<compile_context>
chip_gen: v7x
topology: tpu7x:2x2x1
jax: 0.10.0
libtpu: 0.0.40
codegen_flags: <defaults>
</compile_context>

<pallas_src>
import functools
import math

import jax
import jax.numpy as jnp
from jax.experimental import pallas as pl
from jax.experimental.pallas import tpu as pltpu

F32 = jnp.float32


# ----------------------------------------------------------------------------
# In-kernel helpers (traced inside the Pallas kernel)
# ----------------------------------------------------------------------------
def _gelu(x):
    # tanh approximation of GELU
    c = 0.7978845608028654  # sqrt(2/pi)
    return 0.5 * x * (1.0 + jnp.tanh(c * (x + 0.044715 * x * x * x)))


def _layernorm(z, g, b, eps=1e-5):
    mu = jnp.mean(z, axis=-1, keepdims=True)
    var = jnp.mean((z - mu) * (z - mu), axis=-1, keepdims=True)
    return (z - mu) * jax.lax.rsqrt(var + eps) * g + b


def _dot_nt(a, b):
    # a @ b.T expressed through dot_general dimension numbers (no XLU transpose)
    return jax.lax.dot_general(a, b, (((1,), (1,)), ((), ())),
                               preferred_element_type=F32)


def _circular_conv3(z, w0, w1, w2, bias, perm_ref):
    # y[t] = z[t-1] @ w0 + z[t] @ w1 + z[t+1] @ w2 + bias   (circular along L)
    # perm_ref holds the two constant (L, L) circular-shift matrices (hoisted
    # out of the kernel: no per-step iota/compare construction).
    p_prev = perm_ref[0]
    p_next = perm_ref[1]
    y = jnp.dot(p_prev, jnp.dot(z, w0, preferred_element_type=F32),
                preferred_element_type=F32)
    y = y + jnp.dot(z, w1, preferred_element_type=F32)
    y = y + jnp.dot(p_next, jnp.dot(z, w2, preferred_element_type=F32),
                    preferred_element_type=F32)
    return y + bias


# ----------------------------------------------------------------------------
# The single fused Pallas kernel (per batch item)
# ----------------------------------------------------------------------------
def _informer_kernel(x_ref, tokw_ref, pe_ref,
                     wqkv_ref, bqkv_ref, wo_ref, bo_ref,
                     g1_ref, bt1_ref, w1_ref, b1_ref, w2_ref, b2_ref,
                     g2_ref, bt2_ref, wc_ref, bc_ref,
                     ng_ref, nb_ref, pw_ref, pb_ref,
                     *rest, n_heads, e_layers):
    n_dist = e_layers - 1
    perm_refs = rest[:n_dist]             # circular-shift matrices per distil L
    pool_refs = rest[n_dist:2 * n_dist]   # MaxPool selection matrices per distil L
    o_ref = rest[2 * n_dist]

    D = wqkv_ref.shape[1]
    H = n_heads
    Dh = D // H

    # ---- DataEmbedding: circular token conv (k=3, no bias) + fixed positional ----
    x = x_ref[0]                                              # (L, C_in)
    h = _circular_conv3(x, tokw_ref[0], tokw_ref[1], tokw_ref[2],
                        pe_ref[...], perm_refs[0])            # (L, D)

    # ---- Encoder layers (static Python loop: L shrinks 8 -> 4 -> 2) ----
    for l in range(e_layers):
        Lc = h.shape[0]

        # Fused QKV projection: ONE (Lc, D) @ (D, 3D) matmul.
        # 1/sqrt(Dh) is already folded into the Q columns of wqkv/bqkv.
        qkv = jnp.dot(h, wqkv_ref[l], preferred_element_type=F32) + bqkv_ref[l]

        s_list, v_list = [], []
        for hh in range(H):                                   # static unroll (tiny dots)
            q_h = qkv[:, hh * Dh:(hh + 1) * Dh]
            k_h = qkv[:, D + hh * Dh:D + (hh + 1) * Dh]
            v_list.append(qkv[:, 2 * D + hh * Dh:2 * D + (hh + 1) * Dh])
            s_list.append(_dot_nt(q_h, k_h))                  # (Lc, Lc)

        # Softmax batched across heads: one max/exp/sum/recip for all H heads.
        s = jnp.stack(s_list, axis=0)                         # (H, Lc, Lc)
        s = s - jnp.max(s, axis=-1, keepdims=True)
        pmat = jnp.exp(s)
        pmat = pmat * pl.reciprocal(jnp.sum(pmat, axis=-1, keepdims=True),
                                    approx=True)

        # Head outputs merged once -> single (D, D) output projection matmul.
        o_cat = jnp.concatenate(
            [jnp.dot(pmat[hh], v_list[hh], preferred_element_type=F32)
             for hh in range(H)], axis=-1)                    # (Lc, D)
        attn = jnp.dot(o_cat, wo_ref[l], preferred_element_type=F32) + bo_ref[l]

        # Residual + LayerNorm, position-wise FFN (1x1 convs), residual + LayerNorm.
        x1 = _layernorm(h + attn, g1_ref[l], bt1_ref[l])
        hid = _gelu(jnp.dot(x1, w1_ref[l], preferred_element_type=F32) + b1_ref[l])
        y = jnp.dot(hid, w2_ref[l], preferred_element_type=F32) + b2_ref[l]
        h = _layernorm(x1 + y, g2_ref[l], bt2_ref[l])

        # ---- fused distil ConvLayer: circular conv (BN folded) + ELU + MaxPool(3,2,1) ----
        if l < n_dist:
            wc = wc_ref[l]                                    # (3, D, D)
            yc = _circular_conv3(h, wc[0], wc[1], wc[2], bc_ref[l], perm_refs[l])
            e = jnp.where(yc > 0, yc, jnp.exp(jnp.minimum(yc, 0.0)) - 1.0)  # ELU
            sel = pool_refs[l]                                # (3, Lc//2, Lc) constants
            h = jnp.maximum(
                jnp.maximum(jnp.dot(sel[0], e, preferred_element_type=F32),
                            jnp.dot(sel[1], e, preferred_element_type=F32)),
                jnp.dot(sel[2], e, preferred_element_type=F32))   # (Lc//2, D)

    # ---- final encoder LayerNorm + folded (projection @ projection2) affine ----
    z = _layernorm(h, ng_ref[...], nb_ref[...])               # (L_f, D)
    row = jnp.sum(z * pw_ref[...], axis=-1) + pb_ref[0, 0]    # (L_f,)
    o_ref[0, 0] = row


# ----------------------------------------------------------------------------
# Wrapper
# ----------------------------------------------------------------------------
def _const_spec(a):
    nd = a.ndim
    return pl.BlockSpec(a.shape, lambda b, _n=nd: (0,) * _n)


def informer_forward(params, x_enc, n_heads=4):
    B, L, C_in = x_enc.shape
    E, D, _ = params["wqkv"].shape
    L_f = L >> (E - 1)

    args = [x_enc, params["tok_w"], params["pe"],
            params["wqkv"], params["bqkv"], params["wo"], params["bo"],
            params["g1"], params["bt1"], params["w1"], params["b1"],
            params["w2"], params["b2"], params["g2"], params["bt2"],
            params["wc"], params["bc"],
            params["norm_g"], params["norm_b"], params["proj_w"], params["proj_b"],
            *params["perms"], *params["pools"]]

    in_specs = ([pl.BlockSpec((1, L, C_in), lambda b: (b, 0, 0))]
                + [_const_spec(a) for a in args[1:]])

    kernel = functools.partial(_informer_kernel, n_heads=n_heads, e_layers=E)
    out = pl.pallas_call(
        kernel,
        out_shape=jax.ShapeDtypeStruct((B, 1, L_f), F32),
        grid=(B,),
        in_specs=in_specs,
        out_specs=pl.BlockSpec((1, 1, L_f), lambda b: (b, 0, 0)),
        compiler_params=pltpu.CompilerParams(dimension_semantics=("parallel",)),
    )(*args)
    # matches torch: projection -> squeeze -> projection2 -> squeeze => (B, L_f)
    return out.reshape(B, L_f)


# ----------------------------------------------------------------------------
# Deterministic parameter construction (packed / stacked layouts)
# ----------------------------------------------------------------------------
def _perm_mats(L):
    r = jnp.arange(L)[:, None]
    c = jnp.arange(L)[None, :]
    p_prev = (c == (r - 1) % L).astype(F32)   # (p_prev @ z)[t] = z[t-1 mod L]
    p_next = (c == (r + 1) % L).astype(F32)   # (p_next @ z)[t] = z[t+1 mod L]
    return jnp.stack([p_prev, p_next])        # (2, L, L)


def _pool_mats(L):
    # MaxPool1d(kernel=3, stride=2, padding=1): out[t] = max(e[2t-1], e[2t], e[2t+1]),
    # left pad handled by duplicating e[0] in the 2t-1 selector for row 0.
    Lo = L // 2
    r = jnp.arange(Lo)[:, None]
    c = jnp.arange(L)[None, :]
    s0 = (c == 2 * r).astype(F32)
    s1 = (c == 2 * r + 1).astype(F32)
    sm1 = (c == jnp.maximum(2 * r - 1, 0)).astype(F32)
    return jnp.stack([s0, s1, sm1])           # (3, Lo, L)


def init_params(key, enc_in, c_out, d_model, n_heads, e_layers, d_ff, seq_len):
    keys = iter(jax.random.split(key, 128))
    Dh = d_model // n_heads

    def dense(shape, scale=0.05):
        return jax.random.normal(next(keys), shape, F32) * scale

    p = {}
    # TokenEmbedding Conv1d(enc_in, d_model, k=3, circular, bias=False): taps for
    # x[t-1], x[t], x[t+1] stacked as (3, enc_in, d_model).
    p["tok_w"] = dense((3, enc_in, d_model))

    # PositionalEmbedding (fixed sinusoid)
    pos = jnp.arange(seq_len, dtype=F32)[:, None]
    div = jnp.exp(jnp.arange(0, d_model, 2, dtype=F32)
                  * (-math.log(10000.0) / d_model))
    pe = jnp.zeros((seq_len, d_model), F32)
    pe = pe.at[:, 0::2].set(jnp.sin(pos * div)).at[:, 1::2].set(jnp.cos(pos * div))
    p["pe"] = pe

    E = e_layers
    attn_scale = 1.0 / math.sqrt(Dh)
    wq = dense((E, d_model, d_model))
    wk = dense((E, d_model, d_model))
    wv = dense((E, d_model, d_model))
    bq = dense((E, 1, d_model), 0.01)
    bk = dense((E, 1, d_model), 0.01)
    bv = dense((E, 1, d_model), 0.01)
    # Packed QKV slabs with the 1/sqrt(Dh) attention scale folded into Q.
    p["wqkv"] = jnp.concatenate([wq * attn_scale, wk, wv], axis=-1)   # (E, D, 3D)
    p["bqkv"] = jnp.concatenate([bq * attn_scale, bk, bv], axis=-1)   # (E, 1, 3D)
    p["wo"] = dense((E, d_model, d_model))
    p["bo"] = dense((E, 1, d_model), 0.01)
    p["g1"] = jnp.ones((E, 1, d_model), F32)
    p["bt1"] = jnp.zeros((E, 1, d_model), F32)
    p["g2"] = jnp.ones((E, 1, d_model), F32)
    p["bt2"] = jnp.zeros((E, 1, d_model), F32)
    p["w1"] = dense((E, d_model, d_ff))
    p["b1"] = dense((E, 1, d_ff), 0.01)
    p["w2"] = dense((E, d_ff, d_model))
    p["b2"] = dense((E, 1, d_model), 0.01)

    # Distil ConvLayers (E-1); BatchNorm (eval, default stats) folded in.
    bn_scale = 1.0 / math.sqrt(1.0 + 1e-5)
    p["wc"] = dense((E - 1, 3, d_model, d_model)) * bn_scale
    p["bc"] = dense((E - 1, 1, d_model), 0.01) * bn_scale

    # Constant circular-shift / pooling matrices per distil level (hoisted).
    perms, pools = [], []
    Lc = seq_len
    for _ in range(E - 1):
        perms.append(_perm_mats(Lc))
        pools.append(_pool_mats(Lc))
        Lc //= 2
    p["perms"] = perms
    p["pools"] = pools

    p["norm_g"] = jnp.ones((1, d_model), F32)
    p["norm_b"] = jnp.zeros((1, d_model), F32)

    # projection (d_model -> c_out) then projection2 (c_out -> 1), folded exactly.
    proj_w = dense((d_model, c_out))
    proj_b = dense((1, c_out), 0.01)
    proj2_w = dense((c_out, 1))
    proj2_b = dense((1, 1), 0.01)
    p["proj_w"] = (proj_w @ proj2_w).T                          # (1, d_model)
    p["proj_b"] = proj_b @ proj2_w + proj2_b                    # (1, 1)
    return p


# ----------------------------------------------------------------------------
if __name__ == "__main__":
    # Small, self-consistent shapes:
    #   enc_in=4, d_model=32, n_heads=4, d_ff=32, e_layers=3 (distil),
    #   c_out=10 (so projection2: Linear(10, 1) applies on the channel dim).
    B, L, enc_in = 2, 8, 4
    d_model, n_heads, e_layers, d_ff, c_out = 32, 4, 3, 32, 10

    key = jax.random.PRNGKey(0)
    kp, kx = jax.random.split(key)
    params = init_params(kp, enc_in, c_out, d_model, n_heads, e_layers, d_ff, L)
    x_enc = jax.random.normal(kx, (B, L, enc_in), F32)

    fwd = jax.jit(functools.partial(informer_forward, n_heads=n_heads))
    out = jax.block_until_ready(fwd(params, x_enc))
    assert out.shape == (B, L >> (e_layers - 1))   # L: 8 -> 4 -> 2 through distil
    assert bool(jnp.all(jnp.isfinite(out)))
    print("KERNEL_OK")
</pallas_src>

<mosaic_0001>
module attributes {stable_mosaic.version = 11 : i64} {
  func.func @_informer_kernel(%arg0: i32, %arg1: memref<1x8x4xf32, #tpu.memory_space<vmem>>, %arg2: memref<3x4x32xf32, #tpu.memory_space<vmem>>, %arg3: memref<8x32xf32, #tpu.memory_space<vmem>>, %arg4: memref<3x32x96xf32, #tpu.memory_space<vmem>>, %arg5: memref<3x1x96xf32, #tpu.memory_space<vmem>>, %arg6: memref<3x32x32xf32, #tpu.memory_space<vmem>>, %arg7: memref<3x1x32xf32, #tpu.memory_space<vmem>>, %arg8: memref<3x1x32xf32, #tpu.memory_space<vmem>>, %arg9: memref<3x1x32xf32, #tpu.memory_space<vmem>>, %arg10: memref<3x32x32xf32, #tpu.memory_space<vmem>>, %arg11: memref<3x1x32xf32, #tpu.memory_space<vmem>>, %arg12: memref<3x32x32xf32, #tpu.memory_space<vmem>>, %arg13: memref<3x1x32xf32, #tpu.memory_space<vmem>>, %arg14: memref<3x1x32xf32, #tpu.memory_space<vmem>>, %arg15: memref<3x1x32xf32, #tpu.memory_space<vmem>>, %arg16: memref<2x3x32x32xf32, #tpu.memory_space<vmem>>, %arg17: memref<2x1x32xf32, #tpu.memory_space<vmem>>, %arg18: memref<1x32xf32, #tpu.memory_space<vmem>>, %arg19: memref<1x32xf32, #tpu.memory_space<vmem>>, %arg20: memref<1x32xf32, #tpu.memory_space<vmem>>, %arg21: memref<1x1xf32, #tpu.memory_space<vmem>>, %arg22: memref<2x8x8xf32, #tpu.memory_space<vmem>>, %arg23: memref<2x4x4xf32, #tpu.memory_space<vmem>>, %arg24: memref<3x4x8xf32, #tpu.memory_space<vmem>>, %arg25: memref<3x2x4xf32, #tpu.memory_space<vmem>>, %arg26: memref<1x1x2xf32, #tpu.memory_space<vmem>>) attributes {dimension_semantics = [#tpu.dimension_semantics<parallel>], iteration_bounds = array<i64: 2>, scalar_prefetch = 0 : i64, scratch_operands = 0 : i64, tpu.core_type = #tpu.core_type<tc>, window_params = [{transform_indices = @transform_0, window_bounds = array<i64: 1, 8, 4>}, {pipeline_mode = #tpu.pipeline_mode<synchronous>, transform_indices = @transform_1, window_bounds = array<i64: 3, 4, 32>}, {pipeline_mode = #tpu.pipeline_mode<synchronous>, transform_indices = @transform_2, window_bounds = array<i64: 8, 32>}, {pipeline_mode = #tpu.pipeline_mode<synchronous>, transform_indices = @transform_3, window_bounds = array<i64: 3, 32, 96>}, {pipeline_mode = #tpu.pipeline_mode<synchronous>, transform_indices = @transform_4, window_bounds = array<i64: 3, 1, 96>}, {pipeline_mode = #tpu.pipeline_mode<synchronous>, transform_indices = @transform_5, window_bounds = array<i64: 3, 32, 32>}, {pipeline_mode = #tpu.pipeline_mode<synchronous>, transform_indices = @transform_6, window_bounds = array<i64: 3, 1, 32>}, {pipeline_mode = #tpu.pipeline_mode<synchronous>, transform_indices = @transform_7, window_bounds = array<i64: 3, 1, 32>}, {pipeline_mode = #tpu.pipeline_mode<synchronous>, transform_indices = @transform_8, window_bounds = array<i64: 3, 1, 32>}, {pipeline_mode = #tpu.pipeline_mode<synchronous>, transform_indices = @transform_9, window_bounds = array<i64: 3, 32, 32>}, {pipeline_mode = #tpu.pipeline_mode<synchronous>, transform_indices = @transform_10, window_bounds = array<i64: 3, 1, 32>}, {pipeline_mode = #tpu.pipeline_mode<synchronous>, transform_indices = @transform_11, window_bounds = array<i64: 3, 32, 32>}, {pipeline_mode = #tpu.pipeline_mode<synchronous>, transform_indices = @transform_12, window_bounds = array<i64: 3, 1, 32>}, {pipeline_mode = #tpu.pipeline_mode<synchronous>, transform_indices = @transform_13, window_bounds = array<i64: 3, 1, 32>}, {pipeline_mode = #tpu.pipeline_mode<synchronous>, transform_indices = @transform_14, window_bounds = array<i64: 3, 1, 32>}, {pipeline_mode = #tpu.pipeline_mode<synchronous>, transform_indices = @transform_15, window_bounds = array<i64: 2, 3, 32, 32>}, {pipeline_mode = #tpu.pipeline_mode<synchronous>, transform_indices = @transform_16, window_bounds = array<i64: 2, 1, 32>}, {pipeline_mode = #tpu.pipeline_mode<synchronous>, transform_indices = @transform_17, window_bounds = array<i64: 1, 32>}, {pipeline_mode = #tpu.pipeline_mode<synchronous>, transform_indices = @transform_18, window_bounds = array<i64: 1, 32>}, {pipeline_mode = #tpu.pipeline_mode<synchronous>, transform_indices = @transform_19, window_bounds = array<i64: 1, 32>}, {pipeline_mode = #tpu.pipeline_mode<synchronous>, transform_indices = @transform_20, window_bounds = array<i64: 1, 1>}, {pipeline_mode = #tpu.pipeline_mode<synchronous>, transform_indices = @transform_21, window_bounds = array<i64: 2, 8, 8>}, {pipeline_mode = #tpu.pipeline_mode<synchronous>, transform_indices = @transform_22, window_bounds = array<i64: 2, 4, 4>}, {pipeline_mode = #tpu.pipeline_mode<synchronous>, transform_indices = @transform_23, window_bounds = array<i64: 3, 4, 8>}, {pipeline_mode = #tpu.pipeline_mode<synchronous>, transform_indices = @transform_24, window_bounds = array<i64: 3, 2, 4>}, {transform_indices = @transform_25, window_bounds = array<i64: 1, 1, 2>}]} {
    %c0 = arith.constant 0 : index
    %c0_0 = arith.constant 0 : index
    %c0_1 = arith.constant 0 : index
    %0 = vector.load %arg1[%c0, %c0_0, %c0_1] : memref<1x8x4xf32, #tpu.memory_space<vmem>>, vector<1x8x4xf32>
    %1 = vector.shape_cast %0 : vector<1x8x4xf32> to vector<8x4xf32>
    %c0_2 = arith.constant 0 : index
    %c0_3 = arith.constant 0 : index
    %c0_4 = arith.constant 0 : index
    %2 = vector.load %arg2[%c0_2, %c0_3, %c0_4] : memref<3x4x32xf32, #tpu.memory_space<vmem>>, vector<1x4x32xf32>
    %3 = vector.shape_cast %2 : vector<1x4x32xf32> to vector<4x32xf32>
    %c1 = arith.constant 1 : index
    %c0_5 = arith.constant 0 : index
    %c0_6 = arith.constant 0 : index
    %4 = vector.load %arg2[%c1, %c0_5, %c0_6] : memref<3x4x32xf32, #tpu.memory_space<vmem>>, vector<1x4x32xf32>
    %5 = vector.shape_cast %4 : vector<1x4x32xf32> to vector<4x32xf32>
    %c2 = arith.constant 2 : index
    %c0_7 = arith.constant 0 : index
    %c0_8 = arith.constant 0 : index
    %6 = vector.load %arg2[%c2, %c0_7, %c0_8] : memref<3x4x32xf32, #tpu.memory_space<vmem>>, vector<1x4x32xf32>
    %7 = vector.shape_cast %6 : vector<1x4x32xf32> to vector<4x32xf32>
    %c0_9 = arith.constant 0 : index
    %c0_10 = arith.constant 0 : index
    %8 = vector.load %arg3[%c0_9, %c0_10] : memref<8x32xf32, #tpu.memory_space<vmem>>, vector<8x32xf32>
    %c0_11 = arith.constant 0 : index
    %c0_12 = arith.constant 0 : index
    %c0_13 = arith.constant 0 : index
    %9 = vector.load %arg22[%c0_11, %c0_12, %c0_13] : memref<2x8x8xf32, #tpu.memory_space<vmem>>, vector<1x8x8xf32>
    %10 = vector.shape_cast %9 : vector<1x8x8xf32> to vector<8x8xf32>
    %c1_14 = arith.constant 1 : index
    %c0_15 = arith.constant 0 : index
    %c0_16 = arith.constant 0 : index
    %11 = vector.load %arg22[%c1_14, %c0_15, %c0_16] : memref<2x8x8xf32, #tpu.memory_space<vmem>>, vector<1x8x8xf32>
    %12 = vector.shape_cast %11 : vector<1x8x8xf32> to vector<8x8xf32>
    %cst = arith.constant dense<0.000000e+00> : vector<8x32xf32>
    %13 = tpu.matmul %1, %3, %cst {dimension_numbers = #tpu.dot_dimension_numbers<[1], [0], [0], [1], [0, 0, 1, 1], [], []>} : vector<8x4xf32>, vector<4x32xf32>, vector<8x32xf32> -> vector<8x32xf32>
    %cst_17 = arith.constant dense<0.000000e+00> : vector<8x32xf32>
    %14 = tpu.matmul %10, %13, %cst_17 {dimension_numbers = #tpu.dot_dimension_numbers<[1], [0], [0], [1], [0, 0, 1, 1], [], []>} : vector<8x8xf32>, vector<8x32xf32>, vector<8x32xf32> -> vector<8x32xf32>
    %cst_18 = arith.constant dense<0.000000e+00> : vector<8x32xf32>
    %15 = tpu.matmul %1, %5, %cst_18 {dimension_numbers = #tpu.dot_dimension_numbers<[1], [0], [0], [1], [0, 0, 1, 1], [], []>} : vector<8x4xf32>, vector<4x32xf32>, vector<8x32xf32> -> vector<8x32xf32>
    %16 = arith.addf %14, %15 : vector<8x32xf32>
    %cst_19 = arith.constant dense<0.000000e+00> : vector<8x32xf32>
    %17 = tpu.matmul %1, %7, %cst_19 {dimension_numbers = #tpu.dot_dimension_numbers<[1], [0], [0], [1], [0, 0, 1, 1], [], []>} : vector<8x4xf32>, vector<4x32xf32>, vector<8x32xf32> -> vector<8x32xf32>
    %cst_20 = arith.constant dense<0.000000e+00> : vector<8x32xf32>
    %18 = tpu.matmul %12, %17, %cst_20 {dimension_numbers = #tpu.dot_dimension_numbers<[1], [0], [0], [1], [0, 0, 1, 1], [], []>} : vector<8x8xf32>, vector<8x32xf32>, vector<8x32xf32> -> vector<8x32xf32>
    %19 = arith.addf %16, %18 : vector<8x32xf32>
    %20 = arith.addf %19, %8 : vector<8x32xf32>
    %c0_21 = arith.constant 0 : index
    %c0_22 = arith.constant 0 : index
    %c0_23 = arith.constant 0 : index
    %21 = vector.load %arg4[%c0_21, %c0_22, %c0_23] : memref<3x32x96xf32, #tpu.memory_space<vmem>>, vector<1x32x96xf32>
    %22 = vector.shape_cast %21 : vector<1x32x96xf32> to vector<32x96xf32>
    %cst_24 = arith.constant dense<0.000000e+00> : vector<8x96xf32>
    %23 = tpu.matmul %20, %22, %cst_24 {dimension_numbers = #tpu.dot_dimension_numbers<[1], [0], [0], [1], [0, 0, 1, 1], [], []>} : vector<8x32xf32>, vector<32x96xf32>, vector<8x96xf32> -> vector<8x96xf32>
    %c0_25 = arith.constant 0 : index
    %c0_26 = arith.constant 0 : index
    %c0_27 = arith.constant 0 : index
    %24 = vector.load %arg5[%c0_25, %c0_26, %c0_27] : memref<3x1x96xf32, #tpu.memory_space<vmem>>, vector<1x1x96xf32>
    %25 = vector.shape_cast %24 : vector<1x1x96xf32> to vector<1x96xf32>
    %26 = vector.broadcast %25 : vector<1x96xf32> to vector<8x96xf32>
    %27 = arith.addf %23, %26 : vector<8x96xf32>
    %28 = vector.extract_strided_slice %27 {offsets = [0, 0], sizes = [8, 8], strides = [1, 1]} : vector<8x96xf32> to vector<8x8xf32>
    %29 = vector.extract_strided_slice %27 {offsets = [0, 32], sizes = [8, 8], strides = [1, 1]} : vector<8x96xf32> to vector<8x8xf32>
    %30 = vector.extract_strided_slice %27 {offsets = [0, 64], sizes = [8, 8], strides = [1, 1]} : vector<8x96xf32> to vector<8x8xf32>
    %cst_28 = arith.constant dense<0.000000e+00> : vector<8x8xf32>
    %31 = tpu.matmul %28, %29, %cst_28 {dimension_numbers = #tpu.dot_dimension_numbers<[1], [1], [0], [0], [0, 0, 1, 0], [], []>} : vector<8x8xf32>, vector<8x8xf32>, vector<8x8xf32> -> vector<8x8xf32>
    %32 = vector.extract_strided_slice %27 {offsets = [0, 8], sizes = [8, 8], strides = [1, 1]} : vector<8x96xf32> to vector<8x8xf32>
    %33 = vector.extract_strided_slice %27 {offsets = [0, 40], sizes = [8, 8], strides = [1, 1]} : vector<8x96xf32> to vector<8x8xf32>
    %34 = vector.extract_strided_slice %27 {offsets = [0, 72], sizes = [8, 8], strides = [1, 1]} : vector<8x96xf32> to vector<8x8xf32>
    %cst_29 = arith.constant dense<0.000000e+00> : vector<8x8xf32>
    %35 = tpu.matmul %32, %33, %cst_29 {dimension_numbers = #tpu.dot_dimension_numbers<[1], [1], [0], [0], [0, 0, 1, 0], [], []>} : vector<8x8xf32>, vector<8x8xf32>, vector<8x8xf32> -> vector<8x8xf32>
    %36 = vector.extract_strided_slice %27 {offsets = [0, 16], sizes = [8, 8], strides = [1, 1]} : vector<8x96xf32> to vector<8x8xf32>
    %37 = vector.extract_strided_slice %27 {offsets = [0, 48], sizes = [8, 8], strides = [1, 1]} : vector<8x96xf32> to vector<8x8xf32>
    %38 = vector.extract_strided_slice %27 {offsets = [0, 80], sizes = [8, 8], strides = [1, 1]} : vector<8x96xf32> to vector<8x8xf32>
    %cst_30 = arith.constant dense<0.000000e+00> : vector<8x8xf32>
    %39 = tpu.matmul %36, %37, %cst_30 {dimension_numbers = #tpu.dot_dimension_numbers<[1], [1], [0], [0], [0, 0, 1, 0], [], []>} : vector<8x8xf32>, vector<8x8xf32>, vector<8x8xf32> -> vector<8x8xf32>
    %40 = vector.extract_strided_slice %27 {offsets = [0, 24], sizes = [8, 8], strides = [1, 1]} : vector<8x96xf32> to vector<8x8xf32>
    %41 = vector.extract_strided_slice %27 {offsets = [0, 56], sizes = [8, 8], strides = [1, 1]} : vector<8x96xf32> to vector<8x8xf32>
    %42 = vector.extract_strided_slice %27 {offsets = [0, 88], sizes = [8, 8], strides = [1, 1]} : vector<8x96xf32> to vector<8x8xf32>
    %cst_31 = arith.constant dense<0.000000e+00> : vector<8x8xf32>
    %43 = tpu.matmul %40, %41, %cst_31 {dimension_numbers = #tpu.dot_dimension_numbers<[1], [1], [0], [0], [0, 0, 1, 0], [], []>} : vector<8x8xf32>, vector<8x8xf32>, vector<8x8xf32> -> vector<8x8xf32>
    %44 = vector.shape_cast %31 : vector<8x8xf32> to vector<1x8x8xf32>
    %45 = vector.shape_cast %35 : vector<8x8xf32> to vector<1x8x8xf32>
    %46 = vector.shape_cast %39 : vector<8x8xf32> to vector<1x8x8xf32>
    %47 = vector.shape_cast %43 : vector<8x8xf32> to vector<1x8x8xf32>
    %48 = tpu.concatenate %44, %45, %46, %47 in 0 : vector<1x8x8xf32>, vector<1x8x8xf32>, vector<1x8x8xf32>, vector<1x8x8xf32> -> vector<4x8x8xf32>
    %cst_32 = arith.constant dense<0xFF800000> : vector<4x8xf32>
    %49 = vector.multi_reduction <maximumf>, %48, %cst_32 [2] : vector<4x8x8xf32> to vector<4x8xf32>
    %50 = vector.shape_cast %49 : vector<4x8xf32> to vector<4x8x1xf32>
    %51 = vector.broadcast %50 : vector<4x8x1xf32> to vector<4x8x8xf32>
    %52 = arith.subf %48, %51 : vector<4x8x8xf32>
    %53 = math.exp %52 : vector<4x8x8xf32>
    %cst_33 = arith.constant dense<0.000000e+00> : vector<4x8xf32>
    %54 = vector.multi_reduction <add>, %53, %cst_33 [2] : vector<4x8x8xf32> to vector<4x8xf32>
    %55 = vector.shape_cast %54 : vector<4x8xf32> to vector<4x8x1xf32>
    %56 = tpu.reciprocal %55 {approx = true} : vector<4x8x1xf32> -> vector<4x8x1xf32>
    %57 = vector.broadcast %56 : vector<4x8x1xf32> to vector<4x8x8xf32>
    %58 = arith.mulf %53, %57 : vector<4x8x8xf32>
    %59 = vector.extract_strided_slice %58 {offsets = [0, 0, 0], sizes = [1, 8, 8], strides = [1, 1, 1]} : vector<4x8x8xf32> to vector<1x8x8xf32>
    %60 = vector.shape_cast %59 : vector<1x8x8xf32> to vector<8x8xf32>
    %cst_34 = arith.constant dense<0.000000e+00> : vector<8x8xf32>
    %61 = tpu.matmul %60, %30, %cst_34 {dimension_numbers = #tpu.dot_dimension_numbers<[1], [0], [0], [1], [0, 0, 1, 1], [], []>} : vector<8x8xf32>, vector<8x8xf32>, vector<8x8xf32> -> vector<8x8xf32>
    %62 = vector.extract_strided_slice %58 {offsets = [1, 0, 0], sizes = [1, 8, 8], strides = [1, 1, 1]} : vector<4x8x8xf32> to vector<1x8x8xf32>
    %63 = vector.shape_cast %62 : vector<1x8x8xf32> to vector<8x8xf32>
    %cst_35 = arith.constant dense<0.000000e+00> : vector<8x8xf32>
    %64 = tpu.matmul %63, %34, %cst_35 {dimension_numbers = #tpu.dot_dimension_numbers<[1], [0], [0], [1], [0, 0, 1, 1], [], []>} : vector<8x8xf32>, vector<8x8xf32>, vector<8x8xf32> -> vector<8x8xf32>
    %65 = vector.extract_strided_slice %58 {offsets = [2, 0, 0], sizes = [1, 8, 8], strides = [1, 1, 1]} : vector<4x8x8xf32> to vector<1x8x8xf32>
    %66 = vector.shape_cast %65 : vector<1x8x8xf32> to vector<8x8xf32>
    %cst_36 = arith.constant dense<0.000000e+00> : vector<8x8xf32>
    %67 = tpu.matmul %66, %38, %cst_36 {dimension_numbers = #tpu.dot_dimension_numbers<[1], [0], [0], [1], [0, 0, 1, 1], [], []>} : vector<8x8xf32>, vector<8x8xf32>, vector<8x8xf32> -> vector<8x8xf32>
    %68 = vector.extract_strided_slice %58 {offsets = [3, 0, 0], sizes = [1, 8, 8], strides = [1, 1, 1]} : vector<4x8x8xf32> to vector<1x8x8xf32>
    %69 = vector.shape_cast %68 : vector<1x8x8xf32> to vector<8x8xf32>
    %cst_37 = arith.constant dense<0.000000e+00> : vector<8x8xf32>
    %70 = tpu.matmul %69, %42, %cst_37 {dimension_numbers = #tpu.dot_dimension_numbers<[1], [0], [0], [1], [0, 0, 1, 1], [], []>} : vector<8x8xf32>, vector<8x8xf32>, vector<8x8xf32> -> vector<8x8xf32>
    %71 = tpu.concatenate %61, %64, %67, %70 in 1 : vector<8x8xf32>, vector<8x8xf32>, vector<8x8xf32>, vector<8x8xf32> -> vector<8x32xf32>
    %c0_38 = arith.constant 0 : index
    %c0_39 = arith.constant 0 : index
    %c0_40 = arith.constant 0 : index
    %72 = vector.load %arg6[%c0_38, %c0_39, %c0_40] : memref<3x32x32xf32, #tpu.memory_space<vmem>>, vector<1x32x32xf32>
    %73 = vector.shape_cast %72 : vector<1x32x32xf32> to vector<32x32xf32>
    %cst_41 = arith.constant dense<0.000000e+00> : vector<8x32xf32>
    %74 = tpu.matmul %71, %73, %cst_41 {dimension_numbers = #tpu.dot_dimension_numbers<[1], [0], [0], [1], [0, 0, 1, 1], [], []>} : vector<8x32xf32>, vector<32x32xf32>, vector<8x32xf32> -> vector<8x32xf32>
    %c0_42 = arith.constant 0 : index
    %c0_43 = arith.constant 0 : index
    %c0_44 = arith.constant 0 : index
    %75 = vector.load %arg7[%c0_42, %c0_43, %c0_44] : memref<3x1x32xf32, #tpu.memory_space<vmem>>, vector<1x1x32xf32>
    %76 = vector.shape_cast %75 : vector<1x1x32xf32> to vector<1x32xf32>
    %77 = vector.broadcast %76 : vector<1x32xf32> to vector<8x32xf32>
    %78 = arith.addf %74, %77 : vector<8x32xf32>
    %79 = arith.addf %20, %78 : vector<8x32xf32>
    %c0_45 = arith.constant 0 : index
    %c0_46 = arith.constant 0 : index
    %c0_47 = arith.constant 0 : index
    %80 = vector.load %arg8[%c0_45, %c0_46, %c0_47] : memref<3x1x32xf32, #tpu.memory_space<vmem>>, vector<1x1x32xf32>
    %81 = vector.shape_cast %80 : vector<1x1x32xf32> to vector<1x32xf32>
    %c0_48 = arith.constant 0 : index
    %c0_49 = arith.constant 0 : index
    %c0_50 = arith.constant 0 : index
    %82 = vector.load %arg9[%c0_48, %c0_49, %c0_50] : memref<3x1x32xf32, #tpu.memory_space<vmem>>, vector<1x1x32xf32>
    %83 = vector.shape_cast %82 : vector<1x1x32xf32> to vector<1x32xf32>
    %cst_51 = arith.constant dense<0.000000e+00> : vector<8xf32>
    %84 = vector.multi_reduction <add>, %79, %cst_51 [1] : vector<8x32xf32> to vector<8xf32>
    %85 = vector.shape_cast %84 : vector<8xf32> to vector<8x1xf32>
    %cst_52 = arith.constant 3.200000e+01 : f32
    %86 = vector.broadcast %cst_52 : f32 to vector<8x1xf32>
    %87 = arith.divf %85, %86 : vector<8x1xf32>
    %88 = vector.broadcast %87 : vector<8x1xf32> to vector<8x32xf32>
    %89 = arith.subf %79, %88 : vector<8x32xf32>
    %90 = vector.broadcast %87 : vector<8x1xf32> to vector<8x32xf32>
    %91 = arith.subf %79, %90 : vector<8x32xf32>
    %92 = arith.mulf %89, %91 : vector<8x32xf32>
    %cst_53 = arith.constant dense<0.000000e+00> : vector<8xf32>
    %93 = vector.multi_reduction <add>, %92, %cst_53 [1] : vector<8x32xf32> to vector<8xf32>
    %94 = vector.shape_cast %93 : vector<8xf32> to vector<8x1xf32>
    %cst_54 = arith.constant 3.200000e+01 : f32
    %95 = vector.broadcast %cst_54 : f32 to vector<8x1xf32>
    %96 = arith.divf %94, %95 : vector<8x1xf32>
    %97 = vector.broadcast %87 : vector<8x1xf32> to vector<8x32xf32>
    %98 = arith.subf %79, %97 : vector<8x32xf32>
    %cst_55 = arith.constant 9.99999974E-6 : f32
    %99 = vector.broadcast %cst_55 : f32 to vector<8x1xf32>
    %100 = arith.addf %96, %99 : vector<8x1xf32>
    %101 = math.rsqrt %100 : vector<8x1xf32>
    %102 = vector.broadcast %101 : vector<8x1xf32> to vector<8x32xf32>
    %103 = arith.mulf %98, %102 : vector<8x32xf32>
    %104 = vector.broadcast %81 : vector<1x32xf32> to vector<8x32xf32>
    %105 = arith.mulf %103, %104 : vector<8x32xf32>
    %106 = vector.broadcast %83 : vector<1x32xf32> to vector<8x32xf32>
    %107 = arith.addf %105, %106 : vector<8x32xf32>
    %c0_56 = arith.constant 0 : index
    %c0_57 = arith.constant 0 : index
    %c0_58 = arith.constant 0 : index
    %108 = vector.load %arg10[%c0_56, %c0_57, %c0_58] : memref<3x32x32xf32, #tpu.memory_space<vmem>>, vector<1x32x32xf32>
    %109 = vector.shape_cast %108 : vector<1x32x32xf32> to vector<32x32xf32>
    %cst_59 = arith.constant dense<0.000000e+00> : vector<8x32xf32>
    %110 = tpu.matmul %107, %109, %cst_59 {dimension_numbers = #tpu.dot_dimension_numbers<[1], [0], [0], [1], [0, 0, 1, 1], [], []>} : vector<8x32xf32>, vector<32x32xf32>, vector<8x32xf32> -> vector<8x32xf32>
    %c0_60 = arith.constant 0 : index
    %c0_61 = arith.constant 0 : index
    %c0_62 = arith.constant 0 : index
    %111 = vector.load %arg11[%c0_60, %c0_61, %c0_62] : memref<3x1x32xf32, #tpu.memory_space<vmem>>, vector<1x1x32xf32>
    %112 = vector.shape_cast %111 : vector<1x1x32xf32> to vector<1x32xf32>
    %113 = vector.broadcast %112 : vector<1x32xf32> to vector<8x32xf32>
    %114 = arith.addf %110, %113 : vector<8x32xf32>
    %cst_63 = arith.constant 5.000000e-01 : f32
    %115 = vector.broadcast %cst_63 : f32 to vector<8x32xf32>
    %116 = arith.mulf %115, %114 : vector<8x32xf32>
    %cst_64 = arith.constant 4.471500e-02 : f32
    %117 = vector.broadcast %cst_64 : f32 to vector<8x32xf32>
    %118 = arith.mulf %117, %114 : vector<8x32xf32>
    %119 = arith.mulf %118, %114 : vector<8x32xf32>
    %120 = arith.mulf %119, %114 : vector<8x32xf32>
    %121 = arith.addf %114, %120 : vector<8x32xf32>
    %cst_65 = arith.constant 0.797884583 : f32
    %122 = vector.broadcast %cst_65 : f32 to vector<8x32xf32>
    %123 = arith.mulf %122, %121 : vector<8x32xf32>
    %124 = math.tanh %123 : vector<8x32xf32>
    %cst_66 = arith.constant 1.000000e+00 : f32
    %125 = vector.broadcast %cst_66 : f32 to vector<8x32xf32>
    %126 = arith.addf %125, %124 : vector<8x32xf32>
    %127 = arith.mulf %116, %126 : vector<8x32xf32>
    %c0_67 = arith.constant 0 : index
    %c0_68 = arith.constant 0 : index
    %c0_69 = arith.constant 0 : index
    %128 = vector.load %arg12[%c0_67, %c0_68, %c0_69] : memref<3x32x32xf32, #tpu.memory_space<vmem>>, vector<1x32x32xf32>
    %129 = vector.shape_cast %128 : vector<1x32x32xf32> to vector<32x32xf32>
    %cst_70 = arith.constant dense<0.000000e+00> : vector<8x32xf32>
    %130 = tpu.matmul %127, %129, %cst_70 {dimension_numbers = #tpu.dot_dimension_numbers<[1], [0], [0], [1], [0, 0, 1, 1], [], []>} : vector<8x32xf32>, vector<32x32xf32>, vector<8x32xf32> -> vector<8x32xf32>
    %c0_71 = arith.constant 0 : index
    %c0_72 = arith.constant 0 : index
    %c0_73 = arith.constant 0 : index
    %131 = vector.load %arg13[%c0_71, %c0_72, %c0_73] : memref<3x1x32xf32, #tpu.memory_space<vmem>>, vector<1x1x32xf32>
    %132 = vector.shape_cast %131 : vector<1x1x32xf32> to vector<1x32xf32>
    %133 = vector.broadcast %132 : vector<1x32xf32> to vector<8x32xf32>
    %134 = arith.addf %130, %133 : vector<8x32xf32>
    %135 = arith.addf %107, %134 : vector<8x32xf32>
    %c0_74 = arith.constant 0 : index
    %c0_75 = arith.constant 0 : index
    %c0_76 = arith.constant 0 : index
    %136 = vector.load %arg14[%c0_74, %c0_75, %c0_76] : memref<3x1x32xf32, #tpu.memory_space<vmem>>, vector<1x1x32xf32>
    %137 = vector.shape_cast %136 : vector<1x1x32xf32> to vector<1x32xf32>
    %c0_77 = arith.constant 0 : index
    %c0_78 = arith.constant 0 : index
    %c0_79 = arith.constant 0 : index
    %138 = vector.load %arg15[%c0_77, %c0_78, %c0_79] : memref<3x1x32xf32, #tpu.memory_space<vmem>>, vector<1x1x32xf32>
    %139 = vector.shape_cast %138 : vector<1x1x32xf32> to vector<1x32xf32>
    %cst_80 = arith.constant dense<0.000000e+00> : vector<8xf32>
    %140 = vector.multi_reduction <add>, %135, %cst_80 [1] : vector<8x32xf32> to vector<8xf32>
    %141 = vector.shape_cast %140 : vector<8xf32> to vector<8x1xf32>
    %cst_81 = arith.constant 3.200000e+01 : f32
    %142 = vector.broadcast %cst_81 : f32 to vector<8x1xf32>
    %143 = arith.divf %141, %142 : vector<8x1xf32>
    %144 = vector.broadcast %143 : vector<8x1xf32> to vector<8x32xf32>
    %145 = arith.subf %135, %144 : vector<8x32xf32>
    %146 = vector.broadcast %143 : vector<8x1xf32> to vector<8x32xf32>
    %147 = arith.subf %135, %146 : vector<8x32xf32>
    %148 = arith.mulf %145, %147 : vector<8x32xf32>
    %cst_82 = arith.constant dense<0.000000e+00> : vector<8xf32>
    %149 = vector.multi_reduction <add>, %148, %cst_82 [1] : vector<8x32xf32> to vector<8xf32>
    %150 = vector.shape_cast %149 : vector<8xf32> to vector<8x1xf32>
    %cst_83 = arith.constant 3.200000e+01 : f32
    %151 = vector.broadcast %cst_83 : f32 to vector<8x1xf32>
    %152 = arith.divf %150, %151 : vector<8x1xf32>
    %153 = vector.broadcast %143 : vector<8x1xf32> to vector<8x32xf32>
    %154 = arith.subf %135, %153 : vector<8x32xf32>
    %cst_84 = arith.constant 9.99999974E-6 : f32
    %155 = vector.broadcast %cst_84 : f32 to vector<8x1xf32>
    %156 = arith.addf %152, %155 : vector<8x1xf32>
    %157 = math.rsqrt %156 : vector<8x1xf32>
    %158 = vector.broadcast %157 : vector<8x1xf32> to vector<8x32xf32>
    %159 = arith.mulf %154, %158 : vector<8x32xf32>
    %160 = vector.broadcast %137 : vector<1x32xf32> to vector<8x32xf32>
    %161 = arith.mulf %159, %160 : vector<8x32xf32>
    %162 = vector.broadcast %139 : vector<1x32xf32> to vector<8x32xf32>
    %163 = arith.addf %161, %162 : vector<8x32xf32>
    %c0_85 = arith.constant 0 : index
    %c0_86 = arith.constant 0 : index
    %c0_87 = arith.constant 0 : index
    %c0_88 = arith.constant 0 : index
    %164 = vector.load %arg16[%c0_85, %c0_86, %c0_87, %c0_88] : memref<2x3x32x32xf32, #tpu.memory_space<vmem>>, vector<1x3x32x32xf32>
    %165 = vector.shape_cast %164 : vector<1x3x32x32xf32> to vector<3x32x32xf32>
    %166 = vector.extract_strided_slice %165 {offsets = [0, 0, 0], sizes = [1, 32, 32], strides = [1, 1, 1]} : vector<3x32x32xf32> to vector<1x32x32xf32>
    %167 = vector.shape_cast %166 : vector<1x32x32xf32> to vector<32x32xf32>
    %168 = vector.extract_strided_slice %165 {offsets = [1, 0, 0], sizes = [1, 32, 32], strides = [1, 1, 1]} : vector<3x32x32xf32> to vector<1x32x32xf32>
    %169 = vector.shape_cast %168 : vector<1x32x32xf32> to vector<32x32xf32>
    %170 = vector.extract_strided_slice %165 {offsets = [2, 0, 0], sizes = [1, 32, 32], strides = [1, 1, 1]} : vector<3x32x32xf32> to vector<1x32x32xf32>
    %171 = vector.shape_cast %170 : vector<1x32x32xf32> to vector<32x32xf32>
    %c0_89 = arith.constant 0 : index
    %c0_90 = arith.constant 0 : index
    %c0_91 = arith.constant 0 : index
    %172 = vector.load %arg17[%c0_89, %c0_90, %c0_91] : memref<2x1x32xf32, #tpu.memory_space<vmem>>, vector<1x1x32xf32>
    %173 = vector.shape_cast %172 : vector<1x1x32xf32> to vector<1x32xf32>
    %c0_92 = arith.constant 0 : index
    %c0_93 = arith.constant 0 : index
    %c0_94 = arith.constant 0 : index
    %174 = vector.load %arg22[%c0_92, %c0_93, %c0_94] : memref<2x8x8xf32, #tpu.memory_space<vmem>>, vector<1x8x8xf32>
    %175 = vector.shape_cast %174 : vector<1x8x8xf32> to vector<8x8xf32>
    %c1_95 = arith.constant 1 : index
    %c0_96 = arith.constant 0 : index
    %c0_97 = arith.constant 0 : index
    %176 = vector.load %arg22[%c1_95, %c0_96, %c0_97] : memref<2x8x8xf32, #tpu.memory_space<vmem>>, vector<1x8x8xf32>
    %177 = vector.shape_cast %176 : vector<1x8x8xf32> to vector<8x8xf32>
    %cst_98 = arith.constant dense<0.000000e+00> : vector<8x32xf32>
    %178 = tpu.matmul %163, %167, %cst_98 {dimension_numbers = #tpu.dot_dimension_numbers<[1], [0], [0], [1], [0, 0, 1, 1], [], []>} : vector<8x32xf32>, vector<32x32xf32>, vector<8x32xf32> -> vector<8x32xf32>
    %cst_99 = arith.constant dense<0.000000e+00> : vector<8x32xf32>
    %179 = tpu.matmul %175, %178, %cst_99 {dimension_numbers = #tpu.dot_dimension_numbers<[1], [0], [0], [1], [0, 0, 1, 1], [], []>} : vector<8x8xf32>, vector<8x32xf32>, vector<8x32xf32> -> vector<8x32xf32>
    %cst_100 = arith.constant dense<0.000000e+00> : vector<8x32xf32>
    %180 = tpu.matmul %163, %169, %cst_100 {dimension_numbers = #tpu.dot_dimension_numbers<[1], [0], [0], [1], [0, 0, 1, 1], [], []>} : vector<8x32xf32>, vector<32x32xf32>, vector<8x32xf32> -> vector<8x32xf32>
    %181 = arith.addf %179, %180 : vector<8x32xf32>
    %cst_101 = arith.constant dense<0.000000e+00> : vector<8x32xf32>
    %182 = tpu.matmul %163, %171, %cst_101 {dimension_numbers = #tpu.dot_dimension_numbers<[1], [0], [0], [1], [0, 0, 1, 1], [], []>} : vector<8x32xf32>, vector<32x32xf32>, vector<8x32xf32> -> vector<8x32xf32>
    %cst_102 = arith.constant dense<0.000000e+00> : vector<8x32xf32>
    %183 = tpu.matmul %177, %182, %cst_102 {dimension_numbers = #tpu.dot_dimension_numbers<[1], [0], [0], [1], [0, 0, 1, 1], [], []>} : vector<8x8xf32>, vector<8x32xf32>, vector<8x32xf32> -> vector<8x32xf32>
    %184 = arith.addf %181, %183 : vector<8x32xf32>
    %185 = vector.broadcast %173 : vector<1x32xf32> to vector<8x32xf32>
    %186 = arith.addf %184, %185 : vector<8x32xf32>
    %cst_103 = arith.constant 0.000000e+00 : f32
    %187 = vector.broadcast %cst_103 : f32 to vector<8x32xf32>
    %188 = arith.cmpf ogt, %186, %187 : vector<8x32xf32>
    %cst_104 = arith.constant 0.000000e+00 : f32
    %189 = vector.broadcast %cst_104 : f32 to vector<8x32xf32>
    %190 = arith.minimumf %186, %189 : vector<8x32xf32>
    %191 = math.exp %190 : vector<8x32xf32>
    %cst_105 = arith.constant 1.000000e+00 : f32
    %192 = vector.broadcast %cst_105 : f32 to vector<8x32xf32>
    %193 = arith.subf %191, %192 : vector<8x32xf32>
    %194 = arith.select %188, %186, %193 : vector<8x32xi1>, vector<8x32xf32>
    %c0_106 = arith.constant 0 : index
    %c0_107 = arith.constant 0 : index
    %c0_108 = arith.constant 0 : index
    %195 = vector.load %arg24[%c0_106, %c0_107, %c0_108] : memref<3x4x8xf32, #tpu.memory_space<vmem>>, vector<1x4x8xf32>
    %196 = vector.shape_cast %195 : vector<1x4x8xf32> to vector<4x8xf32>
    %cst_109 = arith.constant dense<0.000000e+00> : vector<4x32xf32>
    %197 = tpu.matmul %196, %194, %cst_109 {dimension_numbers = #tpu.dot_dimension_numbers<[1], [0], [0], [1], [0, 0, 1, 1], [], []>} : vector<4x8xf32>, vector<8x32xf32>, vector<4x32xf32> -> vector<4x32xf32>
    %c1_110 = arith.constant 1 : index
    %c0_111 = arith.constant 0 : index
    %c0_112 = arith.constant 0 : index
    %198 = vector.load %arg24[%c1_110, %c0_111, %c0_112] : memref<3x4x8xf32, #tpu.memory_space<vmem>>, vector<1x4x8xf32>
    %199 = vector.shape_cast %198 : vector<1x4x8xf32> to vector<4x8xf32>
    %cst_113 = arith.constant dense<0.000000e+00> : vector<4x32xf32>
    %200 = tpu.matmul %199, %194, %cst_113 {dimension_numbers = #tpu.dot_dimension_numbers<[1], [0], [0], [1], [0, 0, 1, 1], [], []>} : vector<4x8xf32>, vector<8x32xf32>, vector<4x32xf32> -> vector<4x32xf32>
    %201 = arith.maximumf %197, %200 : vector<4x32xf32>
    %c2_114 = arith.constant 2 : index
    %c0_115 = arith.constant 0 : index
    %c0_116 = arith.constant 0 : index
    %202 = vector.load %arg24[%c2_114, %c0_115, %c0_116] : memref<3x4x8xf32, #tpu.memory_space<vmem>>, vector<1x4x8xf32>
    %203 = vector.shape_cast %202 : vector<1x4x8xf32> to vector<4x8xf32>
    %cst_117 = arith.constant dense<0.000000e+00> : vector<4x32xf32>
    %204 = tpu.matmul %203, %194, %cst_117 {dimension_numbers = #tpu.dot_dimension_numbers<[1], [0], [0], [1], [0, 0, 1, 1], [], []>} : vector<4x8xf32>, vector<8x32xf32>, vector<4x32xf32> -> vector<4x32xf32>
    %205 = arith.maximumf %201, %204 : vector<4x32xf32>
    %c1_118 = arith.constant 1 : index
    %c0_119 = arith.constant 0 : index
    %c0_120 = arith.constant 0 : index
    %206 = vector.load %arg4[%c1_118, %c0_119, %c0_120] : memref<3x32x96xf32, #tpu.memory_space<vmem>>, vector<1x32x96xf32>
    %207 = vector.shape_cast %206 : vector<1x32x96xf32> to vector<32x96xf32>
    %cst_121 = arith.constant dense<0.000000e+00> : vector<4x96xf32>
    %208 = tpu.matmul %205, %207, %cst_121 {dimension_numbers = #tpu.dot_dimension_numbers<[1], [0], [0], [1], [0, 0, 1, 1], [], []>} : vector<4x32xf32>, vector<32x96xf32>, vector<4x96xf32> -> vector<4x96xf32>
    %c1_122 = arith.constant 1 : index
    %c0_123 = arith.constant 0 : index
    %c0_124 = arith.constant 0 : index
    %209 = vector.load %arg5[%c1_122, %c0_123, %c0_124] : memref<3x1x96xf32, #tpu.memory_space<vmem>>, vector<1x1x96xf32>
    %210 = vector.shape_cast %209 : vector<1x1x96xf32> to vector<1x96xf32>
    %211 = vector.broadcast %210 : vector<1x96xf32> to vector<4x96xf32>
    %212 = arith.addf %208, %211 : vector<4x96xf32>
    %213 = vector.extract_strided_slice %212 {offsets = [0, 0], sizes = [4, 8], strides = [1, 1]} : vector<4x96xf32> to vector<4x8xf32>
    %214 = vector.extract_strided_slice %212 {offsets = [0, 32], sizes = [4, 8], strides = [1, 1]} : vector<4x96xf32> to vector<4x8xf32>
    %215 = vector.extract_strided_slice %212 {offsets = [0, 64], sizes = [4, 8], strides = [1, 1]} : vector<4x96xf32> to vector<4x8xf32>
    %cst_125 = arith.constant dense<0.000000e+00> : vector<4x4xf32>
    %216 = tpu.matmul %213, %214, %cst_125 {dimension_numbers = #tpu.dot_dimension_numbers<[1], [1], [0], [0], [0, 0, 1, 0], [], []>} : vector<4x8xf32>, vector<4x8xf32>, vector<4x4xf32> -> vector<4x4xf32>
    %217 = vector.extract_strided_slice %212 {offsets = [0, 8], sizes = [4, 8], strides = [1, 1]} : vector<4x96xf32> to vector<4x8xf32>
    %218 = vector.extract_strided_slice %212 {offsets = [0, 40], sizes = [4, 8], strides = [1, 1]} : vector<4x96xf32> to vector<4x8xf32>
    %219 = vector.extract_strided_slice %212 {offsets = [0, 72], sizes = [4, 8], strides = [1, 1]} : vector<4x96xf32> to vector<4x8xf32>
    %cst_126 = arith.constant dense<0.000000e+00> : vector<4x4xf32>
    %220 = tpu.matmul %217, %218, %cst_126 {dimension_numbers = #tpu.dot_dimension_numbers<[1], [1], [0], [0], [0, 0, 1, 0], [], []>} : vector<4x8xf32>, vector<4x8xf32>, vector<4x4xf32> -> vector<4x4xf32>
    %221 = vector.extract_strided_slice %212 {offsets = [0, 16], sizes = [4, 8], strides = [1, 1]} : vector<4x96xf32> to vector<4x8xf32>
    %222 = vector.extract_strided_slice %212 {offsets = [0, 48], sizes = [4, 8], strides = [1, 1]} : vector<4x96xf32> to vector<4x8xf32>
    %223 = vector.extract_strided_slice %212 {offsets = [0, 80], sizes = [4, 8], strides = [1, 1]} : vector<4x96xf32> to vector<4x8xf32>
    %cst_127 = arith.constant dense<0.000000e+00> : vector<4x4xf32>
    %224 = tpu.matmul %221, %222, %cst_127 {dimension_numbers = #tpu.dot_dimension_numbers<[1], [1], [0], [0], [0, 0, 1, 0], [], []>} : vector<4x8xf32>, vector<4x8xf32>, vector<4x4xf32> -> vector<4x4xf32>
    %225 = vector.extract_strided_slice %212 {offsets = [0, 24], sizes = [4, 8], strides = [1, 1]} : vector<4x96xf32> to vector<4x8xf32>
    %226 = vector.extract_strided_slice %212 {offsets = [0, 56], sizes = [4, 8], strides = [1, 1]} : vector<4x96xf32> to vector<4x8xf32>
    %227 = vector.extract_strided_slice %212 {offsets = [0, 88], sizes = [4, 8], strides = [1, 1]} : vector<4x96xf32> to vector<4x8xf32>
    %cst_128 = arith.constant dense<0.000000e+00> : vector<4x4xf32>
    %228 = tpu.matmul %225, %226, %cst_128 {dimension_numbers = #tpu.dot_dimension_numbers<[1], [1], [0], [0], [0, 0, 1, 0], [], []>} : vector<4x8xf32>, vector<4x8xf32>, vector<4x4xf32> -> vector<4x4xf32>
    %229 = vector.shape_cast %216 : vector<4x4xf32> to vector<1x4x4xf32>
    %230 = vector.shape_cast %220 : vector<4x4xf32> to vector<1x4x4xf32>
    %231 = vector.shape_cast %224 : vector<4x4xf32> to vector<1x4x4xf32>
    %232 = vector.shape_cast %228 : vector<4x4xf32> to vector<1x4x4xf32>
    %233 = tpu.concatenate %229, %230, %231, %232 in 0 : vector<1x4x4xf32>, vector<1x4x4xf32>, vector<1x4x4xf32>, vector<1x4x4xf32> -> vector<4x4x4xf32>
    %cst_129 = arith.constant dense<0xFF800000> : vector<4x4xf32>
    %234 = vector.multi_reduction <maximumf>, %233, %cst_129 [2] : vector<4x4x4xf32> to vector<4x4xf32>
    %235 = vector.shape_cast %234 : vector<4x4xf32> to vector<4x4x1xf32>
    %236 = vector.broadcast %235 : vector<4x4x1xf32> to vector<4x4x4xf32>
    %237 = arith.subf %233, %236 : vector<4x4x4xf32>
    %238 = math.exp %237 : vector<4x4x4xf32>
    %cst_130 = arith.constant dense<0.000000e+00> : vector<4x4xf32>
    %239 = vector.multi_reduction <add>, %238, %cst_130 [2] : vector<4x4x4xf32> to vector<4x4xf32>
    %240 = vector.shape_cast %239 : vector<4x4xf32> to vector<4x4x1xf32>
    %241 = tpu.reciprocal %240 {approx = true} : vector<4x4x1xf32> -> vector<4x4x1xf32>
    %242 = vector.broadcast %241 : vector<4x4x1xf32> to vector<4x4x4xf32>
    %243 = arith.mulf %238, %242 : vector<4x4x4xf32>
    %244 = vector.extract_strided_slice %243 {offsets = [0, 0, 0], sizes = [1, 4, 4], strides = [1, 1, 1]} : vector<4x4x4xf32> to vector<1x4x4xf32>
    %245 = vector.shape_cast %244 : vector<1x4x4xf32> to vector<4x4xf32>
    %cst_131 = arith.constant dense<0.000000e+00> : vector<4x8xf32>
    %246 = tpu.matmul %245, %215, %cst_131 {dimension_numbers = #tpu.dot_dimension_numbers<[1], [0], [0], [1], [0, 0, 1, 1], [], []>} : vector<4x4xf32>, vector<4x8xf32>, vector<4x8xf32> -> vector<4x8xf32>
    %247 = vector.extract_strided_slice %243 {offsets = [1, 0, 0], sizes = [1, 4, 4], strides = [1, 1, 1]} : vector<4x4x4xf32> to vector<1x4x4xf32>
    %248 = vector.shape_cast %247 : vector<1x4x4xf32> to vector<4x4xf32>
    %cst_132 = arith.constant dense<0.000000e+00> : vector<4x8xf32>
    %249 = tpu.matmul %248, %219, %cst_132 {dimension_numbers = #tpu.dot_dimension_numbers<[1], [0], [0], [1], [0, 0, 1, 1], [], []>} : vector<4x4xf32>, vector<4x8xf32>, vector<4x8xf32> -> vector<4x8xf32>
    %250 = vector.extract_strided_slice %243 {offsets = [2, 0, 0], sizes = [1, 4, 4], strides = [1, 1, 1]} : vector<4x4x4xf32> to vector<1x4x4xf32>
    %251 = vector.shape_cast %250 : vector<1x4x4xf32> to vector<4x4xf32>
    %cst_133 = arith.constant dense<0.000000e+00> : vector<4x8xf32>
    %252 = tpu.matmul %251, %223, %cst_133 {dimension_numbers = #tpu.dot_dimension_numbers<[1], [0], [0], [1], [0, 0, 1, 1], [], []>} : vector<4x4xf32>, vector<4x8xf32>, vector<4x8xf32> -> vector<4x8xf32>
    %253 = vector.extract_strided_slice %243 {offsets = [3, 0, 0], sizes = [1, 4, 4], strides = [1, 1, 1]} : vector<4x4x4xf32> to vector<1x4x4xf32>
    %254 = vector.shape_cast %253 : vector<1x4x4xf32> to vector<4x4xf32>
    %cst_134 = arith.constant dense<0.000000e+00> : vector<4x8xf32>
    %255 = tpu.matmul %254, %227, %cst_134 {dimension_numbers = #tpu.dot_dimension_numbers<[1], [0], [0], [1], [0, 0, 1, 1], [], []>} : vector<4x4xf32>, vector<4x8xf32>, vector<4x8xf32> -> vector<4x8xf32>
    %256 = tpu.concatenate %246, %249, %252, %255 in 1 : vector<4x8xf32>, vector<4x8xf32>, vector<4x8xf32>, vector<4x8xf32> -> vector<4x32xf32>
    %c1_135 = arith.constant 1 : index
    %c0_136 = arith.constant 0 : index
    %c0_137 = arith.constant 0 : index
    %257 = vector.load %arg6[%c1_135, %c0_136, %c0_137] : memref<3x32x32xf32, #tpu.memory_space<vmem>>, vector<1x32x32xf32>
    %258 = vector.shape_cast %257 : vector<1x32x32xf32> to vector<32x32xf32>
    %cst_138 = arith.constant dense<0.000000e+00> : vector<4x32xf32>
    %259 = tpu.matmul %256, %258, %cst_138 {dimension_numbers = #tpu.dot_dimension_numbers<[1], [0], [0], [1], [0, 0, 1, 1], [], []>} : vector<4x32xf32>, vector<32x32xf32>, vector<4x32xf32> -> vector<4x32xf32>
    %c1_139 = arith.constant 1 : index
    %c0_140 = arith.constant 0 : index
    %c0_141 = arith.constant 0 : index
    %260 = vector.load %arg7[%c1_139, %c0_140, %c0_141] : memref<3x1x32xf32, #tpu.memory_space<vmem>>, vector<1x1x32xf32>
    %261 = vector.shape_cast %260 : vector<1x1x32xf32> to vector<1x32xf32>
    %262 = vector.broadcast %261 : vector<1x32xf32> to vector<4x32xf32>
    %263 = arith.addf %259, %262 : vector<4x32xf32>
    %264 = arith.addf %205, %263 : vector<4x32xf32>
    %c1_142 = arith.constant 1 : index
    %c0_143 = arith.constant 0 : index
    %c0_144 = arith.constant 0 : index
    %265 = vector.load %arg8[%c1_142, %c0_143, %c0_144] : memref<3x1x32xf32, #tpu.memory_space<vmem>>, vector<1x1x32xf32>
    %266 = vector.shape_cast %265 : vector<1x1x32xf32> to vector<1x32xf32>
    %c1_145 = arith.constant 1 : index
    %c0_146 = arith.constant 0 : index
    %c0_147 = arith.constant 0 : index
    %267 = vector.load %arg9[%c1_145, %c0_146, %c0_147] : memref<3x1x32xf32, #tpu.memory_space<vmem>>, vector<1x1x32xf32>
    %268 = vector.shape_cast %267 : vector<1x1x32xf32> to vector<1x32xf32>
    %cst_148 = arith.constant dense<0.000000e+00> : vector<4xf32>
    %269 = vector.multi_reduction <add>, %264, %cst_148 [1] : vector<4x32xf32> to vector<4xf32>
    %270 = vector.shape_cast %269 : vector<4xf32> to vector<4x1xf32>
    %cst_149 = arith.constant 3.200000e+01 : f32
    %271 = vector.broadcast %cst_149 : f32 to vector<4x1xf32>
    %272 = arith.divf %270, %271 : vector<4x1xf32>
    %273 = vector.broadcast %272 : vector<4x1xf32> to vector<4x32xf32>
    %274 = arith.subf %264, %273 : vector<4x32xf32>
    %275 = vector.broadcast %272 : vector<4x1xf32> to vector<4x32xf32>
    %276 = arith.subf %264, %275 : vector<4x32xf32>
    %277 = arith.mulf %274, %276 : vector<4x32xf32>
    %cst_150 = arith.constant dense<0.000000e+00> : vector<4xf32>
    %278 = vector.multi_reduction <add>, %277, %cst_150 [1] : vector<4x32xf32> to vector<4xf32>
    %279 = vector.shape_cast %278 : vector<4xf32> to vector<4x1xf32>
    %cst_151 = arith.constant 3.200000e+01 : f32
    %280 = vector.broadcast %cst_151 : f32 to vector<4x1xf32>
    %281 = arith.divf %279, %280 : vector<4x1xf32>
    %282 = vector.broadcast %272 : vector<4x1xf32> to vector<4x32xf32>
    %283 = arith.subf %264, %282 : vector<4x32xf32>
    %cst_152 = arith.constant 9.99999974E-6 : f32
    %284 = vector.broadcast %cst_152 : f32 to vector<4x1xf32>
    %285 = arith.addf %281, %284 : vector<4x1xf32>
    %286 = math.rsqrt %285 : vector<4x1xf32>
    %287 = vector.broadcast %286 : vector<4x1xf32> to vector<4x32xf32>
    %288 = arith.mulf %283, %287 : vector<4x32xf32>
    %289 = vector.broadcast %266 : vector<1x32xf32> to vector<4x32xf32>
    %290 = arith.mulf %288, %289 : vector<4x32xf32>
    %291 = vector.broadcast %268 : vector<1x32xf32> to vector<4x32xf32>
    %292 = arith.addf %290, %291 : vector<4x32xf32>
    %c1_153 = arith.constant 1 : index
    %c0_154 = arith.constant 0 : index
    %c0_155 = arith.constant 0 : index
    %293 = vector.load %arg10[%c1_153, %c0_154, %c0_155] : memref<3x32x32xf32, #tpu.memory_space<vmem>>, vector<1x32x32xf32>
    %294 = vector.shape_cast %293 : vector<1x32x32xf32> to vector<32x32xf32>
    %cst_156 = arith.constant dense<0.000000e+00> : vector<4x32xf32>
    %295 = tpu.matmul %292, %294, %cst_156 {dimension_numbers = #tpu.dot_dimension_numbers<[1], [0], [0], [1], [0, 0, 1, 1], [], []>} : vector<4x32xf32>, vector<32x32xf32>, vector<4x32xf32> -> vector<4x32xf32>
    %c1_157 = arith.constant 1 : index
    %c0_158 = arith.constant 0 : index
    %c0_159 = arith.constant 0 : index
    %296 = vector.load %arg11[%c1_157, %c0_158, %c0_159] : memref<3x1x32xf32, #tpu.memory_space<vmem>>, vector<1x1x32xf32>
    %297 = vector.shape_cast %296 : vector<1x1x32xf32> to vector<1x32xf32>
    %298 = vector.broadcast %297 : vector<1x32xf32> to vector<4x32xf32>
    %299 = arith.addf %295, %298 : vector<4x32xf32>
    %cst_160 = arith.constant 5.000000e-01 : f32
    %300 = vector.broadcast %cst_160 : f32 to vector<4x32xf32>
    %301 = arith.mulf %300, %299 : vector<4x32xf32>
    %cst_161 = arith.constant 4.471500e-02 : f32
    %302 = vector.broadcast %cst_161 : f32 to vector<4x32xf32>
    %303 = arith.mulf %302, %299 : vector<4x32xf32>
    %304 = arith.mulf %303, %299 : vector<4x32xf32>
    %305 = arith.mulf %304, %299 : vector<4x32xf32>
    %306 = arith.addf %299, %305 : vector<4x32xf32>
    %cst_162 = arith.constant 0.797884583 : f32
    %307 = vector.broadcast %cst_162 : f32 to vector<4x32xf32>
    %308 = arith.mulf %307, %306 : vector<4x32xf32>
    %309 = math.tanh %308 : vector<4x32xf32>
    %cst_163 = arith.constant 1.000000e+00 : f32
    %310 = vector.broadcast %cst_163 : f32 to vector<4x32xf32>
    %311 = arith.addf %310, %309 : vector<4x32xf32>
    %312 = arith.mulf %301, %311 : vector<4x32xf32>
    %c1_164 = arith.constant 1 : index
    %c0_165 = arith.constant 0 : index
    %c0_166 = arith.constant 0 : index
    %313 = vector.load %arg12[%c1_164, %c0_165, %c0_166] : memref<3x32x32xf32, #tpu.memory_space<vmem>>, vector<1x32x32xf32>
    %314 = vector.shape_cast %313 : vector<1x32x32xf32> to vector<32x32xf32>
    %cst_167 = arith.constant dense<0.000000e+00> : vector<4x32xf32>
    %315 = tpu.matmul %312, %314, %cst_167 {dimension_numbers = #tpu.dot_dimension_numbers<[1], [0], [0], [1], [0, 0, 1, 1], [], []>} : vector<4x32xf32>, vector<32x32xf32>, vector<4x32xf32> -> vector<4x32xf32>
    %c1_168 = arith.constant 1 : index
    %c0_169 = arith.constant 0 : index
    %c0_170 = arith.constant 0 : index
    %316 = vector.load %arg13[%c1_168, %c0_169, %c0_170] : memref<3x1x32xf32, #tpu.memory_space<vmem>>, vector<1x1x32xf32>
    %317 = vector.shape_cast %316 : vector<1x1x32xf32> to vector<1x32xf32>
    %318 = vector.broadcast %317 : vector<1x32xf32> to vector<4x32xf32>
    %319 = arith.addf %315, %318 : vector<4x32xf32>
    %320 = arith.addf %292, %319 : vector<4x32xf32>
    %c1_171 = arith.constant 1 : index
    %c0_172 = arith.constant 0 : index
    %c0_173 = arith.constant 0 : index
    %321 = vector.load %arg14[%c1_171, %c0_172, %c0_173] : memref<3x1x32xf32, #tpu.memory_space<vmem>>, vector<1x1x32xf32>
    %322 = vector.shape_cast %321 : vector<1x1x32xf32> to vector<1x32xf32>
    %c1_174 = arith.constant 1 : index
    %c0_175 = arith.constant 0 : index
    %c0_176 = arith.constant 0 : index
    %323 = vector.load %arg15[%c1_174, %c0_175, %c0_176] : memref<3x1x32xf32, #tpu.memory_space<vmem>>, vector<1x1x32xf32>
    %324 = vector.shape_cast %323 : vector<1x1x32xf32> to vector<1x32xf32>
    %cst_177 = arith.constant dense<0.000000e+00> : vector<4xf32>
    %325 = vector.multi_reduction <add>, %320, %cst_177 [1] : vector<4x32xf32> to vector<4xf32>
    %326 = vector.shape_cast %325 : vector<4xf32> to vector<4x1xf32>
    %cst_178 = arith.constant 3.200000e+01 : f32
    %327 = vector.broadcast %cst_178 : f32 to vector<4x1xf32>
    %328 = arith.divf %326, %327 : vector<4x1xf32>
    %329 = vector.broadcast %328 : vector<4x1xf32> to vector<4x32xf32>
    %330 = arith.subf %320, %329 : vector<4x32xf32>
    %331 = vector.broadcast %328 : vector<4x1xf32> to vector<4x32xf32>
    %332 = arith.subf %320, %331 : vector<4x32xf32>
    %333 = arith.mulf %330, %332 : vector<4x32xf32>
    %cst_179 = arith.constant dense<0.000000e+00> : vector<4xf32>
    %334 = vector.multi_reduction <add>, %333, %cst_179 [1] : vector<4x32xf32> to vector<4xf32>
    %335 = vector.shape_cast %334 : vector<4xf32> to vector<4x1xf32>
    %cst_180 = arith.constant 3.200000e+01 : f32
    %336 = vector.broadcast %cst_180 : f32 to vector<4x1xf32>
    %337 = arith.divf %335, %336 : vector<4x1xf32>
    %338 = vector.broadcast %328 : vector<4x1xf32> to vector<4x32xf32>
    %339 = arith.subf %320, %338 : vector<4x32xf32>
    %cst_181 = arith.constant 9.99999974E-6 : f32
    %340 = vector.broadcast %cst_181 : f32 to vector<4x1xf32>
    %341 = arith.addf %337, %340 : vector<4x1xf32>
    %342 = math.rsqrt %341 : vector<4x1xf32>
    %343 = vector.broadcast %342 : vector<4x1xf32> to vector<4x32xf32>
    %344 = arith.mulf %339, %343 : vector<4x32xf32>
    %345 = vector.broadcast %322 : vector<1x32xf32> to vector<4x32xf32>
    %346 = arith.mulf %344, %345 : vector<4x32xf32>
    %347 = vector.broadcast %324 : vector<1x32xf32> to vector<4x32xf32>
    %348 = arith.addf %346, %347 : vector<4x32xf32>
    %c1_182 = arith.constant 1 : index
    %c0_183 = arith.constant 0 : index
    %c0_184 = arith.constant 0 : index
    %c0_185 = arith.constant 0 : index
    %349 = vector.load %arg16[%c1_182, %c0_183, %c0_184, %c0_185] : memref<2x3x32x32xf32, #tpu.memory_space<vmem>>, vector<1x3x32x32xf32>
    %350 = vector.shape_cast %349 : vector<1x3x32x32xf32> to vector<3x32x32xf32>
    %351 = vector.extract_strided_slice %350 {offsets = [0, 0, 0], sizes = [1, 32, 32], strides = [1, 1, 1]} : vector<3x32x32xf32> to vector<1x32x32xf32>
    %352 = vector.shape_cast %351 : vector<1x32x32xf32> to vector<32x32xf32>
    %353 = vector.extract_strided_slice %350 {offsets = [1, 0, 0], sizes = [1, 32, 32], strides = [1, 1, 1]} : vector<3x32x32xf32> to vector<1x32x32xf32>
    %354 = vector.shape_cast %353 : vector<1x32x32xf32> to vector<32x32xf32>
    %355 = vector.extract_strided_slice %350 {offsets = [2, 0, 0], sizes = [1, 32, 32], strides = [1, 1, 1]} : vector<3x32x32xf32> to vector<1x32x32xf32>
    %356 = vector.shape_cast %355 : vector<1x32x32xf32> to vector<32x32xf32>
    %c1_186 = arith.constant 1 : index
    %c0_187 = arith.constant 0 : index
    %c0_188 = arith.constant 0 : index
    %357 = vector.load %arg17[%c1_186, %c0_187, %c0_188] : memref<2x1x32xf32, #tpu.memory_space<vmem>>, vector<1x1x32xf32>
    %358 = vector.shape_cast %357 : vector<1x1x32xf32> to vector<1x32xf32>
    %c0_189 = arith.constant 0 : index
    %c0_190 = arith.constant 0 : index
    %c0_191 = arith.constant 0 : index
    %359 = vector.load %arg23[%c0_189, %c0_190, %c0_191] : memref<2x4x4xf32, #tpu.memory_space<vmem>>, vector<1x4x4xf32>
    %360 = vector.shape_cast %359 : vector<1x4x4xf32> to vector<4x4xf32>
    %c1_192 = arith.constant 1 : index
    %c0_193 = arith.constant 0 : index
    %c0_194 = arith.constant 0 : index
    %361 = vector.load %arg23[%c1_192, %c0_193, %c0_194] : memref<2x4x4xf32, #tpu.memory_space<vmem>>, vector<1x4x4xf32>
    %362 = vector.shape_cast %361 : vector<1x4x4xf32> to vector<4x4xf32>
    %cst_195 = arith.constant dense<0.000000e+00> : vector<4x32xf32>
    %363 = tpu.matmul %348, %352, %cst_195 {dimension_numbers = #tpu.dot_dimension_numbers<[1], [0], [0], [1], [0, 0, 1, 1], [], []>} : vector<4x32xf32>, vector<32x32xf32>, vector<4x32xf32> -> vector<4x32xf32>
    %cst_196 = arith.constant dense<0.000000e+00> : vector<4x32xf32>
    %364 = tpu.matmul %360, %363, %cst_196 {dimension_numbers = #tpu.dot_dimension_numbers<[1], [0], [0], [1], [0, 0, 1, 1], [], []>} : vector<4x4xf32>, vector<4x32xf32>, vector<4x32xf32> -> vector<4x32xf32>
    %cst_197 = arith.constant dense<0.000000e+00> : vector<4x32xf32>
    %365 = tpu.matmul %348, %354, %cst_197 {dimension_numbers = #tpu.dot_dimension_numbers<[1], [0], [0], [1], [0, 0, 1, 1], [], []>} : vector<4x32xf32>, vector<32x32xf32>, vector<4x32xf32> -> vector<4x32xf32>
    %366 = arith.addf %364, %365 : vector<4x32xf32>
    %cst_198 = arith.constant dense<0.000000e+00> : vector<4x32xf32>
    %367 = tpu.matmul %348, %356, %cst_198 {dimension_numbers = #tpu.dot_dimension_numbers<[1], [0], [0], [1], [0, 0, 1, 1], [], []>} : vector<4x32xf32>, vector<32x32xf32>, vector<4x32xf32> -> vector<4x32xf32>
    %cst_199 = arith.constant dense<0.000000e+00> : vector<4x32xf32>
    %368 = tpu.matmul %362, %367, %cst_199 {dimension_numbers = #tpu.dot_dimension_numbers<[1], [0], [0], [1], [0, 0, 1, 1], [], []>} : vector<4x4xf32>, vector<4x32xf32>, vector<4x32xf32> -> vector<4x32xf32>
    %369 = arith.addf %366, %368 : vector<4x32xf32>
    %370 = vector.broadcast %358 : vector<1x32xf32> to vector<4x32xf32>
    %371 = arith.addf %369, %370 : vector<4x32xf32>
    %cst_200 = arith.constant 0.000000e+00 : f32
    %372 = vector.broadcast %cst_200 : f32 to vector<4x32xf32>
    %373 = arith.cmpf ogt, %371, %372 : vector<4x32xf32>
    %cst_201 = arith.constant 0.000000e+00 : f32
    %374 = vector.broadcast %cst_201 : f32 to vector<4x32xf32>
    %375 = arith.minimumf %371, %374 : vector<4x32xf32>
    %376 = math.exp %375 : vector<4x32xf32>
    %cst_202 = arith.constant 1.000000e+00 : f32
    %377 = vector.broadcast %cst_202 : f32 to vector<4x32xf32>
    %378 = arith.subf %376, %377 : vector<4x32xf32>
    %379 = arith.select %373, %371, %378 : vector<4x32xi1>, vector<4x32xf32>
    %c0_203 = arith.constant 0 : index
    %c0_204 = arith.constant 0 : index
    %c0_205 = arith.constant 0 : index
    %380 = vector.load %arg25[%c0_203, %c0_204, %c0_205] : memref<3x2x4xf32, #tpu.memory_space<vmem>>, vector<1x2x4xf32>
    %381 = vector.shape_cast %380 : vector<1x2x4xf32> to vector<2x4xf32>
    %cst_206 = arith.constant dense<0.000000e+00> : vector<2x32xf32>
    %382 = tpu.matmul %381, %379, %cst_206 {dimension_numbers = #tpu.dot_dimension_numbers<[1], [0], [0], [1], [0, 0, 1, 1], [], []>} : vector<2x4xf32>, vector<4x32xf32>, vector<2x32xf32> -> vector<2x32xf32>
    %c1_207 = arith.constant 1 : index
    %c0_208 = arith.constant 0 : index
    %c0_209 = arith.constant 0 : index
    %383 = vector.load %arg25[%c1_207, %c0_208, %c0_209] : memref<3x2x4xf32, #tpu.memory_space<vmem>>, vector<1x2x4xf32>
    %384 = vector.shape_cast %383 : vector<1x2x4xf32> to vector<2x4xf32>
    %cst_210 = arith.constant dense<0.000000e+00> : vector<2x32xf32>
    %385 = tpu.matmul %384, %379, %cst_210 {dimension_numbers = #tpu.dot_dimension_numbers<[1], [0], [0], [1], [0, 0, 1, 1], [], []>} : vector<2x4xf32>, vector<4x32xf32>, vector<2x32xf32> -> vector<2x32xf32>
    %386 = arith.maximumf %382, %385 : vector<2x32xf32>
    %c2_211 = arith.constant 2 : index
    %c0_212 = arith.constant 0 : index
    %c0_213 = arith.constant 0 : index
    %387 = vector.load %arg25[%c2_211, %c0_212, %c0_213] : memref<3x2x4xf32, #tpu.memory_space<vmem>>, vector<1x2x4xf32>
    %388 = vector.shape_cast %387 : vector<1x2x4xf32> to vector<2x4xf32>
    %cst_214 = arith.constant dense<0.000000e+00> : vector<2x32xf32>
    %389 = tpu.matmul %388, %379, %cst_214 {dimension_numbers = #tpu.dot_dimension_numbers<[1], [0], [0], [1], [0, 0, 1, 1], [], []>} : vector<2x4xf32>, vector<4x32xf32>, vector<2x32xf32> -> vector<2x32xf32>
    %390 = arith.maximumf %386, %389 : vector<2x32xf32>
    %c2_215 = arith.constant 2 : index
    %c0_216 = arith.constant 0 : index
    %c0_217 = arith.constant 0 : index
    %391 = vector.load %arg4[%c2_215, %c0_216, %c0_217] : memref<3x32x96xf32, #tpu.memory_space<vmem>>, vector<1x32x96xf32>
    %392 = vector.shape_cast %391 : vector<1x32x96xf32> to vector<32x96xf32>
    %cst_218 = arith.constant dense<0.000000e+00> : vector<2x96xf32>
    %393 = tpu.matmul %390, %392, %cst_218 {dimension_numbers = #tpu.dot_dimension_numbers<[1], [0], [0], [1], [0, 0, 1, 1], [], []>} : vector<2x32xf32>, vector<32x96xf32>, vector<2x96xf32> -> vector<2x96xf32>
    %c2_219 = arith.constant 2 : index
    %c0_220 = arith.constant 0 : index
    %c0_221 = arith.constant 0 : index
    %394 = vector.load %arg5[%c2_219, %c0_220, %c0_221] : memref<3x1x96xf32, #tpu.memory_space<vmem>>, vector<1x1x96xf32>
    %395 = vector.shape_cast %394 : vector<1x1x96xf32> to vector<1x96xf32>
    %396 = vector.broadcast %395 : vector<1x96xf32> to vector<2x96xf32>
    %397 = arith.addf %393, %396 : vector<2x96xf32>
    %398 = vector.extract_strided_slice %397 {offsets = [0, 0], sizes = [2, 8], strides = [1, 1]} : vector<2x96xf32> to vector<2x8xf32>
    %399 = vector.extract_strided_slice %397 {offsets = [0, 32], sizes = [2, 8], strides = [1, 1]} : vector<2x96xf32> to vector<2x8xf32>
    %400 = vector.extract_strided_slice %397 {offsets = [0, 64], sizes = [2, 8], strides = [1, 1]} : vector<2x96xf32> to vector<2x8xf32>
    %cst_222 = arith.constant dense<0.000000e+00> : vector<2x2xf32>
    %401 = tpu.matmul %398, %399, %cst_222 {dimension_numbers = #tpu.dot_dimension_numbers<[1], [1], [0], [0], [0, 0, 1, 0], [], []>} : vector<2x8xf32>, vector<2x8xf32>, vector<2x2xf32> -> vector<2x2xf32>
    %402 = vector.extract_strided_slice %397 {offsets = [0, 8], sizes = [2, 8], strides = [1, 1]} : vector<2x96xf32> to vector<2x8xf32>
    %403 = vector.extract_strided_slice %397 {offsets = [0, 40], sizes = [2, 8], strides = [1, 1]} : vector<2x96xf32> to vector<2x8xf32>
    %404 = vector.extract_strided_slice %397 {offsets = [0, 72], sizes = [2, 8], strides = [1, 1]} : vector<2x96xf32> to vector<2x8xf32>
    %cst_223 = arith.constant dense<0.000000e+00> : vector<2x2xf32>
    %405 = tpu.matmul %402, %403, %cst_223 {dimension_numbers = #tpu.dot_dimension_numbers<[1], [1], [0], [0], [0, 0, 1, 0], [], []>} : vector<2x8xf32>, vector<2x8xf32>, vector<2x2xf32> -> vector<2x2xf32>
    %406 = vector.extract_strided_slice %397 {offsets = [0, 16], sizes = [2, 8], strides = [1, 1]} : vector<2x96xf32> to vector<2x8xf32>
    %407 = vector.extract_strided_slice %397 {offsets = [0, 48], sizes = [2, 8], strides = [1, 1]} : vector<2x96xf32> to vector<2x8xf32>
    %408 = vector.extract_strided_slice %397 {offsets = [0, 80], sizes = [2, 8], strides = [1, 1]} : vector<2x96xf32> to vector<2x8xf32>
    %cst_224 = arith.constant dense<0.000000e+00> : vector<2x2xf32>
    %409 = tpu.matmul %406, %407, %cst_224 {dimension_numbers = #tpu.dot_dimension_numbers<[1], [1], [0], [0], [0, 0, 1, 0], [], []>} : vector<2x8xf32>, vector<2x8xf32>, vector<2x2xf32> -> vector<2x2xf32>
    %410 = vector.extract_strided_slice %397 {offsets = [0, 24], sizes = [2, 8], strides = [1, 1]} : vector<2x96xf32> to vector<2x8xf32>
    %411 = vector.extract_strided_slice %397 {offsets = [0, 56], sizes = [2, 8], strides = [1, 1]} : vector<2x96xf32> to vector<2x8xf32>
    %412 = vector.extract_strided_slice %397 {offsets = [0, 88], sizes = [2, 8], strides = [1, 1]} : vector<2x96xf32> to vector<2x8xf32>
    %cst_225 = arith.constant dense<0.000000e+00> : vector<2x2xf32>
    %413 = tpu.matmul %410, %411, %cst_225 {dimension_numbers = #tpu.dot_dimension_numbers<[1], [1], [0], [0], [0, 0, 1, 0], [], []>} : vector<2x8xf32>, vector<2x8xf32>, vector<2x2xf32> -> vector<2x2xf32>
    %414 = vector.shape_cast %401 : vector<2x2xf32> to vector<1x2x2xf32>
    %415 = vector.shape_cast %405 : vector<2x2xf32> to vector<1x2x2xf32>
    %416 = vector.shape_cast %409 : vector<2x2xf32> to vector<1x2x2xf32>
    %417 = vector.shape_cast %413 : vector<2x2xf32> to vector<1x2x2xf32>
    %418 = tpu.concatenate %414, %415, %416, %417 in 0 : vector<1x2x2xf32>, vector<1x2x2xf32>, vector<1x2x2xf32>, vector<1x2x2xf32> -> vector<4x2x2xf32>
    %cst_226 = arith.constant dense<0xFF800000> : vector<4x2xf32>
    %419 = vector.multi_reduction <maximumf>, %418, %cst_226 [2] : vector<4x2x2xf32> to vector<4x2xf32>
    %420 = vector.shape_cast %419 : vector<4x2xf32> to vector<4x2x1xf32>
    %421 = vector.broadcast %420 : vector<4x2x1xf32> to vector<4x2x2xf32>
    %422 = arith.subf %418, %421 : vector<4x2x2xf32>
    %423 = math.exp %422 : vector<4x2x2xf32>
    %cst_227 = arith.constant dense<0.000000e+00> : vector<4x2xf32>
    %424 = vector.multi_reduction <add>, %423, %cst_227 [2] : vector<4x2x2xf32> to vector<4x2xf32>
    %425 = vector.shape_cast %424 : vector<4x2xf32> to vector<4x2x1xf32>
    %426 = tpu.reciprocal %425 {approx = true} : vector<4x2x1xf32> -> vector<4x2x1xf32>
    %427 = vector.broadcast %426 : vector<4x2x1xf32> to vector<4x2x2xf32>
    %428 = arith.mulf %423, %427 : vector<4x2x2xf32>
    %429 = vector.extract_strided_slice %428 {offsets = [0, 0, 0], sizes = [1, 2, 2], strides = [1, 1, 1]} : vector<4x2x2xf32> to vector<1x2x2xf32>
    %430 = vector.shape_cast %429 : vector<1x2x2xf32> to vector<2x2xf32>
    %cst_228 = arith.constant dense<0.000000e+00> : vector<2x8xf32>
    %431 = tpu.matmul %430, %400, %cst_228 {dimension_numbers = #tpu.dot_dimension_numbers<[1], [0], [0], [1], [0, 0, 1, 1], [], []>} : vector<2x2xf32>, vector<2x8xf32>, vector<2x8xf32> -> vector<2x8xf32>
    %432 = vector.extract_strided_slice %428 {offsets = [1, 0, 0], sizes = [1, 2, 2], strides = [1, 1, 1]} : vector<4x2x2xf32> to vector<1x2x2xf32>
    %433 = vector.shape_cast %432 : vector<1x2x2xf32> to vector<2x2xf32>
    %cst_229 = arith.constant dense<0.000000e+00> : vector<2x8xf32>
    %434 = tpu.matmul %433, %404, %cst_229 {dimension_numbers = #tpu.dot_dimension_numbers<[1], [0], [0], [1], [0, 0, 1, 1], [], []>} : vector<2x2xf32>, vector<2x8xf32>, vector<2x8xf32> -> vector<2x8xf32>
    %435 = vector.extract_strided_slice %428 {offsets = [2, 0, 0], sizes = [1, 2, 2], strides = [1, 1, 1]} : vector<4x2x2xf32> to vector<1x2x2xf32>
    %436 = vector.shape_cast %435 : vector<1x2x2xf32> to vector<2x2xf32>
    %cst_230 = arith.constant dense<0.000000e+00> : vector<2x8xf32>
    %437 = tpu.matmul %436, %408, %cst_230 {dimension_numbers = #tpu.dot_dimension_numbers<[1], [0], [0], [1], [0, 0, 1, 1], [], []>} : vector<2x2xf32>, vector<2x8xf32>, vector<2x8xf32> -> vector<2x8xf32>
    %438 = vector.extract_strided_slice %428 {offsets = [3, 0, 0], sizes = [1, 2, 2], strides = [1, 1, 1]} : vector<4x2x2xf32> to vector<1x2x2xf32>
    %439 = vector.shape_cast %438 : vector<1x2x2xf32> to vector<2x2xf32>
    %cst_231 = arith.constant dense<0.000000e+00> : vector<2x8xf32>
    %440 = tpu.matmul %439, %412, %cst_231 {dimension_numbers = #tpu.dot_dimension_numbers<[1], [0], [0], [1], [0, 0, 1, 1], [], []>} : vector<2x2xf32>, vector<2x8xf32>, vector<2x8xf32> -> vector<2x8xf32>
    %441 = tpu.concatenate %431, %434, %437, %440 in 1 : vector<2x8xf32>, vector<2x8xf32>, vector<2x8xf32>, vector<2x8xf32> -> vector<2x32xf32>
    %c2_232 = arith.constant 2 : index
    %c0_233 = arith.constant 0 : index
    %c0_234 = arith.constant 0 : index
    %442 = vector.load %arg6[%c2_232, %c0_233, %c0_234] : memref<3x32x32xf32, #tpu.memory_space<vmem>>, vector<1x32x32xf32>
    %443 = vector.shape_cast %442 : vector<1x32x32xf32> to vector<32x32xf32>
    %cst_235 = arith.constant dense<0.000000e+00> : vector<2x32xf32>
    %444 = tpu.matmul %441, %443, %cst_235 {dimension_numbers = #tpu.dot_dimension_numbers<[1], [0], [0], [1], [0, 0, 1, 1], [], []>} : vector<2x32xf32>, vector<32x32xf32>, vector<2x32xf32> -> vector<2x32xf32>
    %c2_236 = arith.constant 2 : index
    %c0_237 = arith.constant 0 : index
    %c0_238 = arith.constant 0 : index
    %445 = vector.load %arg7[%c2_236, %c0_237, %c0_238] : memref<3x1x32xf32, #tpu.memory_space<vmem>>, vector<1x1x32xf32>
    %446 = vector.shape_cast %445 : vector<1x1x32xf32> to vector<1x32xf32>
    %447 = vector.broadcast %446 : vector<1x32xf32> to vector<2x32xf32>
    %448 = arith.addf %444, %447 : vector<2x32xf32>
    %449 = arith.addf %390, %448 : vector<2x32xf32>
    %c2_239 = arith.constant 2 : index
    %c0_240 = arith.constant 0 : index
    %c0_241 = arith.constant 0 : index
    %450 = vector.load %arg8[%c2_239, %c0_240, %c0_241] : memref<3x1x32xf32, #tpu.memory_space<vmem>>, vector<1x1x32xf32>
    %451 = vector.shape_cast %450 : vector<1x1x32xf32> to vector<1x32xf32>
    %c2_242 = arith.constant 2 : index
    %c0_243 = arith.constant 0 : index
    %c0_244 = arith.constant 0 : index
    %452 = vector.load %arg9[%c2_242, %c0_243, %c0_244] : memref<3x1x32xf32, #tpu.memory_space<vmem>>, vector<1x1x32xf32>
    %453 = vector.shape_cast %452 : vector<1x1x32xf32> to vector<1x32xf32>
    %cst_245 = arith.constant dense<0.000000e+00> : vector<2xf32>
    %454 = vector.multi_reduction <add>, %449, %cst_245 [1] : vector<2x32xf32> to vector<2xf32>
    %455 = vector.shape_cast %454 : vector<2xf32> to vector<2x1xf32>
    %cst_246 = arith.constant 3.200000e+01 : f32
    %456 = vector.broadcast %cst_246 : f32 to vector<2x1xf32>
    %457 = arith.divf %455, %456 : vector<2x1xf32>
    %458 = vector.broadcast %457 : vector<2x1xf32> to vector<2x32xf32>
    %459 = arith.subf %449, %458 : vector<2x32xf32>
    %460 = vector.broadcast %457 : vector<2x1xf32> to vector<2x32xf32>
    %461 = arith.subf %449, %460 : vector<2x32xf32>
    %462 = arith.mulf %459, %461 : vector<2x32xf32>
    %cst_247 = arith.constant dense<0.000000e+00> : vector<2xf32>
    %463 = vector.multi_reduction <add>, %462, %cst_247 [1] : vector<2x32xf32> to vector<2xf32>
    %464 = vector.shape_cast %463 : vector<2xf32> to vector<2x1xf32>
    %cst_248 = arith.constant 3.200000e+01 : f32
    %465 = vector.broadcast %cst_248 : f32 to vector<2x1xf32>
    %466 = arith.divf %464, %465 : vector<2x1xf32>
    %467 = vector.broadcast %457 : vector<2x1xf32> to vector<2x32xf32>
    %468 = arith.subf %449, %467 : vector<2x32xf32>
    %cst_249 = arith.constant 9.99999974E-6 : f32
    %469 = vector.broadcast %cst_249 : f32 to vector<2x1xf32>
    %470 = arith.addf %466, %469 : vector<2x1xf32>
    %471 = math.rsqrt %470 : vector<2x1xf32>
    %472 = vector.broadcast %471 : vector<2x1xf32> to vector<2x32xf32>
    %473 = arith.mulf %468, %472 : vector<2x32xf32>
    %474 = vector.broadcast %451 : vector<1x32xf32> to vector<2x32xf32>
    %475 = arith.mulf %473, %474 : vector<2x32xf32>
    %476 = vector.broadcast %453 : vector<1x32xf32> to vector<2x32xf32>
    %477 = arith.addf %475, %476 : vector<2x32xf32>
    %c2_250 = arith.constant 2 : index
    %c0_251 = arith.constant 0 : index
    %c0_252 = arith.constant 0 : index
    %478 = vector.load %arg10[%c2_250, %c0_251, %c0_252] : memref<3x32x32xf32, #tpu.memory_space<vmem>>, vector<1x32x32xf32>
    %479 = vector.shape_cast %478 : vector<1x32x32xf32> to vector<32x32xf32>
    %cst_253 = arith.constant dense<0.000000e+00> : vector<2x32xf32>
    %480 = tpu.matmul %477, %479, %cst_253 {dimension_numbers = #tpu.dot_dimension_numbers<[1], [0], [0], [1], [0, 0, 1, 1], [], []>} : vector<2x32xf32>, vector<32x32xf32>, vector<2x32xf32> -> vector<2x32xf32>
    %c2_254 = arith.constant 2 : index
    %c0_255 = arith.constant 0 : index
    %c0_256 = arith.constant 0 : index
    %481 = vector.load %arg11[%c2_254, %c0_255, %c0_256] : memref<3x1x32xf32, #tpu.memory_space<vmem>>, vector<1x1x32xf32>
    %482 = vector.shape_cast %481 : vector<1x1x32xf32> to vector<1x32xf32>
    %483 = vector.broadcast %482 : vector<1x32xf32> to vector<2x32xf32>
    %484 = arith.addf %480, %483 : vector<2x32xf32>
    %cst_257 = arith.constant 5.000000e-01 : f32
    %485 = vector.broadcast %cst_257 : f32 to vector<2x32xf32>
    %486 = arith.mulf %485, %484 : vector<2x32xf32>
    %cst_258 = arith.constant 4.471500e-02 : f32
    %487 = vector.broadcast %cst_258 : f32 to vector<2x32xf32>
    %488 = arith.mulf %487, %484 : vector<2x32xf32>
    %489 = arith.mulf %488, %484 : vector<2x32xf32>
    %490 = arith.mulf %489, %484 : vector<2x32xf32>
    %491 = arith.addf %484, %490 : vector<2x32xf32>
    %cst_259 = arith.constant 0.797884583 : f32
    %492 = vector.broadcast %cst_259 : f32 to vector<2x32xf32>
    %493 = arith.mulf %492, %491 : vector<2x32xf32>
    %494 = math.tanh %493 : vector<2x32xf32>
    %cst_260 = arith.constant 1.000000e+00 : f32
    %495 = vector.broadcast %cst_260 : f32 to vector<2x32xf32>
    %496 = arith.addf %495, %494 : vector<2x32xf32>
    %497 = arith.mulf %486, %496 : vector<2x32xf32>
    %c2_261 = arith.constant 2 : index
    %c0_262 = arith.constant 0 : index
    %c0_263 = arith.constant 0 : index
    %498 = vector.load %arg12[%c2_261, %c0_262, %c0_263] : memref<3x32x32xf32, #tpu.memory_space<vmem>>, vector<1x32x32xf32>
    %499 = vector.shape_cast %498 : vector<1x32x32xf32> to vector<32x32xf32>
    %cst_264 = arith.constant dense<0.000000e+00> : vector<2x32xf32>
    %500 = tpu.matmul %497, %499, %cst_264 {dimension_numbers = #tpu.dot_dimension_numbers<[1], [0], [0], [1], [0, 0, 1, 1], [], []>} : vector<2x32xf32>, vector<32x32xf32>, vector<2x32xf32> -> vector<2x32xf32>
    %c2_265 = arith.constant 2 : index
    %c0_266 = arith.constant 0 : index
    %c0_267 = arith.constant 0 : index
    %501 = vector.load %arg13[%c2_265, %c0_266, %c0_267] : memref<3x1x32xf32, #tpu.memory_space<vmem>>, vector<1x1x32xf32>
    %502 = vector.shape_cast %501 : vector<1x1x32xf32> to vector<1x32xf32>
    %503 = vector.broadcast %502 : vector<1x32xf32> to vector<2x32xf32>
    %504 = arith.addf %500, %503 : vector<2x32xf32>
    %505 = arith.addf %477, %504 : vector<2x32xf32>
    %c2_268 = arith.constant 2 : index
    %c0_269 = arith.constant 0 : index
    %c0_270 = arith.constant 0 : index
    %506 = vector.load %arg14[%c2_268, %c0_269, %c0_270] : memref<3x1x32xf32, #tpu.memory_space<vmem>>, vector<1x1x32xf32>
    %507 = vector.shape_cast %506 : vector<1x1x32xf32> to vector<1x32xf32>
    %c2_271 = arith.constant 2 : index
    %c0_272 = arith.constant 0 : index
    %c0_273 = arith.constant 0 : index
    %508 = vector.load %arg15[%c2_271, %c0_272, %c0_273] : memref<3x1x32xf32, #tpu.memory_space<vmem>>, vector<1x1x32xf32>
    %509 = vector.shape_cast %508 : vector<1x1x32xf32> to vector<1x32xf32>
    %cst_274 = arith.constant dense<0.000000e+00> : vector<2xf32>
    %510 = vector.multi_reduction <add>, %505, %cst_274 [1] : vector<2x32xf32> to vector<2xf32>
    %511 = vector.shape_cast %510 : vector<2xf32> to vector<2x1xf32>
    %cst_275 = arith.constant 3.200000e+01 : f32
    %512 = vector.broadcast %cst_275 : f32 to vector<2x1xf32>
    %513 = arith.divf %511, %512 : vector<2x1xf32>
    %514 = vector.broadcast %513 : vector<2x1xf32> to vector<2x32xf32>
    %515 = arith.subf %505, %514 : vector<2x32xf32>
    %516 = vector.broadcast %513 : vector<2x1xf32> to vector<2x32xf32>
    %517 = arith.subf %505, %516 : vector<2x32xf32>
    %518 = arith.mulf %515, %517 : vector<2x32xf32>
    %cst_276 = arith.constant dense<0.000000e+00> : vector<2xf32>
    %519 = vector.multi_reduction <add>, %518, %cst_276 [1] : vector<2x32xf32> to vector<2xf32>
    %520 = vector.shape_cast %519 : vector<2xf32> to vector<2x1xf32>
    %cst_277 = arith.constant 3.200000e+01 : f32
    %521 = vector.broadcast %cst_277 : f32 to vector<2x1xf32>
    %522 = arith.divf %520, %521 : vector<2x1xf32>
    %523 = vector.broadcast %513 : vector<2x1xf32> to vector<2x32xf32>
    %524 = arith.subf %505, %523 : vector<2x32xf32>
    %cst_278 = arith.constant 9.99999974E-6 : f32
    %525 = vector.broadcast %cst_278 : f32 to vector<2x1xf32>
    %526 = arith.addf %522, %525 : vector<2x1xf32>
    %527 = math.rsqrt %526 : vector<2x1xf32>
    %528 = vector.broadcast %527 : vector<2x1xf32> to vector<2x32xf32>
    %529 = arith.mulf %524, %528 : vector<2x32xf32>
    %530 = vector.broadcast %507 : vector<1x32xf32> to vector<2x32xf32>
    %531 = arith.mulf %529, %530 : vector<2x32xf32>
    %532 = vector.broadcast %509 : vector<1x32xf32> to vector<2x32xf32>
    %533 = arith.addf %531, %532 : vector<2x32xf32>
    %c0_279 = arith.constant 0 : index
    %c0_280 = arith.constant 0 : index
    %534 = vector.load %arg18[%c0_279, %c0_280] : memref<1x32xf32, #tpu.memory_space<vmem>>, vector<1x32xf32>
    %c0_281 = arith.constant 0 : index
    %c0_282 = arith.constant 0 : index
    %535 = vector.load %arg19[%c0_281, %c0_282] : memref<1x32xf32, #tpu.memory_space<vmem>>, vector<1x32xf32>
    %cst_283 = arith.constant dense<0.000000e+00> : vector<2xf32>
    %536 = vector.multi_reduction <add>, %533, %cst_283 [1] : vector<2x32xf32> to vector<2xf32>
    %537 = vector.shape_cast %536 : vector<2xf32> to vector<2x1xf32>
    %cst_284 = arith.constant 3.200000e+01 : f32
    %538 = vector.broadcast %cst_284 : f32 to vector<2x1xf32>
    %539 = arith.divf %537, %538 : vector<2x1xf32>
    %540 = vector.broadcast %539 : vector<2x1xf32> to vector<2x32xf32>
    %541 = arith.subf %533, %540 : vector<2x32xf32>
    %542 = vector.broadcast %539 : vector<2x1xf32> to vector<2x32xf32>
    %543 = arith.subf %533, %542 : vector<2x32xf32>
    %544 = arith.mulf %541, %543 : vector<2x32xf32>
    %cst_285 = arith.constant dense<0.000000e+00> : vector<2xf32>
    %545 = vector.multi_reduction <add>, %544, %cst_285 [1] : vector<2x32xf32> to vector<2xf32>
    %546 = vector.shape_cast %545 : vector<2xf32> to vector<2x1xf32>
    %cst_286 = arith.constant 3.200000e+01 : f32
    %547 = vector.broadcast %cst_286 : f32 to vector<2x1xf32>
    %548 = arith.divf %546, %547 : vector<2x1xf32>
    %549 = vector.broadcast %539 : vector<2x1xf32> to vector<2x32xf32>
    %550 = arith.subf %533, %549 : vector<2x32xf32>
    %cst_287 = arith.constant 9.99999974E-6 : f32
    %551 = vector.broadcast %cst_287 : f32 to vector<2x1xf32>
    %552 = arith.addf %548, %551 : vector<2x1xf32>
    %553 = math.rsqrt %552 : vector<2x1xf32>
    %554 = vector.broadcast %553 : vector<2x1xf32> to vector<2x32xf32>
    %555 = arith.mulf %550, %554 : vector<2x32xf32>
    %556 = vector.broadcast %534 : vector<1x32xf32> to vector<2x32xf32>
    %557 = arith.mulf %555, %556 : vector<2x32xf32>
    %558 = vector.broadcast %535 : vector<1x32xf32> to vector<2x32xf32>
    %559 = arith.addf %557, %558 : vector<2x32xf32>
    %c0_288 = arith.constant 0 : index
    %c0_289 = arith.constant 0 : index
    %560 = vector.load %arg20[%c0_288, %c0_289] : memref<1x32xf32, #tpu.memory_space<vmem>>, vector<1x32xf32>
    %561 = vector.broadcast %560 : vector<1x32xf32> to vector<2x32xf32>
    %562 = arith.mulf %559, %561 : vector<2x32xf32>
    %cst_290 = arith.constant dense<0.000000e+00> : vector<2xf32>
    %563 = vector.multi_reduction <add>, %562, %cst_290 [1] : vector<2x32xf32> to vector<2xf32>
    %c0_291 = arith.constant 0 : index
    %c0_292 = arith.constant 0 : index
    %564 = vector.load %arg21[%c0_291, %c0_292] : memref<1x1xf32, #tpu.memory_space<vmem>>, vector<1x1xf32>
    %565 = vector.extract %564[0, 0] : f32 from vector<1x1xf32>
    %566 = vector.broadcast %565 : f32 to vector<2xf32>
    %567 = arith.addf %563, %566 : vector<2xf32>
    %c0_293 = arith.constant 0 : index
    %c0_294 = arith.constant 0 : index
    %c0_295 = arith.constant 0 : index
    %568 = vector.load %arg26[%c0_293, %c0_294, %c0_295] : memref<1x1x2xf32, #tpu.memory_space<vmem>>, vector<1x1x2xf32>
    %569 = vector.shape_cast %568 : vector<1x1x2xf32> to vector<2xf32>
    %570 = vector.shape_cast %567 : vector<2xf32> to vector<1x1x2xf32>
    tpu.vector_store %arg26[%c0_293, %c0_294, %c0_295], %570 {strides = array<i32>} : memref<1x1x2xf32, #tpu.memory_space<vmem>>, vector<1x1x2xf32>,
    return
  }
  func.func @transform_0(%arg0: i32) -> (i32, i32, i32) {
    %c0_i32 = arith.constant 0 : i32
    %c0_i32_0 = arith.constant 0 : i32
    %c0_i32_1 = arith.constant 0 : i32
    return %arg0, %c0_i32, %c0_i32_0 : i32, i32, i32
  }
  func.func @transform_1(%arg0: i32) -> (i32, i32, i32) {
    %c0_i32 = arith.constant 0 : i32
    %c0_i32_0 = arith.constant 0 : i32
    %c0_i32_1 = arith.constant 0 : i32
    %c0_i32_2 = arith.constant 0 : i32
    return %c0_i32, %c0_i32_0, %c0_i32_1 : i32, i32, i32
  }
  func.func @transform_2(%arg0: i32) -> (i32, i32) {
    %c0_i32 = arith.constant 0 : i32
    %c0_i32_0 = arith.constant 0 : i32
    %c0_i32_1 = arith.constant 0 : i32
    return %c0_i32, %c0_i32_0 : i32, i32
  }
  func.func @transform_3(%arg0: i32) -> (i32, i32, i32) {
    %c0_i32 = arith.constant 0 : i32
    %c0_i32_0 = arith.constant 0 : i32
    %c0_i32_1 = arith.constant 0 : i32
    %c0_i32_2 = arith.constant 0 : i32
    return %c0_i32, %c0_i32_0, %c0_i32_1 : i32, i32, i32
  }
  func.func @transform_4(%arg0: i32) -> (i32, i32, i32) {
    %c0_i32 = arith.constant 0 : i32
    %c0_i32_0 = arith.constant 0 : i32
    %c0_i32_1 = arith.constant 0 : i32
    %c0_i32_2 = arith.constant 0 : i32
    return %c0_i32, %c0_i32_0, %c0_i32_1 : i32, i32, i32
  }
  func.func @transform_5(%arg0: i32) -> (i32, i32, i32) {
    %c0_i32 = arith.constant 0 : i32
    %c0_i32_0 = arith.constant 0 : i32
    %c0_i32_1 = arith.constant 0 : i32
    %c0_i32_2 = arith.constant 0 : i32
    return %c0_i32, %c0_i32_0, %c0_i32_1 : i32, i32, i32
  }
  func.func @transform_6(%arg0: i32) -> (i32, i32, i32) {
    %c0_i32 = arith.constant 0 : i32
    %c0_i32_0 = arith.constant 0 : i32
    %c0_i32_1 = arith.constant 0 : i32
    %c0_i32_2 = arith.constant 0 : i32
    return %c0_i32, %c0_i32_0, %c0_i32_1 : i32, i32, i32
  }
  func.func @transform_7(%arg0: i32) -> (i32, i32, i32) {
    %c0_i32 = arith.constant 0 : i32
    %c0_i32_0 = arith.constant 0 : i32
    %c0_i32_1 = arith.constant 0 : i32
    %c0_i32_2 = arith.constant 0 : i32
    return %c0_i32, %c0_i32_0, %c0_i32_1 : i32, i32, i32
  }
  func.func @transform_8(%arg0: i32) -> (i32, i32, i32) {
    %c0_i32 = arith.constant 0 : i32
    %c0_i32_0 = arith.constant 0 : i32
    %c0_i32_1 = arith.constant 0 : i32
    %c0_i32_2 = arith.constant 0 : i32
    return %c0_i32, %c0_i32_0, %c0_i32_1 : i32, i32, i32
  }
  func.func @transform_9(%arg0: i32) -> (i32, i32, i32) {
    %c0_i32 = arith.constant 0 : i32
    %c0_i32_0 = arith.constant 0 : i32
    %c0_i32_1 = arith.constant 0 : i32
    %c0_i32_2 = arith.constant 0 : i32
    return %c0_i32, %c0_i32_0, %c0_i32_1 : i32, i32, i32
  }
  func.func @transform_10(%arg0: i32) -> (i32, i32, i32) {
    %c0_i32 = arith.constant 0 : i32
    %c0_i32_0 = arith.constant 0 : i32
    %c0_i32_1 = arith.constant 0 : i32
    %c0_i32_2 = arith.constant 0 : i32
    return %c0_i32, %c0_i32_0, %c0_i32_1 : i32, i32, i32
  }
  func.func @transform_11(%arg0: i32) -> (i32, i32, i32) {
    %c0_i32 = arith.constant 0 : i32
    %c0_i32_0 = arith.constant 0 : i32
    %c0_i32_1 = arith.constant 0 : i32
    %c0_i32_2 = arith.constant 0 : i32
    return %c0_i32, %c0_i32_0, %c0_i32_1 : i32, i32, i32
  }
  func.func @transform_12(%arg0: i32) -> (i32, i32, i32) {
    %c0_i32 = arith.constant 0 : i32
    %c0_i32_0 = arith.constant 0 : i32
    %c0_i32_1 = arith.constant 0 : i32
    %c0_i32_2 = arith.constant 0 : i32
    return %c0_i32, %c0_i32_0, %c0_i32_1 : i32, i32, i32
  }
  func.func @transform_13(%arg0: i32) -> (i32, i32, i32) {
    %c0_i32 = arith.constant 0 : i32
    %c0_i32_0 = arith.constant 0 : i32
    %c0_i32_1 = arith.constant 0 : i32
    %c0_i32_2 = arith.constant 0 : i32
    return %c0_i32, %c0_i32_0, %c0_i32_1 : i32, i32, i32
  }
  func.func @transform_14(%arg0: i32) -> (i32, i32, i32) {
    %c0_i32 = arith.constant 0 : i32
    %c0_i32_0 = arith.constant 0 : i32
    %c0_i32_1 = arith.constant 0 : i32
    %c0_i32_2 = arith.constant 0 : i32
    return %c0_i32, %c0_i32_0, %c0_i32_1 : i32, i32, i32
  }
  func.func @transform_15(%arg0: i32) -> (i32, i32, i32, i32) {
    %c0_i32 = arith.constant 0 : i32
    %c0_i32_0 = arith.constant 0 : i32
    %c0_i32_1 = arith.constant 0 : i32
    %c0_i32_2 = arith.constant 0 : i32
    %c0_i32_3 = arith.constant 0 : i32
    return %c0_i32, %c0_i32_0, %c0_i32_1, %c0_i32_2 : i32, i32, i32, i32
  }
  func.func @transform_16(%arg0: i32) -> (i32, i32, i32) {
    %c0_i32 = arith.constant 0 : i32
    %c0_i32_0 = arith.constant 0 : i32
    %c0_i32_1 = arith.constant 0 : i32
    %c0_i32_2 = arith.constant 0 : i32
    return %c0_i32, %c0_i32_0, %c0_i32_1 : i32, i32, i32
  }
  func.func @transform_17(%arg0: i32) -> (i32, i32) {
    %c0_i32 = arith.constant 0 : i32
    %c0_i32_0 = arith.constant 0 : i32
    %c0_i32_1 = arith.constant 0 : i32
    return %c0_i32, %c0_i32_0 : i32, i32
  }
  func.func @transform_18(%arg0: i32) -> (i32, i32) {
    %c0_i32 = arith.constant 0 : i32
    %c0_i32_0 = arith.constant 0 : i32
    %c0_i32_1 = arith.constant 0 : i32
    return %c0_i32, %c0_i32_0 : i32, i32
  }
  func.func @transform_19(%arg0: i32) -> (i32, i32) {
    %c0_i32 = arith.constant 0 : i32
    %c0_i32_0 = arith.constant 0 : i32
    %c0_i32_1 = arith.constant 0 : i32
    return %c0_i32, %c0_i32_0 : i32, i32
  }
  func.func @transform_20(%arg0: i32) -> (i32, i32) {
    %c0_i32 = arith.constant 0 : i32
    %c0_i32_0 = arith.constant 0 : i32
    %c0_i32_1 = arith.constant 0 : i32
    return %c0_i32, %c0_i32_0 : i32, i32
  }
  func.func @transform_21(%arg0: i32) -> (i32, i32, i32) {
    %c0_i32 = arith.constant 0 : i32
    %c0_i32_0 = arith.constant 0 : i32
    %c0_i32_1 = arith.constant 0 : i32
    %c0_i32_2 = arith.constant 0 : i32
    return %c0_i32, %c0_i32_0, %c0_i32_1 : i32, i32, i32
  }
  func.func @transform_22(%arg0: i32) -> (i32, i32, i32) {
    %c0_i32 = arith.constant 0 : i32
    %c0_i32_0 = arith.constant 0 : i32
    %c0_i32_1 = arith.constant 0 : i32
    %c0_i32_2 = arith.constant 0 : i32
    return %c0_i32, %c0_i32_0, %c0_i32_1 : i32, i32, i32
  }
  func.func @transform_23(%arg0: i32) -> (i32, i32, i32) {
    %c0_i32 = arith.constant 0 : i32
    %c0_i32_0 = arith.constant 0 : i32
    %c0_i32_1 = arith.constant 0 : i32
    %c0_i32_2 = arith.constant 0 : i32
    return %c0_i32, %c0_i32_0, %c0_i32_1 : i32, i32, i32
  }
  func.func @transform_24(%arg0: i32) -> (i32, i32, i32) {
    %c0_i32 = arith.constant 0 : i32
    %c0_i32_0 = arith.constant 0 : i32
    %c0_i32_1 = arith.constant 0 : i32
    %c0_i32_2 = arith.constant 0 : i32
    return %c0_i32, %c0_i32_0, %c0_i32_1 : i32, i32, i32
  }
  func.func @transform_25(%arg0: i32) -> (i32, i32, i32) {
    %c0_i32 = arith.constant 0 : i32
    %c0_i32_0 = arith.constant 0 : i32
    %c0_i32_1 = arith.constant 0 : i32
    return %arg0, %c0_i32, %c0_i32_0 : i32, i32, i32
  }
}

</mosaic_0001>

<llo_original>
// kernel: informer_forward.1
$region0: #{informer_forward.1}
  #allocation0 [shape = 'u32[]', space=smem, size = 0x4, offset = 0x4, fixed_abs, tag = 'smem constant byte address 0x4 - core index']
  #allocation1 [shape = 'u32[144,128]{1,0:T(1,128)}', space=vmem, size = 0x12000, scoped, tag = 'internal scratch']
  #allocation2 [shape = 'f32[1,1]{1,0:T(1,128)S(1)}', space=vmem, size = 0x200, scoped, tag = 'scoped memory for informer_forward.1']
  %s0 = inlined_call_operand.vmem [shape: f32[2,8,4], index: 0, kind: input, shape index: {}]
  %s1 = inlined_call_operand.vmem [shape: f32[3,4,32], index: 1, kind: input, shape index: {}]
  %s2 = inlined_call_operand.hbm [shape: f32[8,32], index: 2, kind: input, shape index: {}]
  %s3 = inlined_call_operand.vmem [shape: f32[3,32,96], index: 3, kind: input, shape index: {}]
  %s4 = inlined_call_operand.vmem [shape: f32[3,1,96], index: 4, kind: input, shape index: {}]
  %s5 = inlined_call_operand.hbm [shape: f32[3,32,32], index: 5, kind: input, shape index: {}]
  %s6 = inlined_call_operand.hbm [shape: f32[3,1,32], index: 6, kind: input, shape index: {}]
  %s7 = inlined_call_operand.hbm [shape: f32[3,1,32], index: 7, kind: input, shape index: {}]
  %s8 = inlined_call_operand.hbm [shape: f32[3,1,32], index: 8, kind: input, shape index: {}]
  %s9 = inlined_call_operand.hbm [shape: f32[3,32,32], index: 9, kind: input, shape index: {}]
  %s10 = inlined_call_operand.hbm [shape: f32[3,1,32], index: 10, kind: input, shape index: {}]
  %s11 = inlined_call_operand.hbm [shape: f32[3,32,32], index: 11, kind: input, shape index: {}]
  %s12 = inlined_call_operand.hbm [shape: f32[3,1,32], index: 12, kind: input, shape index: {}]
  %s13 = inlined_call_operand.hbm [shape: f32[3,1,32], index: 13, kind: input, shape index: {}]
  %s14 = inlined_call_operand.hbm [shape: f32[3,1,32], index: 14, kind: input, shape index: {}]
  %s15 = inlined_call_operand.hbm [shape: f32[2,3,32,32], index: 15, kind: input, shape index: {}]
  %s16 = inlined_call_operand.hbm [shape: f32[2,1,32], index: 16, kind: input, shape index: {}]
  %s17 = inlined_call_operand.hbm [shape: f32[1,32], index: 17, kind: input, shape index: {}]
  %s18 = inlined_call_operand.hbm [shape: f32[1,32], index: 18, kind: input, shape index: {}]
  %s19 = inlined_call_operand.hbm [shape: f32[1,32], index: 19, kind: input, shape index: {}]
  %s20 = inlined_call_operand.<no memory space> [shape: f32[1,1], index: 20, kind: input, shape index: {}]
  %s21 = inlined_call_operand.hbm [shape: f32[2,8,8], index: 21, kind: input, shape index: {}]
  %s22 = inlined_call_operand.hbm [shape: f32[2,4,4], index: 22, kind: input, shape index: {}]
  %s23 = inlined_call_operand.hbm [shape: f32[3,4,8], index: 23, kind: input, shape index: {}]
  %s24 = inlined_call_operand.hbm [shape: f32[3,2,4], index: 24, kind: input, shape index: {}]
  %s25 = inlined_call_operand.hbm [shape: f32[2,1,2], index: 25, kind: output, shape index: {}]
  %s26 = sld [smem:[#allocation0]]
  $region213: #{informer_forward.1} parent=0
    _
  %s28 = ssub.s32 1, %s26
  %s29 = scalar_select 0, %s28, %s26
  %v30 = vstv %s20
  %31 = vst [vmem:[#allocation2] sm:$0x1] %v30
  $region1: #{informer_forward.1} parent=0
    #allocation3 [shape = 'u8[4096]{0}', space=vmem, size = 0x1000, scoped, tag = 'input window, operand 2, single buffered']
    #allocation4 [shape = 's32[2]{0}', space=sflag, size = 0x8, scoped, tag = 'scoped memory for informer_forward.1']
    #allocation5 [shape = 's32[2]{0}', space=sflag, size = 0x8, scoped, tag = 'scoped memory for informer_forward.1']
    #allocation6 [shape = 'u8[49152]{0}', space=vmem, size = 0xc000, scoped, tag = 'input window, operand 5, single buffered']
    #allocation7 [shape = 's32[1]{0}', space=sflag, size = 0x4, scoped, tag = 'scoped memory for informer_forward.1']
    #allocation8 [shape = 'u8[1536]{0}', space=vmem, size = 0x800, scoped, tag = 'input window, operand 6, single buffered']
    #allocation9 [shape = 'u8[1536]{0}', space=vmem, size = 0x800, scoped, tag = 'input window, operand 7, single buffered']
    #allocation10 [shape = 's32[1]{0}', space=sflag, size = 0x4, scoped, tag = 'scoped memory for informer_forward.1']
    #allocation11 [shape = 'u8[1536]{0}', space=vmem, size = 0x800, scoped, tag = 'input window, operand 8, single buffered']
    #allocation12 [shape = 'u8[49152]{0}', space=vmem, size = 0xc000, scoped, tag = 'input window, operand 9, single buffered']
    #allocation13 [shape = 's32[1]{0}', space=sflag, size = 0x4, scoped, tag = 'scoped memory for informer_forward.1']
    #allocation14 [shape = 'u8[1536]{0}', space=vmem, size = 0x800, scoped, tag = 'input window, operand 10, single buffered']
    #allocation15 [shape = 'u8[49152]{0}', space=vmem, size = 0xc000, scoped, tag = 'input window, operand 11, single buffered']
    #allocation16 [shape = 's32[1]{0}', space=sflag, size = 0x4, scoped, tag = 'scoped memory for informer_forward.1']
    #allocation17 [shape = 'u8[1536]{0}', space=vmem, size = 0x800, scoped, tag = 'input window, operand 12, single buffered']
    #allocation18 [shape = 'u8[1536]{0}', space=vmem, size = 0x800, scoped, tag = 'input window, operand 13, single buffered']
    #allocation19 [shape = 's32[1]{0}', space=sflag, size = 0x4, scoped, tag = 'scoped memory for informer_forward.1']
    #allocation20 [shape = 'u8[1536]{0}', space=vmem, size = 0x800, scoped, tag = 'input window, operand 14, single buffered']
    #allocation21 [shape = 'u8[98304]{0}', space=vmem, size = 0x18000, scoped, tag = 'input window, operand 15, single buffered']
    #allocation22 [shape = 's32[1]{0}', space=sflag, size = 0x4, scoped, tag = 'scoped memory for informer_forward.1']
    #allocation23 [shape = 'u8[1024]{0}', space=vmem, size = 0x400, scoped, tag = 'input window, operand 16, single buffered']
    #allocation24 [shape = 'u8[512]{0}', space=vmem, size = 0x400, scoped, tag = 'input window, operand 17, single buffered']
    #allocation25 [shape = 's32[1]{0}', space=sflag, size = 0x4, scoped, tag = 'scoped memory for informer_forward.1']
    #allocation26 [shape = 'u8[512]{0}', space=vmem, size = 0x400, scoped, tag = 'input window, operand 18, single buffered']
    #allocation27 [shape = 'u8[512]{0}', space=vmem, size = 0x400, scoped, tag = 'input window, operand 19, single buffered']
    #allocation28 [shape = 's32[1]{0}', space=sflag, size = 0x4, scoped, tag = 'scoped memory for informer_forward.1']
    #allocation29 [shape = 'u8[8192]{0}', space=vmem, size = 0x2000, scoped, tag = 'input window, operand 21, single buffered']
    #allocation30 [shape = 'u8[4096]{0}', space=vmem, size = 0x1000, scoped, tag = 'input window, operand 22, single buffered']
    #allocation31 [shape = 's32[1]{0}', space=sflag, size = 0x4, scoped, tag = 'scoped memory for informer_forward.1']
    #allocation32 [shape = 'u8[6144]{0}', space=vmem, size = 0x1800, scoped, tag = 'input window, operand 23, single buffered']
    #allocation33 [shape = 'u8[3072]{0}', space=vmem, size = 0xc00, scoped, tag = 'input window, operand 24, single buffered']
    #allocation34 [shape = 's32[1]{0}', space=sflag, size = 0x4, scoped, tag = 'scoped memory for informer_forward.1']
    #allocation35 [shape = 'u8[1024]{0}', space=vmem, size = 0x400, scoped, tag = 'output window, operand 0']
    %32 = vsyncpa [#allocation4], 0
    %33 = vsyncpa [#allocation7], 0
    %34 = vsyncpa [#allocation10], 0
    %35 = vsyncpa [#allocation13], 0
    %36 = vsyncpa [#allocation16], 0
    %37 = vsyncpa [#allocation19], 0
    %38 = vsyncpa [#allocation22], 0
    %39 = vsyncpa [#allocation25], 0
    %40 = vsyncpa [#allocation28], 0
    %41 = vsyncpa [#allocation31], 0
    %42 = vsyncpa [#allocation34], 0
    %43 = vsyncpa [#allocation5], 0
    %s44 = scalar_lea.sflag [#allocation5], 1
    %45 = vsyncpa %s44, 0
    loop: start=0, step=1, limit=4
    $region2: #{informer_forward.1} parent=1 // loop_pre_header
      _
    $region3: #{informer_forward.1} parent=1 // loop_header
      %s47 = sphi 0, %s51
      %p48 = scmp.ge.s32.totalorder %s47, 4
      %s57 = sphi 0, %s59
      %s60 = sphi 0, %s57
      %s61 = sphi 0, %s60
      %s77 = sphi 0, %s61
      %s81 = sphi 0, %s81
      %s83 = sphi 0, %s81
      %s84 = sphi 0, %s83
      %s98 = sphi 0, %s84
      %s102 = sphi 0, %s102
      %s104 = sphi 0, %s102
      %s105 = sphi 0, %s104
      %s119 = sphi 0, %s105
      %s123 = sphi 0, %s123
      %s125 = sphi 0, %s123
      %s126 = sphi 0, %s125
      %s140 = sphi 0, %s126
      %s144 = sphi 0, %s144
      %s146 = sphi 0, %s144
      %s147 = sphi 0, %s146
      %s161 = sphi 0, %s147
      %s165 = sphi 0, %s165
      %s167 = sphi 0, %s165
      %s168 = sphi 0, %s167
      %s182 = sphi 0, %s168
      %s186 = sphi 0, %s186
      %s188 = sphi 0, %s186
      %s189 = sphi 0, %s188
      %s203 = sphi 0, %s189
      %s207 = sphi 0, %s207
      %s209 = sphi 0, %s207
      %s210 = sphi 0, %s209
      %s224 = sphi 0, %s210
      %s228 = sphi 0, %s228
      %s230 = sphi 0, %s228
      %s231 = sphi 0, %s230
      %s245 = sphi 0, %s231
      %s249 = sphi 0, %s249
      %s251 = sphi 0, %s249
      %s252 = sphi 0, %s251
      %s266 = sphi 0, %s252
      %s270 = sphi 0, %s270
      %s272 = sphi 0, %s270
      %s273 = sphi 0, %s272
      %s287 = sphi 0, %s273
      %s291 = sphi 0, %s291
      %s293 = sphi 0, %s291
      %s294 = sphi 0, %s293
      %s308 = sphi 0, %s294
      %s312 = sphi 0, %s312
      %s314 = sphi 0, %s312
      %s315 = sphi 0, %s314
      %s329 = sphi 0, %s315
      %s333 = sphi 0, %s333
      %s335 = sphi 0, %s333
      %s336 = sphi 0, %s335
      %s350 = sphi 0, %s336
      %s354 = sphi 0, %s354
      %s356 = sphi 0, %s354
      %s357 = sphi 0, %s356
      %s371 = sphi 0, %s357
      %s375 = sphi 0, %s375
      %s377 = sphi 0, %s375
      %s378 = sphi 0, %s377
      %s392 = sphi 0, %s378
      %s396 = sphi 0, %s396
      %s398 = sphi 0, %s396
      %s399 = sphi 0, %s398
      %s413 = sphi 0, %s399
      %s417 = sphi 0, %s417
      %s419 = sphi 0, %s417
      %s420 = sphi 0, %s419
      %s434 = sphi 0, %s420
      %s438 = sphi 0, %s438
      %s440 = sphi 0, %s438
      %s441 = sphi 0, %s440
      %s455 = sphi 0, %s441
      %s459 = sphi 0, %s459
      %s461 = sphi 0, %s459
      %s462 = sphi 0, %s461
      %s476 = sphi 0, %s462
      %s480 = sphi 0, %s480
      %s482 = sphi 0, %s480
      %s483 = sphi 0, %s482
      %s497 = sphi 0, %s483
      %s501 = sphi 0, %s501
      %s503 = sphi 0, %s501
      %s504 = sphi 0, %s503
      %s518 = sphi 0, %s504
      %s522 = sphi 0, %s522
      %s524 = sphi 0, %s522
      %s525 = sphi 0, %s524
      %s539 = sphi 0, %s525
      %s543 = sphi 0, %s543
      %s545 = sphi 0, %s543
      %s546 = sphi 0, %s545
      %s560 = sphi 0, %s546
      %s564 = sphi 0, %s564
      %s566 = sphi 0, %s564
      %s567 = sphi 0, %s566
      %s581 = sphi 0, %s567
      %s587 = sphi 0, %s589
      %s590 = sphi 0, %s587
      %s591 = sphi 0, %s590
      %s607 = sphi 0, %s591
    $region4: #{informer_forward.1} parent=1 // loop_header_branch
      %50 = sbr.rel (%p48) target = $region8
    $region5: #{informer_forward.1} parent=1 // loop_body
      %s52 = ssub.s32 %s47, 1
      %s53 = ssub.s32 %s47, 2
      %s54 = sadd.s32 %s47, 1
      %s55 = ssub.s32 %s47, %s54
      %p56 = scmp.eq.s32.totalorder %s55, 0
      %s58 = sadd.s32 %s57, 1
      %s59 = scalar_select %p56, %s57, %s58
      %p62 = pneg %p56
      %p63 = scmp.eq.s32.totalorder %s47, 1
      %p64 = por %p62, %p63
      %p65 = scmp.ne.s32.totalorder %s57, %s60
      %p66 = scmp.eq.s32.totalorder %s47, 0
      %p67 = por %p65, %p66
      %p68 = scmp.ne.s32.totalorder %s57, %s60
      %p69 = scmp.eq.s32.totalorder %s52, 1
      %p70 = por %p68, %p69
      %p71 = scmp.ne.s32.totalorder %s60, %s61
      %p72 = scmp.eq.s32.totalorder %s52, 0
      %p73 = por %p71, %p72
      %p74 = scmp.ne.s32.totalorder %s60, %s61
      %p75 = scmp.eq.s32.totalorder %s53, 1
      %p76 = por %p74, %p75
      %p78 = scmp.ne.s32.totalorder %s61, %s77
      %p79 = scmp.eq.s32.totalorder %s53, 0
      %p80 = por %p78, %p79
      %s82 = sadd.s32 %s81, 1
      %p85 = scmp.eq.s32.totalorder %s47, 1
      %p86 = scmp.ne.s32.totalorder %s81, %s83
      %p87 = scmp.eq.s32.totalorder %s47, 0
      %p88 = por %p86, %p87
      %p89 = scmp.ne.s32.totalorder %s81, %s83
      %p90 = scmp.eq.s32.totalorder %s52, 1
      %p91 = por %p89, %p90
      %p92 = scmp.ne.s32.totalorder %s83, %s84
      %p93 = scmp.eq.s32.totalorder %s52, 0
      %p94 = por %p92, %p93
      %p95 = scmp.ne.s32.totalorder %s83, %s84
      %p96 = scmp.eq.s32.totalorder %s53, 1
      %p97 = por %p95, %p96
      %p99 = scmp.ne.s32.totalorder %s84, %s98
      %p100 = scmp.eq.s32.totalorder %s53, 0
      %p101 = por %p99, %p100
      %s103 = sadd.s32 %s102, 1
      %p106 = scmp.eq.s32.totalorder %s47, 1
      %p107 = scmp.ne.s32.totalorder %s102, %s104
      %p108 = scmp.eq.s32.totalorder %s47, 0
      %p109 = por %p107, %p108
      %p110 = scmp.ne.s32.totalorder %s102, %s104
      %p111 = scmp.eq.s32.totalorder %s52, 1
      %p112 = por %p110, %p111
      %p113 = scmp.ne.s32.totalorder %s104, %s105
      %p114 = scmp.eq.s32.totalorder %s52, 0
      %p115 = por %p113, %p114
      %p116 = scmp.ne.s32.totalorder %s104, %s105
      %p117 = scmp.eq.s32.totalorder %s53, 1
      %p118 = por %p116, %p117
      %p120 = scmp.ne.s32.totalorder %s105, %s119
      %p121 = scmp.eq.s32.totalorder %s53, 0
      %p122 = por %p120, %p121
      %s124 = sadd.s32 %s123, 1
      %p127 = scmp.eq.s32.totalorder %s47, 1
      %p128 = scmp.ne.s32.totalorder %s123, %s125
      %p129 = scmp.eq.s32.totalorder %s47, 0
      %p130 = por %p128, %p129
      %p131 = scmp.ne.s32.totalorder %s123, %s125
      %p132 = scmp.eq.s32.totalorder %s52, 1
      %p133 = por %p131, %p132
      %p134 = scmp.ne.s32.totalorder %s125, %s126
      %p135 = scmp.eq.s32.totalorder %s52, 0
      %p136 = por %p134, %p135
      %p137 = scmp.ne.s32.totalorder %s125, %s126
      %p138 = scmp.eq.s32.totalorder %s53, 1
      %p139 = por %p137, %p138
      %p141 = scmp.ne.s32.totalorder %s126, %s140
      %p142 = scmp.eq.s32.totalorder %s53, 0
      %p143 = por %p141, %p142
      %s145 = sadd.s32 %s144, 1
      %p148 = scmp.eq.s32.totalorder %s47, 1
      %p149 = scmp.ne.s32.totalorder %s144, %s146
      %p150 = scmp.eq.s32.totalorder %s47, 0
      %p151 = por %p149, %p150
      %p152 = scmp.ne.s32.totalorder %s144, %s146
      %p153 = scmp.eq.s32.totalorder %s52, 1
      %p154 = por %p152, %p153
      %p155 = scmp.ne.s32.totalorder %s146, %s147
      %p156 = scmp.eq.s32.totalorder %s52, 0
      %p157 = por %p155, %p156
      %p158 = scmp.ne.s32.totalorder %s146, %s147
      %p159 = scmp.eq.s32.totalorder %s53, 1
      %p160 = por %p158, %p159
      %p162 = scmp.ne.s32.totalorder %s147, %s161
      %p163 = scmp.eq.s32.totalorder %s53, 0
      %p164 = por %p162, %p163
      %s166 = sadd.s32 %s165, 1
      %p169 = scmp.eq.s32.totalorder %s47, 1
      %p170 = scmp.ne.s32.totalorder %s165, %s167
      %p171 = scmp.eq.s32.totalorder %s47, 0
      %p172 = por %p170, %p171
      %p173 = scmp.ne.s32.totalorder %s165, %s167
      %p174 = scmp.eq.s32.totalorder %s52, 1
      %p175 = por %p173, %p174
      %p176 = scmp.ne.s32.totalorder %s167, %s168
      %p177 = scmp.eq.s32.totalorder %s52, 0
      %p178 = por %p176, %p177
      %p179 = scmp.ne.s32.totalorder %s167, %s168
      %p180 = scmp.eq.s32.totalorder %s53, 1
      %p181 = por %p179, %p180
      %p183 = scmp.ne.s32.totalorder %s168, %s182
      %p184 = scmp.eq.s32.totalorder %s53, 0
      %p185 = por %p183, %p184
      %s187 = sadd.s32 %s186, 1
      %p190 = scmp.eq.s32.totalorder %s47, 1
      %p191 = scmp.ne.s32.totalorder %s186, %s188
      %p192 = scmp.eq.s32.totalorder %s47, 0
      %p193 = por %p191, %p192
      %p194 = scmp.ne.s32.totalorder %s186, %s188
      %p195 = scmp.eq.s32.totalorder %s52, 1
      %p196 = por %p194, %p195
      %p197 = scmp.ne.s32.totalorder %s188, %s189
      %p198 = scmp.eq.s32.totalorder %s52, 0
      %p199 = por %p197, %p198
      %p200 = scmp.ne.s32.totalorder %s188, %s189
      %p201 = scmp.eq.s32.totalorder %s53, 1
      %p202 = por %p200, %p201
      %p204 = scmp.ne.s32.totalorder %s189, %s203
      %p205 = scmp.eq.s32.totalorder %s53, 0
      %p206 = por %p204, %p205
      %s208 = sadd.s32 %s207, 1
      %p211 = scmp.eq.s32.totalorder %s47, 1
      %p212 = scmp.ne.s32.totalorder %s207, %s209
      %p213 = scmp.eq.s32.totalorder %s47, 0
      %p214 = por %p212, %p213
      %p215 = scmp.ne.s32.totalorder %s207, %s209
      %p216 = scmp.eq.s32.totalorder %s52, 1
      %p217 = por %p215, %p216
      %p218 = scmp.ne.s32.totalorder %s209, %s210
      %p219 = scmp.eq.s32.totalorder %s52, 0
      %p220 = por %p218, %p219
      %p221 = scmp.ne.s32.totalorder %s209, %s210
      %p222 = scmp.eq.s32.totalorder %s53, 1
      %p223 = por %p221, %p222
      %p225 = scmp.ne.s32.totalorder %s210, %s224
      %p226 = scmp.eq.s32.totalorder %s53, 0
      %p227 = por %p225, %p226
      %s229 = sadd.s32 %s228, 1
      %p232 = scmp.eq.s32.totalorder %s47, 1
      %p233 = scmp.ne.s32.totalorder %s228, %s230
      %p234 = scmp.eq.s32.totalorder %s47, 0
      %p235 = por %p233, %p234
      %p236 = scmp.ne.s32.totalorder %s228, %s230
      %p237 = scmp.eq.s32.totalorder %s52, 1
      %p238 = por %p236, %p237
      %p239 = scmp.ne.s32.totalorder %s230, %s231
      %p240 = scmp.eq.s32.totalorder %s52, 0
      %p241 = por %p239, %p240
      %p242 = scmp.ne.s32.totalorder %s230, %s231
      %p243 = scmp.eq.s32.totalorder %s53, 1
      %p244 = por %p242, %p243
      %p246 = scmp.ne.s32.totalorder %s231, %s245
      %p247 = scmp.eq.s32.totalorder %s53, 0
      %p248 = por %p246, %p247
      %s250 = sadd.s32 %s249, 1
      %p253 = scmp.eq.s32.totalorder %s47, 1
      %p254 = scmp.ne.s32.totalorder %s249, %s251
      %p255 = scmp.eq.s32.totalorder %s47, 0
      %p256 = por %p254, %p255
      %p257 = scmp.ne.s32.totalorder %s249, %s251
      %p258 = scmp.eq.s32.totalorder %s52, 1
      %p259 = por %p257, %p258
      %p260 = scmp.ne.s32.totalorder %s251, %s252
      %p261 = scmp.eq.s32.totalorder %s52, 0
      %p262 = por %p260, %p261
      %p263 = scmp.ne.s32.totalorder %s251, %s252
      %p264 = scmp.eq.s32.totalorder %s53, 1
      %p265 = por %p263, %p264
      %p267 = scmp.ne.s32.totalorder %s252, %s266
      %p268 = scmp.eq.s32.totalorder %s53, 0
      %p269 = por %p267, %p268
      %s271 = sadd.s32 %s270, 1
      %p274 = scmp.eq.s32.totalorder %s47, 1
      %p275 = scmp.ne.s32.totalorder %s270, %s272
      %p276 = scmp.eq.s32.totalorder %s47, 0
      %p277 = por %p275, %p276
      %p278 = scmp.ne.s32.totalorder %s270, %s272
      %p279 = scmp.eq.s32.totalorder %s52, 1
      %p280 = por %p278, %p279
      %p281 = scmp.ne.s32.totalorder %s272, %s273
      %p282 = scmp.eq.s32.totalorder %s52, 0
      %p283 = por %p281, %p282
      %p284 = scmp.ne.s32.totalorder %s272, %s273
      %p285 = scmp.eq.s32.totalorder %s53, 1
      %p286 = por %p284, %p285
      %p288 = scmp.ne.s32.totalorder %s273, %s287
      %p289 = scmp.eq.s32.totalorder %s53, 0
      %p290 = por %p288, %p289
      %s292 = sadd.s32 %s291, 1
      %p295 = scmp.eq.s32.totalorder %s47, 1
      %p296 = scmp.ne.s32.totalorder %s291, %s293
      %p297 = scmp.eq.s32.totalorder %s47, 0
      %p298 = por %p296, %p297
      %p299 = scmp.ne.s32.totalorder %s291, %s293
      %p300 = scmp.eq.s32.totalorder %s52, 1
      %p301 = por %p299, %p300
      %p302 = scmp.ne.s32.totalorder %s293, %s294
      %p303 = scmp.eq.s32.totalorder %s52, 0
      %p304 = por %p302, %p303
      %p305 = scmp.ne.s32.totalorder %s293, %s294
      %p306 = scmp.eq.s32.totalorder %s53, 1
      %p307 = por %p305, %p306
      %p309 = scmp.ne.s32.totalorder %s294, %s308
      %p310 = scmp.eq.s32.totalorder %s53, 0
      %p311 = por %p309, %p310
      %s313 = sadd.s32 %s312, 1
      %p316 = scmp.eq.s32.totalorder %s47, 1
      %p317 = scmp.ne.s32.totalorder %s312, %s314
      %p318 = scmp.eq.s32.totalorder %s47, 0
      %p319 = por %p317, %p318
      %p320 = scmp.ne.s32.totalorder %s312, %s314
      %p321 = scmp.eq.s32.totalorder %s52, 1
      %p322 = por %p320, %p321
      %p323 = scmp.ne.s32.totalorder %s314, %s315
      %p324 = scmp.eq.s32.totalorder %s52, 0
      %p325 = por %p323, %p324
      %p326 = scmp.ne.s32.totalorder %s314, %s315
      %p327 = scmp.eq.s32.totalorder %s53, 1
      %p328 = por %p326, %p327
      %p330 = scmp.ne.s32.totalorder %s315, %s329
      %p331 = scmp.eq.s32.totalorder %s53, 0
      %p332 = por %p330, %p331
      %s334 = sadd.s32 %s333, 1
      %p337 = scmp.eq.s32.totalorder %s47, 1
      %p338 = scmp.ne.s32.totalorder %s333, %s335
      %p339 = scmp.eq.s32.totalorder %s47, 0
      %p340 = por %p338, %p339
      %p341 = scmp.ne.s32.totalorder %s333, %s335
      %p342 = scmp.eq.s32.totalorder %s52, 1
      %p343 = por %p341, %p342
      %p344 = scmp.ne.s32.totalorder %s335, %s336
      %p345 = scmp.eq.s32.totalorder %s52, 0
      %p346 = por %p344, %p345
      %p347 = scmp.ne.s32.totalorder %s335, %s336
      %p348 = scmp.eq.s32.totalorder %s53, 1
      %p349 = por %p347, %p348
      %p351 = scmp.ne.s32.totalorder %s336, %s350
      %p352 = scmp.eq.s32.totalorder %s53, 0
      %p353 = por %p351, %p352
      %s355 = sadd.s32 %s354, 1
      %p358 = scmp.eq.s32.totalorder %s47, 1
      %p359 = scmp.ne.s32.totalorder %s354, %s356
      %p360 = scmp.eq.s32.totalorder %s47, 0
      %p361 = por %p359, %p360
      %p362 = scmp.ne.s32.totalorder %s354, %s356
      %p363 = scmp.eq.s32.totalorder %s52, 1
      %p364 = por %p362, %p363
      %p365 = scmp.ne.s32.totalorder %s356, %s357
      %p366 = scmp.eq.s32.totalorder %s52, 0
      %p367 = por %p365, %p366
      %p368 = scmp.ne.s32.totalorder %s356, %s357
      %p369 = scmp.eq.s32.totalorder %s53, 1
      %p370 = por %p368, %p369
      %p372 = scmp.ne.s32.totalorder %s357, %s371
      %p373 = scmp.eq.s32.totalorder %s53, 0
      %p374 = por %p372, %p373
      %s376 = sadd.s32 %s375, 1
      %p379 = scmp.eq.s32.totalorder %s47, 1
      %p380 = scmp.ne.s32.totalorder %s375, %s377
      %p381 = scmp.eq.s32.totalorder %s47, 0
      %p382 = por %p380, %p381
      %p383 = scmp.ne.s32.totalorder %s375, %s377
      %p384 = scmp.eq.s32.totalorder %s52, 1
      %p385 = por %p383, %p384
      %p386 = scmp.ne.s32.totalorder %s377, %s378
      %p387 = scmp.eq.s32.totalorder %s52, 0
      %p388 = por %p386, %p387
      %p389 = scmp.ne.s32.totalorder %s377, %s378
      %p390 = scmp.eq.s32.totalorder %s53, 1
      %p391 = por %p389, %p390
      %p393 = scmp.ne.s32.totalorder %s378, %s392
      %p394 = scmp.eq.s32.totalorder %s53, 0
      %p395 = por %p393, %p394
      %s397 = sadd.s32 %s396, 1
      %p400 = scmp.eq.s32.totalorder %s47, 1
      %p401 = scmp.ne.s32.totalorder %s396, %s398
      %p402 = scmp.eq.s32.totalorder %s47, 0
      %p403 = por %p401, %p402
      %p404 = scmp.ne.s32.totalorder %s396, %s398
      %p405 = scmp.eq.s32.totalorder %s52, 1
      %p406 = por %p404, %p405
      %p407 = scmp.ne.s32.totalorder %s398, %s399
      %p408 = scmp.eq.s32.totalorder %s52, 0
      %p409 = por %p407, %p408
      %p410 = scmp.ne.s32.totalorder %s398, %s399
      %p411 = scmp.eq.s32.totalorder %s53, 1
      %p412 = por %p410, %p411
      %p414 = scmp.ne.s32.totalorder %s399, %s413
      %p415 = scmp.eq.s32.totalorder %s53, 0
      %p416 = por %p414, %p415
      %s418 = sadd.s32 %s417, 1
      %p421 = scmp.eq.s32.totalorder %s47, 1
      %p422 = scmp.ne.s32.totalorder %s417, %s419
      %p423 = scmp.eq.s32.totalorder %s47, 0
      %p424 = por %p422, %p423
      %p425 = scmp.ne.s32.totalorder %s417, %s419
      %p426 = scmp.eq.s32.totalorder %s52, 1
      %p427 = por %p425, %p426
      %p428 = scmp.ne.s32.totalorder %s419, %s420
      %p429 = scmp.eq.s32.totalorder %s52, 0
      %p430 = por %p428, %p429
      %p431 = scmp.ne.s32.totalorder %s419, %s420
      %p432 = scmp.eq.s32.totalorder %s53, 1
      %p433 = por %p431, %p432
      %p435 = scmp.ne.s32.totalorder %s420, %s434
      %p436 = scmp.eq.s32.totalorder %s53, 0
      %p437 = por %p435, %p436
      %s439 = sadd.s32 %s438, 1
      %p442 = scmp.eq.s32.totalorder %s47, 1
      %p443 = scmp.ne.s32.totalorder %s438, %s440
      %p444 = scmp.eq.s32.totalorder %s47, 0
      %p445 = por %p443, %p444
      %p446 = scmp.ne.s32.totalorder %s438, %s440
      %p447 = scmp.eq.s32.totalorder %s52, 1
      %p448 = por %p446, %p447
      %p449 = scmp.ne.s32.totalorder %s440, %s441
      %p450 = scmp.eq.s32.totalorder %s52, 0
      %p451 = por %p449, %p450
      %p452 = scmp.ne.s32.totalorder %s440, %s441
      %p453 = scmp.eq.s32.totalorder %s53, 1
      %p454 = por %p452, %p453
      %p456 = scmp.ne.s32.totalorder %s441, %s455
      %p457 = scmp.eq.s32.totalorder %s53, 0
      %p458 = por %p456, %p457
      %s460 = sadd.s32 %s459, 1
      %p463 = scmp.eq.s32.totalorder %s47, 1
      %p464 = scmp.ne.s32.totalorder %s459, %s461
      %p465 = scmp.eq.s32.totalorder %s47, 0
      %p466 = por %p464, %p465
      %p467 = scmp.ne.s32.totalorder %s459, %s461
      %p468 = scmp.eq.s32.totalorder %s52, 1
      %p469 = por %p467, %p468
      %p470 = scmp.ne.s32.totalorder %s461, %s462
      %p471 = scmp.eq.s32.totalorder %s52, 0
      %p472 = por %p470, %p471
      %p473 = scmp.ne.s32.totalorder %s461, %s462
      %p474 = scmp.eq.s32.totalorder %s53, 1
      %p475 = por %p473, %p474
      %p477 = scmp.ne.s32.totalorder %s462, %s476
      %p478 = scmp.eq.s32.totalorder %s53, 0
      %p479 = por %p477, %p478
      %s481 = sadd.s32 %s480, 1
      %p484 = scmp.eq.s32.totalorder %s47, 1
      %p485 = scmp.ne.s32.totalorder %s480, %s482
      %p486 = scmp.eq.s32.totalorder %s47, 0
      %p487 = por %p485, %p486
      %p488 = scmp.ne.s32.totalorder %s480, %s482
      %p489 = scmp.eq.s32.totalorder %s52, 1
      %p490 = por %p488, %p489
      %p491 = scmp.ne.s32.totalorder %s482, %s483
      %p492 = scmp.eq.s32.totalorder %s52, 0
      %p493 = por %p491, %p492
      %p494 = scmp.ne.s32.totalorder %s482, %s483
      %p495 = scmp.eq.s32.totalorder %s53, 1
      %p496 = por %p494, %p495
      %p498 = scmp.ne.s32.totalorder %s483, %s497
      %p499 = scmp.eq.s32.totalorder %s53, 0
      %p500 = por %p498, %p499
      %s502 = sadd.s32 %s501, 1
      %p505 = scmp.eq.s32.totalorder %s47, 1
      %p506 = scmp.ne.s32.totalorder %s501, %s503
      %p507 = scmp.eq.s32.totalorder %s47, 0
      %p508 = por %p506, %p507
      %p509 = scmp.ne.s32.totalorder %s501, %s503
      %p510 = scmp.eq.s32.totalorder %s52, 1
      %p511 = por %p509, %p510
      %p512 = scmp.ne.s32.totalorder %s503, %s504
      %p513 = scmp.eq.s32.totalorder %s52, 0
      %p514 = por %p512, %p513
      %p515 = scmp.ne.s32.totalorder %s503, %s504
      %p516 = scmp.eq.s32.totalorder %s53, 1
      %p517 = por %p515, %p516
      %p519 = scmp.ne.s32.totalorder %s504, %s518
      %p520 = scmp.eq.s32.totalorder %s53, 0
      %p521 = por %p519, %p520
      %s523 = sadd.s32 %s522, 1
      %p526 = scmp.eq.s32.totalorder %s47, 1
      %p527 = scmp.ne.s32.totalorder %s522, %s524
      %p528 = scmp.eq.s32.totalorder %s47, 0
      %p529 = por %p527, %p528
      %p530 = scmp.ne.s32.totalorder %s522, %s524
      %p531 = scmp.eq.s32.totalorder %s52, 1
      %p532 = por %p530, %p531
      %p533 = scmp.ne.s32.totalorder %s524, %s525
      %p534 = scmp.eq.s32.totalorder %s52, 0
      %p535 = por %p533, %p534
      %p536 = scmp.ne.s32.totalorder %s524, %s525
      %p537 = scmp.eq.s32.totalorder %s53, 1
      %p538 = por %p536, %p537
      %p540 = scmp.ne.s32.totalorder %s525, %s539
      %p541 = scmp.eq.s32.totalorder %s53, 0
      %p542 = por %p540, %p541
      %s544 = sadd.s32 %s543, 1
      %p547 = scmp.eq.s32.totalorder %s47, 1
      %p548 = scmp.ne.s32.totalorder %s543, %s545
      %p549 = scmp.eq.s32.totalorder %s47, 0
      %p550 = por %p548, %p549
      %p551 = scmp.ne.s32.totalorder %s543, %s545
      %p552 = scmp.eq.s32.totalorder %s52, 1
      %p553 = por %p551, %p552
      %p554 = scmp.ne.s32.totalorder %s545, %s546
      %p555 = scmp.eq.s32.totalorder %s52, 0
      %p556 = por %p554, %p555
      %p557 = scmp.ne.s32.totalorder %s545, %s546
      %p558 = scmp.eq.s32.totalorder %s53, 1
      %p559 = por %p557, %p558
      %p561 = scmp.ne.s32.totalorder %s546, %s560
      %p562 = scmp.eq.s32.totalorder %s53, 0
      %p563 = por %p561, %p562
      %s565 = sadd.s32 %s564, 1
      %p568 = scmp.eq.s32.totalorder %s47, 1
      %p569 = scmp.ne.s32.totalorder %s564, %s566
      %p570 = scmp.eq.s32.totalorder %s47, 0
      %p571 = por %p569, %p570
      %p572 = scmp.ne.s32.totalorder %s564, %s566
      %p573 = scmp.eq.s32.totalorder %s52, 1
      %p574 = por %p572, %p573
      %p575 = scmp.ne.s32.totalorder %s566, %s567
      %p576 = scmp.eq.s32.totalorder %s52, 0
      %p577 = por %p575, %p576
      %p578 = scmp.ne.s32.totalorder %s566, %s567
      %p579 = scmp.eq.s32.totalorder %s53, 1
      %p580 = por %p578, %p579
      %p582 = scmp.ne.s32.totalorder %s567, %s581
      %p583 = scmp.eq.s32.totalorder %s53, 0
      %p584 = por %p582, %p583
      %s585 = ssub.s32 %s47, %s54
      %p586 = scmp.eq.s32.totalorder %s585, 0
      %s588 = sadd.s32 %s587, 1
      %s589 = scalar_select %p586, %s587, %s588
      %p592 = pneg %p586
      %p593 = scmp.eq.s32.totalorder %s47, 1
      %p594 = por %p592, %p593
      %p595 = scmp.ne.s32.totalorder %s587, %s590
      %p596 = scmp.eq.s32.totalorder %s47, 0
      %p597 = por %p595, %p596
      %p598 = scmp.ne.s32.totalorder %s587, %s590
      %p599 = scmp.eq.s32.totalorder %s52, 1
      %p600 = por %p598, %p599
      %p601 = scmp.ne.s32.totalorder %s590, %s591
      %p602 = scmp.eq.s32.totalorder %s52, 0
      %p603 = por %p601, %p602
      %p604 = scmp.ne.s32.totalorder %s590, %s591
      %p605 = scmp.eq.s32.totalorder %s53, 1
      %p606 = por %p604, %p605
      %p608 = scmp.ne.s32.totalorder %s591, %s607
      %p609 = scmp.eq.s32.totalorder %s53, 0
      %p610 = por %p608, %p609
      %p611 = scmp.le.s32.totalorder 1, %s47
      %p612 = scmp.lt.s32.totalorder %s47, 3
      %p613 = pnand %p611, %p612
      %p614 = pneg %p613
      // Predicated region
      $region9: #{informer_forward.1} parent=5 // pred_check
        _
      $region10: #{informer_forward.1} parent=5 // pred_check_branch
        %616 = sbr.rel (%p613) target = $region12
      $region11: #{informer_forward.1} parent=5 // pred_region
        %s617 = ssub.s32 %s47, 1
        // Predicated region
        $region13: #{informer_forward.1} parent=11 // pred_check
          %p618 = pneg %p94
        $region14: #{informer_forward.1} parent=11 // pred_check_branch
          %620 = sbr.rel (%p618) target = $region16
        $region15: #{informer_forward.1} parent=11 // pred_region
          _
        $region16: #{informer_forward.1} parent=11 // pred_fallthru
          _
        // Predicated region
        $region17: #{informer_forward.1} parent=11 // pred_check
          %p621 = pneg %p115
        $region18: #{informer_forward.1} parent=11 // pred_check_branch
          %623 = sbr.rel (%p621) target = $region20
        $region19: #{informer_forward.1} parent=11 // pred_region
          %s625 = ssub.s32 128, 128
          %626 = vsyncadd [#allocation4], %s625
          %s628 = sshll.u32 [#allocation3], 4
          %s629 = int_to_ptr.vmem [resolvable:$true] %s628
          %631 = dma.hbm_to_vmem [thread:$0]  %s2, 128, %s629, [#allocation4]
        $region20: #{informer_forward.1} parent=11 // pred_fallthru
          _
        // Predicated region
        $region21: #{informer_forward.1} parent=11 // pred_check
          %p632 = pneg %p136
        $region22: #{informer_forward.1} parent=11 // pred_check_branch
          %634 = sbr.rel (%p632) target = $region24
        $region23: #{informer_forward.1} parent=11 // pred_region
          _
        $region24: #{informer_forward.1} parent=11 // pred_fallthru
          _
        // Predicated region
        $region25: #{informer_forward.1} parent=11 // pred_check
          %p635 = pneg %p157
        $region26: #{informer_forward.1} parent=11 // pred_check_branch
          %637 = sbr.rel (%p635) target = $region28
        $region27: #{informer_forward.1} parent=11 // pred_region
          _
        $region28: #{informer_forward.1} parent=11 // pred_fallthru
          _
        // Predicated region
        $region29: #{informer_forward.1} parent=11 // pred_check
          %p638 = pneg %p178
        $region30: #{informer_forward.1} parent=11 // pred_check_branch
          %640 = sbr.rel (%p638) target = $region32
        $region31: #{informer_forward.1} parent=11 // pred_region
          %s642 = ssub.s32 1536, 1536
          %643 = vsyncadd [#allocation7], %s642
          %s644 = sshll.u32 [#allocation6], 4
          %s645 = int_to_ptr.vmem [resolvable:$true] %s644
          %650 = dma.hbm_to_vmem [thread:$0]  %s5, 1536, %s645, [#allocation7], 128, 128, 8
        $region32: #{informer_forward.1} parent=11 // pred_fallthru
          _
        // Predicated region
        $region33: #{informer_forward.1} parent=11 // pred_check
          %p651 = pneg %p199
        $region34: #{informer_forward.1} parent=11 // pred_check_branch
          %653 = sbr.rel (%p651) target = $region36
        $region35: #{informer_forward.1} parent=11 // pred_region
          %s655 = ssub.s32 48, 48
          %656 = vsyncadd [#allocation7], %s655
          %s657 = sshll.u32 [#allocation8], 4
          %s658 = int_to_ptr.vmem [resolvable:$true] %s657
          %663 = dma.hbm_to_vmem [thread:$0]  %s6, 48, %s658, [#allocation7], 16, 16, 1
        $region36: #{informer_forward.1} parent=11 // pred_fallthru
          _
        // Predicated region
        $region37: #{informer_forward.1} parent=11 // pred_check
          %p664 = pneg %p220
        $region38: #{informer_forward.1} parent=11 // pred_check_branch
          %666 = sbr.rel (%p664) target = $region40
        $region39: #{informer_forward.1} parent=11 // pred_region
          %s668 = ssub.s32 48, 48
          %669 = vsyncadd [#allocation10], %s668
          %s670 = sshll.u32 [#allocation9], 4
          %s671 = int_to_ptr.vmem [resolvable:$true] %s670
          %676 = dma.hbm_to_vmem [thread:$0]  %s7, 48, %s671, [#allocation10], 16, 16, 1
        $region40: #{informer_forward.1} parent=11 // pred_fallthru
          _
        // Predicated region
        $region41: #{informer_forward.1} parent=11 // pred_check
          %p677 = pneg %p241
        $region42: #{informer_forward.1} parent=11 // pred_check_branch
          %679 = sbr.rel (%p677) target = $region44
        $region43: #{informer_forward.1} parent=11 // pred_region
          %s681 = ssub.s32 48, 48
          %682 = vsyncadd [#allocation10], %s681
          %s683 = sshll.u32 [#allocation11], 4
          %s684 = int_to_ptr.vmem [resolvable:$true] %s683
          %689 = dma.hbm_to_vmem [thread:$0]  %s8, 48, %s684, [#allocation10], 16, 16, 1
        $region44: #{informer_forward.1} parent=11 // pred_fallthru
          _
        // Predicated region
        $region45: #{informer_forward.1} parent=11 // pred_check
          %p690 = pneg %p262
        $region46: #{informer_forward.1} parent=11 // pred_check_branch
          %692 = sbr.rel (%p690) target = $region48
        $region47: #{informer_forward.1} parent=11 // pred_region
          %s694 = ssub.s32 1536, 1536
          %695 = vsyncadd [#allocation13], %s694
          %s696 = sshll.u32 [#allocation12], 4
          %s697 = int_to_ptr.vmem [resolvable:$true] %s696
          %702 = dma.hbm_to_vmem [thread:$0]  %s9, 1536, %s697, [#allocation13], 128, 128, 8
        $region48: #{informer_forward.1} parent=11 // pred_fallthru
          _
        // Predicated region
        $region49: #{informer_forward.1} parent=11 // pred_check
          %p703 = pneg %p283
        $region50: #{informer_forward.1} parent=11 // pred_check_branch
          %705 = sbr.rel (%p703) target = $region52
        $region51: #{informer_forward.1} parent=11 // pred_region
          %s707 = ssub.s32 48, 48
          %708 = vsyncadd [#allocation13], %s707
          %s709 = sshll.u32 [#allocation14], 4
          %s710 = int_to_ptr.vmem [resolvable:$true] %s709
          %715 = dma.hbm_to_vmem [thread:$0]  %s10, 48, %s710, [#allocation13], 16, 16, 1
        $region52: #{informer_forward.1} parent=11 // pred_fallthru
          _
        // Predicated region
        $region53: #{informer_forward.1} parent=11 // pred_check
          %p716 = pneg %p304
        $region54: #{informer_forward.1} parent=11 // pred_check_branch
          %718 = sbr.rel (%p716) target = $region56
        $region55: #{informer_forward.1} parent=11 // pred_region
          %s720 = ssub.s32 1536, 1536
          %721 = vsyncadd [#allocation16], %s720
          %s722 = sshll.u32 [#allocation15], 4
          %s723 = int_to_ptr.vmem [resolvable:$true] %s722
          %728 = dma.hbm_to_vmem [thread:$0]  %s11, 1536, %s723, [#allocation16], 128, 128, 8
        $region56: #{informer_forward.1} parent=11 // pred_fallthru
          _
        // Predicated region
        $region57: #{informer_forward.1} parent=11 // pred_check
          %p729 = pneg %p325
        $region58: #{informer_forward.1} parent=11 // pred_check_branch
          %731 = sbr.rel (%p729) target = $region60
        $region59: #{informer_forward.1} parent=11 // pred_region
          %s733 = ssub.s32 48, 48
          %734 = vsyncadd [#allocation16], %s733
          %s735 = sshll.u32 [#allocation17], 4
          %s736 = int_to_ptr.vmem [resolvable:$true] %s735
          %741 = dma.hbm_to_vmem [thread:$0]  %s12, 48, %s736, [#allocation16], 16, 16, 1
        $region60: #{informer_forward.1} parent=11 // pred_fallthru
          _
        // Predicated region
        $region61: #{informer_forward.1} parent=11 // pred_check
          %p742 = pneg %p346
        $region62: #{informer_forward.1} parent=11 // pred_check_branch
          %744 = sbr.rel (%p742) target = $region64
        $region63: #{informer_forward.1} parent=11 // pred_region
          %s746 = ssub.s32 48, 48
          %747 = vsyncadd [#allocation19], %s746
          %s748 = sshll.u32 [#allocation18], 4
          %s749 = int_to_ptr.vmem [resolvable:$true] %s748
          %754 = dma.hbm_to_vmem [thread:$0]  %s13, 48, %s749, [#allocation19], 16, 16, 1
        $region64: #{informer_forward.1} parent=11 // pred_fallthru
          _
        // Predicated region
        $region65: #{informer_forward.1} parent=11 // pred_check
          %p755 = pneg %p367
        $region66: #{informer_forward.1} parent=11 // pred_check_branch
          %757 = sbr.rel (%p755) target = $region68
        $region67: #{informer_forward.1} parent=11 // pred_region
          %s759 = ssub.s32 48, 48
          %760 = vsyncadd [#allocation19], %s759
          %s761 = sshll.u32 [#allocation20], 4
          %s762 = int_to_ptr.vmem [resolvable:$true] %s761
          %767 = dma.hbm_to_vmem [thread:$0]  %s14, 48, %s762, [#allocation19], 16, 16, 1
        $region68: #{informer_forward.1} parent=11 // pred_fallthru
          _
        // Predicated region
        $region69: #{informer_forward.1} parent=11 // pred_check
          %p768 = pneg %p388
        $region70: #{informer_forward.1} parent=11 // pred_check_branch
          %770 = sbr.rel (%p768) target = $region72
        $region71: #{informer_forward.1} parent=11 // pred_region
          %s772 = ssub.s32 3072, 3072
          %773 = vsyncadd [#allocation22], %s772
          %s774 = sshll.u32 [#allocation21], 4
          %s775 = int_to_ptr.vmem [resolvable:$true] %s774
          %780 = dma.hbm_to_vmem [thread:$0]  %s15, 3072, %s775, [#allocation22], 128, 128, 8
        $region72: #{informer_forward.1} parent=11 // pred_fallthru
          _
        // Predicated region
        $region73: #{informer_forward.1} parent=11 // pred_check
          %p781 = pneg %p409
        $region74: #{informer_forward.1} parent=11 // pred_check_branch
          %783 = sbr.rel (%p781) target = $region76
        $region75: #{informer_forward.1} parent=11 // pred_region
          %s785 = ssub.s32 32, 32
          %786 = vsyncadd [#allocation22], %s785
          %s787 = sshll.u32 [#allocation23], 4
          %s788 = int_to_ptr.vmem [resolvable:$true] %s787
          %793 = dma.hbm_to_vmem [thread:$0]  %s16, 32, %s788, [#allocation22], 16, 16, 1
        $region76: #{informer_forward.1} parent=11 // pred_fallthru
          _
        // Predicated region
        $region77: #{informer_forward.1} parent=11 // pred_check
          %p794 = pneg %p430
        $region78: #{informer_forward.1} parent=11 // pred_check_branch
          %796 = sbr.rel (%p794) target = $region80
        $region79: #{informer_forward.1} parent=11 // pred_region
          %s798 = ssub.s32 16, 16
          %799 = vsyncadd [#allocation25], %s798
          %s801 = sshll.u32 [#allocation24], 4
          %s802 = int_to_ptr.vmem [resolvable:$true] %s801
          %804 = dma.hbm_to_vmem [thread:$0]  %s17, 16, %s802, [#allocation25]
        $region80: #{informer_forward.1} parent=11 // pred_fallthru
          _
        // Predicated region
        $region81: #{informer_forward.1} parent=11 // pred_check
          %p805 = pneg %p451
        $region82: #{informer_forward.1} parent=11 // pred_check_branch
          %807 = sbr.rel (%p805) target = $region84
        $region83: #{informer_forward.1} parent=11 // pred_region
          %s809 = ssub.s32 16, 16
          %810 = vsyncadd [#allocation25], %s809
          %s812 = sshll.u32 [#allocation26], 4
          %s813 = int_to_ptr.vmem [resolvable:$true] %s812
          %815 = dma.hbm_to_vmem [thread:$0]  %s18, 16, %s813, [#allocation25]
        $region84: #{informer_forward.1} parent=11 // pred_fallthru
          _
        // Predicated region
        $region85: #{informer_forward.1} parent=11 // pred_check
          %p816 = pneg %p472
        $region86: #{informer_forward.1} parent=11 // pred_check_branch
          %818 = sbr.rel (%p816) target = $region88
        $region87: #{informer_forward.1} parent=11 // pred_region
          %s820 = ssub.s32 16, 16
          %821 = vsyncadd [#allocation28], %s820
          %s823 = sshll.u32 [#allocation27], 4
          %s824 = int_to_ptr.vmem [resolvable:$true] %s823
          %826 = dma.hbm_to_vmem [thread:$0]  %s19, 16, %s824, [#allocation28]
        $region88: #{informer_forward.1} parent=11 // pred_fallthru
          _
        // Predicated region
        $region89: #{informer_forward.1} parent=11 // pred_check
          %p827 = pneg %p493
        $region90: #{informer_forward.1} parent=11 // pred_check_branch
          %829 = sbr.rel (%p827) target = $region92
        $region91: #{informer_forward.1} parent=11 // pred_region
          _
        $region92: #{informer_forward.1} parent=11 // pred_fallthru
          _
        // Predicated region
        $region93: #{informer_forward.1} parent=11 // pred_check
          %p830 = pneg %p514
        $region94: #{informer_forward.1} parent=11 // pred_check_branch
          %832 = sbr.rel (%p830) target = $region96
        $region95: #{informer_forward.1} parent=11 // pred_region
          %s834 = ssub.s32 256, 256
          %835 = vsyncadd [#allocation28], %s834
          %s836 = sshll.u32 [#allocation29], 4
          %s837 = int_to_ptr.vmem [resolvable:$true] %s836
          %842 = dma.hbm_to_vmem [thread:$0]  %s21, 256, %s837, [#allocation28], 128, 128, 8
        $region96: #{informer_forward.1} parent=11 // pred_fallthru
          _
        // Predicated region
        $region97: #{informer_forward.1} parent=11 // pred_check
          %p843 = pneg %p535
        $region98: #{informer_forward.1} parent=11 // pred_check_branch
          %845 = sbr.rel (%p843) target = $region100
        $region99: #{informer_forward.1} parent=11 // pred_region
          %s847 = ssub.s32 128, 128
          %848 = vsyncadd [#allocation31], %s847
          %s849 = sshll.u32 [#allocation30], 4
          %s850 = int_to_ptr.vmem [resolvable:$true] %s849
          %855 = dma.hbm_to_vmem [thread:$0]  %s22, 128, %s850, [#allocation31], 64, 64, 4
        $region100: #{informer_forward.1} parent=11 // pred_fallthru
          _
        // Predicated region
        $region101: #{informer_forward.1} parent=11 // pred_check
          %p856 = pneg %p556
        $region102: #{informer_forward.1} parent=11 // pred_check_branch
          %858 = sbr.rel (%p856) target = $region104
        $region103: #{informer_forward.1} parent=11 // pred_region
          %s860 = ssub.s32 192, 192
          %861 = vsyncadd [#allocation31], %s860
          %s862 = sshll.u32 [#allocation32], 4
          %s863 = int_to_ptr.vmem [resolvable:$true] %s862
          %868 = dma.hbm_to_vmem [thread:$0]  %s23, 192, %s863, [#allocation31], 64, 64, 4
        $region104: #{informer_forward.1} parent=11 // pred_fallthru
          _
        // Predicated region
        $region105: #{informer_forward.1} parent=11 // pred_check
          %p869 = pneg %p577
        $region106: #{informer_forward.1} parent=11 // pred_check_branch
          %871 = sbr.rel (%p869) target = $region108
        $region107: #{informer_forward.1} parent=11 // pred_region
          %s873 = ssub.s32 96, 96
          %874 = vsyncadd [#allocation34], %s873
          %s875 = sshll.u32 [#allocation33], 4
          %s876 = int_to_ptr.vmem [resolvable:$true] %s875
          %881 = dma.hbm_to_vmem [thread:$0]  %s24, 96, %s876, [#allocation34], 32, 32, 2
        $region108: #{informer_forward.1} parent=11 // pred_fallthru
          _
      $region12: #{informer_forward.1} parent=5 // pred_fallthru
        _
      %p882 = scmp.lt.s32.totalorder %s47, 2
      // Predicated region
      $region109: #{informer_forward.1} parent=5 // pred_check
        %p883 = pneg %p882
      $region110: #{informer_forward.1} parent=5 // pred_check_branch
        %885 = sbr.rel (%p883) target = $region112
      $region111: #{informer_forward.1} parent=5 // pred_region
        // Predicated region
        $region113: #{informer_forward.1} parent=111 // pred_check
          %p886 = pneg %p67
        $region114: #{informer_forward.1} parent=111 // pred_check_branch
          %888 = sbr.rel (%p886) target = $region116
        $region115: #{informer_forward.1} parent=111 // pred_region
          %p889 = scmp.lt.s32.totalorder %s47, 1
          %s890 = scalar_select %p889, %s47, 1
          %s891 = smul.addr %s890, 8
          %s892 = scalar_lea.vmem %s0, %s891
        $region116: #{informer_forward.1} parent=111 // pred_fallthru
          _
      $region112: #{informer_forward.1} parent=5 // pred_fallthru
        _
      %p893 = scmp.le.s32.totalorder 1, %s47
      %p894 = scmp.lt.s32.totalorder %s47, 3
      %p895 = pnand %p893, %p894
      %p896 = pneg %p895
      // Predicated region
      $region117: #{informer_forward.1} parent=5 // pred_check
        _
      $region118: #{informer_forward.1} parent=5 // pred_check_branch
        %898 = sbr.rel (%p895) target = $region120
      $region119: #{informer_forward.1} parent=5 // pred_region
        %s899 = ssub.s32 %s47, 1
        // Predicated region
        $region121: #{informer_forward.1} parent=119 // pred_check
          %p900 = pneg %p115
        $region122: #{informer_forward.1} parent=119 // pred_check_branch
          %902 = sbr.rel (%p900) target = $region124
        $region123: #{informer_forward.1} parent=119 // pred_region
          %903 = dma.done [#allocation4], 128
        $region124: #{informer_forward.1} parent=119 // pred_fallthru
          _
        // Predicated region
        $region125: #{informer_forward.1} parent=119 // pred_check
          %p904 = pneg %p178
        $region126: #{informer_forward.1} parent=119 // pred_check_branch
          %906 = sbr.rel (%p904) target = $region128
        $region127: #{informer_forward.1} parent=119 // pred_region
          %907 = dma.done [#allocation7], 1536
        $region128: #{informer_forward.1} parent=119 // pred_fallthru
          _
        // Predicated region
        $region129: #{informer_forward.1} parent=119 // pred_check
          %p908 = pneg %p199
        $region130: #{informer_forward.1} parent=119 // pred_check_branch
          %910 = sbr.rel (%p908) target = $region132
        $region131: #{informer_forward.1} parent=119 // pred_region
          %911 = dma.done [#allocation7], 48
        $region132: #{informer_forward.1} parent=119 // pred_fallthru
          _
        // Predicated region
        $region133: #{informer_forward.1} parent=119 // pred_check
          %p912 = pneg %p220
        $region134: #{informer_forward.1} parent=119 // pred_check_branch
          %914 = sbr.rel (%p912) target = $region136
        $region135: #{informer_forward.1} parent=119 // pred_region
          %915 = dma.done [#allocation10], 48
        $region136: #{informer_forward.1} parent=119 // pred_fallthru
          _
        // Predicated region
        $region137: #{informer_forward.1} parent=119 // pred_check
          %p916 = pneg %p241
        $region138: #{informer_forward.1} parent=119 // pred_check_branch
          %918 = sbr.rel (%p916) target = $region140
        $region139: #{informer_forward.1} parent=119 // pred_region
          %919 = dma.done [#allocation10], 48
        $region140: #{informer_forward.1} parent=119 // pred_fallthru
          _
        // Predicated region
        $region141: #{informer_forward.1} parent=119 // pred_check
          %p920 = pneg %p262
        $region142: #{informer_forward.1} parent=119 // pred_check_branch
          %922 = sbr.rel (%p920) target = $region144
        $region143: #{informer_forward.1} parent=119 // pred_region
          %923 = dma.done [#allocation13], 1536
        $region144: #{informer_forward.1} parent=119 // pred_fallthru
          _
        // Predicated region
        $region145: #{informer_forward.1} parent=119 // pred_check
          %p924 = pneg %p283
        $region146: #{informer_forward.1} parent=119 // pred_check_branch
          %926 = sbr.rel (%p924) target = $region148
        $region147: #{informer_forward.1} parent=119 // pred_region
          %927 = dma.done [#allocation13], 48
        $region148: #{informer_forward.1} parent=119 // pred_fallthru
          _
        // Predicated region
        $region149: #{informer_forward.1} parent=119 // pred_check
          %p928 = pneg %p304
        $region150: #{informer_forward.1} parent=119 // pred_check_branch
          %930 = sbr.rel (%p928) target = $region152
        $region151: #{informer_forward.1} parent=119 // pred_region
          %931 = dma.done [#allocation16], 1536
        $region152: #{informer_forward.1} parent=119 // pred_fallthru
          _
        // Predicated region
        $region153: #{informer_forward.1} parent=119 // pred_check
          %p932 = pneg %p325
        $region154: #{informer_forward.1} parent=119 // pred_check_branch
          %934 = sbr.rel (%p932) target = $region156
        $region155: #{informer_forward.1} parent=119 // pred_region
          %935 = dma.done [#allocation16], 48
        $region156: #{informer_forward.1} parent=119 // pred_fallthru
          _
        // Predicated region
        $region157: #{informer_forward.1} parent=119 // pred_check
          %p936 = pneg %p346
        $region158: #{informer_forward.1} parent=119 // pred_check_branch
          %938 = sbr.rel (%p936) target = $region160
        $region159: #{informer_forward.1} parent=119 // pred_region
          %939 = dma.done [#allocation19], 48
        $region160: #{informer_forward.1} parent=119 // pred_fallthru
          _
        // Predicated region
        $region161: #{informer_forward.1} parent=119 // pred_check
          %p940 = pneg %p367
        $region162: #{informer_forward.1} parent=119 // pred_check_branch
          %942 = sbr.rel (%p940) target = $region164
        $region163: #{informer_forward.1} parent=119 // pred_region
          %943 = dma.done [#allocation19], 48
        $region164: #{informer_forward.1} parent=119 // pred_fallthru
          _
        // Predicated region
        $region165: #{informer_forward.1} parent=119 // pred_check
          %p944 = pneg %p388
        $region166: #{informer_forward.1} parent=119 // pred_check_branch
          %946 = sbr.rel (%p944) target = $region168
        $region167: #{informer_forward.1} parent=119 // pred_region
          %947 = dma.done [#allocation22], 3072
        $region168: #{informer_forward.1} parent=119 // pred_fallthru
          _
        // Predicated region
        $region169: #{informer_forward.1} parent=119 // pred_check
          %p948 = pneg %p409
        $region170: #{informer_forward.1} parent=119 // pred_check_branch
          %950 = sbr.rel (%p948) target = $region172
        $region171: #{informer_forward.1} parent=119 // pred_region
          %951 = dma.done [#allocation22], 32
        $region172: #{informer_forward.1} parent=119 // pred_fallthru
          _
        // Predicated region
        $region173: #{informer_forward.1} parent=119 // pred_check
          %p952 = pneg %p430
        $region174: #{informer_forward.1} parent=119 // pred_check_branch
          %954 = sbr.rel (%p952) target = $region176
        $region175: #{informer_forward.1} parent=119 // pred_region
          %955 = dma.done [#allocation25], 16
        $region176: #{informer_forward.1} parent=119 // pred_fallthru
          _
        // Predicated region
        $region177: #{informer_forward.1} parent=119 // pred_check
          %p956 = pneg %p451
        $region178: #{informer_forward.1} parent=119 // pred_check_branch
          %958 = sbr.rel (%p956) target = $region180
        $region179: #{informer_forward.1} parent=119 // pred_region
          %959 = dma.done [#allocation25], 16
        $region180: #{informer_forward.1} parent=119 // pred_fallthru
          _
        // Predicated region
        $region181: #{informer_forward.1} parent=119 // pred_check
          %p960 = pneg %p472
        $region182: #{informer_forward.1} parent=119 // pred_check_branch
          %962 = sbr.rel (%p960) target = $region184
        $region183: #{informer_forward.1} parent=119 // pred_region
          %963 = dma.done [#allocation28], 16
        $region184: #{informer_forward.1} parent=119 // pred_fallthru
          _
        // Predicated region
        $region185: #{informer_forward.1} parent=119 // pred_check
          %p964 = pneg %p514
        $region186: #{informer_forward.1} parent=119 // pred_check_branch
          %966 = sbr.rel (%p964) target = $region188
        $region187: #{informer_forward.1} parent=119 // pred_region
          %967 = dma.done [#allocation28], 256
        $region188: #{informer_forward.1} parent=119 // pred_fallthru
          _
        // Predicated region
        $region189: #{informer_forward.1} parent=119 // pred_check
          %p968 = pneg %p535
        $region190: #{informer_forward.1} parent=119 // pred_check_branch
          %970 = sbr.rel (%p968) target = $region192
        $region191: #{informer_forward.1} parent=119 // pred_region
          %971 = dma.done [#allocation31], 128
        $region192: #{informer_forward.1} parent=119 // pred_fallthru
          _
        // Predicated region
        $region193: #{informer_forward.1} parent=119 // pred_check
          %p972 = pneg %p556
        $region194: #{informer_forward.1} parent=119 // pred_check_branch
          %974 = sbr.rel (%p972) target = $region196
        $region195: #{informer_forward.1} parent=119 // pred_region
          %975 = dma.done [#allocation31], 192
        $region196: #{informer_forward.1} parent=119 // pred_fallthru
          _
        // Predicated region
        $region197: #{informer_forward.1} parent=119 // pred_check
          %p976 = pneg %p577
        $region198: #{informer_forward.1} parent=119 // pred_check_branch
          %978 = sbr.rel (%p976) target = $region200
        $region199: #{informer_forward.1} parent=119 // pred_region
          %979 = dma.done [#allocation34], 96
        $region200: #{informer_forward.1} parent=119 // pred_fallthru
          _
        %p980 = scmp.lt.s32.totalorder %s52, 1
        %s981 = scalar_select %p980, %s52, 1
        %s982 = smul.addr %s981, 8
        %s983 = scalar_lea.vmem %s0, %s982
        %p984 = pneg %p73
        %p985 = pneg %p70
        %p986 = pneg %p94
        %p987 = pneg %p91
        %p988 = pneg %p115
        %p989 = pneg %p112
        %p990 = pneg %p136
        %p991 = pneg %p133
        %p992 = pneg %p157
        %p993 = pneg %p154
        %p994 = pneg %p178
        %p995 = pneg %p175
        %p996 = pneg %p199
        %p997 = pneg %p196
        %p998 = pneg %p220
        %p999 = pneg %p217
        %p1000 = pneg %p241
        %p1001 = pneg %p238
        %p1002 = pneg %p262
        %p1003 = pneg %p259
        %p1004 = pneg %p283
        %p1005 = pneg %p280
        %p1006 = pneg %p304
        %p1007 = pneg %p301
        %p1008 = pneg %p325
        %p1009 = pneg %p322
        %p1010 = pneg %p346
        %p1011 = pneg %p343
        %p1012 = pneg %p367
        %p1013 = pneg %p364
        %p1014 = pneg %p388
        %p1015 = pneg %p385
        %p1016 = pneg %p409
        %p1017 = pneg %p406
        %p1018 = pneg %p430
        %p1019 = pneg %p427
        %p1020 = pneg %p451
        %p1021 = pneg %p448
        %p1022 = pneg %p472
        %p1023 = pneg %p469
        %p1024 = pneg %p493
        %p1025 = pneg %p490
        %p1026 = pneg %p514
        %p1027 = pneg %p511
        %p1028 = pneg %p535
        %p1029 = pneg %p532
        %p1030 = pneg %p556
        %p1031 = pneg %p553
        %p1032 = pneg %p577
        %p1033 = pneg %p574
        %p1034 = pneg %p603
        %p1035 = pneg %p600
        %s1036 = sand.u32 %s590, 1
        %s1037 = scalar_lea.sflag [#allocation5], %s1036
        %s1038 = sand.u32 %s590, 1
        %s1039 = scalar_lea.vmem [#allocation35], %s1038
        %p1040 = scmp.lt.s32.totalorder %s52, 1
        %s1041 = scalar_select %p1040, %s52, 1
        %s1042 = smul.addr %s1041, 8
        %s1043 = scalar_lea.vmem %s0, %s1042
        %v1044 = vld [vmem:[%s1043] sm:$0xff]
        %v1045 = vld [vmem:[%s1] sm:$0xf]
        %s1046 = scalar_lea.vmem %s1, 4
        %v1047 = vld [vmem:[%s1046] sm:$0xf]
        %s1048 = scalar_lea.vmem %s1, 8
        %v1049 = vld [vmem:[%s1048] sm:$0xf]
        %v1050 = vld [vmem:[#allocation3] sm:$0xff]
        %v1051 = vld [vmem:[#allocation29] sm:$0xff]
        %s1052 = scalar_lea.vmem [#allocation29], 8
        %v1053 = vld [vmem:[%s1052] sm:$0xff]
        %vm1054 = vcmask 31744
        %v1056 = vsel %vm1054, %v1044, 0
        %vm1058 = vcmask 1043456
        %v1060 = vsel %vm1058, %v1045, 0
        %1062 = vmatprep.subr.mxu0 0.0
        %1063 = vmatpush1.msra.mxu0 %v1060
        %1064 = vmatprep.subr.mxu0 0.0
        %1065 = vmatpush1.msra.mxu0 0.0
        %1066 = vmatprep.subr.mxu0 0.0
        %1067 = vmatpush1.msra.mxu0 0.0
        %1068 = vmatprep.subr.mxu0 0.0
        %1069 = vmatpush1.msra.mxu0 0.0
        %1070 = vmatprep.subr.mxu0 0.0
        %1071 = vmatpush1.msra.mxu0 0.0
        %1072 = vmatprep.subr.mxu0 0.0
        %1073 = vmatpush1.msra.mxu0 0.0
        %1074 = vmatprep.subr.mxu0 0.0
        %1075 = vmatpush1.msra.mxu0 0.0
        %1076 = vmatprep.subr.mxu0 0.0
        %1077 = vmatpush1.msra.mxu0 0.0
        %1078 = vmatprep.subr.mxu0 0.0
        %1079 = vmatpush1.msra.mxu0 0.0
        %1080 = vmatprep.subr.mxu0 0.0
        %1081 = vmatpush1.msra.mxu0 0.0
        %1082 = vmatprep.subr.mxu0 0.0
        %1083 = vmatpush1.msra.mxu0 0.0
        %1084 = vmatprep.subr.mxu0 0.0
        %1085 = vmatpush1.msra.mxu0 0.0
        %1086 = vmatprep.subr.mxu0 0.0
        %1087 = vmatpush1.msra.mxu0 0.0
        %1088 = vmatprep.subr.mxu0 0.0
        %1089 = vmatpush1.msra.mxu0 0.0
        %1090 = vmatprep.subr.mxu0 0.0
        %1091 = vmatpush1.msra.mxu0 0.0
        %1092 = vmatprep.subr.mxu0 0.0
        %1093 = vmatpush1.msra.mxu0 0.0
        %1094 = vmatprep.subr.mxu0 0.0
        %1095 = vmatpush1.msra.mxu0 0.0
        %1096 = vmatprep.subr.mxu0 0.0
        %1097 = vmatpush1.msra.mxu0 0.0
        %1098 = vmatprep.subr.mxu0 0.0
        %1099 = vmatpush1.msra.mxu0 0.0
        %1100 = vmatprep.subr.mxu0 0.0
        %1101 = vmatpush1.msra.mxu0 0.0
        %1102 = vmatprep.subr.mxu0 0.0
        %1103 = vmatpush1.msra.mxu0 0.0
        %1104 = vmatprep.subr.mxu0 0.0
        %1105 = vmatpush1.msra.mxu0 0.0
        %1106 = vmatprep.subr.mxu0 0.0
        %1107 = vmatpush1.msra.mxu0 0.0
        %1108 = vmatprep.subr.mxu0 0.0
        %1109 = vmatpush1.msra.mxu0 0.0
        %1110 = vmatprep.subr.mxu0 0.0
        %1111 = vmatpush1.msra.mxu0 0.0
        %1112 = vmatprep.subr.mxu0 0.0
        %1113 = vmatpush1.msra.mxu0 0.0
        %1114 = vmatprep.subr.mxu0 0.0
        %1115 = vmatpush1.msra.mxu0 0.0
        %1116 = vmatprep.subr.mxu0 0.0
        %1117 = vmatpush1.msra.mxu0 0.0
        %1118 = vmatprep.subr.mxu0 0.0
        %1119 = vmatpush1.msra.mxu0 0.0
        %1120 = vmatprep.subr.mxu0 0.0
        %1121 = vmatpush1.msra.mxu0 0.0
        %1122 = vmatprep.subr.mxu0 0.0
        %1123 = vmatpush1.msra.mxu0 0.0
        %1124 = vmatprep.subr.mxu0 0.0
        %1125 = vmatpush1.msra.mxu0 0.0
        %1126 = vmatprep.mubr.f32.mxu0 0.0
        %1127 = vmatmul.mubr.f32.gmra.mrb[0].mxu0 %v1056
        %v1128 = vpop.f32.mrb[0].mxu0
        %v1129 = vadd.f32 0.0, %v1128
        %v1130 = vpop.f32.mrb[0].mxu0
        %1131 = vdwg.mxu0
        %v1133 = vsel %vm1058, %v1047, 0
        %1135 = vmatprep.subr.mxu0 0.0
        %1136 = vmatpush1.msra.mxu0 %v1133
        %1137 = vmatprep.subr.mxu0 0.0
        %1138 = vmatpush1.msra.mxu0 0.0
        %1139 = vmatprep.subr.mxu0 0.0
        %1140 = vmatpush1.msra.mxu0 0.0
        %1141 = vmatprep.subr.mxu0 0.0
        %1142 = vmatpush1.msra.mxu0 0.0
        %1143 = vmatprep.subr.mxu0 0.0
        %1144 = vmatpush1.msra.mxu0 0.0
        %1145 = vmatprep.subr.mxu0 0.0
        %1146 = vmatpush1.msra.mxu0 0.0
        %1147 = vmatprep.subr.mxu0 0.0
        %1148 = vmatpush1.msra.mxu0 0.0
        %1149 = vmatprep.subr.mxu0 0.0
        %1150 = vmatpush1.msra.mxu0 0.0
        %1151 = vmatprep.subr.mxu0 0.0
        %1152 = vmatpush1.msra.mxu0 0.0
        %1153 = vmatprep.subr.mxu0 0.0
        %1154 = vmatpush1.msra.mxu0 0.0
        %1155 = vmatprep.subr.mxu0 0.0
        %1156 = vmatpush1.msra.mxu0 0.0
        %1157 = vmatprep.subr.mxu0 0.0
        %1158 = vmatpush1.msra.mxu0 0.0
        %1159 = vmatprep.subr.mxu0 0.0
        %1160 = vmatpush1.msra.mxu0 0.0
        %1161 = vmatprep.subr.mxu0 0.0
        %1162 = vmatpush1.msra.mxu0 0.0
        %1163 = vmatprep.subr.mxu0 0.0
        %1164 = vmatpush1.msra.mxu0 0.0
        %1165 = vmatprep.subr.mxu0 0.0
        %1166 = vmatpush1.msra.mxu0 0.0
        %1167 = vmatprep.subr.mxu0 0.0
        %1168 = vmatpush1.msra.mxu0 0.0
        %1169 = vmatprep.subr.mxu0 0.0
        %1170 = vmatpush1.msra.mxu0 0.0
        %1171 = vmatprep.subr.mxu0 0.0
        %1172 = vmatpush1.msra.mxu0 0.0
        %1173 = vmatprep.subr.mxu0 0.0
        %1174 = vmatpush1.msra.mxu0 0.0
        %1175 = vmatprep.subr.mxu0 0.0
        %1176 = vmatpush1.msra.mxu0 0.0
        %1177 = vmatprep.subr.mxu0 0.0
        %1178 = vmatpush1.msra.mxu0 0.0
        %1179 = vmatprep.subr.mxu0 0.0
        %1180 = vmatpush1.msra.mxu0 0.0
        %1181 = vmatprep.subr.mxu0 0.0
        %1182 = vmatpush1.msra.mxu0 0.0
        %1183 = vmatprep.subr.mxu0 0.0
        %1184 = vmatpush1.msra.mxu0 0.0
        %1185 = vmatprep.subr.mxu0 0.0
        %1186 = vmatpush1.msra.mxu0 0.0
        %1187 = vmatprep.subr.mxu0 0.0
        %1188 = vmatpush1.msra.mxu0 0.0
        %1189 = vmatprep.subr.mxu0 0.0
        %1190 = vmatpush1.msra.mxu0 0.0
        %1191 = vmatprep.subr.mxu0 0.0
        %1192 = vmatpush1.msra.mxu0 0.0
        %1193 = vmatprep.subr.mxu0 0.0
        %1194 = vmatpush1.msra.mxu0 0.0
        %1195 = vmatprep.subr.mxu0 0.0
        %1196 = vmatpush1.msra.mxu0 0.0
        %1197 = vmatprep.subr.mxu0 0.0
        %1198 = vmatpush1.msra.mxu0 0.0
        %1199 = vmatprep.mubr.f32.mxu0 0.0
        %1200 = vmatmul.mubr.f32.gmra.mrb[0].mxu0 %v1056
        %v1201 = vpop.f32.mrb[0].mxu0
        %v1202 = vadd.f32 0.0, %v1201
        %v1203 = vpop.f32.mrb[0].mxu0
        %1204 = vdwg.mxu0
        %vm1205 = vcmask 64512
        %v1207 = vsel %vm1205, %v1051, 0
        %1209 = vmatprep.subr.mxu0 0.0
        %1210 = vmatpush1.msra.mxu0 %v1129
        %1211 = vmatprep.subr.mxu0 0.0
        %1212 = vmatpush1.msra.mxu0 0.0
        %1213 = vmatprep.subr.mxu0 0.0
        %1214 = vmatpush1.msra.mxu0 0.0
        %1215 = vmatprep.subr.mxu0 0.0
        %1216 = vmatpush1.msra.mxu0 0.0
        %1217 = vmatprep.subr.mxu0 0.0
        %1218 = vmatpush1.msra.mxu0 0.0
        %1219 = vmatprep.subr.mxu0 0.0
        %1220 = vmatpush1.msra.mxu0 0.0
        %1221 = vmatprep.subr.mxu0 0.0
        %1222 = vmatpush1.msra.mxu0 0.0
        %1223 = vmatprep.subr.mxu0 0.0
        %1224 = vmatpush1.msra.mxu0 0.0
        %1225 = vmatprep.subr.mxu0 0.0
        %1226 = vmatpush1.msra.mxu0 0.0
        %1227 = vmatprep.subr.mxu0 0.0
        %1228 = vmatpush1.msra.mxu0 0.0
        %1229 = vmatprep.subr.mxu0 0.0
        %1230 = vmatpush1.msra.mxu0 0.0
        %1231 = vmatprep.subr.mxu0 0.0
        %1232 = vmatpush1.msra.mxu0 0.0
        %1233 = vmatprep.subr.mxu0 0.0
        %1234 = vmatpush1.msra.mxu0 0.0
        %1235 = vmatprep.subr.mxu0 0.0
        %1236 = vmatpush1.msra.mxu0 0.0
        %1237 = vmatprep.subr.mxu0 0.0
        %1238 = vmatpush1.msra.mxu0 0.0
        %1239 = vmatprep.subr.mxu0 0.0
        %1240 = vmatpush1.msra.mxu0 0.0
        %1241 = vmatprep.subr.mxu0 0.0
        %1242 = vmatpush1.msra.mxu0 0.0
        %1243 = vmatprep.subr.mxu0 0.0
        %1244 = vmatpush1.msra.mxu0 0.0
        %1245 = vmatprep.subr.mxu0 0.0
        %1246 = vmatpush1.msra.mxu0 0.0
        %1247 = vmatprep.subr.mxu0 0.0
        %1248 = vmatpush1.msra.mxu0 0.0
        %1249 = vmatprep.subr.mxu0 0.0
        %1250 = vmatpush1.msra.mxu0 0.0
        %1251 = vmatprep.subr.mxu0 0.0
        %1252 = vmatpush1.msra.mxu0 0.0
        %1253 = vmatprep.subr.mxu0 0.0
        %1254 = vmatpush1.msra.mxu0 0.0
        %1255 = vmatprep.subr.mxu0 0.0
        %1256 = vmatpush1.msra.mxu0 0.0
        %1257 = vmatprep.subr.mxu0 0.0
        %1258 = vmatpush1.msra.mxu0 0.0
        %1259 = vmatprep.subr.mxu0 0.0
        %1260 = vmatpush1.msra.mxu0 0.0
        %1261 = vmatprep.subr.mxu0 0.0
        %1262 = vmatpush1.msra.mxu0 0.0
        %1263 = vmatprep.subr.mxu0 0.0
        %1264 = vmatpush1.msra.mxu0 0.0
        %1265 = vmatprep.subr.mxu0 0.0
        %1266 = vmatpush1.msra.mxu0 0.0
        %1267 = vmatprep.subr.mxu0 0.0
        %1268 = vmatpush1.msra.mxu0 0.0
        %1269 = vmatprep.subr.mxu0 0.0
        %1270 = vmatpush1.msra.mxu0 0.0
        %1271 = vmatprep.subr.mxu0 0.0
        %1272 = vmatpush1.msra.mxu0 0.0
        %1273 = vmatprep.mubr.f32.mxu0 0.0
        %1274 = vmatmul.mubr.f32.gmra.mrb[0].mxu0 %v1207
        %v1275 = vpop.f32.mrb[0].mxu0
        %v1276 = vadd.f32 %v1202, %v1275
        %v1277 = vpop.f32.mrb[0].mxu0
        %1278 = vdwg.mxu0
        %v1280 = vsel %vm1058, %v1049, 0
        %1282 = vmatprep.subr.mxu0 0.0
        %1283 = vmatpush1.msra.mxu0 %v1280
        %1284 = vmatprep.subr.mxu0 0.0
        %1285 = vmatpush1.msra.mxu0 0.0
        %1286 = vmatprep.subr.mxu0 0.0
        %1287 = vmatpush1.msra.mxu0 0.0
        %1288 = vmatprep.subr.mxu0 0.0
        %1289 = vmatpush1.msra.mxu0 0.0
        %1290 = vmatprep.subr.mxu0 0.0
        %1291 = vmatpush1.msra.mxu0 0.0
        %1292 = vmatprep.subr.mxu0 0.0
        %1293 = vmatpush1.msra.mxu0 0.0
        %1294 = vmatprep.subr.mxu0 0.0
        %1295 = vmatpush1.msra.mxu0 0.0
        %1296 = vmatprep.subr.mxu0 0.0
        %1297 = vmatpush1.msra.mxu0 0.0
        %1298 = vmatprep.subr.mxu0 0.0
        %1299 = vmatpush1.msra.mxu0 0.0
        %1300 = vmatprep.subr.mxu0 0.0
        %1301 = vmatpush1.msra.mxu0 0.0
        %1302 = vmatprep.subr.mxu0 0.0
        %1303 = vmatpush1.msra.mxu0 0.0
        %1304 = vmatprep.subr.mxu0 0.0
        %1305 = vmatpush1.msra.mxu0 0.0
        %1306 = vmatprep.subr.mxu0 0.0
        %1307 = vmatpush1.msra.mxu0 0.0
        %1308 = vmatprep.subr.mxu0 0.0
        %1309 = vmatpush1.msra.mxu0 0.0
        %1310 = vmatprep.subr.mxu0 0.0
        %1311 = vmatpush1.msra.mxu0 0.0
        %1312 = vmatprep.subr.mxu0 0.0
        %1313 = vmatpush1.msra.mxu0 0.0
        %1314 = vmatprep.subr.mxu0 0.0
        %1315 = vmatpush1.msra.mxu0 0.0
        %1316 = vmatprep.subr.mxu0 0.0
        %1317 = vmatpush1.msra.mxu0 0.0
        %1318 = vmatprep.subr.mxu0 0.0
        %1319 = vmatpush1.msra.mxu0 0.0
        %1320 = vmatprep.subr.mxu0 0.0
        %1321 = vmatpush1.msra.mxu0 0.0
        %1322 = vmatprep.subr.mxu0 0.0
        %1323 = vmatpush1.msra.mxu0 0.0
        %1324 = vmatprep.subr.mxu0 0.0
        %1325 = vmatpush1.msra.mxu0 0.0
        %1326 = vmatprep.subr.mxu0 0.0
        %1327 = vmatpush1.msra.mxu0 0.0
        %1328 = vmatprep.subr.mxu0 0.0
        %1329 = vmatpush1.msra.mxu0 0.0
        %1330 = vmatprep.subr.mxu0 0.0
        %1331 = vmatpush1.msra.mxu0 0.0
        %1332 = vmatprep.subr.mxu0 0.0
        %1333 = vmatpush1.msra.mxu0 0.0
        %1334 = vmatprep.subr.mxu0 0.0
        %1335 = vmatpush1.msra.mxu0 0.0
        %1336 = vmatprep.subr.mxu0 0.0
        %1337 = vmatpush1.msra.mxu0 0.0
        %1338 = vmatprep.subr.mxu0 0.0
        %1339 = vmatpush1.msra.mxu0 0.0
        %1340 = vmatprep.subr.mxu0 0.0
        %1341 = vmatpush1.msra.mxu0 0.0
        %1342 = vmatprep.subr.mxu0 0.0
        %1343 = vmatpush1.msra.mxu0 0.0
        %1344 = vmatprep.subr.mxu0 0.0
        %1345 = vmatpush1.msra.mxu0 0.0
        %1346 = vmatprep.mubr.f32.mxu0 0.0
        %1347 = vmatmul.mubr.f32.gmra.mrb[0].mxu0 %v1056
        %v1348 = vpop.f32.mrb[0].mxu0
        %v1349 = vadd.f32 0.0, %v1348
        %v1350 = vpop.f32.mrb[0].mxu0
        %1351 = vdwg.mxu0
        %v1353 = vsel %vm1205, %v1053, 0
        %1355 = vmatprep.subr.mxu0 0.0
        %1356 = vmatpush1.msra.mxu0 %v1349
        %1357 = vmatprep.subr.mxu0 0.0
        %1358 = vmatpush1.msra.mxu0 0.0
        %1359 = vmatprep.subr.mxu0 0.0
        %1360 = vmatpush1.msra.mxu0 0.0
        %1361 = vmatprep.subr.mxu0 0.0
        %1362 = vmatpush1.msra.mxu0 0.0
        %1363 = vmatprep.subr.mxu0 0.0
        %1364 = vmatpush1.msra.mxu0 0.0
        %1365 = vmatprep.subr.mxu0 0.0
        %1366 = vmatpush1.msra.mxu0 0.0
        %1367 = vmatprep.subr.mxu0 0.0
        %1368 = vmatpush1.msra.mxu0 0.0
        %1369 = vmatprep.subr.mxu0 0.0
        %1370 = vmatpush1.msra.mxu0 0.0
        %1371 = vmatprep.subr.mxu0 0.0
        %1372 = vmatpush1.msra.mxu0 0.0
        %1373 = vmatprep.subr.mxu0 0.0
        %1374 = vmatpush1.msra.mxu0 0.0
        %1375 = vmatprep.subr.mxu0 0.0
        %1376 = vmatpush1.msra.mxu0 0.0
        %1377 = vmatprep.subr.mxu0 0.0
        %1378 = vmatpush1.msra.mxu0 0.0
        %1379 = vmatprep.subr.mxu0 0.0
        %1380 = vmatpush1.msra.mxu0 0.0
        %1381 = vmatprep.subr.mxu0 0.0
        %1382 = vmatpush1.msra.mxu0 0.0
        %1383 = vmatprep.subr.mxu0 0.0
        %1384 = vmatpush1.msra.mxu0 0.0
        %1385 = vmatprep.subr.mxu0 0.0
        %1386 = vmatpush1.msra.mxu0 0.0
        %1387 = vmatprep.subr.mxu0 0.0
        %1388 = vmatpush1.msra.mxu0 0.0
        %1389 = vmatprep.subr.mxu0 0.0
        %1390 = vmatpush1.msra.mxu0 0.0
        %1391 = vmatprep.subr.mxu0 0.0
        %1392 = vmatpush1.msra.mxu0 0.0
        %1393 = vmatprep.subr.mxu0 0.0
        %1394 = vmatpush1.msra.mxu0 0.0
        %1395 = vmatprep.subr.mxu0 0.0
        %1396 = vmatpush1.msra.mxu0 0.0
        %1397 = vmatprep.subr.mxu0 0.0
        %1398 = vmatpush1.msra.mxu0 0.0
        %1399 = vmatprep.subr.mxu0 0.0
        %1400 = vmatpush1.msra.mxu0 0.0
        %1401 = vmatprep.subr.mxu0 0.0
        %1402 = vmatpush1.msra.mxu0 0.0
        %1403 = vmatprep.subr.mxu0 0.0
        %1404 = vmatpush1.msra.mxu0 0.0
        %1405 = vmatprep.subr.mxu0 0.0
        %1406 = vmatpush1.msra.mxu0 0.0
        %1407 = vmatprep.subr.mxu0 0.0
        %1408 = vmatpush1.msra.mxu0 0.0
        %1409 = vmatprep.subr.mxu0 0.0
        %1410 = vmatpush1.msra.mxu0 0.0
        %1411 = vmatprep.subr.mxu0 0.0
        %1412 = vmatpush1.msra.mxu0 0.0
        %1413 = vmatprep.subr.mxu0 0.0
        %1414 = vmatpush1.msra.mxu0 0.0
        %1415 = vmatprep.subr.mxu0 0.0
        %1416 = vmatpush1.msra.mxu0 0.0
        %1417 = vmatprep.subr.mxu0 0.0
        %1418 = vmatpush1.msra.mxu0 0.0
        %1419 = vmatprep.mubr.f32.mxu0 0.0
        %1420 = vmatmul.mubr.f32.gmra.mrb[0].mxu0 %v1353
        %v1421 = vpop.f32.mrb[0].mxu0
        %v1422 = vadd.f32 0.0, %v1421
        %v1423 = vpop.f32.mrb[0].mxu0
        %1424 = vdwg.mxu0
        %v1425 = vadd.f32 %v1276, %v1422
        %v1426 = vadd.f32 %v1425, %v1050
        %v1427 = vld [vmem:[%s3] sm:$0xff]
        %v1428 = vld [vmem:[%s3 + $0x8] sm:$0xff]
        %v1429 = vld [vmem:[%s3 + $0x10] sm:$0xff]
        %v1430 = vld [vmem:[%s3 + $0x18] sm:$0xff]
        %v1431 = vld [vmem:[%s4] sm:$0x1]
        %v1433 = vlaneseq
        %v1434 = vshrl.u32 %v1433, 7
        %v1435 = vsub.s32 0, %v1434
        %v1436 = vrot.slane %v1431, %v1435
        %vm1438 = vcmask 261120
        %v1440 = vsel %vm1438, %v1426, 0
        %1442 = vmatprep.subr.mxu0 0.0
        %1443 = vmatpush1.msra.mxu0 %v1427
        %1444 = vmatprep.subr.mxu0 0.0
        %1445 = vmatpush1.msra.mxu0 %v1428
        %1446 = vmatprep.subr.mxu0 0.0
        %1447 = vmatpush1.msra.mxu0 %v1429
        %1448 = vmatprep.subr.mxu0 0.0
        %1449 = vmatpush1.msra.mxu0 %v1430
        %1450 = vmatprep.subr.mxu0 0.0
        %1451 = vmatpush1.msra.mxu0 0.0
        %1452 = vmatprep.subr.mxu0 0.0
        %1453 = vmatpush1.msra.mxu0 0.0
        %1454 = vmatprep.subr.mxu0 0.0
        %1455 = vmatpush1.msra.mxu0 0.0
        %1456 = vmatprep.subr.mxu0 0.0
        %1457 = vmatpush1.msra.mxu0 0.0
        %1458 = vmatprep.subr.mxu0 0.0
        %1459 = vmatpush1.msra.mxu0 0.0
        %1460 = vmatprep.subr.mxu0 0.0
        %1461 = vmatpush1.msra.mxu0 0.0
        %1462 = vmatprep.subr.mxu0 0.0
        %1463 = vmatpush1.msra.mxu0 0.0
        %1464 = vmatprep.subr.mxu0 0.0
        %1465 = vmatpush1.msra.mxu0 0.0
        %1466 = vmatprep.subr.mxu0 0.0
        %1467 = vmatpush1.msra.mxu0 0.0
        %1468 = vmatprep.subr.mxu0 0.0
        %1469 = vmatpush1.msra.mxu0 0.0
        %1470 = vmatprep.subr.mxu0 0.0
        %1471 = vmatpush1.msra.mxu0 0.0
        %1472 = vmatprep.subr.mxu0 0.0
        %1473 = vmatpush1.msra.mxu0 0.0
        %1474 = vmatprep.subr.mxu0 0.0
        %1475 = vmatpush1.msra.mxu0 0.0
        %1476 = vmatprep.subr.mxu0 0.0
        %1477 = vmatpush1.msra.mxu0 0.0
        %1478 = vmatprep.subr.mxu0 0.0
        %1479 = vmatpush1.msra.mxu0 0.0
        %1480 = vmatprep.subr.mxu0 0.0
        %1481 = vmatpush1.msra.mxu0 0.0
        %1482 = vmatprep.subr.mxu0 0.0
        %1483 = vmatpush1.msra.mxu0 0.0
        %1484 = vmatprep.subr.mxu0 0.0
        %1485 = vmatpush1.msra.mxu0 0.0
        %1486 = vmatprep.subr.mxu0 0.0
        %1487 = vmatpush1.msra.mxu0 0.0
        %1488 = vmatprep.subr.mxu0 0.0
        %1489 = vmatpush1.msra.mxu0 0.0
        %1490 = vmatprep.subr.mxu0 0.0
        %1491 = vmatpush1.msra.mxu0 0.0
        %1492 = vmatprep.subr.mxu0 0.0
        %1493 = vmatpush1.msra.mxu0 0.0
        %1494 = vmatprep.subr.mxu0 0.0
        %1495 = vmatpush1.msra.mxu0 0.0
        %1496 = vmatprep.subr.mxu0 0.0
        %1497 = vmatpush1.msra.mxu0 0.0
        %1498 = vmatprep.subr.mxu0 0.0
        %1499 = vmatpush1.msra.mxu0 0.0
        %1500 = vmatprep.subr.mxu0 0.0
        %1501 = vmatpush1.msra.mxu0 0.0
        %1502 = vmatprep.subr.mxu0 0.0
        %1503 = vmatpush1.msra.mxu0 0.0
        %1504 = vmatprep.subr.mxu0 0.0
        %1505 = vmatpush1.msra.mxu0 0.0
        %1506 = vmatprep.mubr.f32.mxu0 0.0
        %1507 = vmatmul.mubr.f32.gmra.mrb[0].mxu0 %v1440
        %v1508 = vpop.f32.mrb[0].mxu0
        %v1509 = vadd.f32 %v1436, %v1508
        %v1510 = vpop.f32.mrb[0].mxu0
        %1511 = vdwg.mxu0
        %1513 = vrot.lane.b32.xlu0 %v1509, 96
        %v1514 = vpop.permute.xlu0 %1513
        %v1515 = vsel %vm1205, %v1509, 0
        %v1517 = vsel %vm1205, %v1514, 0
        %1519 = vmatprep.subr.mxu0 0.0
        %1520 = vmatpush1.xpose.msra.mxu0 %v1517
        %1521 = vmatprep.subr.mxu0 0.0
        %1522 = vmatpush1.xpose.msra.mxu0 0.0
        %1523 = vmatprep.subr.mxu0 0.0
        %1524 = vmatpush1.xpose.msra.mxu0 0.0
        %1525 = vmatprep.subr.mxu0 0.0
        %1526 = vmatpush1.xpose.msra.mxu0 0.0
        %1527 = vmatprep.subr.mxu0 0.0
        %1528 = vmatpush1.xpose.msra.mxu0 0.0
        %1529 = vmatprep.subr.mxu0 0.0
        %1530 = vmatpush1.xpose.msra.mxu0 0.0
        %1531 = vmatprep.subr.mxu0 0.0
        %1532 = vmatpush1.xpose.msra.mxu0 0.0
        %1533 = vmatprep.subr.mxu0 0.0
        %1534 = vmatpush1.xpose.msra.mxu0 0.0
        %1535 = vmatprep.subr.mxu0 0.0
        %1536 = vmatpush1.xpose.msra.mxu0 0.0
        %1537 = vmatprep.subr.mxu0 0.0
        %1538 = vmatpush1.xpose.msra.mxu0 0.0
        %1539 = vmatprep.subr.mxu0 0.0
        %1540 = vmatpush1.xpose.msra.mxu0 0.0
        %1541 = vmatprep.subr.mxu0 0.0
        %1542 = vmatpush1.xpose.msra.mxu0 0.0
        %1543 = vmatprep.subr.mxu0 0.0
        %1544 = vmatpush1.xpose.msra.mxu0 0.0
        %1545 = vmatprep.subr.mxu0 0.0
        %1546 = vmatpush1.xpose.msra.mxu0 0.0
        %1547 = vmatprep.subr.mxu0 0.0
        %1548 = vmatpush1.xpose.msra.mxu0 0.0
        %1549 = vmatprep.subr.mxu0 0.0
        %1550 = vmatpush1.xpose.msra.mxu0 0.0
        %1551 = vmatprep.subr.mxu0 0.0
        %1552 = vmatpush1.xpose.msra.mxu0 0.0
        %1553 = vmatprep.subr.mxu0 0.0
        %1554 = vmatpush1.xpose.msra.mxu0 0.0
        %1555 = vmatprep.subr.mxu0 0.0
        %1556 = vmatpush1.xpose.msra.mxu0 0.0
        %1557 = vmatprep.subr.mxu0 0.0
        %1558 = vmatpush1.xpose.msra.mxu0 0.0
        %1559 = vmatprep.subr.mxu0 0.0
        %1560 = vmatpush1.xpose.msra.mxu0 0.0
        %1561 = vmatprep.subr.mxu0 0.0
        %1562 = vmatpush1.xpose.msra.mxu0 0.0
        %1563 = vmatprep.subr.mxu0 0.0
        %1564 = vmatpush1.xpose.msra.mxu0 0.0
        %1565 = vmatprep.subr.mxu0 0.0
        %1566 = vmatpush1.xpose.msra.mxu0 0.0
        %1567 = vmatprep.subr.mxu0 0.0
        %1568 = vmatpush1.xpose.msra.mxu0 0.0
        %1569 = vmatprep.subr.mxu0 0.0
        %1570 = vmatpush1.xpose.msra.mxu0 0.0
        %1571 = vmatprep.subr.mxu0 0.0
        %1572 = vmatpush1.xpose.msra.mxu0 0.0
        %1573 = vmatprep.subr.mxu0 0.0
        %1574 = vmatpush1.xpose.msra.mxu0 0.0
        %1575 = vmatprep.subr.mxu0 0.0
        %1576 = vmatpush1.xpose.msra.mxu0 0.0
        %1577 = vmatprep.subr.mxu0 0.0
        %1578 = vmatpush1.xpose.msra.mxu0 0.0
        %1579 = vmatprep.subr.mxu0 0.0
        %1580 = vmatpush1.xpose.msra.mxu0 0.0
        %1581 = vmatprep.subr.mxu0 0.0
        %1582 = vmatpush1.xpose.msra.mxu0 0.0
        %1583 = vmatprep.mubr.f32.mxu0 0.0
        %1584 = vmatmul.mubr.f32.gmra.mrb[0].mxu0 %v1515
        %v1585 = vpop.f32.mrb[0].mxu0
        %v1586 = vadd.f32 0.0, %v1585
        %v1587 = vpop.f32.mrb[0].mxu0
        %1588 = vdwg.mxu0
        %1589 = vrot.lane.b32.xlu0 %v1509, 120
        %v1590 = vpop.permute.xlu0 %1589
        %1591 = vrot.lane.b32.xlu0 %v1509, 88
        %v1592 = vpop.permute.xlu0 %1591
        %v1593 = vsel %vm1205, %v1590, 0
        %v1595 = vsel %vm1205, %v1592, 0
        %1597 = vmatprep.subr.mxu0 0.0
        %1598 = vmatpush1.xpose.msra.mxu0 %v1595
        %1599 = vmatprep.subr.mxu0 0.0
        %1600 = vmatpush1.xpose.msra.mxu0 0.0
        %1601 = vmatprep.subr.mxu0 0.0
        %1602 = vmatpush1.xpose.msra.mxu0 0.0
        %1603 = vmatprep.subr.mxu0 0.0
        %1604 = vmatpush1.xpose.msra.mxu0 0.0
        %1605 = vmatprep.subr.mxu0 0.0
        %1606 = vmatpush1.xpose.msra.mxu0 0.0
        %1607 = vmatprep.subr.mxu0 0.0
        %1608 = vmatpush1.xpose.msra.mxu0 0.0
        %1609 = vmatprep.subr.mxu0 0.0
        %1610 = vmatpush1.xpose.msra.mxu0 0.0
        %1611 = vmatprep.subr.mxu0 0.0
        %1612 = vmatpush1.xpose.msra.mxu0 0.0
        %1613 = vmatprep.subr.mxu0 0.0
        %1614 = vmatpush1.xpose.msra.mxu0 0.0
        %1615 = vmatprep.subr.mxu0 0.0
        %1616 = vmatpush1.xpose.msra.mxu0 0.0
        %1617 = vmatprep.subr.mxu0 0.0
        %1618 = vmatpush1.xpose.msra.mxu0 0.0
        %1619 = vmatprep.subr.mxu0 0.0
        %1620 = vmatpush1.xpose.msra.mxu0 0.0
        %1621 = vmatprep.subr.mxu0 0.0
        %1622 = vmatpush1.xpose.msra.mxu0 0.0
        %1623 = vmatprep.subr.mxu0 0.0
        %1624 = vmatpush1.xpose.msra.mxu0 0.0
        %1625 = vmatprep.subr.mxu0 0.0
        %1626 = vmatpush1.xpose.msra.mxu0 0.0
        %1627 = vmatprep.subr.mxu0 0.0
        %1628 = vmatpush1.xpose.msra.mxu0 0.0
        %1629 = vmatprep.subr.mxu0 0.0
        %1630 = vmatpush1.xpose.msra.mxu0 0.0
        %1631 = vmatprep.subr.mxu0 0.0
        %1632 = vmatpush1.xpose.msra.mxu0 0.0
        %1633 = vmatprep.subr.mxu0 0.0
        %1634 = vmatpush1.xpose.msra.mxu0 0.0
        %1635 = vmatprep.subr.mxu0 0.0
        %1636 = vmatpush1.xpose.msra.mxu0 0.0
        %1637 = vmatprep.subr.mxu0 0.0
        %1638 = vmatpush1.xpose.msra.mxu0 0.0
        %1639 = vmatprep.subr.mxu0 0.0
        %1640 = vmatpush1.xpose.msra.mxu0 0.0
        %1641 = vmatprep.subr.mxu0 0.0
        %1642 = vmatpush1.xpose.msra.mxu0 0.0
        %1643 = vmatprep.subr.mxu0 0.0
        %1644 = vmatpush1.xpose.msra.mxu0 0.0
        %1645 = vmatprep.subr.mxu0 0.0
        %1646 = vmatpush1.xpose.msra.mxu0 0.0
        %1647 = vmatprep.subr.mxu0 0.0
        %1648 = vmatpush1.xpose.msra.mxu0 0.0
        %1649 = vmatprep.subr.mxu0 0.0
        %1650 = vmatpush1.xpose.msra.mxu0 0.0
        %1651 = vmatprep.subr.mxu0 0.0
        %1652 = vmatpush1.xpose.msra.mxu0 0.0
        %1653 = vmatprep.subr.mxu0 0.0
        %1654 = vmatpush1.xpose.msra.mxu0 0.0
        %1655 = vmatprep.subr.mxu0 0.0
        %1656 = vmatpush1.xpose.msra.mxu0 0.0
        %1657 = vmatprep.subr.mxu0 0.0
        %1658 = vmatpush1.xpose.msra.mxu0 0.0
        %1659 = vmatprep.subr.mxu0 0.0
        %1660 = vmatpush1.xpose.msra.mxu0 0.0
        %1661 = vmatprep.mubr.f32.mxu0 0.0
        %1662 = vmatmul.mubr.f32.gmra.mrb[0].mxu0 %v1593
        %v1663 = vpop.f32.mrb[0].mxu0
        %v1664 = vadd.f32 0.0, %v1663
        %v1665 = vpop.f32.mrb[0].mxu0
        %1666 = vdwg.mxu0
        %1667 = vrot.lane.b32.xlu0 %v1509, 112
        %v1668 = vpop.permute.xlu0 %1667
        %1669 = vrot.lane.b32.xlu0 %v1509, 80
        %v1670 = vpop.permute.xlu0 %1669
        %v1671 = vsel %vm1205, %v1668, 0
        %v1673 = vsel %vm1205, %v1670, 0
        %1675 = vmatprep.subr.mxu0 0.0
        %1676 = vmatpush1.xpose.msra.mxu0 %v1673
        %1677 = vmatprep.subr.mxu0 0.0
        %1678 = vmatpush1.xpose.msra.mxu0 0.0
        %1679 = vmatprep.subr.mxu0 0.0
        %1680 = vmatpush1.xpose.msra.mxu0 0.0
        %1681 = vmatprep.subr.mxu0 0.0
        %1682 = vmatpush1.xpose.msra.mxu0 0.0
        %1683 = vmatprep.subr.mxu0 0.0
        %1684 = vmatpush1.xpose.msra.mxu0 0.0
        %1685 = vmatprep.subr.mxu0 0.0
        %1686 = vmatpush1.xpose.msra.mxu0 0.0
        %1687 = vmatprep.subr.mxu0 0.0
        %1688 = vmatpush1.xpose.msra.mxu0 0.0
        %1689 = vmatprep.subr.mxu0 0.0
        %1690 = vmatpush1.xpose.msra.mxu0 0.0
        %1691 = vmatprep.subr.mxu0 0.0
        %1692 = vmatpush1.xpose.msra.mxu0 0.0
        %1693 = vmatprep.subr.mxu0 0.0
        %1694 = vmatpush1.xpose.msra.mxu0 0.0
        %1695 = vmatprep.subr.mxu0 0.0
        %1696 = vmatpush1.xpose.msra.mxu0 0.0
        %1697 = vmatprep.subr.mxu0 0.0
        %1698 = vmatpush1.xpose.msra.mxu0 0.0
        %1699 = vmatprep.subr.mxu0 0.0
        %1700 = vmatpush1.xpose.msra.mxu0 0.0
        %1701 = vmatprep.subr.mxu0 0.0
        %1702 = vmatpush1.xpose.msra.mxu0 0.0
        %1703 = vmatprep.subr.mxu0 0.0
        %1704 = vmatpush1.xpose.msra.mxu0 0.0
        %1705 = vmatprep.subr.mxu0 0.0
        %1706 = vmatpush1.xpose.msra.mxu0 0.0
        %1707 = vmatprep.subr.mxu0 0.0
        %1708 = vmatpush1.xpose.msra.mxu0 0.0
        %1709 = vmatprep.subr.mxu0 0.0
        %1710 = vmatpush1.xpose.msra.mxu0 0.0
        %1711 = vmatprep.subr.mxu0 0.0
        %1712 = vmatpush1.xpose.msra.mxu0 0.0
        %1713 = vmatprep.subr.mxu0 0.0
        %1714 = vmatpush1.xpose.msra.mxu0 0.0
        %1715 = vmatprep.subr.mxu0 0.0
        %1716 = vmatpush1.xpose.msra.mxu0 0.0
        %1717 = vmatprep.subr.mxu0 0.0
        %1718 = vmatpush1.xpose.msra.mxu0 0.0
        %1719 = vmatprep.subr.mxu0 0.0
        %1720 = vmatpush1.xpose.msra.mxu0 0.0
        %1721 = vmatprep.subr.mxu0 0.0
        %1722 = vmatpush1.xpose.msra.mxu0 0.0
        %1723 = vmatprep.subr.mxu0 0.0
        %1724 = vmatpush1.xpose.msra.mxu0 0.0
        %1725 = vmatprep.subr.mxu0 0.0
        %1726 = vmatpush1.xpose.msra.mxu0 0.0
        %1727 = vmatprep.subr.mxu0 0.0
        %1728 = vmatpush1.xpose.msra.mxu0 0.0
        %1729 = vmatprep.subr.mxu0 0.0
        %1730 = vmatpush1.xpose.msra.mxu0 0.0
        %1731 = vmatprep.subr.mxu0 0.0
        %1732 = vmatpush1.xpose.msra.mxu0 0.0
        %1733 = vmatprep.subr.mxu0 0.0
        %1734 = vmatpush1.xpose.msra.mxu0 0.0
        %1735 = vmatprep.subr.mxu0 0.0
        %1736 = vmatpush1.xpose.msra.mxu0 0.0
        %1737 = vmatprep.subr.mxu0 0.0
        %1738 = vmatpush1.xpose.msra.mxu0 0.0
        %1739 = vmatprep.mubr.f32.mxu0 0.0
        %1740 = vmatmul.mubr.f32.gmra.mrb[0].mxu0 %v1671
        %v1741 = vpop.f32.mrb[0].mxu0
        %v1742 = vadd.f32 0.0, %v1741
        %v1743 = vpop.f32.mrb[0].mxu0
        %1744 = vdwg.mxu0
        %1745 = vrot.lane.b32.xlu0 %v1509, 104
        %v1746 = vpop.permute.xlu0 %1745
        %1747 = vrot.lane.b32.xlu0 %v1509, 72
        %v1748 = vpop.permute.xlu0 %1747
        %v1749 = vsel %vm1205, %v1746, 0
        %v1751 = vsel %vm1205, %v1748, 0
        %1753 = vmatprep.subr.mxu0 0.0
        %1754 = vmatpush1.xpose.msra.mxu0 %v1751
        %1755 = vmatprep.subr.mxu0 0.0
        %1756 = vmatpush1.xpose.msra.mxu0 0.0
        %1757 = vmatprep.subr.mxu0 0.0
        %1758 = vmatpush1.xpose.msra.mxu0 0.0
        %1759 = vmatprep.subr.mxu0 0.0
        %1760 = vmatpush1.xpose.msra.mxu0 0.0
        %1761 = vmatprep.subr.mxu0 0.0
        %1762 = vmatpush1.xpose.msra.mxu0 0.0
        %1763 = vmatprep.subr.mxu0 0.0
        %1764 = vmatpush1.xpose.msra.mxu0 0.0
        %1765 = vmatprep.subr.mxu0 0.0
        %1766 = vmatpush1.xpose.msra.mxu0 0.0
        %1767 = vmatprep.subr.mxu0 0.0
        %1768 = vmatpush1.xpose.msra.mxu0 0.0
        %1769 = vmatprep.subr.mxu0 0.0
        %1770 = vmatpush1.xpose.msra.mxu0 0.0
        %1771 = vmatprep.subr.mxu0 0.0
        %1772 = vmatpush1.xpose.msra.mxu0 0.0
        %1773 = vmatprep.subr.mxu0 0.0
        %1774 = vmatpush1.xpose.msra.mxu0 0.0
        %1775 = vmatprep.subr.mxu0 0.0
        %1776 = vmatpush1.xpose.msra.mxu0 0.0
        %1777 = vmatprep.subr.mxu0 0.0
        %1778 = vmatpush1.xpose.msra.mxu0 0.0
        %1779 = vmatprep.subr.mxu0 0.0
        %1780 = vmatpush1.xpose.msra.mxu0 0.0
        %1781 = vmatprep.subr.mxu0 0.0
        %1782 = vmatpush1.xpose.msra.mxu0 0.0
        %1783 = vmatprep.subr.mxu0 0.0
        %1784 = vmatpush1.xpose.msra.mxu0 0.0
        %1785 = vmatprep.subr.mxu0 0.0
        %1786 = vmatpush1.xpose.msra.mxu0 0.0
        %1787 = vmatprep.subr.mxu0 0.0
        %1788 = vmatpush1.xpose.msra.mxu0 0.0
        %1789 = vmatprep.subr.mxu0 0.0
        %1790 = vmatpush1.xpose.msra.mxu0 0.0
        %1791 = vmatprep.subr.mxu0 0.0
        %1792 = vmatpush1.xpose.msra.mxu0 0.0
        %1793 = vmatprep.subr.mxu0 0.0
        %1794 = vmatpush1.xpose.msra.mxu0 0.0
        %1795 = vmatprep.subr.mxu0 0.0
        %1796 = vmatpush1.xpose.msra.mxu0 0.0
        %1797 = vmatprep.subr.mxu0 0.0
        %1798 = vmatpush1.xpose.msra.mxu0 0.0
        %1799 = vmatprep.subr.mxu0 0.0
        %1800 = vmatpush1.xpose.msra.mxu0 0.0
        %1801 = vmatprep.subr.mxu0 0.0
        %1802 = vmatpush1.xpose.msra.mxu0 0.0
        %1803 = vmatprep.subr.mxu0 0.0
        %1804 = vmatpush1.xpose.msra.mxu0 0.0
        %1805 = vmatprep.subr.mxu0 0.0
        %1806 = vmatpush1.xpose.msra.mxu0 0.0
        %1807 = vmatprep.subr.mxu0 0.0
        %1808 = vmatpush1.xpose.msra.mxu0 0.0
        %1809 = vmatprep.subr.mxu0 0.0
        %1810 = vmatpush1.xpose.msra.mxu0 0.0
        %1811 = vmatprep.subr.mxu0 0.0
        %1812 = vmatpush1.xpose.msra.mxu0 0.0
        %1813 = vmatprep.subr.mxu0 0.0
        %1814 = vmatpush1.xpose.msra.mxu0 0.0
        %1815 = vmatprep.subr.mxu0 0.0
        %1816 = vmatpush1.xpose.msra.mxu0 0.0
        %1817 = vmatprep.mubr.f32.mxu0 0.0
        %1818 = vmatmul.mubr.f32.gmra.mrb[0].mxu0 %v1749
        %v1819 = vpop.f32.mrb[0].mxu0
        %v1820 = vadd.f32 0.0, %v1819
        %v1821 = vpop.f32.mrb[0].mxu0
        %1822 = vdwg.mxu0
        %v1823 = vsel %vm1205, %v1586, -inf
        %1824 = vmax.xlane.f32.xlu0 %v1823
        %v1825 = vpop.xlane.xlu0 %1824
        %v1826 = vsel %vm1205, %v1664, -inf
        %1827 = vmax.xlane.f32.xlu0 %v1826
        %v1828 = vpop.xlane.xlu0 %1827
        %v1829 = vsel %vm1205, %v1742, -inf
        %1830 = vmax.xlane.f32.xlu0 %v1829
        %v1831 = vpop.xlane.xlu0 %1830
        %v1832 = vsel %vm1205, %v1820, -inf
        %1833 = vmax.xlane.f32.xlu0 %v1832
        %v1834 = vpop.xlane.xlu0 %1833
        %v1835 = vsub.f32 %v1586, %v1825
        %v1836 = vsub.f32 %v1664, %v1828
        %v1837 = vsub.f32 %v1742, %v1831
        %v1838 = vsub.f32 %v1820, %v1834
        %v1839 = vmul.f32 %v1835, 1.442695
        %v1840 = vpow.pop %v1839
        %v1841 = vmul.f32 %v1836, 1.442695
        %v1842 = vpow.pop %v1841
        %v1843 = vmul.f32 %v1837, 1.442695
        %v1844 = vpow.pop %v1843
        %v1845 = vmul.f32 %v1838, 1.442695
        %v1846 = vpow.pop %v1845
        %v1847 = vsel %vm1205, %v1840, 0.0
        %1848 = vadd.xlane.f32.xlu0 %v1847
        %v1849 = vpop.xlane.xlu0 %1848
        %v1850 = vsel %vm1205, %v1842, 0.0
        %1851 = vadd.xlane.f32.xlu0 %v1850
        %v1852 = vpop.xlane.xlu0 %1851
        %v1853 = vsel %vm1205, %v1844, 0.0
        %1854 = vadd.xlane.f32.xlu0 %v1853
        %v1855 = vpop.xlane.xlu0 %1854
        %v1856 = vsel %vm1205, %v1846, 0.0
        %1857 = vadd.xlane.f32.xlu0 %v1856
        %v1858 = vpop.xlane.xlu0 %1857
        %v1859 = vrcp.pop %v1849
        %v1860 = vrcp.pop %v1852
        %v1861 = vrcp.pop %v1855
        %v1862 = vrcp.pop %v1858
        %v1863 = vmul.f32 %v1840, %v1859
        %v1864 = vmul.f32 %v1842, %v1860
        %v1865 = vmul.f32 %v1844, %v1861
        %v1866 = vmul.f32 %v1846, %v1862
        %1867 = vrot.lane.b32.xlu0 %v1509, 64
        %v1868 = vpop.permute.xlu0 %1867
        %v1871 = vsel %vm1205, %v1863, 0
        %1873 = vmatprep.subr.mxu0 0.0
        %1874 = vmatpush1.msra.mxu0 %v1868
        %1875 = vmatprep.subr.mxu0 0.0
        %1876 = vmatpush1.msra.mxu0 0.0
        %1877 = vmatprep.subr.mxu0 0.0
        %1878 = vmatpush1.msra.mxu0 0.0
        %1879 = vmatprep.subr.mxu0 0.0
        %1880 = vmatpush1.msra.mxu0 0.0
        %1881 = vmatprep.subr.mxu0 0.0
        %1882 = vmatpush1.msra.mxu0 0.0
        %1883 = vmatprep.subr.mxu0 0.0
        %1884 = vmatpush1.msra.mxu0 0.0
        %1885 = vmatprep.subr.mxu0 0.0
        %1886 = vmatpush1.msra.mxu0 0.0
        %1887 = vmatprep.subr.mxu0 0.0
        %1888 = vmatpush1.msra.mxu0 0.0
        %1889 = vmatprep.subr.mxu0 0.0
        %1890 = vmatpush1.msra.mxu0 0.0
        %1891 = vmatprep.subr.mxu0 0.0
        %1892 = vmatpush1.msra.mxu0 0.0
        %1893 = vmatprep.subr.mxu0 0.0
        %1894 = vmatpush1.msra.mxu0 0.0
        %1895 = vmatprep.subr.mxu0 0.0
        %1896 = vmatpush1.msra.mxu0 0.0
        %1897 = vmatprep.subr.mxu0 0.0
        %1898 = vmatpush1.msra.mxu0 0.0
        %1899 = vmatprep.subr.mxu0 0.0
        %1900 = vmatpush1.msra.mxu0 0.0
        %1901 = vmatprep.subr.mxu0 0.0
        %1902 = vmatpush1.msra.mxu0 0.0
        %1903 = vmatprep.subr.mxu0 0.0
        %1904 = vmatpush1.msra.mxu0 0.0
        %1905 = vmatprep.subr.mxu0 0.0
        %1906 = vmatpush1.msra.mxu0 0.0
        %1907 = vmatprep.subr.mxu0 0.0
        %1908 = vmatpush1.msra.mxu0 0.0
        %1909 = vmatprep.subr.mxu0 0.0
        %1910 = vmatpush1.msra.mxu0 0.0
        %1911 = vmatprep.subr.mxu0 0.0
        %1912 = vmatpush1.msra.mxu0 0.0
        %1913 = vmatprep.subr.mxu0 0.0
        %1914 = vmatpush1.msra.mxu0 0.0
        %1915 = vmatprep.subr.mxu0 0.0
        %1916 = vmatpush1.msra.mxu0 0.0
        %1917 = vmatprep.subr.mxu0 0.0
        %1918 = vmatpush1.msra.mxu0 0.0
        %1919 = vmatprep.subr.mxu0 0.0
        %1920 = vmatpush1.msra.mxu0 0.0
        %1921 = vmatprep.subr.mxu0 0.0
        %1922 = vmatpush1.msra.mxu0 0.0
        %1923 = vmatprep.subr.mxu0 0.0
        %1924 = vmatpush1.msra.mxu0 0.0
        %1925 = vmatprep.subr.mxu0 0.0
        %1926 = vmatpush1.msra.mxu0 0.0
        %1927 = vmatprep.subr.mxu0 0.0
        %1928 = vmatpush1.msra.mxu0 0.0
        %1929 = vmatprep.subr.mxu0 0.0
        %1930 = vmatpush1.msra.mxu0 0.0
        %1931 = vmatprep.subr.mxu0 0.0
        %1932 = vmatpush1.msra.mxu0 0.0
        %1933 = vmatprep.subr.mxu0 0.0
        %1934 = vmatpush1.msra.mxu0 0.0
        %1935 = vmatprep.subr.mxu0 0.0
        %1936 = vmatpush1.msra.mxu0 0.0
        %1937 = vmatprep.mubr.f32.mxu0 0.0
        %1938 = vmatmul.mubr.f32.gmra.mrb[0].mxu0 %v1871
        %v1939 = vpop.f32.mrb[0].mxu0
        %v1940 = vadd.f32 0.0, %v1939
        %v1941 = vpop.f32.mrb[0].mxu0
        %1942 = vdwg.mxu0
        %1943 = vrot.lane.b32.xlu0 %v1509, 56
        %v1944 = vpop.permute.xlu0 %1943
        %v1947 = vsel %vm1205, %v1864, 0
        %1949 = vmatprep.subr.mxu0 0.0
        %1950 = vmatpush1.msra.mxu0 %v1944
        %1951 = vmatprep.subr.mxu0 0.0
        %1952 = vmatpush1.msra.mxu0 0.0
        %1953 = vmatprep.subr.mxu0 0.0
        %1954 = vmatpush1.msra.mxu0 0.0
        %1955 = vmatprep.subr.mxu0 0.0
        %1956 = vmatpush1.msra.mxu0 0.0
        %1957 = vmatprep.subr.mxu0 0.0
        %1958 = vmatpush1.msra.mxu0 0.0
        %1959 = vmatprep.subr.mxu0 0.0
        %1960 = vmatpush1.msra.mxu0 0.0
        %1961 = vmatprep.subr.mxu0 0.0
        %1962 = vmatpush1.msra.mxu0 0.0
        %1963 = vmatprep.subr.mxu0 0.0
        %1964 = vmatpush1.msra.mxu0 0.0
        %1965 = vmatprep.subr.mxu0 0.0
        %1966 = vmatpush1.msra.mxu0 0.0
        %1967 = vmatprep.subr.mxu0 0.0
        %1968 = vmatpush1.msra.mxu0 0.0
        %1969 = vmatprep.subr.mxu0 0.0
        %1970 = vmatpush1.msra.mxu0 0.0
        %1971 = vmatprep.subr.mxu0 0.0
        %1972 = vmatpush1.msra.mxu0 0.0
        %1973 = vmatprep.subr.mxu0 0.0
        %1974 = vmatpush1.msra.mxu0 0.0
        %1975 = vmatprep.subr.mxu0 0.0
        %1976 = vmatpush1.msra.mxu0 0.0
        %1977 = vmatprep.subr.mxu0 0.0
        %1978 = vmatpush1.msra.mxu0 0.0
        %1979 = vmatprep.subr.mxu0 0.0
        %1980 = vmatpush1.msra.mxu0 0.0
        %1981 = vmatprep.subr.mxu0 0.0
        %1982 = vmatpush1.msra.mxu0 0.0
        %1983 = vmatprep.subr.mxu0 0.0
        %1984 = vmatpush1.msra.mxu0 0.0
        %1985 = vmatprep.subr.mxu0 0.0
        %1986 = vmatpush1.msra.mxu0 0.0
        %1987 = vmatprep.subr.mxu0 0.0
        %1988 = vmatpush1.msra.mxu0 0.0
        %1989 = vmatprep.subr.mxu0 0.0
        %1990 = vmatpush1.msra.mxu0 0.0
        %1991 = vmatprep.subr.mxu0 0.0
        %1992 = vmatpush1.msra.mxu0 0.0
        %1993 = vmatprep.subr.mxu0 0.0
        %1994 = vmatpush1.msra.mxu0 0.0
        %1995 = vmatprep.subr.mxu0 0.0
        %1996 = vmatpush1.msra.mxu0 0.0
        %1997 = vmatprep.subr.mxu0 0.0
        %1998 = vmatpush1.msra.mxu0 0.0
        %1999 = vmatprep.subr.mxu0 0.0
        %2000 = vmatpush1.msra.mxu0 0.0
        %2001 = vmatprep.subr.mxu0 0.0
        %2002 = vmatpush1.msra.mxu0 0.0
        %2003 = vmatprep.subr.mxu0 0.0
        %2004 = vmatpush1.msra.mxu0 0.0
        %2005 = vmatprep.subr.mxu0 0.0
        %2006 = vmatpush1.msra.mxu0 0.0
        %2007 = vmatprep.subr.mxu0 0.0
        %2008 = vmatpush1.msra.mxu0 0.0
        %2009 = vmatprep.subr.mxu0 0.0
        %2010 = vmatpush1.msra.mxu0 0.0
        %2011 = vmatprep.subr.mxu0 0.0
        %2012 = vmatpush1.msra.mxu0 0.0
        %2013 = vmatprep.mubr.f32.mxu0 0.0
        %2014 = vmatmul.mubr.f32.gmra.mrb[0].mxu0 %v1947
        %v2015 = vpop.f32.mrb[0].mxu0
        %v2016 = vadd.f32 0.0, %v2015
        %v2017 = vpop.f32.mrb[0].mxu0
        %2018 = vdwg.mxu0
        %2019 = vrot.lane.b32.xlu0 %v1509, 48
        %v2020 = vpop.permute.xlu0 %2019
        %v2023 = vsel %vm1205, %v1865, 0
        %2025 = vmatprep.subr.mxu0 0.0
        %2026 = vmatpush1.msra.mxu0 %v2020
        %2027 = vmatprep.subr.mxu0 0.0
        %2028 = vmatpush1.msra.mxu0 0.0
        %2029 = vmatprep.subr.mxu0 0.0
        %2030 = vmatpush1.msra.mxu0 0.0
        %2031 = vmatprep.subr.mxu0 0.0
        %2032 = vmatpush1.msra.mxu0 0.0
        %2033 = vmatprep.subr.mxu0 0.0
        %2034 = vmatpush1.msra.mxu0 0.0
        %2035 = vmatprep.subr.mxu0 0.0
        %2036 = vmatpush1.msra.mxu0 0.0
        %2037 = vmatprep.subr.mxu0 0.0
        %2038 = vmatpush1.msra.mxu0 0.0
        %2039 = vmatprep.subr.mxu0 0.0
        %2040 = vmatpush1.msra.mxu0 0.0
        %2041 = vmatprep.subr.mxu0 0.0
        %2042 = vmatpush1.msra.mxu0 0.0
        %2043 = vmatprep.subr.mxu0 0.0
        %2044 = vmatpush1.msra.mxu0 0.0
        %2045 = vmatprep.subr.mxu0 0.0
        %2046 = vmatpush1.msra.mxu0 0.0
        %2047 = vmatprep.subr.mxu0 0.0
        %2048 = vmatpush1.msra.mxu0 0.0
        %2049 = vmatprep.subr.mxu0 0.0
        %2050 = vmatpush1.msra.mxu0 0.0
        %2051 = vmatprep.subr.mxu0 0.0
        %2052 = vmatpush1.msra.mxu0 0.0
        %2053 = vmatprep.subr.mxu0 0.0
        %2054 = vmatpush1.msra.mxu0 0.0
        %2055 = vmatprep.subr.mxu0 0.0
        %2056 = vmatpush1.msra.mxu0 0.0
        %2057 = vmatprep.subr.mxu0 0.0
        %2058 = vmatpush1.msra.mxu0 0.0
        %2059 = vmatprep.subr.mxu0 0.0
        %2060 = vmatpush1.msra.mxu0 0.0
        %2061 = vmatprep.subr.mxu0 0.0
        %2062 = vmatpush1.msra.mxu0 0.0
        %2063 = vmatprep.subr.mxu0 0.0
        %2064 = vmatpush1.msra.mxu0 0.0
        %2065 = vmatprep.subr.mxu0 0.0
        %2066 = vmatpush1.msra.mxu0 0.0
        %2067 = vmatprep.subr.mxu0 0.0
        %2068 = vmatpush1.msra.mxu0 0.0
        %2069 = vmatprep.subr.mxu0 0.0
        %2070 = vmatpush1.msra.mxu0 0.0
        %2071 = vmatprep.subr.mxu0 0.0
        %2072 = vmatpush1.msra.mxu0 0.0
        %2073 = vmatprep.subr.mxu0 0.0
        %2074 = vmatpush1.msra.mxu0 0.0
        %2075 = vmatprep.subr.mxu0 0.0
        %2076 = vmatpush1.msra.mxu0 0.0
        %2077 = vmatprep.subr.mxu0 0.0
        %2078 = vmatpush1.msra.mxu0 0.0
        %2079 = vmatprep.subr.mxu0 0.0
        %2080 = vmatpush1.msra.mxu0 0.0
        %2081 = vmatprep.subr.mxu0 0.0
        %2082 = vmatpush1.msra.mxu0 0.0
        %2083 = vmatprep.subr.mxu0 0.0
        %2084 = vmatpush1.msra.mxu0 0.0
        %2085 = vmatprep.subr.mxu0 0.0
        %2086 = vmatpush1.msra.mxu0 0.0
        %2087 = vmatprep.subr.mxu0 0.0
        %2088 = vmatpush1.msra.mxu0 0.0
        %2089 = vmatprep.mubr.f32.mxu0 0.0
        %2090 = vmatmul.mubr.f32.gmra.mrb[0].mxu0 %v2023
        %v2091 = vpop.f32.mrb[0].mxu0
        %v2092 = vadd.f32 0.0, %v2091
        %v2093 = vpop.f32.mrb[0].mxu0
        %2094 = vdwg.mxu0
        %2095 = vrot.lane.b32.xlu0 %v1509, 40
        %v2096 = vpop.permute.xlu0 %2095
        %v2099 = vsel %vm1205, %v1866, 0
        %2101 = vmatprep.subr.mxu0 0.0
        %2102 = vmatpush1.msra.mxu0 %v2096
        %2103 = vmatprep.subr.mxu0 0.0
        %2104 = vmatpush1.msra.mxu0 0.0
        %2105 = vmatprep.subr.mxu0 0.0
        %2106 = vmatpush1.msra.mxu0 0.0
        %2107 = vmatprep.subr.mxu0 0.0
        %2108 = vmatpush1.msra.mxu0 0.0
        %2109 = vmatprep.subr.mxu0 0.0
        %2110 = vmatpush1.msra.mxu0 0.0
        %2111 = vmatprep.subr.mxu0 0.0
        %2112 = vmatpush1.msra.mxu0 0.0
        %2113 = vmatprep.subr.mxu0 0.0
        %2114 = vmatpush1.msra.mxu0 0.0
        %2115 = vmatprep.subr.mxu0 0.0
        %2116 = vmatpush1.msra.mxu0 0.0
        %2117 = vmatprep.subr.mxu0 0.0
        %2118 = vmatpush1.msra.mxu0 0.0
        %2119 = vmatprep.subr.mxu0 0.0
        %2120 = vmatpush1.msra.mxu0 0.0
        %2121 = vmatprep.subr.mxu0 0.0
        %2122 = vmatpush1.msra.mxu0 0.0
        %2123 = vmatprep.subr.mxu0 0.0
        %2124 = vmatpush1.msra.mxu0 0.0
        %2125 = vmatprep.subr.mxu0 0.0
        %2126 = vmatpush1.msra.mxu0 0.0
        %2127 = vmatprep.subr.mxu0 0.0
        %2128 = vmatpush1.msra.mxu0 0.0
        %2129 = vmatprep.subr.mxu0 0.0
        %2130 = vmatpush1.msra.mxu0 0.0
        %2131 = vmatprep.subr.mxu0 0.0
        %2132 = vmatpush1.msra.mxu0 0.0
        %2133 = vmatprep.subr.mxu0 0.0
        %2134 = vmatpush1.msra.mxu0 0.0
        %2135 = vmatprep.subr.mxu0 0.0
        %2136 = vmatpush1.msra.mxu0 0.0
        %2137 = vmatprep.subr.mxu0 0.0
        %2138 = vmatpush1.msra.mxu0 0.0
        %2139 = vmatprep.subr.mxu0 0.0
        %2140 = vmatpush1.msra.mxu0 0.0
        %2141 = vmatprep.subr.mxu0 0.0
        %2142 = vmatpush1.msra.mxu0 0.0
        %2143 = vmatprep.subr.mxu0 0.0
        %2144 = vmatpush1.msra.mxu0 0.0
        %2145 = vmatprep.subr.mxu0 0.0
        %2146 = vmatpush1.msra.mxu0 0.0
        %2147 = vmatprep.subr.mxu0 0.0
        %2148 = vmatpush1.msra.mxu0 0.0
        %2149 = vmatprep.subr.mxu0 0.0
        %2150 = vmatpush1.msra.mxu0 0.0
        %2151 = vmatprep.subr.mxu0 0.0
        %2152 = vmatpush1.msra.mxu0 0.0
        %2153 = vmatprep.subr.mxu0 0.0
        %2154 = vmatpush1.msra.mxu0 0.0
        %2155 = vmatprep.subr.mxu0 0.0
        %2156 = vmatpush1.msra.mxu0 0.0
        %2157 = vmatprep.subr.mxu0 0.0
        %2158 = vmatpush1.msra.mxu0 0.0
        %2159 = vmatprep.subr.mxu0 0.0
        %2160 = vmatpush1.msra.mxu0 0.0
        %2161 = vmatprep.subr.mxu0 0.0
        %2162 = vmatpush1.msra.mxu0 0.0
        %2163 = vmatprep.subr.mxu0 0.0
        %2164 = vmatpush1.msra.mxu0 0.0
        %2165 = vmatprep.mubr.f32.mxu0 0.0
        %2166 = vmatmul.mubr.f32.gmra.mrb[0].mxu0 %v2099
        %v2167 = vpop.f32.mrb[0].mxu0
        %v2168 = vadd.f32 0.0, %v2167
        %v2169 = vpop.f32.mrb[0].mxu0
        %2170 = vdwg.mxu0
        %2172 = vrot.lane.b32.xlu0 %v2016, 8
        %v2173 = vpop.permute.xlu0 %2172
        %2176 = vrot.lane.b32.xlu0 %v2092, 16
        %v2177 = vpop.permute.xlu0 %2176
        %2180 = vrot.lane.b32.xlu0 %v2168, 24
        %v2181 = vpop.permute.xlu0 %2180
        %v2183 = vsel %vm1205, %v1940, %v2173
        %vm2184 = vcmask 130048
        %v2185 = vsel %vm2184, %v2183, %v2177
        %vm2186 = vcmask 195584
        %v2187 = vsel %vm2186, %v2185, %v2181
        %v2188 = vld [vmem:[#allocation6] sm:$0xff]
        %v2189 = vld [vmem:[#allocation6 + $0x8] sm:$0xff]
        %v2190 = vld [vmem:[#allocation6 + $0x10] sm:$0xff]
        %v2191 = vld [vmem:[#allocation6 + $0x18] sm:$0xff]
        %v2192 = vld [vmem:[#allocation8] sm:$0x1]
        %v2194 = vlaneseq
        %v2195 = vshrl.u32 %v2194, 7
        %v2196 = vsub.s32 0, %v2195
        %v2197 = vrot.slane %v2192, %v2196
        %v2200 = vsel %vm1438, %v2187, 0
        %2202 = vmatprep.subr.mxu0 0.0
        %2203 = vmatpush1.msra.mxu0 %v2188
        %2204 = vmatprep.subr.mxu0 0.0
        %2205 = vmatpush1.msra.mxu0 %v2189
        %2206 = vmatprep.subr.mxu0 0.0
        %2207 = vmatpush1.msra.mxu0 %v2190
        %2208 = vmatprep.subr.mxu0 0.0
        %2209 = vmatpush1.msra.mxu0 %v2191
        %2210 = vmatprep.subr.mxu0 0.0
        %2211 = vmatpush1.msra.mxu0 0.0
        %2212 = vmatprep.subr.mxu0 0.0
        %2213 = vmatpush1.msra.mxu0 0.0
        %2214 = vmatprep.subr.mxu0 0.0
        %2215 = vmatpush1.msra.mxu0 0.0
        %2216 = vmatprep.subr.mxu0 0.0
        %2217 = vmatpush1.msra.mxu0 0.0
        %2218 = vmatprep.subr.mxu0 0.0
        %2219 = vmatpush1.msra.mxu0 0.0
        %2220 = vmatprep.subr.mxu0 0.0
        %2221 = vmatpush1.msra.mxu0 0.0
        %2222 = vmatprep.subr.mxu0 0.0
        %2223 = vmatpush1.msra.mxu0 0.0
        %2224 = vmatprep.subr.mxu0 0.0
        %2225 = vmatpush1.msra.mxu0 0.0
        %2226 = vmatprep.subr.mxu0 0.0
        %2227 = vmatpush1.msra.mxu0 0.0
        %2228 = vmatprep.subr.mxu0 0.0
        %2229 = vmatpush1.msra.mxu0 0.0
        %2230 = vmatprep.subr.mxu0 0.0
        %2231 = vmatpush1.msra.mxu0 0.0
        %2232 = vmatprep.subr.mxu0 0.0
        %2233 = vmatpush1.msra.mxu0 0.0
        %2234 = vmatprep.subr.mxu0 0.0
        %2235 = vmatpush1.msra.mxu0 0.0
        %2236 = vmatprep.subr.mxu0 0.0
        %2237 = vmatpush1.msra.mxu0 0.0
        %2238 = vmatprep.subr.mxu0 0.0
        %2239 = vmatpush1.msra.mxu0 0.0
        %2240 = vmatprep.subr.mxu0 0.0
        %2241 = vmatpush1.msra.mxu0 0.0
        %2242 = vmatprep.subr.mxu0 0.0
        %2243 = vmatpush1.msra.mxu0 0.0
        %2244 = vmatprep.subr.mxu0 0.0
        %2245 = vmatpush1.msra.mxu0 0.0
        %2246 = vmatprep.subr.mxu0 0.0
        %2247 = vmatpush1.msra.mxu0 0.0
        %2248 = vmatprep.subr.mxu0 0.0
        %2249 = vmatpush1.msra.mxu0 0.0
        %2250 = vmatprep.subr.mxu0 0.0
        %2251 = vmatpush1.msra.mxu0 0.0
        %2252 = vmatprep.subr.mxu0 0.0
        %2253 = vmatpush1.msra.mxu0 0.0
        %2254 = vmatprep.subr.mxu0 0.0
        %2255 = vmatpush1.msra.mxu0 0.0
        %2256 = vmatprep.subr.mxu0 0.0
        %2257 = vmatpush1.msra.mxu0 0.0
        %2258 = vmatprep.subr.mxu0 0.0
        %2259 = vmatpush1.msra.mxu0 0.0
        %2260 = vmatprep.subr.mxu0 0.0
        %2261 = vmatpush1.msra.mxu0 0.0
        %2262 = vmatprep.subr.mxu0 0.0
        %2263 = vmatpush1.msra.mxu0 0.0
        %2264 = vmatprep.subr.mxu0 0.0
        %2265 = vmatpush1.msra.mxu0 0.0
        %2266 = vmatprep.mubr.f32.mxu0 0.0
        %2267 = vmatmul.mubr.f32.gmra.mrb[0].mxu0 %v2200
        %v2268 = vpop.f32.mrb[0].mxu0
        %v2269 = vadd.f32 %v2197, %v2268
        %v2270 = vpop.f32.mrb[0].mxu0
        %2271 = vdwg.mxu0
        %v2272 = vadd.f32 %v1426, %v2269
        %v2273 = vld [vmem:[#allocation9] sm:$0x1]
        %v2274 = vld [vmem:[#allocation11] sm:$0x1]
        %v2275 = vsel %vm1438, %v2272, 0.0
        %2276 = vadd.xlane.f32.xlu0 %v2275
        %v2277 = vpop.xlane.xlu0 %2276
        %v2278 = vrcp.pop 32.0
        %v2279 = vmul.f32 %v2277, %v2278
        %v2280 = vsub.f32 %v2272, %v2279
        %v2281 = vmul.f32 %v2280, %v2280
        %v2282 = vsel %vm1438, %v2281, 0.0
        %2283 = vadd.xlane.f32.xlu0 %v2282
        %v2284 = vpop.xlane.xlu0 %2283
        %v2285 = vmul.f32 %v2284, %v2278
        %v2286 = vadd.f32 %v2285, 1e-05
        %v2287 = vrsqrt.pop %v2286
        %v2288 = vmul.f32 %v2280, %v2287
        %v2290 = vlaneseq
        %v2291 = vshrl.u32 %v2290, 7
        %v2292 = vsub.s32 0, %v2291
        %v2293 = vrot.slane %v2273, %v2292
        %v2295 = vmul.f32 %v2288, %v2293
        %v2297 = vlaneseq
        %v2298 = vshrl.u32 %v2297, 7
        %v2299 = vsub.s32 0, %v2298
        %v2300 = vrot.slane %v2274, %v2299
        %v2302 = vadd.f32 %v2295, %v2300
        %v2303 = vld [vmem:[#allocation12] sm:$0xff]
        %v2304 = vld [vmem:[#allocation12 + $0x8] sm:$0xff]
        %v2305 = vld [vmem:[#allocation12 + $0x10] sm:$0xff]
        %v2306 = vld [vmem:[#allocation12 + $0x18] sm:$0xff]
        %v2307 = vld [vmem:[#allocation14] sm:$0x1]
        %v2309 = vlaneseq
        %v2310 = vshrl.u32 %v2309, 7
        %v2311 = vsub.s32 0, %v2310
        %v2312 = vrot.slane %v2307, %v2311
        %v2315 = vsel %vm1438, %v2302, 0
        %2317 = vmatprep.subr.mxu0 0.0
        %2318 = vmatpush1.msra.mxu0 %v2303
        %2319 = vmatprep.subr.mxu0 0.0
        %2320 = vmatpush1.msra.mxu0 %v2304
        %2321 = vmatprep.subr.mxu0 0.0
        %2322 = vmatpush1.msra.mxu0 %v2305
        %2323 = vmatprep.subr.mxu0 0.0
        %2324 = vmatpush1.msra.mxu0 %v2306
        %2325 = vmatprep.subr.mxu0 0.0
        %2326 = vmatpush1.msra.mxu0 0.0
        %2327 = vmatprep.subr.mxu0 0.0
        %2328 = vmatpush1.msra.mxu0 0.0
        %2329 = vmatprep.subr.mxu0 0.0
        %2330 = vmatpush1.msra.mxu0 0.0
        %2331 = vmatprep.subr.mxu0 0.0
        %2332 = vmatpush1.msra.mxu0 0.0
        %2333 = vmatprep.subr.mxu0 0.0
        %2334 = vmatpush1.msra.mxu0 0.0
        %2335 = vmatprep.subr.mxu0 0.0
        %2336 = vmatpush1.msra.mxu0 0.0
        %2337 = vmatprep.subr.mxu0 0.0
        %2338 = vmatpush1.msra.mxu0 0.0
        %2339 = vmatprep.subr.mxu0 0.0
        %2340 = vmatpush1.msra.mxu0 0.0
        %2341 = vmatprep.subr.mxu0 0.0
        %2342 = vmatpush1.msra.mxu0 0.0
        %2343 = vmatprep.subr.mxu0 0.0
        %2344 = vmatpush1.msra.mxu0 0.0
        %2345 = vmatprep.subr.mxu0 0.0
        %2346 = vmatpush1.msra.mxu0 0.0
        %2347 = vmatprep.subr.mxu0 0.0
        %2348 = vmatpush1.msra.mxu0 0.0
        %2349 = vmatprep.subr.mxu0 0.0
        %2350 = vmatpush1.msra.mxu0 0.0
        %2351 = vmatprep.subr.mxu0 0.0
        %2352 = vmatpush1.msra.mxu0 0.0
        %2353 = vmatprep.subr.mxu0 0.0
        %2354 = vmatpush1.msra.mxu0 0.0
        %2355 = vmatprep.subr.mxu0 0.0
        %2356 = vmatpush1.msra.mxu0 0.0
        %2357 = vmatprep.subr.mxu0 0.0
        %2358 = vmatpush1.msra.mxu0 0.0
        %2359 = vmatprep.subr.mxu0 0.0
        %2360 = vmatpush1.msra.mxu0 0.0
        %2361 = vmatprep.subr.mxu0 0.0
        %2362 = vmatpush1.msra.mxu0 0.0
        %2363 = vmatprep.subr.mxu0 0.0
        %2364 = vmatpush1.msra.mxu0 0.0
        %2365 = vmatprep.subr.mxu0 0.0
        %2366 = vmatpush1.msra.mxu0 0.0
        %2367 = vmatprep.subr.mxu0 0.0
        %2368 = vmatpush1.msra.mxu0 0.0
        %2369 = vmatprep.subr.mxu0 0.0
        %2370 = vmatpush1.msra.mxu0 0.0
        %2371 = vmatprep.subr.mxu0 0.0
        %2372 = vmatpush1.msra.mxu0 0.0
        %2373 = vmatprep.subr.mxu0 0.0
        %2374 = vmatpush1.msra.mxu0 0.0
        %2375 = vmatprep.subr.mxu0 0.0
        %2376 = vmatpush1.msra.mxu0 0.0
        %2377 = vmatprep.subr.mxu0 0.0
        %2378 = vmatpush1.msra.mxu0 0.0
        %2379 = vmatprep.subr.mxu0 0.0
        %2380 = vmatpush1.msra.mxu0 0.0
        %2381 = vmatprep.mubr.f32.mxu0 0.0
        %2382 = vmatmul.mubr.f32.gmra.mrb[0].mxu0 %v2315
        %v2383 = vpop.f32.mrb[0].mxu0
        %v2384 = vadd.f32 %v2312, %v2383
        %v2385 = vpop.f32.mrb[0].mxu0
        %2386 = vdwg.mxu0
        %v2387 = vmul.f32 %v2384, 0.5
        %v2388 = vmul.f32 %v2384, 0.044715
        %v2389 = vmul.f32 %v2388, %v2384
        %v2390 = vmul.f32 %v2389, %v2384
        %v2391 = vadd.f32 %v2384, %v2390
        %v2392 = vmul.f32 %v2391, 0.7978846
        %v2393 = vtanh.pop %v2392
        %v2394 = vadd.f32 %v2393, 1.0
        %v2395 = vmul.f32 %v2387, %v2394
        %v2396 = vld [vmem:[#allocation15] sm:$0xff]
        %v2397 = vld [vmem:[#allocation15 + $0x8] sm:$0xff]
        %v2398 = vld [vmem:[#allocation15 + $0x10] sm:$0xff]
        %v2399 = vld [vmem:[#allocation15 + $0x18] sm:$0xff]
        %v2400 = vld [vmem:[#allocation17] sm:$0x1]
        %v2402 = vlaneseq
        %v2403 = vshrl.u32 %v2402, 7
        %v2404 = vsub.s32 0, %v2403
        %v2405 = vrot.slane %v2400, %v2404
        %v2408 = vsel %vm1438, %v2395, 0
        %2410 = vmatprep.subr.mxu0 0.0
        %2411 = vmatpush1.msra.mxu0 %v2396
        %2412 = vmatprep.subr.mxu0 0.0
        %2413 = vmatpush1.msra.mxu0 %v2397
        %2414 = vmatprep.subr.mxu0 0.0
        %2415 = vmatpush1.msra.mxu0 %v2398
        %2416 = vmatprep.subr.mxu0 0.0
        %2417 = vmatpush1.msra.mxu0 %v2399
        %2418 = vmatprep.subr.mxu0 0.0
        %2419 = vmatpush1.msra.mxu0 0.0
        %2420 = vmatprep.subr.mxu0 0.0
        %2421 = vmatpush1.msra.mxu0 0.0
        %2422 = vmatprep.subr.mxu0 0.0
        %2423 = vmatpush1.msra.mxu0 0.0
        %2424 = vmatprep.subr.mxu0 0.0
        %2425 = vmatpush1.msra.mxu0 0.0
        %2426 = vmatprep.subr.mxu0 0.0
        %2427 = vmatpush1.msra.mxu0 0.0
        %2428 = vmatprep.subr.mxu0 0.0
        %2429 = vmatpush1.msra.mxu0 0.0
        %2430 = vmatprep.subr.mxu0 0.0
        %2431 = vmatpush1.msra.mxu0 0.0
        %2432 = vmatprep.subr.mxu0 0.0
        %2433 = vmatpush1.msra.mxu0 0.0
        %2434 = vmatprep.subr.mxu0 0.0
        %2435 = vmatpush1.msra.mxu0 0.0
        %2436 = vmatprep.subr.mxu0 0.0
        %2437 = vmatpush1.msra.mxu0 0.0
        %2438 = vmatprep.subr.mxu0 0.0
        %2439 = vmatpush1.msra.mxu0 0.0
        %2440 = vmatprep.subr.mxu0 0.0
        %2441 = vmatpush1.msra.mxu0 0.0
        %2442 = vmatprep.subr.mxu0 0.0
        %2443 = vmatpush1.msra.mxu0 0.0
        %2444 = vmatprep.subr.mxu0 0.0
        %2445 = vmatpush1.msra.mxu0 0.0
        %2446 = vmatprep.subr.mxu0 0.0
        %2447 = vmatpush1.msra.mxu0 0.0
        %2448 = vmatprep.subr.mxu0 0.0
        %2449 = vmatpush1.msra.mxu0 0.0
        %2450 = vmatprep.subr.mxu0 0.0
        %2451 = vmatpush1.msra.mxu0 0.0
        %2452 = vmatprep.subr.mxu0 0.0
        %2453 = vmatpush1.msra.mxu0 0.0
        %2454 = vmatprep.subr.mxu0 0.0
        %2455 = vmatpush1.msra.mxu0 0.0
        %2456 = vmatprep.subr.mxu0 0.0
        %2457 = vmatpush1.msra.mxu0 0.0
        %2458 = vmatprep.subr.mxu0 0.0
        %2459 = vmatpush1.msra.mxu0 0.0
        %2460 = vmatprep.subr.mxu0 0.0
        %2461 = vmatpush1.msra.mxu0 0.0
        %2462 = vmatprep.subr.mxu0 0.0
        %2463 = vmatpush1.msra.mxu0 0.0
        %2464 = vmatprep.subr.mxu0 0.0
        %2465 = vmatpush1.msra.mxu0 0.0
        %2466 = vmatprep.subr.mxu0 0.0
        %2467 = vmatpush1.msra.mxu0 0.0
        %2468 = vmatprep.subr.mxu0 0.0
        %2469 = vmatpush1.msra.mxu0 0.0
        %2470 = vmatprep.subr.mxu0 0.0
        %2471 = vmatpush1.msra.mxu0 0.0
        %2472 = vmatprep.subr.mxu0 0.0
        %2473 = vmatpush1.msra.mxu0 0.0
        %2474 = vmatprep.mubr.f32.mxu0 0.0
        %2475 = vmatmul.mubr.f32.gmra.mrb[0].mxu0 %v2408
        %v2476 = vpop.f32.mrb[0].mxu0
        %v2477 = vadd.f32 %v2405, %v2476
        %v2478 = vpop.f32.mrb[0].mxu0
        %2479 = vdwg.mxu0
        %v2480 = vadd.f32 %v2302, %v2477
        %v2481 = vld [vmem:[#allocation18] sm:$0x1]
        %v2482 = vld [vmem:[#allocation20] sm:$0x1]
        %v2483 = vsel %vm1438, %v2480, 0.0
        %2484 = vadd.xlane.f32.xlu0 %v2483
        %v2485 = vpop.xlane.xlu0 %2484
        %v2486 = vmul.f32 %v2485, %v2278
        %v2487 = vsub.f32 %v2480, %v2486
        %v2488 = vmul.f32 %v2487, %v2487
        %v2489 = vsel %vm1438, %v2488, 0.0
        %2490 = vadd.xlane.f32.xlu0 %v2489
        %v2491 = vpop.xlane.xlu0 %2490
        %v2492 = vmul.f32 %v2491, %v2278
        %v2493 = vadd.f32 %v2492, 1e-05
        %v2494 = vrsqrt.pop %v2493
        %v2495 = vmul.f32 %v2487, %v2494
        %v2497 = vlaneseq
        %v2498 = vshrl.u32 %v2497, 7
        %v2499 = vsub.s32 0, %v2498
        %v2500 = vrot.slane %v2481, %v2499
        %v2502 = vmul.f32 %v2495, %v2500
        %v2504 = vlaneseq
        %v2505 = vshrl.u32 %v2504, 7
        %v2506 = vsub.s32 0, %v2505
        %v2507 = vrot.slane %v2482, %v2506
        %v2509 = vadd.f32 %v2502, %v2507
        %v2510 = vld [vmem:[#allocation21] sm:$0xff]
        %v2511 = vld [vmem:[#allocation21 + $0x8] sm:$0xff]
        %v2512 = vld [vmem:[#allocation21 + $0x10] sm:$0xff]
        %v2513 = vld [vmem:[#allocation21 + $0x18] sm:$0xff]
        %v2514 = vld [vmem:[#allocation21 + $0x20] sm:$0xff]
        %v2515 = vld [vmem:[#allocation21 + $0x28] sm:$0xff]
        %v2516 = vld [vmem:[#allocation21 + $0x30] sm:$0xff]
        %v2517 = vld [vmem:[#allocation21 + $0x38] sm:$0xff]
        %v2518 = vld [vmem:[#allocation21 + $0x40] sm:$0xff]
        %v2519 = vld [vmem:[#allocation21 + $0x48] sm:$0xff]
        %v2520 = vld [vmem:[#allocation21 + $0x50] sm:$0xff]
        %v2521 = vld [vmem:[#allocation21 + $0x58] sm:$0xff]
        %v2522 = vld [vmem:[#allocation23] sm:$0x1]
        %v2524 = vsel %vm1438, %v2509, 0
        %2526 = vmatprep.subr.mxu0 0.0
        %2527 = vmatpush1.msra.mxu0 %v2510
        %2528 = vmatprep.subr.mxu0 0.0
        %2529 = vmatpush1.msra.mxu0 %v2511
        %2530 = vmatprep.subr.mxu0 0.0
        %2531 = vmatpush1.msra.mxu0 %v2512
        %2532 = vmatprep.subr.mxu0 0.0
        %2533 = vmatpush1.msra.mxu0 %v2513
        %2534 = vmatprep.subr.mxu0 0.0
        %2535 = vmatpush1.msra.mxu0 0.0
        %2536 = vmatprep.subr.mxu0 0.0
        %2537 = vmatpush1.msra.mxu0 0.0
        %2538 = vmatprep.subr.mxu0 0.0
        %2539 = vmatpush1.msra.mxu0 0.0
        %2540 = vmatprep.subr.mxu0 0.0
        %2541 = vmatpush1.msra.mxu0 0.0
        %2542 = vmatprep.subr.mxu0 0.0
        %2543 = vmatpush1.msra.mxu0 0.0
        %2544 = vmatprep.subr.mxu0 0.0
        %2545 = vmatpush1.msra.mxu0 0.0
        %2546 = vmatprep.subr.mxu0 0.0
        %2547 = vmatpush1.msra.mxu0 0.0
        %2548 = vmatprep.subr.mxu0 0.0
        %2549 = vmatpush1.msra.mxu0 0.0
        %2550 = vmatprep.subr.mxu0 0.0
        %2551 = vmatpush1.msra.mxu0 0.0
        %2552 = vmatprep.subr.mxu0 0.0
        %2553 = vmatpush1.msra.mxu0 0.0
        %2554 = vmatprep.subr.mxu0 0.0
        %2555 = vmatpush1.msra.mxu0 0.0
        %2556 = vmatprep.subr.mxu0 0.0
        %2557 = vmatpush1.msra.mxu0 0.0
        %2558 = vmatprep.subr.mxu0 0.0
        %2559 = vmatpush1.msra.mxu0 0.0
        %2560 = vmatprep.subr.mxu0 0.0
        %2561 = vmatpush1.msra.mxu0 0.0
        %2562 = vmatprep.subr.mxu0 0.0
        %2563 = vmatpush1.msra.mxu0 0.0
        %2564 = vmatprep.subr.mxu0 0.0
        %2565 = vmatpush1.msra.mxu0 0.0
        %2566 = vmatprep.subr.mxu0 0.0
        %2567 = vmatpush1.msra.mxu0 0.0
        %2568 = vmatprep.subr.mxu0 0.0
        %2569 = vmatpush1.msra.mxu0 0.0
        %2570 = vmatprep.subr.mxu0 0.0
        %2571 = vmatpush1.msra.mxu0 0.0
        %2572 = vmatprep.subr.mxu0 0.0
        %2573 = vmatpush1.msra.mxu0 0.0
        %2574 = vmatprep.subr.mxu0 0.0
        %2575 = vmatpush1.msra.mxu0 0.0
        %2576 = vmatprep.subr.mxu0 0.0
        %2577 = vmatpush1.msra.mxu0 0.0
        %2578 = vmatprep.subr.mxu0 0.0
        %2579 = vmatpush1.msra.mxu0 0.0
        %2580 = vmatprep.subr.mxu0 0.0
        %2581 = vmatpush1.msra.mxu0 0.0
        %2582 = vmatprep.subr.mxu0 0.0
        %2583 = vmatpush1.msra.mxu0 0.0
        %2584 = vmatprep.subr.mxu0 0.0
        %2585 = vmatpush1.msra.mxu0 0.0
        %2586 = vmatprep.subr.mxu0 0.0
        %2587 = vmatpush1.msra.mxu0 0.0
        %2588 = vmatprep.subr.mxu0 0.0
        %2589 = vmatpush1.msra.mxu0 0.0
        %2590 = vmatprep.mubr.f32.mxu0 0.0
        %2591 = vmatmul.mubr.f32.gmra.mrb[0].mxu0 %v2524
        %v2592 = vpop.f32.mrb[0].mxu0
        %v2593 = vadd.f32 0.0, %v2592
        %v2594 = vpop.f32.mrb[0].mxu0
        %2595 = vdwg.mxu0
        %2596 = vmatprep.subr.mxu0 0.0
        %2597 = vmatpush1.msra.mxu0 %v2514
        %2598 = vmatprep.subr.mxu0 0.0
        %2599 = vmatpush1.msra.mxu0 %v2515
        %2600 = vmatprep.subr.mxu0 0.0
        %2601 = vmatpush1.msra.mxu0 %v2516
        %2602 = vmatprep.subr.mxu0 0.0
        %2603 = vmatpush1.msra.mxu0 %v2517
        %2604 = vmatprep.subr.mxu0 0.0
        %2605 = vmatpush1.msra.mxu0 0.0
        %2606 = vmatprep.subr.mxu0 0.0
        %2607 = vmatpush1.msra.mxu0 0.0
        %2608 = vmatprep.subr.mxu0 0.0
        %2609 = vmatpush1.msra.mxu0 0.0
        %2610 = vmatprep.subr.mxu0 0.0
        %2611 = vmatpush1.msra.mxu0 0.0
        %2612 = vmatprep.subr.mxu0 0.0
        %2613 = vmatpush1.msra.mxu0 0.0
        %2614 = vmatprep.subr.mxu0 0.0
        %2615 = vmatpush1.msra.mxu0 0.0
        %2616 = vmatprep.subr.mxu0 0.0
        %2617 = vmatpush1.msra.mxu0 0.0
        %2618 = vmatprep.subr.mxu0 0.0
        %2619 = vmatpush1.msra.mxu0 0.0
        %2620 = vmatprep.subr.mxu0 0.0
        %2621 = vmatpush1.msra.mxu0 0.0
        %2622 = vmatprep.subr.mxu0 0.0
        %2623 = vmatpush1.msra.mxu0 0.0
        %2624 = vmatprep.subr.mxu0 0.0
        %2625 = vmatpush1.msra.mxu0 0.0
        %2626 = vmatprep.subr.mxu0 0.0
        %2627 = vmatpush1.msra.mxu0 0.0
        %2628 = vmatprep.subr.mxu0 0.0
        %2629 = vmatpush1.msra.mxu0 0.0
        %2630 = vmatprep.subr.mxu0 0.0
        %2631 = vmatpush1.msra.mxu0 0.0
        %2632 = vmatprep.subr.mxu0 0.0
        %2633 = vmatpush1.msra.mxu0 0.0
        %2634 = vmatprep.subr.mxu0 0.0
        %2635 = vmatpush1.msra.mxu0 0.0
        %2636 = vmatprep.subr.mxu0 0.0
        %2637 = vmatpush1.msra.mxu0 0.0
        %2638 = vmatprep.subr.mxu0 0.0
        %2639 = vmatpush1.msra.mxu0 0.0
        %2640 = vmatprep.subr.mxu0 0.0
        %2641 = vmatpush1.msra.mxu0 0.0
        %2642 = vmatprep.subr.mxu0 0.0
        %2643 = vmatpush1.msra.mxu0 0.0
        %2644 = vmatprep.subr.mxu0 0.0
        %2645 = vmatpush1.msra.mxu0 0.0
        %2646 = vmatprep.subr.mxu0 0.0
        %2647 = vmatpush1.msra.mxu0 0.0
        %2648 = vmatprep.subr.mxu0 0.0
        %2649 = vmatpush1.msra.mxu0 0.0
        %2650 = vmatprep.subr.mxu0 0.0
        %2651 = vmatpush1.msra.mxu0 0.0
        %2652 = vmatprep.subr.mxu0 0.0
        %2653 = vmatpush1.msra.mxu0 0.0
        %2654 = vmatprep.subr.mxu0 0.0
        %2655 = vmatpush1.msra.mxu0 0.0
        %2656 = vmatprep.subr.mxu0 0.0
        %2657 = vmatpush1.msra.mxu0 0.0
        %2658 = vmatprep.subr.mxu0 0.0
        %2659 = vmatpush1.msra.mxu0 0.0
        %2660 = vmatprep.mubr.f32.mxu0 0.0
        %2661 = vmatmul.mubr.f32.gmra.mrb[0].mxu0 %v2524
        %v2662 = vpop.f32.mrb[0].mxu0
        %v2663 = vadd.f32 0.0, %v2662
        %v2664 = vpop.f32.mrb[0].mxu0
        %2665 = vdwg.mxu0
        %2666 = vmatprep.subr.mxu0 0.0
        %2667 = vmatpush1.msra.mxu0 %v2593
        %2668 = vmatprep.subr.mxu0 0.0
        %2669 = vmatpush1.msra.mxu0 0.0
        %2670 = vmatprep.subr.mxu0 0.0
        %2671 = vmatpush1.msra.mxu0 0.0
        %2672 = vmatprep.subr.mxu0 0.0
        %2673 = vmatpush1.msra.mxu0 0.0
        %2674 = vmatprep.subr.mxu0 0.0
        %2675 = vmatpush1.msra.mxu0 0.0
        %2676 = vmatprep.subr.mxu0 0.0
        %2677 = vmatpush1.msra.mxu0 0.0
        %2678 = vmatprep.subr.mxu0 0.0
        %2679 = vmatpush1.msra.mxu0 0.0
        %2680 = vmatprep.subr.mxu0 0.0
        %2681 = vmatpush1.msra.mxu0 0.0
        %2682 = vmatprep.subr.mxu0 0.0
        %2683 = vmatpush1.msra.mxu0 0.0
        %2684 = vmatprep.subr.mxu0 0.0
        %2685 = vmatpush1.msra.mxu0 0.0
        %2686 = vmatprep.subr.mxu0 0.0
        %2687 = vmatpush1.msra.mxu0 0.0
        %2688 = vmatprep.subr.mxu0 0.0
        %2689 = vmatpush1.msra.mxu0 0.0
        %2690 = vmatprep.subr.mxu0 0.0
        %2691 = vmatpush1.msra.mxu0 0.0
        %2692 = vmatprep.subr.mxu0 0.0
        %2693 = vmatpush1.msra.mxu0 0.0
        %2694 = vmatprep.subr.mxu0 0.0
        %2695 = vmatpush1.msra.mxu0 0.0
        %2696 = vmatprep.subr.mxu0 0.0
        %2697 = vmatpush1.msra.mxu0 0.0
        %2698 = vmatprep.subr.mxu0 0.0
        %2699 = vmatpush1.msra.mxu0 0.0
        %2700 = vmatprep.subr.mxu0 0.0
        %2701 = vmatpush1.msra.mxu0 0.0
        %2702 = vmatprep.subr.mxu0 0.0
        %2703 = vmatpush1.msra.mxu0 0.0
        %2704 = vmatprep.subr.mxu0 0.0
        %2705 = vmatpush1.msra.mxu0 0.0
        %2706 = vmatprep.subr.mxu0 0.0
        %2707 = vmatpush1.msra.mxu0 0.0
        %2708 = vmatprep.subr.mxu0 0.0
        %2709 = vmatpush1.msra.mxu0 0.0
        %2710 = vmatprep.subr.mxu0 0.0
        %2711 = vmatpush1.msra.mxu0 0.0
        %2712 = vmatprep.subr.mxu0 0.0
        %2713 = vmatpush1.msra.mxu0 0.0
        %2714 = vmatprep.subr.mxu0 0.0
        %2715 = vmatpush1.msra.mxu0 0.0
        %2716 = vmatprep.subr.mxu0 0.0
        %2717 = vmatpush1.msra.mxu0 0.0
        %2718 = vmatprep.subr.mxu0 0.0
        %2719 = vmatpush1.msra.mxu0 0.0
        %2720 = vmatprep.subr.mxu0 0.0
        %2721 = vmatpush1.msra.mxu0 0.0
        %2722 = vmatprep.subr.mxu0 0.0
        %2723 = vmatpush1.msra.mxu0 0.0
        %2724 = vmatprep.subr.mxu0 0.0
        %2725 = vmatpush1.msra.mxu0 0.0
        %2726 = vmatprep.subr.mxu0 0.0
        %2727 = vmatpush1.msra.mxu0 0.0
        %2728 = vmatprep.subr.mxu0 0.0
        %2729 = vmatpush1.msra.mxu0 0.0
        %2730 = vmatprep.mubr.f32.mxu0 0.0
        %2731 = vmatmul.mubr.f32.gmra.mrb[0].mxu0 %v1207
        %v2732 = vpop.f32.mrb[0].mxu0
        %v2733 = vadd.f32 %v2663, %v2732
        %v2734 = vpop.f32.mrb[0].mxu0
        %2735 = vdwg.mxu0
        %2736 = vmatprep.subr.mxu0 0.0
        %2737 = vmatpush1.msra.mxu0 %v2518
        %2738 = vmatprep.subr.mxu0 0.0
        %2739 = vmatpush1.msra.mxu0 %v2519
        %2740 = vmatprep.subr.mxu0 0.0
        %2741 = vmatpush1.msra.mxu0 %v2520
        %2742 = vmatprep.subr.mxu0 0.0
        %2743 = vmatpush1.msra.mxu0 %v2521
        %2744 = vmatprep.subr.mxu0 0.0
        %2745 = vmatpush1.msra.mxu0 0.0
        %2746 = vmatprep.subr.mxu0 0.0
        %2747 = vmatpush1.msra.mxu0 0.0
        %2748 = vmatprep.subr.mxu0 0.0
        %2749 = vmatpush1.msra.mxu0 0.0
        %2750 = vmatprep.subr.mxu0 0.0
        %2751 = vmatpush1.msra.mxu0 0.0
        %2752 = vmatprep.subr.mxu0 0.0
        %2753 = vmatpush1.msra.mxu0 0.0
        %2754 = vmatprep.subr.mxu0 0.0
        %2755 = vmatpush1.msra.mxu0 0.0
        %2756 = vmatprep.subr.mxu0 0.0
        %2757 = vmatpush1.msra.mxu0 0.0
        %2758 = vmatprep.subr.mxu0 0.0
        %2759 = vmatpush1.msra.mxu0 0.0
        %2760 = vmatprep.subr.mxu0 0.0
        %2761 = vmatpush1.msra.mxu0 0.0
        %2762 = vmatprep.subr.mxu0 0.0
        %2763 = vmatpush1.msra.mxu0 0.0
        %2764 = vmatprep.subr.mxu0 0.0
        %2765 = vmatpush1.msra.mxu0 0.0
        %2766 = vmatprep.subr.mxu0 0.0
        %2767 = vmatpush1.msra.mxu0 0.0
        %2768 = vmatprep.subr.mxu0 0.0
        %2769 = vmatpush1.msra.mxu0 0.0
        %2770 = vmatprep.subr.mxu0 0.0
        %2771 = vmatpush1.msra.mxu0 0.0
        %2772 = vmatprep.subr.mxu0 0.0
        %2773 = vmatpush1.msra.mxu0 0.0
        %2774 = vmatprep.subr.mxu0 0.0
        %2775 = vmatpush1.msra.mxu0 0.0
        %2776 = vmatprep.subr.mxu0 0.0
        %2777 = vmatpush1.msra.mxu0 0.0
        %2778 = vmatprep.subr.mxu0 0.0
        %2779 = vmatpush1.msra.mxu0 0.0
        %2780 = vmatprep.subr.mxu0 0.0
        %2781 = vmatpush1.msra.mxu0 0.0
        %2782 = vmatprep.subr.mxu0 0.0
        %2783 = vmatpush1.msra.mxu0 0.0
        %2784 = vmatprep.subr.mxu0 0.0
        %2785 = vmatpush1.msra.mxu0 0.0
        %2786 = vmatprep.subr.mxu0 0.0
        %2787 = vmatpush1.msra.mxu0 0.0
        %2788 = vmatprep.subr.mxu0 0.0
        %2789 = vmatpush1.msra.mxu0 0.0
        %2790 = vmatprep.subr.mxu0 0.0
        %2791 = vmatpush1.msra.mxu0 0.0
        %2792 = vmatprep.subr.mxu0 0.0
        %2793 = vmatpush1.msra.mxu0 0.0
        %2794 = vmatprep.subr.mxu0 0.0
        %2795 = vmatpush1.msra.mxu0 0.0
        %2796 = vmatprep.subr.mxu0 0.0
        %2797 = vmatpush1.msra.mxu0 0.0
        %2798 = vmatprep.subr.mxu0 0.0
        %2799 = vmatpush1.msra.mxu0 0.0
        %2800 = vmatprep.mubr.f32.mxu0 0.0
        %2801 = vmatmul.mubr.f32.gmra.mrb[0].mxu0 %v2524
        %v2802 = vpop.f32.mrb[0].mxu0
        %v2803 = vadd.f32 0.0, %v2802
        %v2804 = vpop.f32.mrb[0].mxu0
        %2805 = vdwg.mxu0
        %2806 = vmatprep.subr.mxu0 0.0
        %2807 = vmatpush1.msra.mxu0 %v2803
        %2808 = vmatprep.subr.mxu0 0.0
        %2809 = vmatpush1.msra.mxu0 0.0
        %2810 = vmatprep.subr.mxu0 0.0
        %2811 = vmatpush1.msra.mxu0 0.0
        %2812 = vmatprep.subr.mxu0 0.0
        %2813 = vmatpush1.msra.mxu0 0.0
        %2814 = vmatprep.subr.mxu0 0.0
        %2815 = vmatpush1.msra.mxu0 0.0
        %2816 = vmatprep.subr.mxu0 0.0
        %2817 = vmatpush1.msra.mxu0 0.0
        %2818 = vmatprep.subr.mxu0 0.0
        %2819 = vmatpush1.msra.mxu0 0.0
        %2820 = vmatprep.subr.mxu0 0.0
        %2821 = vmatpush1.msra.mxu0 0.0
        %2822 = vmatprep.subr.mxu0 0.0
        %2823 = vmatpush1.msra.mxu0 0.0
        %2824 = vmatprep.subr.mxu0 0.0
        %2825 = vmatpush1.msra.mxu0 0.0
        %2826 = vmatprep.subr.mxu0 0.0
        %2827 = vmatpush1.msra.mxu0 0.0
        %2828 = vmatprep.subr.mxu0 0.0
        %2829 = vmatpush1.msra.mxu0 0.0
        %2830 = vmatprep.subr.mxu0 0.0
        %2831 = vmatpush1.msra.mxu0 0.0
        %2832 = vmatprep.subr.mxu0 0.0
        %2833 = vmatpush1.msra.mxu0 0.0
        %2834 = vmatprep.subr.mxu0 0.0
        %2835 = vmatpush1.msra.mxu0 0.0
        %2836 = vmatprep.subr.mxu0 0.0
        %2837 = vmatpush1.msra.mxu0 0.0
        %2838 = vmatprep.subr.mxu0 0.0
        %2839 = vmatpush1.msra.mxu0 0.0
        %2840 = vmatprep.subr.mxu0 0.0
        %2841 = vmatpush1.msra.mxu0 0.0
        %2842 = vmatprep.subr.mxu0 0.0
        %2843 = vmatpush1.msra.mxu0 0.0
        %2844 = vmatprep.subr.mxu0 0.0
        %2845 = vmatpush1.msra.mxu0 0.0
        %2846 = vmatprep.subr.mxu0 0.0
        %2847 = vmatpush1.msra.mxu0 0.0
        %2848 = vmatprep.subr.mxu0 0.0
        %2849 = vmatpush1.msra.mxu0 0.0
        %2850 = vmatprep.subr.mxu0 0.0
        %2851 = vmatpush1.msra.mxu0 0.0
        %2852 = vmatprep.subr.mxu0 0.0
        %2853 = vmatpush1.msra.mxu0 0.0
        %2854 = vmatprep.subr.mxu0 0.0
        %2855 = vmatpush1.msra.mxu0 0.0
        %2856 = vmatprep.subr.mxu0 0.0
        %2857 = vmatpush1.msra.mxu0 0.0
        %2858 = vmatprep.subr.mxu0 0.0
        %2859 = vmatpush1.msra.mxu0 0.0
        %2860 = vmatprep.subr.mxu0 0.0
        %2861 = vmatpush1.msra.mxu0 0.0
        %2862 = vmatprep.subr.mxu0 0.0
        %2863 = vmatpush1.msra.mxu0 0.0
        %2864 = vmatprep.subr.mxu0 0.0
        %2865 = vmatpush1.msra.mxu0 0.0
        %2866 = vmatprep.subr.mxu0 0.0
        %2867 = vmatpush1.msra.mxu0 0.0
        %2868 = vmatprep.subr.mxu0 0.0
        %2869 = vmatpush1.msra.mxu0 0.0
        %2870 = vmatprep.mubr.f32.mxu0 0.0
        %2871 = vmatmul.mubr.f32.gmra.mrb[0].mxu0 %v1353
        %v2872 = vpop.f32.mrb[0].mxu0
        %v2873 = vadd.f32 0.0, %v2872
        %v2874 = vpop.f32.mrb[0].mxu0
        %2875 = vdwg.mxu0
        %v2876 = vadd.f32 %v2733, %v2873
        %v2878 = vlaneseq
        %v2879 = vshrl.u32 %v2878, 7
        %v2880 = vsub.s32 0, %v2879
        %v2881 = vrot.slane %v2522, %v2880
        %v2883 = vadd.f32 %v2876, %v2881
        %vm2884 = vcmp.gt.f32.partialorder %v2883, 0.0
        %v2885 = vmin.f32 %v2883, 0.0
        %v2886 = vmul.f32 %v2885, 1.442695
        %v2887 = vpow.pop %v2886
        %v2888 = vsub.f32 %v2887, 1.0
        %v2889 = vsel %vm2884, %v2883, %v2888
        %v2890 = vld [vmem:[#allocation32] sm:$0xf]
        %v2892 = vsel %vm1205, %v2890, 0
        %2894 = vmatprep.subr.mxu0 0.0
        %2895 = vmatpush1.msra.mxu0 %v2889
        %2896 = vmatprep.subr.mxu0 0.0
        %2897 = vmatpush1.msra.mxu0 0.0
        %2898 = vmatprep.subr.mxu0 0.0
        %2899 = vmatpush1.msra.mxu0 0.0
        %2900 = vmatprep.subr.mxu0 0.0
        %2901 = vmatpush1.msra.mxu0 0.0
        %2902 = vmatprep.subr.mxu0 0.0
        %2903 = vmatpush1.msra.mxu0 0.0
        %2904 = vmatprep.subr.mxu0 0.0
        %2905 = vmatpush1.msra.mxu0 0.0
        %2906 = vmatprep.subr.mxu0 0.0
        %2907 = vmatpush1.msra.mxu0 0.0
        %2908 = vmatprep.subr.mxu0 0.0
        %2909 = vmatpush1.msra.mxu0 0.0
        %2910 = vmatprep.subr.mxu0 0.0
        %2911 = vmatpush1.msra.mxu0 0.0
        %2912 = vmatprep.subr.mxu0 0.0
        %2913 = vmatpush1.msra.mxu0 0.0
        %2914 = vmatprep.subr.mxu0 0.0
        %2915 = vmatpush1.msra.mxu0 0.0
        %2916 = vmatprep.subr.mxu0 0.0
        %2917 = vmatpush1.msra.mxu0 0.0
        %2918 = vmatprep.subr.mxu0 0.0
        %2919 = vmatpush1.msra.mxu0 0.0
        %2920 = vmatprep.subr.mxu0 0.0
        %2921 = vmatpush1.msra.mxu0 0.0
        %2922 = vmatprep.subr.mxu0 0.0
        %2923 = vmatpush1.msra.mxu0 0.0
        %2924 = vmatprep.subr.mxu0 0.0
        %2925 = vmatpush1.msra.mxu0 0.0
        %2926 = vmatprep.subr.mxu0 0.0
        %2927 = vmatpush1.msra.mxu0 0.0
        %2928 = vmatprep.subr.mxu0 0.0
        %2929 = vmatpush1.msra.mxu0 0.0
        %2930 = vmatprep.subr.mxu0 0.0
        %2931 = vmatpush1.msra.mxu0 0.0
        %2932 = vmatprep.subr.mxu0 0.0
        %2933 = vmatpush1.msra.mxu0 0.0
        %2934 = vmatprep.subr.mxu0 0.0
        %2935 = vmatpush1.msra.mxu0 0.0
        %2936 = vmatprep.subr.mxu0 0.0
        %2937 = vmatpush1.msra.mxu0 0.0
        %2938 = vmatprep.subr.mxu0 0.0
        %2939 = vmatpush1.msra.mxu0 0.0
        %2940 = vmatprep.subr.mxu0 0.0
        %2941 = vmatpush1.msra.mxu0 0.0
        %2942 = vmatprep.subr.mxu0 0.0
        %2943 = vmatpush1.msra.mxu0 0.0
        %2944 = vmatprep.subr.mxu0 0.0
        %2945 = vmatpush1.msra.mxu0 0.0
        %2946 = vmatprep.subr.mxu0 0.0
        %2947 = vmatpush1.msra.mxu0 0.0
        %2948 = vmatprep.subr.mxu0 0.0
        %2949 = vmatpush1.msra.mxu0 0.0
        %2950 = vmatprep.subr.mxu0 0.0
        %2951 = vmatpush1.msra.mxu0 0.0
        %2952 = vmatprep.subr.mxu0 0.0
        %2953 = vmatpush1.msra.mxu0 0.0
        %2954 = vmatprep.subr.mxu0 0.0
        %2955 = vmatpush1.msra.mxu0 0.0
        %2956 = vmatprep.subr.mxu0 0.0
        %2957 = vmatpush1.msra.mxu0 0.0
        %2958 = vmatprep.mubr.f32.mxu0 0.0
        %2959 = vmatmul.mubr.f32.gmra.mrb[0].mxu0 %v2892
        %v2960 = vpop.f32.mrb[0].mxu0
        %v2961 = vadd.f32 0.0, %v2960
        %v2962 = vpop.f32.mrb[0].mxu0
        %2963 = vdwg.mxu0
        %s2964 = scalar_lea.vmem [#allocation32], 4
        %v2965 = vld [vmem:[%s2964] sm:$0xf]
        %v2967 = vsel %vm1205, %v2965, 0
        %2969 = vmatprep.subr.mxu0 0.0
        %2970 = vmatpush1.msra.mxu0 %v2889
        %2971 = vmatprep.subr.mxu0 0.0
        %2972 = vmatpush1.msra.mxu0 0.0
        %2973 = vmatprep.subr.mxu0 0.0
        %2974 = vmatpush1.msra.mxu0 0.0
        %2975 = vmatprep.subr.mxu0 0.0
        %2976 = vmatpush1.msra.mxu0 0.0
        %2977 = vmatprep.subr.mxu0 0.0
        %2978 = vmatpush1.msra.mxu0 0.0
        %2979 = vmatprep.subr.mxu0 0.0
        %2980 = vmatpush1.msra.mxu0 0.0
        %2981 = vmatprep.subr.mxu0 0.0
        %2982 = vmatpush1.msra.mxu0 0.0
        %2983 = vmatprep.subr.mxu0 0.0
        %2984 = vmatpush1.msra.mxu0 0.0
        %2985 = vmatprep.subr.mxu0 0.0
        %2986 = vmatpush1.msra.mxu0 0.0
        %2987 = vmatprep.subr.mxu0 0.0
        %2988 = vmatpush1.msra.mxu0 0.0
        %2989 = vmatprep.subr.mxu0 0.0
        %2990 = vmatpush1.msra.mxu0 0.0
        %2991 = vmatprep.subr.mxu0 0.0
        %2992 = vmatpush1.msra.mxu0 0.0
        %2993 = vmatprep.subr.mxu0 0.0
        %2994 = vmatpush1.msra.mxu0 0.0
        %2995 = vmatprep.subr.mxu0 0.0
        %2996 = vmatpush1.msra.mxu0 0.0
        %2997 = vmatprep.subr.mxu0 0.0
        %2998 = vmatpush1.msra.mxu0 0.0
        %2999 = vmatprep.subr.mxu0 0.0
        %3000 = vmatpush1.msra.mxu0 0.0
        %3001 = vmatprep.subr.mxu0 0.0
        %3002 = vmatpush1.msra.mxu0 0.0
        %3003 = vmatprep.subr.mxu0 0.0
        %3004 = vmatpush1.msra.mxu0 0.0
        %3005 = vmatprep.subr.mxu0 0.0
        %3006 = vmatpush1.msra.mxu0 0.0
        %3007 = vmatprep.subr.mxu0 0.0
        %3008 = vmatpush1.msra.mxu0 0.0
        %3009 = vmatprep.subr.mxu0 0.0
        %3010 = vmatpush1.msra.mxu0 0.0
        %3011 = vmatprep.subr.mxu0 0.0
        %3012 = vmatpush1.msra.mxu0 0.0
        %3013 = vmatprep.subr.mxu0 0.0
        %3014 = vmatpush1.msra.mxu0 0.0
        %3015 = vmatprep.subr.mxu0 0.0
        %3016 = vmatpush1.msra.mxu0 0.0
        %3017 = vmatprep.subr.mxu0 0.0
        %3018 = vmatpush1.msra.mxu0 0.0
        %3019 = vmatprep.subr.mxu0 0.0
        %3020 = vmatpush1.msra.mxu0 0.0
        %3021 = vmatprep.subr.mxu0 0.0
        %3022 = vmatpush1.msra.mxu0 0.0
        %3023 = vmatprep.subr.mxu0 0.0
        %3024 = vmatpush1.msra.mxu0 0.0
        %3025 = vmatprep.subr.mxu0 0.0
        %3026 = vmatpush1.msra.mxu0 0.0
        %3027 = vmatprep.subr.mxu0 0.0
        %3028 = vmatpush1.msra.mxu0 0.0
        %3029 = vmatprep.subr.mxu0 0.0
        %3030 = vmatpush1.msra.mxu0 0.0
        %3031 = vmatprep.subr.mxu0 0.0
        %3032 = vmatpush1.msra.mxu0 0.0
        %3033 = vmatprep.mubr.f32.mxu0 0.0
        %3034 = vmatmul.mubr.f32.gmra.mrb[0].mxu0 %v2967
        %v3035 = vpop.f32.mrb[0].mxu0
        %v3036 = vadd.f32 0.0, %v3035
        %v3037 = vpop.f32.mrb[0].mxu0
        %3038 = vdwg.mxu0
        %v3039 = vmax.f32 %v2961, %v3036
        %s3040 = scalar_lea.vmem [#allocation32], 8
        %v3041 = vld [vmem:[%s3040] sm:$0xf]
        %v3043 = vsel %vm1205, %v3041, 0
        %3045 = vmatprep.subr.mxu0 0.0
        %3046 = vmatpush1.msra.mxu0 %v2889
        %3047 = vmatprep.subr.mxu0 0.0
        %3048 = vmatpush1.msra.mxu0 0.0
        %3049 = vmatprep.subr.mxu0 0.0
        %3050 = vmatpush1.msra.mxu0 0.0
        %3051 = vmatprep.subr.mxu0 0.0
        %3052 = vmatpush1.msra.mxu0 0.0
        %3053 = vmatprep.subr.mxu0 0.0
        %3054 = vmatpush1.msra.mxu0 0.0
        %3055 = vmatprep.subr.mxu0 0.0
        %3056 = vmatpush1.msra.mxu0 0.0
        %3057 = vmatprep.subr.mxu0 0.0
        %3058 = vmatpush1.msra.mxu0 0.0
        %3059 = vmatprep.subr.mxu0 0.0
        %3060 = vmatpush1.msra.mxu0 0.0
        %3061 = vmatprep.subr.mxu0 0.0
        %3062 = vmatpush1.msra.mxu0 0.0
        %3063 = vmatprep.subr.mxu0 0.0
        %3064 = vmatpush1.msra.mxu0 0.0
        %3065 = vmatprep.subr.mxu0 0.0
        %3066 = vmatpush1.msra.mxu0 0.0
        %3067 = vmatprep.subr.mxu0 0.0
        %3068 = vmatpush1.msra.mxu0 0.0
        %3069 = vmatprep.subr.mxu0 0.0
        %3070 = vmatpush1.msra.mxu0 0.0
        %3071 = vmatprep.subr.mxu0 0.0
        %3072 = vmatpush1.msra.mxu0 0.0
        %3073 = vmatprep.subr.mxu0 0.0
        %3074 = vmatpush1.msra.mxu0 0.0
        %3075 = vmatprep.subr.mxu0 0.0
        %3076 = vmatpush1.msra.mxu0 0.0
        %3077 = vmatprep.subr.mxu0 0.0
        %3078 = vmatpush1.msra.mxu0 0.0
        %3079 = vmatprep.subr.mxu0 0.0
        %3080 = vmatpush1.msra.mxu0 0.0
        %3081 = vmatprep.subr.mxu0 0.0
        %3082 = vmatpush1.msra.mxu0 0.0
        %3083 = vmatprep.subr.mxu0 0.0
        %3084 = vmatpush1.msra.mxu0 0.0
        %3085 = vmatprep.subr.mxu0 0.0
        %3086 = vmatpush1.msra.mxu0 0.0
        %3087 = vmatprep.subr.mxu0 0.0
        %3088 = vmatpush1.msra.mxu0 0.0
        %3089 = vmatprep.subr.mxu0 0.0
        %3090 = vmatpush1.msra.mxu0 0.0
        %3091 = vmatprep.subr.mxu0 0.0
        %3092 = vmatpush1.msra.mxu0 0.0
        %3093 = vmatprep.subr.mxu0 0.0
        %3094 = vmatpush1.msra.mxu0 0.0
        %3095 = vmatprep.subr.mxu0 0.0
        %3096 = vmatpush1.msra.mxu0 0.0
        %3097 = vmatprep.subr.mxu0 0.0
        %3098 = vmatpush1.msra.mxu0 0.0
        %3099 = vmatprep.subr.mxu0 0.0
        %3100 = vmatpush1.msra.mxu0 0.0
        %3101 = vmatprep.subr.mxu0 0.0
        %3102 = vmatpush1.msra.mxu0 0.0
        %3103 = vmatprep.subr.mxu0 0.0
        %3104 = vmatpush1.msra.mxu0 0.0
        %3105 = vmatprep.subr.mxu0 0.0
        %3106 = vmatpush1.msra.mxu0 0.0
        %3107 = vmatprep.subr.mxu0 0.0
        %3108 = vmatpush1.msra.mxu0 0.0
        %3109 = vmatprep.mubr.f32.mxu0 0.0
        %3110 = vmatmul.mubr.f32.gmra.mrb[0].mxu0 %v3043
        %v3111 = vpop.f32.mrb[0].mxu0
        %v3112 = vadd.f32 0.0, %v3111
        %v3113 = vpop.f32.mrb[0].mxu0
        %3114 = vdwg.mxu0
        %v3115 = vmax.f32 %v3039, %v3112
        %s3116 = scalar_lea.vmem %s3, 32
        %v3117 = vld [vmem:[%s3116] sm:$0xff]
        %v3118 = vld [vmem:[%s3116 + $0x8] sm:$0xff]
        %v3119 = vld [vmem:[%s3116 + $0x10] sm:$0xff]
        %v3120 = vld [vmem:[%s3116 + $0x18] sm:$0xff]
        %s3121 = scalar_lea.vmem %s4, 1
        %v3122 = vld [vmem:[%s3121] sm:$0x1]
        %v3124 = vlaneseq
        %v3125 = vshrl.u32 %v3124, 7
        %v3126 = vsub.s32 0, %v3125
        %v3127 = vrot.slane %v3122, %v3126
        %v3130 = vsel %vm1438, %v3115, 0
        %3132 = vmatprep.subr.mxu0 0.0
        %3133 = vmatpush1.msra.mxu0 %v3117
        %3134 = vmatprep.subr.mxu0 0.0
        %3135 = vmatpush1.msra.mxu0 %v3118
        %3136 = vmatprep.subr.mxu0 0.0
        %3137 = vmatpush1.msra.mxu0 %v3119
        %3138 = vmatprep.subr.mxu0 0.0
        %3139 = vmatpush1.msra.mxu0 %v3120
        %3140 = vmatprep.subr.mxu0 0.0
        %3141 = vmatpush1.msra.mxu0 0.0
        %3142 = vmatprep.subr.mxu0 0.0
        %3143 = vmatpush1.msra.mxu0 0.0
        %3144 = vmatprep.subr.mxu0 0.0
        %3145 = vmatpush1.msra.mxu0 0.0
        %3146 = vmatprep.subr.mxu0 0.0
        %3147 = vmatpush1.msra.mxu0 0.0
        %3148 = vmatprep.subr.mxu0 0.0
        %3149 = vmatpush1.msra.mxu0 0.0
        %3150 = vmatprep.subr.mxu0 0.0
        %3151 = vmatpush1.msra.mxu0 0.0
        %3152 = vmatprep.subr.mxu0 0.0
        %3153 = vmatpush1.msra.mxu0 0.0
        %3154 = vmatprep.subr.mxu0 0.0
        %3155 = vmatpush1.msra.mxu0 0.0
        %3156 = vmatprep.subr.mxu0 0.0
        %3157 = vmatpush1.msra.mxu0 0.0
        %3158 = vmatprep.subr.mxu0 0.0
        %3159 = vmatpush1.msra.mxu0 0.0
        %3160 = vmatprep.subr.mxu0 0.0
        %3161 = vmatpush1.msra.mxu0 0.0
        %3162 = vmatprep.subr.mxu0 0.0
        %3163 = vmatpush1.msra.mxu0 0.0
        %3164 = vmatprep.subr.mxu0 0.0
        %3165 = vmatpush1.msra.mxu0 0.0
        %3166 = vmatprep.subr.mxu0 0.0
        %3167 = vmatpush1.msra.mxu0 0.0
        %3168 = vmatprep.subr.mxu0 0.0
        %3169 = vmatpush1.msra.mxu0 0.0
        %3170 = vmatprep.subr.mxu0 0.0
        %3171 = vmatpush1.msra.mxu0 0.0
        %3172 = vmatprep.subr.mxu0 0.0
        %3173 = vmatpush1.msra.mxu0 0.0
        %3174 = vmatprep.subr.mxu0 0.0
        %3175 = vmatpush1.msra.mxu0 0.0
        %3176 = vmatprep.subr.mxu0 0.0
        %3177 = vmatpush1.msra.mxu0 0.0
        %3178 = vmatprep.subr.mxu0 0.0
        %3179 = vmatpush1.msra.mxu0 0.0
        %3180 = vmatprep.subr.mxu0 0.0
        %3181 = vmatpush1.msra.mxu0 0.0
        %3182 = vmatprep.subr.mxu0 0.0
        %3183 = vmatpush1.msra.mxu0 0.0
        %3184 = vmatprep.subr.mxu0 0.0
        %3185 = vmatpush1.msra.mxu0 0.0
        %3186 = vmatprep.subr.mxu0 0.0
        %3187 = vmatpush1.msra.mxu0 0.0
        %3188 = vmatprep.subr.mxu0 0.0
        %3189 = vmatpush1.msra.mxu0 0.0
        %3190 = vmatprep.subr.mxu0 0.0
        %3191 = vmatpush1.msra.mxu0 0.0
        %3192 = vmatprep.subr.mxu0 0.0
        %3193 = vmatpush1.msra.mxu0 0.0
        %3194 = vmatprep.subr.mxu0 0.0
        %3195 = vmatpush1.msra.mxu0 0.0
        %3196 = vmatprep.mubr.f32.mxu0 0.0
        %3197 = vmatmul.mubr.f32.gmra.mrb[0].mxu0 %v3130
        %v3198 = vpop.f32.mrb[0].mxu0
        %v3199 = vadd.f32 %v3127, %v3198
        %v3200 = vpop.f32.mrb[0].mxu0
        %3201 = vdwg.mxu0
        %3203 = vrot.lane.b32.xlu0 %v3199, 96
        %v3204 = vpop.permute.xlu0 %3203
        %v3205 = vsel %vm1205, %v3199, 0
        %v3207 = vsel %vm1205, %v3204, 0
        %3209 = vmatprep.subr.mxu0 0.0
        %3210 = vmatpush1.xpose.msra.mxu0 %v3207
        %3211 = vmatprep.subr.mxu0 0.0
        %3212 = vmatpush1.xpose.msra.mxu0 0.0
        %3213 = vmatprep.subr.mxu0 0.0
        %3214 = vmatpush1.xpose.msra.mxu0 0.0
        %3215 = vmatprep.subr.mxu0 0.0
        %3216 = vmatpush1.xpose.msra.mxu0 0.0
        %3217 = vmatprep.subr.mxu0 0.0
        %3218 = vmatpush1.xpose.msra.mxu0 0.0
        %3219 = vmatprep.subr.mxu0 0.0
        %3220 = vmatpush1.xpose.msra.mxu0 0.0
        %3221 = vmatprep.subr.mxu0 0.0
        %3222 = vmatpush1.xpose.msra.mxu0 0.0
        %3223 = vmatprep.subr.mxu0 0.0
        %3224 = vmatpush1.xpose.msra.mxu0 0.0
        %3225 = vmatprep.subr.mxu0 0.0
        %3226 = vmatpush1.xpose.msra.mxu0 0.0
        %3227 = vmatprep.subr.mxu0 0.0
        %3228 = vmatpush1.xpose.msra.mxu0 0.0
        %3229 = vmatprep.subr.mxu0 0.0
        %3230 = vmatpush1.xpose.msra.mxu0 0.0
        %3231 = vmatprep.subr.mxu0 0.0
        %3232 = vmatpush1.xpose.msra.mxu0 0.0
        %3233 = vmatprep.subr.mxu0 0.0
        %3234 = vmatpush1.xpose.msra.mxu0 0.0
        %3235 = vmatprep.subr.mxu0 0.0
        %3236 = vmatpush1.xpose.msra.mxu0 0.0
        %3237 = vmatprep.subr.mxu0 0.0
        %3238 = vmatpush1.xpose.msra.mxu0 0.0
        %3239 = vmatprep.subr.mxu0 0.0
        %3240 = vmatpush1.xpose.msra.mxu0 0.0
        %3241 = vmatprep.subr.mxu0 0.0
        %3242 = vmatpush1.xpose.msra.mxu0 0.0
        %3243 = vmatprep.subr.mxu0 0.0
        %3244 = vmatpush1.xpose.msra.mxu0 0.0
        %3245 = vmatprep.subr.mxu0 0.0
        %3246 = vmatpush1.xpose.msra.mxu0 0.0
        %3247 = vmatprep.subr.mxu0 0.0
        %3248 = vmatpush1.xpose.msra.mxu0 0.0
        %3249 = vmatprep.subr.mxu0 0.0
        %3250 = vmatpush1.xpose.msra.mxu0 0.0
        %3251 = vmatprep.subr.mxu0 0.0
        %3252 = vmatpush1.xpose.msra.mxu0 0.0
        %3253 = vmatprep.subr.mxu0 0.0
        %3254 = vmatpush1.xpose.msra.mxu0 0.0
        %3255 = vmatprep.subr.mxu0 0.0
        %3256 = vmatpush1.xpose.msra.mxu0 0.0
        %3257 = vmatprep.subr.mxu0 0.0
        %3258 = vmatpush1.xpose.msra.mxu0 0.0
        %3259 = vmatprep.subr.mxu0 0.0
        %3260 = vmatpush1.xpose.msra.mxu0 0.0
        %3261 = vmatprep.subr.mxu0 0.0
        %3262 = vmatpush1.xpose.msra.mxu0 0.0
        %3263 = vmatprep.subr.mxu0 0.0
        %3264 = vmatpush1.xpose.msra.mxu0 0.0
        %3265 = vmatprep.subr.mxu0 0.0
        %3266 = vmatpush1.xpose.msra.mxu0 0.0
        %3267 = vmatprep.subr.mxu0 0.0
        %3268 = vmatpush1.xpose.msra.mxu0 0.0
        %3269 = vmatprep.subr.mxu0 0.0
        %3270 = vmatpush1.xpose.msra.mxu0 0.0
        %3271 = vmatprep.subr.mxu0 0.0
        %3272 = vmatpush1.xpose.msra.mxu0 0.0
        %3273 = vmatprep.mubr.f32.mxu0 0.0
        %3274 = vmatmul.mubr.f32.gmra.mrb[0].mxu0 %v3205
        %v3275 = vpop.f32.mrb[0].mxu0
        %v3276 = vadd.f32 0.0, %v3275
        %v3277 = vpop.f32.mrb[0].mxu0
        %3278 = vdwg.mxu0
        %3279 = vrot.lane.b32.xlu0 %v3199, 120
        %v3280 = vpop.permute.xlu0 %3279
        %3281 = vrot.lane.b32.xlu0 %v3199, 88
        %v3282 = vpop.permute.xlu0 %3281
        %v3283 = vsel %vm1205, %v3280, 0
        %v3285 = vsel %vm1205, %v3282, 0
        %3287 = vmatprep.subr.mxu0 0.0
        %3288 = vmatpush1.xpose.msra.mxu0 %v3285
        %3289 = vmatprep.subr.mxu0 0.0
        %3290 = vmatpush1.xpose.msra.mxu0 0.0
        %3291 = vmatprep.subr.mxu0 0.0
        %3292 = vmatpush1.xpose.msra.mxu0 0.0
        %3293 = vmatprep.subr.mxu0 0.0
        %3294 = vmatpush1.xpose.msra.mxu0 0.0
        %3295 = vmatprep.subr.mxu0 0.0
        %3296 = vmatpush1.xpose.msra.mxu0 0.0
        %3297 = vmatprep.subr.mxu0 0.0
        %3298 = vmatpush1.xpose.msra.mxu0 0.0
        %3299 = vmatprep.subr.mxu0 0.0
        %3300 = vmatpush1.xpose.msra.mxu0 0.0
        %3301 = vmatprep.subr.mxu0 0.0
        %3302 = vmatpush1.xpose.msra.mxu0 0.0
        %3303 = vmatprep.subr.mxu0 0.0
        %3304 = vmatpush1.xpose.msra.mxu0 0.0
        %3305 = vmatprep.subr.mxu0 0.0
        %3306 = vmatpush1.xpose.msra.mxu0 0.0
        %3307 = vmatprep.subr.mxu0 0.0
        %3308 = vmatpush1.xpose.msra.mxu0 0.0
        %3309 = vmatprep.subr.mxu0 0.0
        %3310 = vmatpush1.xpose.msra.mxu0 0.0
        %3311 = vmatprep.subr.mxu0 0.0
        %3312 = vmatpush1.xpose.msra.mxu0 0.0
        %3313 = vmatprep.subr.mxu0 0.0
        %3314 = vmatpush1.xpose.msra.mxu0 0.0
        %3315 = vmatprep.subr.mxu0 0.0
        %3316 = vmatpush1.xpose.msra.mxu0 0.0
        %3317 = vmatprep.subr.mxu0 0.0
        %3318 = vmatpush1.xpose.msra.mxu0 0.0
        %3319 = vmatprep.subr.mxu0 0.0
        %3320 = vmatpush1.xpose.msra.mxu0 0.0
        %3321 = vmatprep.subr.mxu0 0.0
        %3322 = vmatpush1.xpose.msra.mxu0 0.0
        %3323 = vmatprep.subr.mxu0 0.0
        %3324 = vmatpush1.xpose.msra.mxu0 0.0
        %3325 = vmatprep.subr.mxu0 0.0
        %3326 = vmatpush1.xpose.msra.mxu0 0.0
        %3327 = vmatprep.subr.mxu0 0.0
        %3328 = vmatpush1.xpose.msra.mxu0 0.0
        %3329 = vmatprep.subr.mxu0 0.0
        %3330 = vmatpush1.xpose.msra.mxu0 0.0
        %3331 = vmatprep.subr.mxu0 0.0
        %3332 = vmatpush1.xpose.msra.mxu0 0.0
        %3333 = vmatprep.subr.mxu0 0.0
        %3334 = vmatpush1.xpose.msra.mxu0 0.0
        %3335 = vmatprep.subr.mxu0 0.0
        %3336 = vmatpush1.xpose.msra.mxu0 0.0
        %3337 = vmatprep.subr.mxu0 0.0
        %3338 = vmatpush1.xpose.msra.mxu0 0.0
        %3339 = vmatprep.subr.mxu0 0.0
        %3340 = vmatpush1.xpose.msra.mxu0 0.0
        %3341 = vmatprep.subr.mxu0 0.0
        %3342 = vmatpush1.xpose.msra.mxu0 0.0
        %3343 = vmatprep.subr.mxu0 0.0
        %3344 = vmatpush1.xpose.msra.mxu0 0.0
        %3345 = vmatprep.subr.mxu0 0.0
        %3346 = vmatpush1.xpose.msra.mxu0 0.0
        %3347 = vmatprep.subr.mxu0 0.0
        %3348 = vmatpush1.xpose.msra.mxu0 0.0
        %3349 = vmatprep.subr.mxu0 0.0
        %3350 = vmatpush1.xpose.msra.mxu0 0.0
        %3351 = vmatprep.mubr.f32.mxu0 0.0
        %3352 = vmatmul.mubr.f32.gmra.mrb[0].mxu0 %v3283
        %v3353 = vpop.f32.mrb[0].mxu0
        %v3354 = vadd.f32 0.0, %v3353
        %v3355 = vpop.f32.mrb[0].mxu0
        %3356 = vdwg.mxu0
        %3357 = vrot.lane.b32.xlu0 %v3199, 112
        %v3358 = vpop.permute.xlu0 %3357
        %3359 = vrot.lane.b32.xlu0 %v3199, 80
        %v3360 = vpop.permute.xlu0 %3359
        %v3361 = vsel %vm1205, %v3358, 0
        %v3363 = vsel %vm1205, %v3360, 0
        %3365 = vmatprep.subr.mxu0 0.0
        %3366 = vmatpush1.xpose.msra.mxu0 %v3363
        %3367 = vmatprep.subr.mxu0 0.0
        %3368 = vmatpush1.xpose.msra.mxu0 0.0
        %3369 = vmatprep.subr.mxu0 0.0
        %3370 = vmatpush1.xpose.msra.mxu0 0.0
        %3371 = vmatprep.subr.mxu0 0.0
        %3372 = vmatpush1.xpose.msra.mxu0 0.0
        %3373 = vmatprep.subr.mxu0 0.0
        %3374 = vmatpush1.xpose.msra.mxu0 0.0
        %3375 = vmatprep.subr.mxu0 0.0
        %3376 = vmatpush1.xpose.msra.mxu0 0.0
        %3377 = vmatprep.subr.mxu0 0.0
        %3378 = vmatpush1.xpose.msra.mxu0 0.0
        %3379 = vmatprep.subr.mxu0 0.0
        %3380 = vmatpush1.xpose.msra.mxu0 0.0
        %3381 = vmatprep.subr.mxu0 0.0
        %3382 = vmatpush1.xpose.msra.mxu0 0.0
        %3383 = vmatprep.subr.mxu0 0.0
        %3384 = vmatpush1.xpose.msra.mxu0 0.0
        %3385 = vmatprep.subr.mxu0 0.0
        %3386 = vmatpush1.xpose.msra.mxu0 0.0
        %3387 = vmatprep.subr.mxu0 0.0
        %3388 = vmatpush1.xpose.msra.mxu0 0.0
        %3389 = vmatprep.subr.mxu0 0.0
        %3390 = vmatpush1.xpose.msra.mxu0 0.0
        %3391 = vmatprep.subr.mxu0 0.0
        %3392 = vmatpush1.xpose.msra.mxu0 0.0
        %3393 = vmatprep.subr.mxu0 0.0
        %3394 = vmatpush1.xpose.msra.mxu0 0.0
        %3395 = vmatprep.subr.mxu0 0.0
        %3396 = vmatpush1.xpose.msra.mxu0 0.0
        %3397 = vmatprep.subr.mxu0 0.0
        %3398 = vmatpush1.xpose.msra.mxu0 0.0
        %3399 = vmatprep.subr.mxu0 0.0
        %3400 = vmatpush1.xpose.msra.mxu0 0.0
        %3401 = vmatprep.subr.mxu0 0.0
        %3402 = vmatpush1.xpose.msra.mxu0 0.0
        %3403 = vmatprep.subr.mxu0 0.0
        %3404 = vmatpush1.xpose.msra.mxu0 0.0
        %3405 = vmatprep.subr.mxu0 0.0
        %3406 = vmatpush1.xpose.msra.mxu0 0.0
        %3407 = vmatprep.subr.mxu0 0.0
        %3408 = vmatpush1.xpose.msra.mxu0 0.0
        %3409 = vmatprep.subr.mxu0 0.0
        %3410 = vmatpush1.xpose.msra.mxu0 0.0
        %3411 = vmatprep.subr.mxu0 0.0
        %3412 = vmatpush1.xpose.msra.mxu0 0.0
        %3413 = vmatprep.subr.mxu0 0.0
        %3414 = vmatpush1.xpose.msra.mxu0 0.0
        %3415 = vmatprep.subr.mxu0 0.0
        %3416 = vmatpush1.xpose.msra.mxu0 0.0
        %3417 = vmatprep.subr.mxu0 0.0
        %3418 = vmatpush1.xpose.msra.mxu0 0.0
        %3419 = vmatprep.subr.mxu0 0.0
        %3420 = vmatpush1.xpose.msra.mxu0 0.0
        %3421 = vmatprep.subr.mxu0 0.0
        %3422 = vmatpush1.xpose.msra.mxu0 0.0
        %3423 = vmatprep.subr.mxu0 0.0
        %3424 = vmatpush1.xpose.msra.mxu0 0.0
        %3425 = vmatprep.subr.mxu0 0.0
        %3426 = vmatpush1.xpose.msra.mxu0 0.0
        %3427 = vmatprep.subr.mxu0 0.0
        %3428 = vmatpush1.xpose.msra.mxu0 0.0
        %3429 = vmatprep.mubr.f32.mxu0 0.0
        %3430 = vmatmul.mubr.f32.gmra.mrb[0].mxu0 %v3361
        %v3431 = vpop.f32.mrb[0].mxu0
        %v3432 = vadd.f32 0.0, %v3431
        %v3433 = vpop.f32.mrb[0].mxu0
        %3434 = vdwg.mxu0
        %3435 = vrot.lane.b32.xlu0 %v3199, 104
        %v3436 = vpop.permute.xlu0 %3435
        %3437 = vrot.lane.b32.xlu0 %v3199, 72
        %v3438 = vpop.permute.xlu0 %3437
        %v3439 = vsel %vm1205, %v3436, 0
        %v3441 = vsel %vm1205, %v3438, 0
        %3443 = vmatprep.subr.mxu0 0.0
        %3444 = vmatpush1.xpose.msra.mxu0 %v3441
        %3445 = vmatprep.subr.mxu0 0.0
        %3446 = vmatpush1.xpose.msra.mxu0 0.0
        %3447 = vmatprep.subr.mxu0 0.0
        %3448 = vmatpush1.xpose.msra.mxu0 0.0
        %3449 = vmatprep.subr.mxu0 0.0
        %3450 = vmatpush1.xpose.msra.mxu0 0.0
        %3451 = vmatprep.subr.mxu0 0.0
        %3452 = vmatpush1.xpose.msra.mxu0 0.0
        %3453 = vmatprep.subr.mxu0 0.0
        %3454 = vmatpush1.xpose.msra.mxu0 0.0
        %3455 = vmatprep.subr.mxu0 0.0
        %3456 = vmatpush1.xpose.msra.mxu0 0.0
        %3457 = vmatprep.subr.mxu0 0.0
        %3458 = vmatpush1.xpose.msra.mxu0 0.0
        %3459 = vmatprep.subr.mxu0 0.0
        %3460 = vmatpush1.xpose.msra.mxu0 0.0
        %3461 = vmatprep.subr.mxu0 0.0
        %3462 = vmatpush1.xpose.msra.mxu0 0.0
        %3463 = vmatprep.subr.mxu0 0.0
        %3464 = vmatpush1.xpose.msra.mxu0 0.0
        %3465 = vmatprep.subr.mxu0 0.0
        %3466 = vmatpush1.xpose.msra.mxu0 0.0
        %3467 = vmatprep.subr.mxu0 0.0
        %3468 = vmatpush1.xpose.msra.mxu0 0.0
        %3469 = vmatprep.subr.mxu0 0.0
        %3470 = vmatpush1.xpose.msra.mxu0 0.0
        %3471 = vmatprep.subr.mxu0 0.0
        %3472 = vmatpush1.xpose.msra.mxu0 0.0
        %3473 = vmatprep.subr.mxu0 0.0
        %3474 = vmatpush1.xpose.msra.mxu0 0.0
        %3475 = vmatprep.subr.mxu0 0.0
        %3476 = vmatpush1.xpose.msra.mxu0 0.0
        %3477 = vmatprep.subr.mxu0 0.0
        %3478 = vmatpush1.xpose.msra.mxu0 0.0
        %3479 = vmatprep.subr.mxu0 0.0
        %3480 = vmatpush1.xpose.msra.mxu0 0.0
        %3481 = vmatprep.subr.mxu0 0.0
        %3482 = vmatpush1.xpose.msra.mxu0 0.0
        %3483 = vmatprep.subr.mxu0 0.0
        %3484 = vmatpush1.xpose.msra.mxu0 0.0
        %3485 = vmatprep.subr.mxu0 0.0
        %3486 = vmatpush1.xpose.msra.mxu0 0.0
        %3487 = vmatprep.subr.mxu0 0.0
        %3488 = vmatpush1.xpose.msra.mxu0 0.0
        %3489 = vmatprep.subr.mxu0 0.0
        %3490 = vmatpush1.xpose.msra.mxu0 0.0
        %3491 = vmatprep.subr.mxu0 0.0
        %3492 = vmatpush1.xpose.msra.mxu0 0.0
        %3493 = vmatprep.subr.mxu0 0.0
        %3494 = vmatpush1.xpose.msra.mxu0 0.0
        %3495 = vmatprep.subr.mxu0 0.0
        %3496 = vmatpush1.xpose.msra.mxu0 0.0
        %3497 = vmatprep.subr.mxu0 0.0
        %3498 = vmatpush1.xpose.msra.mxu0 0.0
        %3499 = vmatprep.subr.mxu0 0.0
        %3500 = vmatpush1.xpose.msra.mxu0 0.0
        %3501 = vmatprep.subr.mxu0 0.0
        %3502 = vmatpush1.xpose.msra.mxu0 0.0
        %3503 = vmatprep.subr.mxu0 0.0
        %3504 = vmatpush1.xpose.msra.mxu0 0.0
        %3505 = vmatprep.subr.mxu0 0.0
        %3506 = vmatpush1.xpose.msra.mxu0 0.0
        %3507 = vmatprep.mubr.f32.mxu0 0.0
        %3508 = vmatmul.mubr.f32.gmra.mrb[0].mxu0 %v3439
        %v3509 = vpop.f32.mrb[0].mxu0
        %v3510 = vadd.f32 0.0, %v3509
        %v3511 = vpop.f32.mrb[0].mxu0
        %3512 = vdwg.mxu0
        %vm3513 = vcmask 27648
        %v3514 = vsel %vm3513, %v3276, -inf
        %3515 = vmax.xlane.f32.xlu0 %v3514
        %v3516 = vpop.xlane.xlu0 %3515
        %v3517 = vsel %vm3513, %v3354, -inf
        %3518 = vmax.xlane.f32.xlu0 %v3517
        %v3519 = vpop.xlane.xlu0 %3518
        %v3520 = vsel %vm3513, %v3432, -inf
        %3521 = vmax.xlane.f32.xlu0 %v3520
        %v3522 = vpop.xlane.xlu0 %3521
        %v3523 = vsel %vm3513, %v3510, -inf
        %3524 = vmax.xlane.f32.xlu0 %v3523
        %v3525 = vpop.xlane.xlu0 %3524
        %v3526 = vsub.f32 %v3276, %v3516
        %v3527 = vsub.f32 %v3354, %v3519
        %v3528 = vsub.f32 %v3432, %v3522
        %v3529 = vsub.f32 %v3510, %v3525
        %v3530 = vmul.f32 %v3526, 1.442695
        %v3531 = vpow.pop %v3530
        %v3532 = vmul.f32 %v3527, 1.442695
        %v3533 = vpow.pop %v3532
        %v3534 = vmul.f32 %v3528, 1.442695
        %v3535 = vpow.pop %v3534
        %v3536 = vmul.f32 %v3529, 1.442695
        %v3537 = vpow.pop %v3536
        %v3538 = vsel %vm3513, %v3531, 0.0
        %3539 = vadd.xlane.f32.xlu0 %v3538
        %v3540 = vpop.xlane.xlu0 %3539
        %v3541 = vsel %vm3513, %v3533, 0.0
        %3542 = vadd.xlane.f32.xlu0 %v3541
        %v3543 = vpop.xlane.xlu0 %3542
        %v3544 = vsel %vm3513, %v3535, 0.0
        %3545 = vadd.xlane.f32.xlu0 %v3544
        %v3546 = vpop.xlane.xlu0 %3545
        %v3547 = vsel %vm3513, %v3537, 0.0
        %3548 = vadd.xlane.f32.xlu0 %v3547
        %v3549 = vpop.xlane.xlu0 %3548
        %v3550 = vrcp.pop %v3540
        %v3551 = vrcp.pop %v3543
        %v3552 = vrcp.pop %v3546
        %v3553 = vrcp.pop %v3549
        %v3554 = vmul.f32 %v3531, %v3550
        %v3555 = vmul.f32 %v3533, %v3551
        %v3556 = vmul.f32 %v3535, %v3552
        %v3557 = vmul.f32 %v3537, %v3553
        %3558 = vrot.lane.b32.xlu0 %v3199, 64
        %v3559 = vpop.permute.xlu0 %3558
        %v3561 = vsel %vm1054, %v3554, 0
        %v3563 = vsel %vm1058, %v3559, 0
        %3565 = vmatprep.subr.mxu0 0.0
        %3566 = vmatpush1.msra.mxu0 %v3563
        %3567 = vmatprep.subr.mxu0 0.0
        %3568 = vmatpush1.msra.mxu0 0.0
        %3569 = vmatprep.subr.mxu0 0.0
        %3570 = vmatpush1.msra.mxu0 0.0
        %3571 = vmatprep.subr.mxu0 0.0
        %3572 = vmatpush1.msra.mxu0 0.0
        %3573 = vmatprep.subr.mxu0 0.0
        %3574 = vmatpush1.msra.mxu0 0.0
        %3575 = vmatprep.subr.mxu0 0.0
        %3576 = vmatpush1.msra.mxu0 0.0
        %3577 = vmatprep.subr.mxu0 0.0
        %3578 = vmatpush1.msra.mxu0 0.0
        %3579 = vmatprep.subr.mxu0 0.0
        %3580 = vmatpush1.msra.mxu0 0.0
        %3581 = vmatprep.subr.mxu0 0.0
        %3582 = vmatpush1.msra.mxu0 0.0
        %3583 = vmatprep.subr.mxu0 0.0
        %3584 = vmatpush1.msra.mxu0 0.0
        %3585 = vmatprep.subr.mxu0 0.0
        %3586 = vmatpush1.msra.mxu0 0.0
        %3587 = vmatprep.subr.mxu0 0.0
        %3588 = vmatpush1.msra.mxu0 0.0
        %3589 = vmatprep.subr.mxu0 0.0
        %3590 = vmatpush1.msra.mxu0 0.0
        %3591 = vmatprep.subr.mxu0 0.0
        %3592 = vmatpush1.msra.mxu0 0.0
        %3593 = vmatprep.subr.mxu0 0.0
        %3594 = vmatpush1.msra.mxu0 0.0
        %3595 = vmatprep.subr.mxu0 0.0
        %3596 = vmatpush1.msra.mxu0 0.0
        %3597 = vmatprep.subr.mxu0 0.0
        %3598 = vmatpush1.msra.mxu0 0.0
        %3599 = vmatprep.subr.mxu0 0.0
        %3600 = vmatpush1.msra.mxu0 0.0
        %3601 = vmatprep.subr.mxu0 0.0
        %3602 = vmatpush1.msra.mxu0 0.0
        %3603 = vmatprep.subr.mxu0 0.0
        %3604 = vmatpush1.msra.mxu0 0.0
        %3605 = vmatprep.subr.mxu0 0.0
        %3606 = vmatpush1.msra.mxu0 0.0
        %3607 = vmatprep.subr.mxu0 0.0
        %3608 = vmatpush1.msra.mxu0 0.0
        %3609 = vmatprep.subr.mxu0 0.0
        %3610 = vmatpush1.msra.mxu0 0.0
        %3611 = vmatprep.subr.mxu0 0.0
        %3612 = vmatpush1.msra.mxu0 0.0
        %3613 = vmatprep.subr.mxu0 0.0
        %3614 = vmatpush1.msra.mxu0 0.0
        %3615 = vmatprep.subr.mxu0 0.0
        %3616 = vmatpush1.msra.mxu0 0.0
        %3617 = vmatprep.subr.mxu0 0.0
        %3618 = vmatpush1.msra.mxu0 0.0
        %3619 = vmatprep.subr.mxu0 0.0
        %3620 = vmatpush1.msra.mxu0 0.0
        %3621 = vmatprep.subr.mxu0 0.0
        %3622 = vmatpush1.msra.mxu0 0.0
        %3623 = vmatprep.subr.mxu0 0.0
        %3624 = vmatpush1.msra.mxu0 0.0
        %3625 = vmatprep.subr.mxu0 0.0
        %3626 = vmatpush1.msra.mxu0 0.0
        %3627 = vmatprep.subr.mxu0 0.0
        %3628 = vmatpush1.msra.mxu0 0.0
        %3629 = vmatprep.mubr.f32.mxu0 0.0
        %3630 = vmatmul.mubr.f32.gmra.mrb[0].mxu0 %v3561
        %v3631 = vpop.f32.mrb[0].mxu0
        %v3632 = vadd.f32 0.0, %v3631
        %v3633 = vpop.f32.mrb[0].mxu0
        %3634 = vdwg.mxu0
        %3635 = vrot.lane.b32.xlu0 %v3199, 56
        %v3636 = vpop.permute.xlu0 %3635
        %v3638 = vsel %vm1054, %v3555, 0
        %v3640 = vsel %vm1058, %v3636, 0
        %3642 = vmatprep.subr.mxu0 0.0
        %3643 = vmatpush1.msra.mxu0 %v3640
        %3644 = vmatprep.subr.mxu0 0.0
        %3645 = vmatpush1.msra.mxu0 0.0
        %3646 = vmatprep.subr.mxu0 0.0
        %3647 = vmatpush1.msra.mxu0 0.0
        %3648 = vmatprep.subr.mxu0 0.0
        %3649 = vmatpush1.msra.mxu0 0.0
        %3650 = vmatprep.subr.mxu0 0.0
        %3651 = vmatpush1.msra.mxu0 0.0
        %3652 = vmatprep.subr.mxu0 0.0
        %3653 = vmatpush1.msra.mxu0 0.0
        %3654 = vmatprep.subr.mxu0 0.0
        %3655 = vmatpush1.msra.mxu0 0.0
        %3656 = vmatprep.subr.mxu0 0.0
        %3657 = vmatpush1.msra.mxu0 0.0
        %3658 = vmatprep.subr.mxu0 0.0
        %3659 = vmatpush1.msra.mxu0 0.0
        %3660 = vmatprep.subr.mxu0 0.0
        %3661 = vmatpush1.msra.mxu0 0.0
        %3662 = vmatprep.subr.mxu0 0.0
        %3663 = vmatpush1.msra.mxu0 0.0
        %3664 = vmatprep.subr.mxu0 0.0
        %3665 = vmatpush1.msra.mxu0 0.0
        %3666 = vmatprep.subr.mxu0 0.0
        %3667 = vmatpush1.msra.mxu0 0.0
        %3668 = vmatprep.subr.mxu0 0.0
        %3669 = vmatpush1.msra.mxu0 0.0
        %3670 = vmatprep.subr.mxu0 0.0
        %3671 = vmatpush1.msra.mxu0 0.0
        %3672 = vmatprep.subr.mxu0 0.0
        %3673 = vmatpush1.msra.mxu0 0.0
        %3674 = vmatprep.subr.mxu0 0.0
        %3675 = vmatpush1.msra.mxu0 0.0
        %3676 = vmatprep.subr.mxu0 0.0
        %3677 = vmatpush1.msra.mxu0 0.0
        %3678 = vmatprep.subr.mxu0 0.0
        %3679 = vmatpush1.msra.mxu0 0.0
        %3680 = vmatprep.subr.mxu0 0.0
        %3681 = vmatpush1.msra.mxu0 0.0
        %3682 = vmatprep.subr.mxu0 0.0
        %3683 = vmatpush1.msra.mxu0 0.0
        %3684 = vmatprep.subr.mxu0 0.0
        %3685 = vmatpush1.msra.mxu0 0.0
        %3686 = vmatprep.subr.mxu0 0.0
        %3687 = vmatpush1.msra.mxu0 0.0
        %3688 = vmatprep.subr.mxu0 0.0
        %3689 = vmatpush1.msra.mxu0 0.0
        %3690 = vmatprep.subr.mxu0 0.0
        %3691 = vmatpush1.msra.mxu0 0.0
        %3692 = vmatprep.subr.mxu0 0.0
        %3693 = vmatpush1.msra.mxu0 0.0
        %3694 = vmatprep.subr.mxu0 0.0
        %3695 = vmatpush1.msra.mxu0 0.0
        %3696 = vmatprep.subr.mxu0 0.0
        %3697 = vmatpush1.msra.mxu0 0.0
        %3698 = vmatprep.subr.mxu0 0.0
        %3699 = vmatpush1.msra.mxu0 0.0
        %3700 = vmatprep.subr.mxu0 0.0
        %3701 = vmatpush1.msra.mxu0 0.0
        %3702 = vmatprep.subr.mxu0 0.0
        %3703 = vmatpush1.msra.mxu0 0.0
        %3704 = vmatprep.subr.mxu0 0.0
        %3705 = vmatpush1.msra.mxu0 0.0
        %3706 = vmatprep.mubr.f32.mxu0 0.0
        %3707 = vmatmul.mubr.f32.gmra.mrb[0].mxu0 %v3638
        %v3708 = vpop.f32.mrb[0].mxu0
        %v3709 = vadd.f32 0.0, %v3708
        %v3710 = vpop.f32.mrb[0].mxu0
        %3711 = vdwg.mxu0
        %3712 = vrot.lane.b32.xlu0 %v3199, 48
        %v3713 = vpop.permute.xlu0 %3712
        %v3715 = vsel %vm1054, %v3556, 0
        %v3717 = vsel %vm1058, %v3713, 0
        %3719 = vmatprep.subr.mxu0 0.0
        %3720 = vmatpush1.msra.mxu0 %v3717
        %3721 = vmatprep.subr.mxu0 0.0
        %3722 = vmatpush1.msra.mxu0 0.0
        %3723 = vmatprep.subr.mxu0 0.0
        %3724 = vmatpush1.msra.mxu0 0.0
        %3725 = vmatprep.subr.mxu0 0.0
        %3726 = vmatpush1.msra.mxu0 0.0
        %3727 = vmatprep.subr.mxu0 0.0
        %3728 = vmatpush1.msra.mxu0 0.0
        %3729 = vmatprep.subr.mxu0 0.0
        %3730 = vmatpush1.msra.mxu0 0.0
        %3731 = vmatprep.subr.mxu0 0.0
        %3732 = vmatpush1.msra.mxu0 0.0
        %3733 = vmatprep.subr.mxu0 0.0
        %3734 = vmatpush1.msra.mxu0 0.0
        %3735 = vmatprep.subr.mxu0 0.0
        %3736 = vmatpush1.msra.mxu0 0.0
        %3737 = vmatprep.subr.mxu0 0.0
        %3738 = vmatpush1.msra.mxu0 0.0
        %3739 = vmatprep.subr.mxu0 0.0
        %3740 = vmatpush1.msra.mxu0 0.0
        %3741 = vmatprep.subr.mxu0 0.0
        %3742 = vmatpush1.msra.mxu0 0.0
        %3743 = vmatprep.subr.mxu0 0.0
        %3744 = vmatpush1.msra.mxu0 0.0
        %3745 = vmatprep.subr.mxu0 0.0
        %3746 = vmatpush1.msra.mxu0 0.0
        %3747 = vmatprep.subr.mxu0 0.0
        %3748 = vmatpush1.msra.mxu0 0.0
        %3749 = vmatprep.subr.mxu0 0.0
        %3750 = vmatpush1.msra.mxu0 0.0
        %3751 = vmatprep.subr.mxu0 0.0
        %3752 = vmatpush1.msra.mxu0 0.0
        %3753 = vmatprep.subr.mxu0 0.0
        %3754 = vmatpush1.msra.mxu0 0.0
        %3755 = vmatprep.subr.mxu0 0.0
        %3756 = vmatpush1.msra.mxu0 0.0
        %3757 = vmatprep.subr.mxu0 0.0
        %3758 = vmatpush1.msra.mxu0 0.0
        %3759 = vmatprep.subr.mxu0 0.0
        %3760 = vmatpush1.msra.mxu0 0.0
        %3761 = vmatprep.subr.mxu0 0.0
        %3762 = vmatpush1.msra.mxu0 0.0
        %3763 = vmatprep.subr.mxu0 0.0
        %3764 = vmatpush1.msra.mxu0 0.0
        %3765 = vmatprep.subr.mxu0 0.0
        %3766 = vmatpush1.msra.mxu0 0.0
        %3767 = vmatprep.subr.mxu0 0.0
        %3768 = vmatpush1.msra.mxu0 0.0
        %3769 = vmatprep.subr.mxu0 0.0
        %3770 = vmatpush1.msra.mxu0 0.0
        %3771 = vmatprep.subr.mxu0 0.0
        %3772 = vmatpush1.msra.mxu0 0.0
        %3773 = vmatprep.subr.mxu0 0.0
        %3774 = vmatpush1.msra.mxu0 0.0
        %3775 = vmatprep.subr.mxu0 0.0
        %3776 = vmatpush1.msra.mxu0 0.0
        %3777 = vmatprep.subr.mxu0 0.0
        %3778 = vmatpush1.msra.mxu0 0.0
        %3779 = vmatprep.subr.mxu0 0.0
        %3780 = vmatpush1.msra.mxu0 0.0
        %3781 = vmatprep.subr.mxu0 0.0
        %3782 = vmatpush1.msra.mxu0 0.0
        %3783 = vmatprep.mubr.f32.mxu0 0.0
        %3784 = vmatmul.mubr.f32.gmra.mrb[0].mxu0 %v3715
        %v3785 = vpop.f32.mrb[0].mxu0
        %v3786 = vadd.f32 0.0, %v3785
        %v3787 = vpop.f32.mrb[0].mxu0
        %3788 = vdwg.mxu0
        %3789 = vrot.lane.b32.xlu0 %v3199, 40
        %v3790 = vpop.permute.xlu0 %3789
        %v3792 = vsel %vm1054, %v3557, 0
        %v3794 = vsel %vm1058, %v3790, 0
        %3796 = vmatprep.subr.mxu0 0.0
        %3797 = vmatpush1.msra.mxu0 %v3794
        %3798 = vmatprep.subr.mxu0 0.0
        %3799 = vmatpush1.msra.mxu0 0.0
        %3800 = vmatprep.subr.mxu0 0.0
        %3801 = vmatpush1.msra.mxu0 0.0
        %3802 = vmatprep.subr.mxu0 0.0
        %3803 = vmatpush1.msra.mxu0 0.0
        %3804 = vmatprep.subr.mxu0 0.0
        %3805 = vmatpush1.msra.mxu0 0.0
        %3806 = vmatprep.subr.mxu0 0.0
        %3807 = vmatpush1.msra.mxu0 0.0
        %3808 = vmatprep.subr.mxu0 0.0
        %3809 = vmatpush1.msra.mxu0 0.0
        %3810 = vmatprep.subr.mxu0 0.0
        %3811 = vmatpush1.msra.mxu0 0.0
        %3812 = vmatprep.subr.mxu0 0.0
        %3813 = vmatpush1.msra.mxu0 0.0
        %3814 = vmatprep.subr.mxu0 0.0
        %3815 = vmatpush1.msra.mxu0 0.0
        %3816 = vmatprep.subr.mxu0 0.0
        %3817 = vmatpush1.msra.mxu0 0.0
        %3818 = vmatprep.subr.mxu0 0.0
        %3819 = vmatpush1.msra.mxu0 0.0
        %3820 = vmatprep.subr.mxu0 0.0
        %3821 = vmatpush1.msra.mxu0 0.0
        %3822 = vmatprep.subr.mxu0 0.0
        %3823 = vmatpush1.msra.mxu0 0.0
        %3824 = vmatprep.subr.mxu0 0.0
        %3825 = vmatpush1.msra.mxu0 0.0
        %3826 = vmatprep.subr.mxu0 0.0
        %3827 = vmatpush1.msra.mxu0 0.0
        %3828 = vmatprep.subr.mxu0 0.0
        %3829 = vmatpush1.msra.mxu0 0.0
        %3830 = vmatprep.subr.mxu0 0.0
        %3831 = vmatpush1.msra.mxu0 0.0
        %3832 = vmatprep.subr.mxu0 0.0
        %3833 = vmatpush1.msra.mxu0 0.0
        %3834 = vmatprep.subr.mxu0 0.0
        %3835 = vmatpush1.msra.mxu0 0.0
        %3836 = vmatprep.subr.mxu0 0.0
        %3837 = vmatpush1.msra.mxu0 0.0
        %3838 = vmatprep.subr.mxu0 0.0
        %3839 = vmatpush1.msra.mxu0 0.0
        %3840 = vmatprep.subr.mxu0 0.0
        %3841 = vmatpush1.msra.mxu0 0.0
        %3842 = vmatprep.subr.mxu0 0.0
        %3843 = vmatpush1.msra.mxu0 0.0
        %3844 = vmatprep.subr.mxu0 0.0
        %3845 = vmatpush1.msra.mxu0 0.0
        %3846 = vmatprep.subr.mxu0 0.0
        %3847 = vmatpush1.msra.mxu0 0.0
        %3848 = vmatprep.subr.mxu0 0.0
        %3849 = vmatpush1.msra.mxu0 0.0
        %3850 = vmatprep.subr.mxu0 0.0
        %3851 = vmatpush1.msra.mxu0 0.0
        %3852 = vmatprep.subr.mxu0 0.0
        %3853 = vmatpush1.msra.mxu0 0.0
        %3854 = vmatprep.subr.mxu0 0.0
        %3855 = vmatpush1.msra.mxu0 0.0
        %3856 = vmatprep.subr.mxu0 0.0
        %3857 = vmatpush1.msra.mxu0 0.0
        %3858 = vmatprep.subr.mxu0 0.0
        %3859 = vmatpush1.msra.mxu0 0.0
        %3860 = vmatprep.mubr.f32.mxu0 0.0
        %3861 = vmatmul.mubr.f32.gmra.mrb[0].mxu0 %v3792
        %v3862 = vpop.f32.mrb[0].mxu0
        %v3863 = vadd.f32 0.0, %v3862
        %v3864 = vpop.f32.mrb[0].mxu0
        %3865 = vdwg.mxu0
        %3867 = vrot.lane.b32.xlu0 %v3709, 8
        %v3868 = vpop.permute.xlu0 %3867
        %3871 = vrot.lane.b32.xlu0 %v3786, 16
        %v3872 = vpop.permute.xlu0 %3871
        %3875 = vrot.lane.b32.xlu0 %v3863, 24
        %v3876 = vpop.permute.xlu0 %3875
        %v3878 = vsel %vm1205, %v3632, %v3868
        %v3879 = vsel %vm2184, %v3878, %v3872
        %v3880 = vsel %vm2186, %v3879, %v3876
        %s3881 = scalar_lea.vmem [#allocation6], 32
        %v3882 = vld [vmem:[%s3881] sm:$0xff]
        %v3883 = vld [vmem:[%s3881 + $0x8] sm:$0xff]
        %v3884 = vld [vmem:[%s3881 + $0x10] sm:$0xff]
        %v3885 = vld [vmem:[%s3881 + $0x18] sm:$0xff]
        %s3886 = scalar_lea.vmem [#allocation8], 1
        %v3887 = vld [vmem:[%s3886] sm:$0x1]
        %v3889 = vlaneseq
        %v3890 = vshrl.u32 %v3889, 7
        %v3891 = vsub.s32 0, %v3890
        %v3892 = vrot.slane %v3887, %v3891
        %v3895 = vsel %vm1438, %v3880, 0
        %3897 = vmatprep.subr.mxu0 0.0
        %3898 = vmatpush1.msra.mxu0 %v3882
        %3899 = vmatprep.subr.mxu0 0.0
        %3900 = vmatpush1.msra.mxu0 %v3883
        %3901 = vmatprep.subr.mxu0 0.0
        %3902 = vmatpush1.msra.mxu0 %v3884
        %3903 = vmatprep.subr.mxu0 0.0
        %3904 = vmatpush1.msra.mxu0 %v3885
        %3905 = vmatprep.subr.mxu0 0.0
        %3906 = vmatpush1.msra.mxu0 0.0
        %3907 = vmatprep.subr.mxu0 0.0
        %3908 = vmatpush1.msra.mxu0 0.0
        %3909 = vmatprep.subr.mxu0 0.0
        %3910 = vmatpush1.msra.mxu0 0.0
        %3911 = vmatprep.subr.mxu0 0.0
        %3912 = vmatpush1.msra.mxu0 0.0
        %3913 = vmatprep.subr.mxu0 0.0
        %3914 = vmatpush1.msra.mxu0 0.0
        %3915 = vmatprep.subr.mxu0 0.0
        %3916 = vmatpush1.msra.mxu0 0.0
        %3917 = vmatprep.subr.mxu0 0.0
        %3918 = vmatpush1.msra.mxu0 0.0
        %3919 = vmatprep.subr.mxu0 0.0
        %3920 = vmatpush1.msra.mxu0 0.0
        %3921 = vmatprep.subr.mxu0 0.0
        %3922 = vmatpush1.msra.mxu0 0.0
        %3923 = vmatprep.subr.mxu0 0.0
        %3924 = vmatpush1.msra.mxu0 0.0
        %3925 = vmatprep.subr.mxu0 0.0
        %3926 = vmatpush1.msra.mxu0 0.0
        %3927 = vmatprep.subr.mxu0 0.0
        %3928 = vmatpush1.msra.mxu0 0.0
        %3929 = vmatprep.subr.mxu0 0.0
        %3930 = vmatpush1.msra.mxu0 0.0
        %3931 = vmatprep.subr.mxu0 0.0
        %3932 = vmatpush1.msra.mxu0 0.0
        %3933 = vmatprep.subr.mxu0 0.0
        %3934 = vmatpush1.msra.mxu0 0.0
        %3935 = vmatprep.subr.mxu0 0.0
        %3936 = vmatpush1.msra.mxu0 0.0
        %3937 = vmatprep.subr.mxu0 0.0
        %3938 = vmatpush1.msra.mxu0 0.0
        %3939 = vmatprep.subr.mxu0 0.0
        %3940 = vmatpush1.msra.mxu0 0.0
        %3941 = vmatprep.subr.mxu0 0.0
        %3942 = vmatpush1.msra.mxu0 0.0
        %3943 = vmatprep.subr.mxu0 0.0
        %3944 = vmatpush1.msra.mxu0 0.0
        %3945 = vmatprep.subr.mxu0 0.0
        %3946 = vmatpush1.msra.mxu0 0.0
        %3947 = vmatprep.subr.mxu0 0.0
        %3948 = vmatpush1.msra.mxu0 0.0
        %3949 = vmatprep.subr.mxu0 0.0
        %3950 = vmatpush1.msra.mxu0 0.0
        %3951 = vmatprep.subr.mxu0 0.0
        %3952 = vmatpush1.msra.mxu0 0.0
        %3953 = vmatprep.subr.mxu0 0.0
        %3954 = vmatpush1.msra.mxu0 0.0
        %3955 = vmatprep.subr.mxu0 0.0
        %3956 = vmatpush1.msra.mxu0 0.0
        %3957 = vmatprep.subr.mxu0 0.0
        %3958 = vmatpush1.msra.mxu0 0.0
        %3959 = vmatprep.subr.mxu0 0.0
        %3960 = vmatpush1.msra.mxu0 0.0
        %3961 = vmatprep.mubr.f32.mxu0 0.0
        %3962 = vmatmul.mubr.f32.gmra.mrb[0].mxu0 %v3895
        %v3963 = vpop.f32.mrb[0].mxu0
        %v3964 = vadd.f32 %v3892, %v3963
        %v3965 = vpop.f32.mrb[0].mxu0
        %3966 = vdwg.mxu0
        %v3967 = vadd.f32 %v3115, %v3964
        %s3968 = scalar_lea.vmem [#allocation9], 1
        %v3969 = vld [vmem:[%s3968] sm:$0x1]
        %s3970 = scalar_lea.vmem [#allocation11], 1
        %v3971 = vld [vmem:[%s3970] sm:$0x1]
        %vm3972 = vcmask 257024
        %v3973 = vsel %vm3972, %v3967, 0.0
        %3974 = vadd.xlane.f32.xlu0 %v3973
        %v3975 = vpop.xlane.xlu0 %3974
        %v3976 = vmul.f32 %v3975, %v2278
        %v3977 = vsub.f32 %v3967, %v3976
        %v3978 = vmul.f32 %v3977, %v3977
        %v3979 = vsel %vm3972, %v3978, 0.0
        %3980 = vadd.xlane.f32.xlu0 %v3979
        %v3981 = vpop.xlane.xlu0 %3980
        %v3982 = vmul.f32 %v3981, %v2278
        %v3983 = vadd.f32 %v3982, 1e-05
        %v3984 = vrsqrt.pop %v3983
        %v3985 = vmul.f32 %v3977, %v3984
        %v3987 = vlaneseq
        %v3988 = vshrl.u32 %v3987, 7
        %v3989 = vsub.s32 0, %v3988
        %v3990 = vrot.slane %v3969, %v3989
        %v3992 = vmul.f32 %v3985, %v3990
        %v3994 = vlaneseq
        %v3995 = vshrl.u32 %v3994, 7
        %v3996 = vsub.s32 0, %v3995
        %v3997 = vrot.slane %v3971, %v3996
        %v3999 = vadd.f32 %v3992, %v3997
        %s4000 = scalar_lea.vmem [#allocation12], 32
        %v4001 = vld [vmem:[%s4000] sm:$0xff]
        %v4002 = vld [vmem:[%s4000 + $0x8] sm:$0xff]
        %v4003 = vld [vmem:[%s4000 + $0x10] sm:$0xff]
        %v4004 = vld [vmem:[%s4000 + $0x18] sm:$0xff]
        %s4005 = scalar_lea.vmem [#allocation14], 1
        %v4006 = vld [vmem:[%s4005] sm:$0x1]
        %v4008 = vlaneseq
        %v4009 = vshrl.u32 %v4008, 7
        %v4010 = vsub.s32 0, %v4009
        %v4011 = vrot.slane %v4006, %v4010
        %v4014 = vsel %vm1438, %v3999, 0
        %4016 = vmatprep.subr.mxu0 0.0
        %4017 = vmatpush1.msra.mxu0 %v4001
        %4018 = vmatprep.subr.mxu0 0.0
        %4019 = vmatpush1.msra.mxu0 %v4002
        %4020 = vmatprep.subr.mxu0 0.0
        %4021 = vmatpush1.msra.mxu0 %v4003
        %4022 = vmatprep.subr.mxu0 0.0
        %4023 = vmatpush1.msra.mxu0 %v4004
        %4024 = vmatprep.subr.mxu0 0.0
        %4025 = vmatpush1.msra.mxu0 0.0
        %4026 = vmatprep.subr.mxu0 0.0
        %4027 = vmatpush1.msra.mxu0 0.0
        %4028 = vmatprep.subr.mxu0 0.0
        %4029 = vmatpush1.msra.mxu0 0.0
        %4030 = vmatprep.subr.mxu0 0.0
        %4031 = vmatpush1.msra.mxu0 0.0
        %4032 = vmatprep.subr.mxu0 0.0
        %4033 = vmatpush1.msra.mxu0 0.0
        %4034 = vmatprep.subr.mxu0 0.0
        %4035 = vmatpush1.msra.mxu0 0.0
        %4036 = vmatprep.subr.mxu0 0.0
        %4037 = vmatpush1.msra.mxu0 0.0
        %4038 = vmatprep.subr.mxu0 0.0
        %4039 = vmatpush1.msra.mxu0 0.0
        %4040 = vmatprep.subr.mxu0 0.0
        %4041 = vmatpush1.msra.mxu0 0.0
        %4042 = vmatprep.subr.mxu0 0.0
        %4043 = vmatpush1.msra.mxu0 0.0
        %4044 = vmatprep.subr.mxu0 0.0
        %4045 = vmatpush1.msra.mxu0 0.0
        %4046 = vmatprep.subr.mxu0 0.0
        %4047 = vmatpush1.msra.mxu0 0.0
        %4048 = vmatprep.subr.mxu0 0.0
        %4049 = vmatpush1.msra.mxu0 0.0
        %4050 = vmatprep.subr.mxu0 0.0
        %4051 = vmatpush1.msra.mxu0 0.0
        %4052 = vmatprep.subr.mxu0 0.0
        %4053 = vmatpush1.msra.mxu0 0.0
        %4054 = vmatprep.subr.mxu0 0.0
        %4055 = vmatpush1.msra.mxu0 0.0
        %4056 = vmatprep.subr.mxu0 0.0
        %4057 = vmatpush1.msra.mxu0 0.0
        %4058 = vmatprep.subr.mxu0 0.0
        %4059 = vmatpush1.msra.mxu0 0.0
        %4060 = vmatprep.subr.mxu0 0.0
        %4061 = vmatpush1.msra.mxu0 0.0
        %4062 = vmatprep.subr.mxu0 0.0
        %4063 = vmatpush1.msra.mxu0 0.0
        %4064 = vmatprep.subr.mxu0 0.0
        %4065 = vmatpush1.msra.mxu0 0.0
        %4066 = vmatprep.subr.mxu0 0.0
        %4067 = vmatpush1.msra.mxu0 0.0
        %4068 = vmatprep.subr.mxu0 0.0
        %4069 = vmatpush1.msra.mxu0 0.0
        %4070 = vmatprep.subr.mxu0 0.0
        %4071 = vmatpush1.msra.mxu0 0.0
        %4072 = vmatprep.subr.mxu0 0.0
        %4073 = vmatpush1.msra.mxu0 0.0
        %4074 = vmatprep.subr.mxu0 0.0
        %4075 = vmatpush1.msra.mxu0 0.0
        %4076 = vmatprep.subr.mxu0 0.0
        %4077 = vmatpush1.msra.mxu0 0.0
        %4078 = vmatprep.subr.mxu0 0.0
        %4079 = vmatpush1.msra.mxu0 0.0
        %4080 = vmatprep.mubr.f32.mxu0 0.0
        %4081 = vmatmul.mubr.f32.gmra.mrb[0].mxu0 %v4014
        %v4082 = vpop.f32.mrb[0].mxu0
        %v4083 = vadd.f32 %v4011, %v4082
        %v4084 = vpop.f32.mrb[0].mxu0
        %4085 = vdwg.mxu0
        %v4086 = vmul.f32 %v4083, 0.5
        %v4087 = vmul.f32 %v4083, 0.044715
        %v4088 = vmul.f32 %v4087, %v4083
        %v4089 = vmul.f32 %v4088, %v4083
        %v4090 = vadd.f32 %v4083, %v4089
        %v4091 = vmul.f32 %v4090, 0.7978846
        %v4092 = vtanh.pop %v4091
        %v4093 = vadd.f32 %v4092, 1.0
        %v4094 = vmul.f32 %v4086, %v4093
        %s4095 = scalar_lea.vmem [#allocation15], 32
        %v4096 = vld [vmem:[%s4095] sm:$0xff]
        %v4097 = vld [vmem:[%s4095 + $0x8] sm:$0xff]
        %v4098 = vld [vmem:[%s4095 + $0x10] sm:$0xff]
        %v4099 = vld [vmem:[%s4095 + $0x18] sm:$0xff]
        %s4100 = scalar_lea.vmem [#allocation17], 1
        %v4101 = vld [vmem:[%s4100] sm:$0x1]
        %v4103 = vlaneseq
        %v4104 = vshrl.u32 %v4103, 7
        %v4105 = vsub.s32 0, %v4104
        %v4106 = vrot.slane %v4101, %v4105
        %v4109 = vsel %vm1438, %v4094, 0
        %4111 = vmatprep.subr.mxu0 0.0
        %4112 = vmatpush1.msra.mxu0 %v4096
        %4113 = vmatprep.subr.mxu0 0.0
        %4114 = vmatpush1.msra.mxu0 %v4097
        %4115 = vmatprep.subr.mxu0 0.0
        %4116 = vmatpush1.msra.mxu0 %v4098
        %4117 = vmatprep.subr.mxu0 0.0
        %4118 = vmatpush1.msra.mxu0 %v4099
        %4119 = vmatprep.subr.mxu0 0.0
        %4120 = vmatpush1.msra.mxu0 0.0
        %4121 = vmatprep.subr.mxu0 0.0
        %4122 = vmatpush1.msra.mxu0 0.0
        %4123 = vmatprep.subr.mxu0 0.0
        %4124 = vmatpush1.msra.mxu0 0.0
        %4125 = vmatprep.subr.mxu0 0.0
        %4126 = vmatpush1.msra.mxu0 0.0
        %4127 = vmatprep.subr.mxu0 0.0
        %4128 = vmatpush1.msra.mxu0 0.0
        %4129 = vmatprep.subr.mxu0 0.0
        %4130 = vmatpush1.msra.mxu0 0.0
        %4131 = vmatprep.subr.mxu0 0.0
        %4132 = vmatpush1.msra.mxu0 0.0
        %4133 = vmatprep.subr.mxu0 0.0
        %4134 = vmatpush1.msra.mxu0 0.0
        %4135 = vmatprep.subr.mxu0 0.0
        %4136 = vmatpush1.msra.mxu0 0.0
        %4137 = vmatprep.subr.mxu0 0.0
        %4138 = vmatpush1.msra.mxu0 0.0
        %4139 = vmatprep.subr.mxu0 0.0
        %4140 = vmatpush1.msra.mxu0 0.0
        %4141 = vmatprep.subr.mxu0 0.0
        %4142 = vmatpush1.msra.mxu0 0.0
        %4143 = vmatprep.subr.mxu0 0.0
        %4144 = vmatpush1.msra.mxu0 0.0
        %4145 = vmatprep.subr.mxu0 0.0
        %4146 = vmatpush1.msra.mxu0 0.0
        %4147 = vmatprep.subr.mxu0 0.0
        %4148 = vmatpush1.msra.mxu0 0.0
        %4149 = vmatprep.subr.mxu0 0.0
        %4150 = vmatpush1.msra.mxu0 0.0
        %4151 = vmatprep.subr.mxu0 0.0
        %4152 = vmatpush1.msra.mxu0 0.0
        %4153 = vmatprep.subr.mxu0 0.0
        %4154 = vmatpush1.msra.mxu0 0.0
        %4155 = vmatprep.subr.mxu0 0.0
        %4156 = vmatpush1.msra.mxu0 0.0
        %4157 = vmatprep.subr.mxu0 0.0
        %4158 = vmatpush1.msra.mxu0 0.0
        %4159 = vmatprep.subr.mxu0 0.0
        %4160 = vmatpush1.msra.mxu0 0.0
        %4161 = vmatprep.subr.mxu0 0.0
        %4162 = vmatpush1.msra.mxu0 0.0
        %4163 = vmatprep.subr.mxu0 0.0
        %4164 = vmatpush1.msra.mxu0 0.0
        %4165 = vmatprep.subr.mxu0 0.0
        %4166 = vmatpush1.msra.mxu0 0.0
        %4167 = vmatprep.subr.mxu0 0.0
        %4168 = vmatpush1.msra.mxu0 0.0
        %4169 = vmatprep.subr.mxu0 0.0
        %4170 = vmatpush1.msra.mxu0 0.0
        %4171 = vmatprep.subr.mxu0 0.0
        %4172 = vmatpush1.msra.mxu0 0.0
        %4173 = vmatprep.subr.mxu0 0.0
        %4174 = vmatpush1.msra.mxu0 0.0
        %4175 = vmatprep.mubr.f32.mxu0 0.0
        %4176 = vmatmul.mubr.f32.gmra.mrb[0].mxu0 %v4109
        %v4177 = vpop.f32.mrb[0].mxu0
        %v4178 = vadd.f32 %v4106, %v4177
        %v4179 = vpop.f32.mrb[0].mxu0
        %4180 = vdwg.mxu0
        %v4181 = vadd.f32 %v3999, %v4178
        %s4182 = scalar_lea.vmem [#allocation18], 1
        %v4183 = vld [vmem:[%s4182] sm:$0x1]
        %s4184 = scalar_lea.vmem [#allocation20], 1
        %v4185 = vld [vmem:[%s4184] sm:$0x1]
        %v4186 = vsel %vm3972, %v4181, 0.0
        %4187 = vadd.xlane.f32.xlu0 %v4186
        %v4188 = vpop.xlane.xlu0 %4187
        %v4189 = vmul.f32 %v4188, %v2278
        %v4190 = vsub.f32 %v4181, %v4189
        %v4191 = vmul.f32 %v4190, %v4190
        %v4192 = vsel %vm3972, %v4191, 0.0
        %4193 = vadd.xlane.f32.xlu0 %v4192
        %v4194 = vpop.xlane.xlu0 %4193
        %v4195 = vmul.f32 %v4194, %v2278
        %v4196 = vadd.f32 %v4195, 1e-05
        %v4197 = vrsqrt.pop %v4196
        %v4198 = vmul.f32 %v4190, %v4197
        %v4200 = vlaneseq
        %v4201 = vshrl.u32 %v4200, 7
        %v4202 = vsub.s32 0, %v4201
        %v4203 = vrot.slane %v4183, %v4202
        %v4205 = vmul.f32 %v4198, %v4203
        %v4207 = vlaneseq
        %v4208 = vshrl.u32 %v4207, 7
        %v4209 = vsub.s32 0, %v4208
        %v4210 = vrot.slane %v4185, %v4209
        %v4212 = vadd.f32 %v4205, %v4210
        %s4213 = scalar_lea.vmem [#allocation21], 96
        %v4214 = vld [vmem:[%s4213] sm:$0xff]
        %v4215 = vld [vmem:[%s4213 + $0x8] sm:$0xff]
        %v4216 = vld [vmem:[%s4213 + $0x10] sm:$0xff]
        %v4217 = vld [vmem:[%s4213 + $0x18] sm:$0xff]
        %v4218 = vld [vmem:[%s4213 + $0x20] sm:$0xff]
        %v4219 = vld [vmem:[%s4213 + $0x28] sm:$0xff]
        %v4220 = vld [vmem:[%s4213 + $0x30] sm:$0xff]
        %v4221 = vld [vmem:[%s4213 + $0x38] sm:$0xff]
        %v4222 = vld [vmem:[%s4213 + $0x40] sm:$0xff]
        %v4223 = vld [vmem:[%s4213 + $0x48] sm:$0xff]
        %v4224 = vld [vmem:[%s4213 + $0x50] sm:$0xff]
        %v4225 = vld [vmem:[%s4213 + $0x58] sm:$0xff]
        %s4226 = scalar_lea.vmem [#allocation23], 1
        %v4227 = vld [vmem:[%s4226] sm:$0x1]
        %v4228 = vld [vmem:[#allocation30] sm:$0xf]
        %s4229 = scalar_lea.vmem [#allocation30], 4
        %v4230 = vld [vmem:[%s4229] sm:$0xf]
        %v4232 = vsel %vm1438, %v4212, 0
        %4234 = vmatprep.subr.mxu0 0.0
        %4235 = vmatpush1.msra.mxu0 %v4214
        %4236 = vmatprep.subr.mxu0 0.0
        %4237 = vmatpush1.msra.mxu0 %v4215
        %4238 = vmatprep.subr.mxu0 0.0
        %4239 = vmatpush1.msra.mxu0 %v4216
        %4240 = vmatprep.subr.mxu0 0.0
        %4241 = vmatpush1.msra.mxu0 %v4217
        %4242 = vmatprep.subr.mxu0 0.0
        %4243 = vmatpush1.msra.mxu0 0.0
        %4244 = vmatprep.subr.mxu0 0.0
        %4245 = vmatpush1.msra.mxu0 0.0
        %4246 = vmatprep.subr.mxu0 0.0
        %4247 = vmatpush1.msra.mxu0 0.0
        %4248 = vmatprep.subr.mxu0 0.0
        %4249 = vmatpush1.msra.mxu0 0.0
        %4250 = vmatprep.subr.mxu0 0.0
        %4251 = vmatpush1.msra.mxu0 0.0
        %4252 = vmatprep.subr.mxu0 0.0
        %4253 = vmatpush1.msra.mxu0 0.0
        %4254 = vmatprep.subr.mxu0 0.0
        %4255 = vmatpush1.msra.mxu0 0.0
        %4256 = vmatprep.subr.mxu0 0.0
        %4257 = vmatpush1.msra.mxu0 0.0
        %4258 = vmatprep.subr.mxu0 0.0
        %4259 = vmatpush1.msra.mxu0 0.0
        %4260 = vmatprep.subr.mxu0 0.0
        %4261 = vmatpush1.msra.mxu0 0.0
        %4262 = vmatprep.subr.mxu0 0.0
        %4263 = vmatpush1.msra.mxu0 0.0
        %4264 = vmatprep.subr.mxu0 0.0
        %4265 = vmatpush1.msra.mxu0 0.0
        %4266 = vmatprep.subr.mxu0 0.0
        %4267 = vmatpush1.msra.mxu0 0.0
        %4268 = vmatprep.subr.mxu0 0.0
        %4269 = vmatpush1.msra.mxu0 0.0
        %4270 = vmatprep.subr.mxu0 0.0
        %4271 = vmatpush1.msra.mxu0 0.0
        %4272 = vmatprep.subr.mxu0 0.0
        %4273 = vmatpush1.msra.mxu0 0.0
        %4274 = vmatprep.subr.mxu0 0.0
        %4275 = vmatpush1.msra.mxu0 0.0
        %4276 = vmatprep.subr.mxu0 0.0
        %4277 = vmatpush1.msra.mxu0 0.0
        %4278 = vmatprep.subr.mxu0 0.0
        %4279 = vmatpush1.msra.mxu0 0.0
        %4280 = vmatprep.subr.mxu0 0.0
        %4281 = vmatpush1.msra.mxu0 0.0
        %4282 = vmatprep.subr.mxu0 0.0
        %4283 = vmatpush1.msra.mxu0 0.0
        %4284 = vmatprep.subr.mxu0 0.0
        %4285 = vmatpush1.msra.mxu0 0.0
        %4286 = vmatprep.subr.mxu0 0.0
        %4287 = vmatpush1.msra.mxu0 0.0
        %4288 = vmatprep.subr.mxu0 0.0
        %4289 = vmatpush1.msra.mxu0 0.0
        %4290 = vmatprep.subr.mxu0 0.0
        %4291 = vmatpush1.msra.mxu0 0.0
        %4292 = vmatprep.subr.mxu0 0.0
        %4293 = vmatpush1.msra.mxu0 0.0
        %4294 = vmatprep.subr.mxu0 0.0
        %4295 = vmatpush1.msra.mxu0 0.0
        %4296 = vmatprep.subr.mxu0 0.0
        %4297 = vmatpush1.msra.mxu0 0.0
        %4298 = vmatprep.mubr.f32.mxu0 0.0
        %4299 = vmatmul.mubr.f32.gmra.mrb[0].mxu0 %v4232
        %v4300 = vpop.f32.mrb[0].mxu0
        %v4301 = vadd.f32 0.0, %v4300
        %v4302 = vpop.f32.mrb[0].mxu0
        %4303 = vdwg.mxu0
        %4304 = vmatprep.subr.mxu0 0.0
        %4305 = vmatpush1.msra.mxu0 %v4218
        %4306 = vmatprep.subr.mxu0 0.0
        %4307 = vmatpush1.msra.mxu0 %v4219
        %4308 = vmatprep.subr.mxu0 0.0
        %4309 = vmatpush1.msra.mxu0 %v4220
        %4310 = vmatprep.subr.mxu0 0.0
        %4311 = vmatpush1.msra.mxu0 %v4221
        %4312 = vmatprep.subr.mxu0 0.0
        %4313 = vmatpush1.msra.mxu0 0.0
        %4314 = vmatprep.subr.mxu0 0.0
        %4315 = vmatpush1.msra.mxu0 0.0
        %4316 = vmatprep.subr.mxu0 0.0
        %4317 = vmatpush1.msra.mxu0 0.0
        %4318 = vmatprep.subr.mxu0 0.0
        %4319 = vmatpush1.msra.mxu0 0.0
        %4320 = vmatprep.subr.mxu0 0.0
        %4321 = vmatpush1.msra.mxu0 0.0
        %4322 = vmatprep.subr.mxu0 0.0
        %4323 = vmatpush1.msra.mxu0 0.0
        %4324 = vmatprep.subr.mxu0 0.0
        %4325 = vmatpush1.msra.mxu0 0.0
        %4326 = vmatprep.subr.mxu0 0.0
        %4327 = vmatpush1.msra.mxu0 0.0
        %4328 = vmatprep.subr.mxu0 0.0
        %4329 = vmatpush1.msra.mxu0 0.0
        %4330 = vmatprep.subr.mxu0 0.0
        %4331 = vmatpush1.msra.mxu0 0.0
        %4332 = vmatprep.subr.mxu0 0.0
        %4333 = vmatpush1.msra.mxu0 0.0
        %4334 = vmatprep.subr.mxu0 0.0
        %4335 = vmatpush1.msra.mxu0 0.0
        %4336 = vmatprep.subr.mxu0 0.0
        %4337 = vmatpush1.msra.mxu0 0.0
        %4338 = vmatprep.subr.mxu0 0.0
        %4339 = vmatpush1.msra.mxu0 0.0
        %4340 = vmatprep.subr.mxu0 0.0
        %4341 = vmatpush1.msra.mxu0 0.0
        %4342 = vmatprep.subr.mxu0 0.0
        %4343 = vmatpush1.msra.mxu0 0.0
        %4344 = vmatprep.subr.mxu0 0.0
        %4345 = vmatpush1.msra.mxu0 0.0
        %4346 = vmatprep.subr.mxu0 0.0
        %4347 = vmatpush1.msra.mxu0 0.0
        %4348 = vmatprep.subr.mxu0 0.0
        %4349 = vmatpush1.msra.mxu0 0.0
        %4350 = vmatprep.subr.mxu0 0.0
        %4351 = vmatpush1.msra.mxu0 0.0
        %4352 = vmatprep.subr.mxu0 0.0
        %4353 = vmatpush1.msra.mxu0 0.0
        %4354 = vmatprep.subr.mxu0 0.0
        %4355 = vmatpush1.msra.mxu0 0.0
        %4356 = vmatprep.subr.mxu0 0.0
        %4357 = vmatpush1.msra.mxu0 0.0
        %4358 = vmatprep.subr.mxu0 0.0
        %4359 = vmatpush1.msra.mxu0 0.0
        %4360 = vmatprep.subr.mxu0 0.0
        %4361 = vmatpush1.msra.mxu0 0.0
        %4362 = vmatprep.subr.mxu0 0.0
        %4363 = vmatpush1.msra.mxu0 0.0
        %4364 = vmatprep.subr.mxu0 0.0
        %4365 = vmatpush1.msra.mxu0 0.0
        %4366 = vmatprep.subr.mxu0 0.0
        %4367 = vmatpush1.msra.mxu0 0.0
        %4368 = vmatprep.mubr.f32.mxu0 0.0
        %4369 = vmatmul.mubr.f32.gmra.mrb[0].mxu0 %v4232
        %v4370 = vpop.f32.mrb[0].mxu0
        %v4371 = vadd.f32 0.0, %v4370
        %v4372 = vpop.f32.mrb[0].mxu0
        %4373 = vdwg.mxu0
        %v4375 = vsel %vm1054, %v4228, 0
        %v4378 = vsel %vm1058, %v4301, 0
        %4380 = vmatprep.subr.mxu0 0.0
        %4381 = vmatpush1.msra.mxu0 %v4378
        %4382 = vmatprep.subr.mxu0 0.0
        %4383 = vmatpush1.msra.mxu0 0.0
        %4384 = vmatprep.subr.mxu0 0.0
        %4385 = vmatpush1.msra.mxu0 0.0
        %4386 = vmatprep.subr.mxu0 0.0
        %4387 = vmatpush1.msra.mxu0 0.0
        %4388 = vmatprep.subr.mxu0 0.0
        %4389 = vmatpush1.msra.mxu0 0.0
        %4390 = vmatprep.subr.mxu0 0.0
        %4391 = vmatpush1.msra.mxu0 0.0
        %4392 = vmatprep.subr.mxu0 0.0
        %4393 = vmatpush1.msra.mxu0 0.0
        %4394 = vmatprep.subr.mxu0 0.0
        %4395 = vmatpush1.msra.mxu0 0.0
        %4396 = vmatprep.subr.mxu0 0.0
        %4397 = vmatpush1.msra.mxu0 0.0
        %4398 = vmatprep.subr.mxu0 0.0
        %4399 = vmatpush1.msra.mxu0 0.0
        %4400 = vmatprep.subr.mxu0 0.0
        %4401 = vmatpush1.msra.mxu0 0.0
        %4402 = vmatprep.subr.mxu0 0.0
        %4403 = vmatpush1.msra.mxu0 0.0
        %4404 = vmatprep.subr.mxu0 0.0
        %4405 = vmatpush1.msra.mxu0 0.0
        %4406 = vmatprep.subr.mxu0 0.0
        %4407 = vmatpush1.msra.mxu0 0.0
        %4408 = vmatprep.subr.mxu0 0.0
        %4409 = vmatpush1.msra.mxu0 0.0
        %4410 = vmatprep.subr.mxu0 0.0
        %4411 = vmatpush1.msra.mxu0 0.0
        %4412 = vmatprep.subr.mxu0 0.0
        %4413 = vmatpush1.msra.mxu0 0.0
        %4414 = vmatprep.subr.mxu0 0.0
        %4415 = vmatpush1.msra.mxu0 0.0
        %4416 = vmatprep.subr.mxu0 0.0
        %4417 = vmatpush1.msra.mxu0 0.0
        %4418 = vmatprep.subr.mxu0 0.0
        %4419 = vmatpush1.msra.mxu0 0.0
        %4420 = vmatprep.subr.mxu0 0.0
        %4421 = vmatpush1.msra.mxu0 0.0
        %4422 = vmatprep.subr.mxu0 0.0
        %4423 = vmatpush1.msra.mxu0 0.0
        %4424 = vmatprep.subr.mxu0 0.0
        %4425 = vmatpush1.msra.mxu0 0.0
        %4426 = vmatprep.subr.mxu0 0.0
        %4427 = vmatpush1.msra.mxu0 0.0
        %4428 = vmatprep.subr.mxu0 0.0
        %4429 = vmatpush1.msra.mxu0 0.0
        %4430 = vmatprep.subr.mxu0 0.0
        %4431 = vmatpush1.msra.mxu0 0.0
        %4432 = vmatprep.subr.mxu0 0.0
        %4433 = vmatpush1.msra.mxu0 0.0
        %4434 = vmatprep.subr.mxu0 0.0
        %4435 = vmatpush1.msra.mxu0 0.0
        %4436 = vmatprep.subr.mxu0 0.0
        %4437 = vmatpush1.msra.mxu0 0.0
        %4438 = vmatprep.subr.mxu0 0.0
        %4439 = vmatpush1.msra.mxu0 0.0
        %4440 = vmatprep.subr.mxu0 0.0
        %4441 = vmatpush1.msra.mxu0 0.0
        %4442 = vmatprep.subr.mxu0 0.0
        %4443 = vmatpush1.msra.mxu0 0.0
        %4444 = vmatprep.mubr.f32.mxu0 0.0
        %4445 = vmatmul.mubr.f32.gmra.mrb[0].mxu0 %v4375
        %v4446 = vpop.f32.mrb[0].mxu0
        %v4447 = vadd.f32 %v4371, %v4446
        %v4448 = vpop.f32.mrb[0].mxu0
        %4449 = vdwg.mxu0
        %4450 = vmatprep.subr.mxu0 0.0
        %4451 = vmatpush1.msra.mxu0 %v4222
        %4452 = vmatprep.subr.mxu0 0.0
        %4453 = vmatpush1.msra.mxu0 %v4223
        %4454 = vmatprep.subr.mxu0 0.0
        %4455 = vmatpush1.msra.mxu0 %v4224
        %4456 = vmatprep.subr.mxu0 0.0
        %4457 = vmatpush1.msra.mxu0 %v4225
        %4458 = vmatprep.subr.mxu0 0.0
        %4459 = vmatpush1.msra.mxu0 0.0
        %4460 = vmatprep.subr.mxu0 0.0
        %4461 = vmatpush1.msra.mxu0 0.0
        %4462 = vmatprep.subr.mxu0 0.0
        %4463 = vmatpush1.msra.mxu0 0.0
        %4464 = vmatprep.subr.mxu0 0.0
        %4465 = vmatpush1.msra.mxu0 0.0
        %4466 = vmatprep.subr.mxu0 0.0
        %4467 = vmatpush1.msra.mxu0 0.0
        %4468 = vmatprep.subr.mxu0 0.0
        %4469 = vmatpush1.msra.mxu0 0.0
        %4470 = vmatprep.subr.mxu0 0.0
        %4471 = vmatpush1.msra.mxu0 0.0
        %4472 = vmatprep.subr.mxu0 0.0
        %4473 = vmatpush1.msra.mxu0 0.0
        %4474 = vmatprep.subr.mxu0 0.0
        %4475 = vmatpush1.msra.mxu0 0.0
        %4476 = vmatprep.subr.mxu0 0.0
        %4477 = vmatpush1.msra.mxu0 0.0
        %4478 = vmatprep.subr.mxu0 0.0
        %4479 = vmatpush1.msra.mxu0 0.0
        %4480 = vmatprep.subr.mxu0 0.0
        %4481 = vmatpush1.msra.mxu0 0.0
        %4482 = vmatprep.subr.mxu0 0.0
        %4483 = vmatpush1.msra.mxu0 0.0
        %4484 = vmatprep.subr.mxu0 0.0
        %4485 = vmatpush1.msra.mxu0 0.0
        %4486 = vmatprep.subr.mxu0 0.0
        %4487 = vmatpush1.msra.mxu0 0.0
        %4488 = vmatprep.subr.mxu0 0.0
        %4489 = vmatpush1.msra.mxu0 0.0
        %4490 = vmatprep.subr.mxu0 0.0
        %4491 = vmatpush1.msra.mxu0 0.0
        %4492 = vmatprep.subr.mxu0 0.0
        %4493 = vmatpush1.msra.mxu0 0.0
        %4494 = vmatprep.subr.mxu0 0.0
        %4495 = vmatpush1.msra.mxu0 0.0
        %4496 = vmatprep.subr.mxu0 0.0
        %4497 = vmatpush1.msra.mxu0 0.0
        %4498 = vmatprep.subr.mxu0 0.0
        %4499 = vmatpush1.msra.mxu0 0.0
        %4500 = vmatprep.subr.mxu0 0.0
        %4501 = vmatpush1.msra.mxu0 0.0
        %4502 = vmatprep.subr.mxu0 0.0
        %4503 = vmatpush1.msra.mxu0 0.0
        %4504 = vmatprep.subr.mxu0 0.0
        %4505 = vmatpush1.msra.mxu0 0.0
        %4506 = vmatprep.subr.mxu0 0.0
        %4507 = vmatpush1.msra.mxu0 0.0
        %4508 = vmatprep.subr.mxu0 0.0
        %4509 = vmatpush1.msra.mxu0 0.0
        %4510 = vmatprep.subr.mxu0 0.0
        %4511 = vmatpush1.msra.mxu0 0.0
        %4512 = vmatprep.subr.mxu0 0.0
        %4513 = vmatpush1.msra.mxu0 0.0
        %4514 = vmatprep.mubr.f32.mxu0 0.0
        %4515 = vmatmul.mubr.f32.gmra.mrb[0].mxu0 %v4232
        %v4516 = vpop.f32.mrb[0].mxu0
        %v4517 = vadd.f32 0.0, %v4516
        %v4518 = vpop.f32.mrb[0].mxu0
        %4519 = vdwg.mxu0
        %v4521 = vsel %vm1054, %v4230, 0
        %v4524 = vsel %vm1058, %v4517, 0
        %4526 = vmatprep.subr.mxu0 0.0
        %4527 = vmatpush1.msra.mxu0 %v4524
        %4528 = vmatprep.subr.mxu0 0.0
        %4529 = vmatpush1.msra.mxu0 0.0
        %4530 = vmatprep.subr.mxu0 0.0
        %4531 = vmatpush1.msra.mxu0 0.0
        %4532 = vmatprep.subr.mxu0 0.0
        %4533 = vmatpush1.msra.mxu0 0.0
        %4534 = vmatprep.subr.mxu0 0.0
        %4535 = vmatpush1.msra.mxu0 0.0
        %4536 = vmatprep.subr.mxu0 0.0
        %4537 = vmatpush1.msra.mxu0 0.0
        %4538 = vmatprep.subr.mxu0 0.0
        %4539 = vmatpush1.msra.mxu0 0.0
        %4540 = vmatprep.subr.mxu0 0.0
        %4541 = vmatpush1.msra.mxu0 0.0
        %4542 = vmatprep.subr.mxu0 0.0
        %4543 = vmatpush1.msra.mxu0 0.0
        %4544 = vmatprep.subr.mxu0 0.0
        %4545 = vmatpush1.msra.mxu0 0.0
        %4546 = vmatprep.subr.mxu0 0.0
        %4547 = vmatpush1.msra.mxu0 0.0
        %4548 = vmatprep.subr.mxu0 0.0
        %4549 = vmatpush1.msra.mxu0 0.0
        %4550 = vmatprep.subr.mxu0 0.0
        %4551 = vmatpush1.msra.mxu0 0.0
        %4552 = vmatprep.subr.mxu0 0.0
        %4553 = vmatpush1.msra.mxu0 0.0
        %4554 = vmatprep.subr.mxu0 0.0
        %4555 = vmatpush1.msra.mxu0 0.0
        %4556 = vmatprep.subr.mxu0 0.0
        %4557 = vmatpush1.msra.mxu0 0.0
        %4558 = vmatprep.subr.mxu0 0.0
        %4559 = vmatpush1.msra.mxu0 0.0
        %4560 = vmatprep.subr.mxu0 0.0
        %4561 = vmatpush1.msra.mxu0 0.0
        %4562 = vmatprep.subr.mxu0 0.0
        %4563 = vmatpush1.msra.mxu0 0.0
        %4564 = vmatprep.subr.mxu0 0.0
        %4565 = vmatpush1.msra.mxu0 0.0
        %4566 = vmatprep.subr.mxu0 0.0
        %4567 = vmatpush1.msra.mxu0 0.0
        %4568 = vmatprep.subr.mxu0 0.0
        %4569 = vmatpush1.msra.mxu0 0.0
        %4570 = vmatprep.subr.mxu0 0.0
        %4571 = vmatpush1.msra.mxu0 0.0
        %4572 = vmatprep.subr.mxu0 0.0
        %4573 = vmatpush1.msra.mxu0 0.0
        %4574 = vmatprep.subr.mxu0 0.0
        %4575 = vmatpush1.msra.mxu0 0.0
        %4576 = vmatprep.subr.mxu0 0.0
        %4577 = vmatpush1.msra.mxu0 0.0
        %4578 = vmatprep.subr.mxu0 0.0
        %4579 = vmatpush1.msra.mxu0 0.0
        %4580 = vmatprep.subr.mxu0 0.0
        %4581 = vmatpush1.msra.mxu0 0.0
        %4582 = vmatprep.subr.mxu0 0.0
        %4583 = vmatpush1.msra.mxu0 0.0
        %4584 = vmatprep.subr.mxu0 0.0
        %4585 = vmatpush1.msra.mxu0 0.0
        %4586 = vmatprep.subr.mxu0 0.0
        %4587 = vmatpush1.msra.mxu0 0.0
        %4588 = vmatprep.subr.mxu0 0.0
        %4589 = vmatpush1.msra.mxu0 0.0
        %4590 = vmatprep.mubr.f32.mxu0 0.0
        %4591 = vmatmul.mubr.f32.gmra.mrb[0].mxu0 %v4521
        %v4592 = vpop.f32.mrb[0].mxu0
        %v4593 = vadd.f32 0.0, %v4592
        %v4594 = vpop.f32.mrb[0].mxu0
        %4595 = vdwg.mxu0
        %v4596 = vadd.f32 %v4447, %v4593
        %v4598 = vlaneseq
        %v4599 = vshrl.u32 %v4598, 7
        %v4600 = vsub.s32 0, %v4599
        %v4601 = vrot.slane %v4227, %v4600
        %v4603 = vadd.f32 %v4596, %v4601
        %vm4604 = vcmp.gt.f32.partialorder %v4603, 0.0
        %v4605 = vmin.f32 %v4603, 0.0
        %v4606 = vmul.f32 %v4605, 1.442695
        %v4607 = vpow.pop %v4606
        %v4608 = vsub.f32 %v4607, 1.0
        %v4609 = vsel %vm4604, %v4603, %v4608
        %v4610 = vld [vmem:[#allocation33] sm:$0x3]
        %v4612 = vsel %vm1054, %v4610, 0
        %v4615 = vsel %vm1058, %v4609, 0
        %4617 = vmatprep.subr.mxu0 0.0
        %4618 = vmatpush1.msra.mxu0 %v4615
        %4619 = vmatprep.subr.mxu0 0.0
        %4620 = vmatpush1.msra.mxu0 0.0
        %4621 = vmatprep.subr.mxu0 0.0
        %4622 = vmatpush1.msra.mxu0 0.0
        %4623 = vmatprep.subr.mxu0 0.0
        %4624 = vmatpush1.msra.mxu0 0.0
        %4625 = vmatprep.subr.mxu0 0.0
        %4626 = vmatpush1.msra.mxu0 0.0
        %4627 = vmatprep.subr.mxu0 0.0
        %4628 = vmatpush1.msra.mxu0 0.0
        %4629 = vmatprep.subr.mxu0 0.0
        %4630 = vmatpush1.msra.mxu0 0.0
        %4631 = vmatprep.subr.mxu0 0.0
        %4632 = vmatpush1.msra.mxu0 0.0
        %4633 = vmatprep.subr.mxu0 0.0
        %4634 = vmatpush1.msra.mxu0 0.0
        %4635 = vmatprep.subr.mxu0 0.0
        %4636 = vmatpush1.msra.mxu0 0.0
        %4637 = vmatprep.subr.mxu0 0.0
        %4638 = vmatpush1.msra.mxu0 0.0
        %4639 = vmatprep.subr.mxu0 0.0
        %4640 = vmatpush1.msra.mxu0 0.0
        %4641 = vmatprep.subr.mxu0 0.0
        %4642 = vmatpush1.msra.mxu0 0.0
        %4643 = vmatprep.subr.mxu0 0.0
        %4644 = vmatpush1.msra.mxu0 0.0
        %4645 = vmatprep.subr.mxu0 0.0
        %4646 = vmatpush1.msra.mxu0 0.0
        %4647 = vmatprep.subr.mxu0 0.0
        %4648 = vmatpush1.msra.mxu0 0.0
        %4649 = vmatprep.subr.mxu0 0.0
        %4650 = vmatpush1.msra.mxu0 0.0
        %4651 = vmatprep.subr.mxu0 0.0
        %4652 = vmatpush1.msra.mxu0 0.0
        %4653 = vmatprep.subr.mxu0 0.0
        %4654 = vmatpush1.msra.mxu0 0.0
        %4655 = vmatprep.subr.mxu0 0.0
        %4656 = vmatpush1.msra.mxu0 0.0
        %4657 = vmatprep.subr.mxu0 0.0
        %4658 = vmatpush1.msra.mxu0 0.0
        %4659 = vmatprep.subr.mxu0 0.0
        %4660 = vmatpush1.msra.mxu0 0.0
        %4661 = vmatprep.subr.mxu0 0.0
        %4662 = vmatpush1.msra.mxu0 0.0
        %4663 = vmatprep.subr.mxu0 0.0
        %4664 = vmatpush1.msra.mxu0 0.0
        %4665 = vmatprep.subr.mxu0 0.0
        %4666 = vmatpush1.msra.mxu0 0.0
        %4667 = vmatprep.subr.mxu0 0.0
        %4668 = vmatpush1.msra.mxu0 0.0
        %4669 = vmatprep.subr.mxu0 0.0
        %4670 = vmatpush1.msra.mxu0 0.0
        %4671 = vmatprep.subr.mxu0 0.0
        %4672 = vmatpush1.msra.mxu0 0.0
        %4673 = vmatprep.subr.mxu0 0.0
        %4674 = vmatpush1.msra.mxu0 0.0
        %4675 = vmatprep.subr.mxu0 0.0
        %4676 = vmatpush1.msra.mxu0 0.0
        %4677 = vmatprep.subr.mxu0 0.0
        %4678 = vmatpush1.msra.mxu0 0.0
        %4679 = vmatprep.subr.mxu0 0.0
        %4680 = vmatpush1.msra.mxu0 0.0
        %4681 = vmatprep.mubr.f32.mxu0 0.0
        %4682 = vmatmul.mubr.f32.gmra.mrb[0].mxu0 %v4612
        %v4683 = vpop.f32.mrb[0].mxu0
        %v4684 = vadd.f32 0.0, %v4683
        %v4685 = vpop.f32.mrb[0].mxu0
        %4686 = vdwg.mxu0
        %s4687 = scalar_lea.vmem [#allocation33], 2
        %v4688 = vld [vmem:[%s4687] sm:$0x3]
        %v4690 = vsel %vm1054, %v4688, 0
        %4692 = vmatprep.subr.mxu0 0.0
        %4693 = vmatpush1.msra.mxu0 %v4615
        %4694 = vmatprep.subr.mxu0 0.0
        %4695 = vmatpush1.msra.mxu0 0.0
        %4696 = vmatprep.subr.mxu0 0.0
        %4697 = vmatpush1.msra.mxu0 0.0
        %4698 = vmatprep.subr.mxu0 0.0
        %4699 = vmatpush1.msra.mxu0 0.0
        %4700 = vmatprep.subr.mxu0 0.0
        %4701 = vmatpush1.msra.mxu0 0.0
        %4702 = vmatprep.subr.mxu0 0.0
        %4703 = vmatpush1.msra.mxu0 0.0
        %4704 = vmatprep.subr.mxu0 0.0
        %4705 = vmatpush1.msra.mxu0 0.0
        %4706 = vmatprep.subr.mxu0 0.0
        %4707 = vmatpush1.msra.mxu0 0.0
        %4708 = vmatprep.subr.mxu0 0.0
        %4709 = vmatpush1.msra.mxu0 0.0
        %4710 = vmatprep.subr.mxu0 0.0
        %4711 = vmatpush1.msra.mxu0 0.0
        %4712 = vmatprep.subr.mxu0 0.0
        %4713 = vmatpush1.msra.mxu0 0.0
        %4714 = vmatprep.subr.mxu0 0.0
        %4715 = vmatpush1.msra.mxu0 0.0
        %4716 = vmatprep.subr.mxu0 0.0
        %4717 = vmatpush1.msra.mxu0 0.0
        %4718 = vmatprep.subr.mxu0 0.0
        %4719 = vmatpush1.msra.mxu0 0.0
        %4720 = vmatprep.subr.mxu0 0.0
        %4721 = vmatpush1.msra.mxu0 0.0
        %4722 = vmatprep.subr.mxu0 0.0
        %4723 = vmatpush1.msra.mxu0 0.0
        %4724 = vmatprep.subr.mxu0 0.0
        %4725 = vmatpush1.msra.mxu0 0.0
        %4726 = vmatprep.subr.mxu0 0.0
        %4727 = vmatpush1.msra.mxu0 0.0
        %4728 = vmatprep.subr.mxu0 0.0
        %4729 = vmatpush1.msra.mxu0 0.0
        %4730 = vmatprep.subr.mxu0 0.0
        %4731 = vmatpush1.msra.mxu0 0.0
        %4732 = vmatprep.subr.mxu0 0.0
        %4733 = vmatpush1.msra.mxu0 0.0
        %4734 = vmatprep.subr.mxu0 0.0
        %4735 = vmatpush1.msra.mxu0 0.0
        %4736 = vmatprep.subr.mxu0 0.0
        %4737 = vmatpush1.msra.mxu0 0.0
        %4738 = vmatprep.subr.mxu0 0.0
        %4739 = vmatpush1.msra.mxu0 0.0
        %4740 = vmatprep.subr.mxu0 0.0
        %4741 = vmatpush1.msra.mxu0 0.0
        %4742 = vmatprep.subr.mxu0 0.0
        %4743 = vmatpush1.msra.mxu0 0.0
        %4744 = vmatprep.subr.mxu0 0.0
        %4745 = vmatpush1.msra.mxu0 0.0
        %4746 = vmatprep.subr.mxu0 0.0
        %4747 = vmatpush1.msra.mxu0 0.0
        %4748 = vmatprep.subr.mxu0 0.0
        %4749 = vmatpush1.msra.mxu0 0.0
        %4750 = vmatprep.subr.mxu0 0.0
        %4751 = vmatpush1.msra.mxu0 0.0
        %4752 = vmatprep.subr.mxu0 0.0
        %4753 = vmatpush1.msra.mxu0 0.0
        %4754 = vmatprep.subr.mxu0 0.0
        %4755 = vmatpush1.msra.mxu0 0.0
        %4756 = vmatprep.mubr.f32.mxu0 0.0
        %4757 = vmatmul.mubr.f32.gmra.mrb[0].mxu0 %v4690
        %v4758 = vpop.f32.mrb[0].mxu0
        %v4759 = vadd.f32 0.0, %v4758
        %v4760 = vpop.f32.mrb[0].mxu0
        %4761 = vdwg.mxu0
        %v4762 = vmax.f32 %v4684, %v4759
        %s4763 = scalar_lea.vmem [#allocation33], 4
        %v4764 = vld [vmem:[%s4763] sm:$0x3]
        %v4766 = vsel %vm1054, %v4764, 0
        %4768 = vmatprep.subr.mxu0 0.0
        %4769 = vmatpush1.msra.mxu0 %v4615
        %4770 = vmatprep.subr.mxu0 0.0
        %4771 = vmatpush1.msra.mxu0 0.0
        %4772 = vmatprep.subr.mxu0 0.0
        %4773 = vmatpush1.msra.mxu0 0.0
        %4774 = vmatprep.subr.mxu0 0.0
        %4775 = vmatpush1.msra.mxu0 0.0
        %4776 = vmatprep.subr.mxu0 0.0
        %4777 = vmatpush1.msra.mxu0 0.0
        %4778 = vmatprep.subr.mxu0 0.0
        %4779 = vmatpush1.msra.mxu0 0.0
        %4780 = vmatprep.subr.mxu0 0.0
        %4781 = vmatpush1.msra.mxu0 0.0
        %4782 = vmatprep.subr.mxu0 0.0
        %4783 = vmatpush1.msra.mxu0 0.0
        %4784 = vmatprep.subr.mxu0 0.0
        %4785 = vmatpush1.msra.mxu0 0.0
        %4786 = vmatprep.subr.mxu0 0.0
        %4787 = vmatpush1.msra.mxu0 0.0
        %4788 = vmatprep.subr.mxu0 0.0
        %4789 = vmatpush1.msra.mxu0 0.0
        %4790 = vmatprep.subr.mxu0 0.0
        %4791 = vmatpush1.msra.mxu0 0.0
        %4792 = vmatprep.subr.mxu0 0.0
        %4793 = vmatpush1.msra.mxu0 0.0
        %4794 = vmatprep.subr.mxu0 0.0
        %4795 = vmatpush1.msra.mxu0 0.0
        %4796 = vmatprep.subr.mxu0 0.0
        %4797 = vmatpush1.msra.mxu0 0.0
        %4798 = vmatprep.subr.mxu0 0.0
        %4799 = vmatpush1.msra.mxu0 0.0
        %4800 = vmatprep.subr.mxu0 0.0
        %4801 = vmatpush1.msra.mxu0 0.0
        %4802 = vmatprep.subr.mxu0 0.0
        %4803 = vmatpush1.msra.mxu0 0.0
        %4804 = vmatprep.subr.mxu0 0.0
        %4805 = vmatpush1.msra.mxu0 0.0
        %4806 = vmatprep.subr.mxu0 0.0
        %4807 = vmatpush1.msra.mxu0 0.0
        %4808 = vmatprep.subr.mxu0 0.0
        %4809 = vmatpush1.msra.mxu0 0.0
        %4810 = vmatprep.subr.mxu0 0.0
        %4811 = vmatpush1.msra.mxu0 0.0
        %4812 = vmatprep.subr.mxu0 0.0
        %4813 = vmatpush1.msra.mxu0 0.0
        %4814 = vmatprep.subr.mxu0 0.0
        %4815 = vmatpush1.msra.mxu0 0.0
        %4816 = vmatprep.subr.mxu0 0.0
        %4817 = vmatpush1.msra.mxu0 0.0
        %4818 = vmatprep.subr.mxu0 0.0
        %4819 = vmatpush1.msra.mxu0 0.0
        %4820 = vmatprep.subr.mxu0 0.0
        %4821 = vmatpush1.msra.mxu0 0.0
        %4822 = vmatprep.subr.mxu0 0.0
        %4823 = vmatpush1.msra.mxu0 0.0
        %4824 = vmatprep.subr.mxu0 0.0
        %4825 = vmatpush1.msra.mxu0 0.0
        %4826 = vmatprep.subr.mxu0 0.0
        %4827 = vmatpush1.msra.mxu0 0.0
        %4828 = vmatprep.subr.mxu0 0.0
        %4829 = vmatpush1.msra.mxu0 0.0
        %4830 = vmatprep.subr.mxu0 0.0
        %4831 = vmatpush1.msra.mxu0 0.0
        %4832 = vmatprep.mubr.f32.mxu0 0.0
        %4833 = vmatmul.mubr.f32.gmra.mrb[0].mxu0 %v4766
        %v4834 = vpop.f32.mrb[0].mxu0
        %v4835 = vadd.f32 0.0, %v4834
        %v4836 = vpop.f32.mrb[0].mxu0
        %4837 = vdwg.mxu0
        %v4838 = vmax.f32 %v4762, %v4835
        %s4839 = scalar_lea.vmem %s3, 64
        %v4840 = vld [vmem:[%s4839] sm:$0xff]
        %v4841 = vld [vmem:[%s4839 + $0x8] sm:$0xff]
        %v4842 = vld [vmem:[%s4839 + $0x10] sm:$0xff]
        %v4843 = vld [vmem:[%s4839 + $0x18] sm:$0xff]
        %s4844 = scalar_lea.vmem %s4, 2
        %v4845 = vld [vmem:[%s4844] sm:$0x1]
        %v4847 = vlaneseq
        %v4848 = vshrl.u32 %v4847, 7
        %v4849 = vsub.s32 0, %v4848
        %v4850 = vrot.slane %v4845, %v4849
        %v4853 = vsel %vm1438, %v4838, 0
        %4855 = vmatprep.subr.mxu0 0.0
        %4856 = vmatpush1.msra.mxu0 %v4840
        %4857 = vmatprep.subr.mxu0 0.0
        %4858 = vmatpush1.msra.mxu0 %v4841
        %4859 = vmatprep.subr.mxu0 0.0
        %4860 = vmatpush1.msra.mxu0 %v4842
        %4861 = vmatprep.subr.mxu0 0.0
        %4862 = vmatpush1.msra.mxu0 %v4843
        %4863 = vmatprep.subr.mxu0 0.0
        %4864 = vmatpush1.msra.mxu0 0.0
        %4865 = vmatprep.subr.mxu0 0.0
        %4866 = vmatpush1.msra.mxu0 0.0
        %4867 = vmatprep.subr.mxu0 0.0
        %4868 = vmatpush1.msra.mxu0 0.0
        %4869 = vmatprep.subr.mxu0 0.0
        %4870 = vmatpush1.msra.mxu0 0.0
        %4871 = vmatprep.subr.mxu0 0.0
        %4872 = vmatpush1.msra.mxu0 0.0
        %4873 = vmatprep.subr.mxu0 0.0
        %4874 = vmatpush1.msra.mxu0 0.0
        %4875 = vmatprep.subr.mxu0 0.0
        %4876 = vmatpush1.msra.mxu0 0.0
        %4877 = vmatprep.subr.mxu0 0.0
        %4878 = vmatpush1.msra.mxu0 0.0
        %4879 = vmatprep.subr.mxu0 0.0
        %4880 = vmatpush1.msra.mxu0 0.0
        %4881 = vmatprep.subr.mxu0 0.0
        %4882 = vmatpush1.msra.mxu0 0.0
        %4883 = vmatprep.subr.mxu0 0.0
        %4884 = vmatpush1.msra.mxu0 0.0
        %4885 = vmatprep.subr.mxu0 0.0
        %4886 = vmatpush1.msra.mxu0 0.0
        %4887 = vmatprep.subr.mxu0 0.0
        %4888 = vmatpush1.msra.mxu0 0.0
        %4889 = vmatprep.subr.mxu0 0.0
        %4890 = vmatpush1.msra.mxu0 0.0
        %4891 = vmatprep.subr.mxu0 0.0
        %4892 = vmatpush1.msra.mxu0 0.0
        %4893 = vmatprep.subr.mxu0 0.0
        %4894 = vmatpush1.msra.mxu0 0.0
        %4895 = vmatprep.subr.mxu0 0.0
        %4896 = vmatpush1.msra.mxu0 0.0
        %4897 = vmatprep.subr.mxu0 0.0
        %4898 = vmatpush1.msra.mxu0 0.0
        %4899 = vmatprep.subr.mxu0 0.0
        %4900 = vmatpush1.msra.mxu0 0.0
        %4901 = vmatprep.subr.mxu0 0.0
        %4902 = vmatpush1.msra.mxu0 0.0
        %4903 = vmatprep.subr.mxu0 0.0
        %4904 = vmatpush1.msra.mxu0 0.0
        %4905 = vmatprep.subr.mxu0 0.0
        %4906 = vmatpush1.msra.mxu0 0.0
        %4907 = vmatprep.subr.mxu0 0.0
        %4908 = vmatpush1.msra.mxu0 0.0
        %4909 = vmatprep.subr.mxu0 0.0
        %4910 = vmatpush1.msra.mxu0 0.0
        %4911 = vmatprep.subr.mxu0 0.0
        %4912 = vmatpush1.msra.mxu0 0.0
        %4913 = vmatprep.subr.mxu0 0.0
        %4914 = vmatpush1.msra.mxu0 0.0
        %4915 = vmatprep.subr.mxu0 0.0
        %4916 = vmatpush1.msra.mxu0 0.0
        %4917 = vmatprep.subr.mxu0 0.0
        %4918 = vmatpush1.msra.mxu0 0.0
        %4919 = vmatprep.mubr.f32.mxu0 0.0
        %4920 = vmatmul.mubr.f32.gmra.mrb[0].mxu0 %v4853
        %v4921 = vpop.f32.mrb[0].mxu0
        %v4922 = vadd.f32 %v4850, %v4921
        %v4923 = vpop.f32.mrb[0].mxu0
        %4924 = vdwg.mxu0
        %4926 = vrot.lane.b32.xlu0 %v4922, 96
        %v4927 = vpop.permute.xlu0 %4926
        %v4928 = vsel %vm1205, %v4922, 0
        %v4930 = vsel %vm1205, %v4927, 0
        %4932 = vmatprep.subr.mxu0 0.0
        %4933 = vmatpush1.xpose.msra.mxu0 %v4930
        %4934 = vmatprep.subr.mxu0 0.0
        %4935 = vmatpush1.xpose.msra.mxu0 0.0
        %4936 = vmatprep.subr.mxu0 0.0
        %4937 = vmatpush1.xpose.msra.mxu0 0.0
        %4938 = vmatprep.subr.mxu0 0.0
        %4939 = vmatpush1.xpose.msra.mxu0 0.0
        %4940 = vmatprep.subr.mxu0 0.0
        %4941 = vmatpush1.xpose.msra.mxu0 0.0
        %4942 = vmatprep.subr.mxu0 0.0
        %4943 = vmatpush1.xpose.msra.mxu0 0.0
        %4944 = vmatprep.subr.mxu0 0.0
        %4945 = vmatpush1.xpose.msra.mxu0 0.0
        %4946 = vmatprep.subr.mxu0 0.0
        %4947 = vmatpush1.xpose.msra.mxu0 0.0
        %4948 = vmatprep.subr.mxu0 0.0
        %4949 = vmatpush1.xpose.msra.mxu0 0.0
        %4950 = vmatprep.subr.mxu0 0.0
        %4951 = vmatpush1.xpose.msra.mxu0 0.0
        %4952 = vmatprep.subr.mxu0 0.0
        %4953 = vmatpush1.xpose.msra.mxu0 0.0
        %4954 = vmatprep.subr.mxu0 0.0
        %4955 = vmatpush1.xpose.msra.mxu0 0.0
        %4956 = vmatprep.subr.mxu0 0.0
        %4957 = vmatpush1.xpose.msra.mxu0 0.0
        %4958 = vmatprep.subr.mxu0 0.0
        %4959 = vmatpush1.xpose.msra.mxu0 0.0
        %4960 = vmatprep.subr.mxu0 0.0
        %4961 = vmatpush1.xpose.msra.mxu0 0.0
        %4962 = vmatprep.subr.mxu0 0.0
        %4963 = vmatpush1.xpose.msra.mxu0 0.0
        %4964 = vmatprep.subr.mxu0 0.0
        %4965 = vmatpush1.xpose.msra.mxu0 0.0
        %4966 = vmatprep.subr.mxu0 0.0
        %4967 = vmatpush1.xpose.msra.mxu0 0.0
        %4968 = vmatprep.subr.mxu0 0.0
        %4969 = vmatpush1.xpose.msra.mxu0 0.0
        %4970 = vmatprep.subr.mxu0 0.0
        %4971 = vmatpush1.xpose.msra.mxu0 0.0
        %4972 = vmatprep.subr.mxu0 0.0
        %4973 = vmatpush1.xpose.msra.mxu0 0.0
        %4974 = vmatprep.subr.mxu0 0.0
        %4975 = vmatpush1.xpose.msra.mxu0 0.0
        %4976 = vmatprep.subr.mxu0 0.0
        %4977 = vmatpush1.xpose.msra.mxu0 0.0
        %4978 = vmatprep.subr.mxu0 0.0
        %4979 = vmatpush1.xpose.msra.mxu0 0.0
        %4980 = vmatprep.subr.mxu0 0.0
        %4981 = vmatpush1.xpose.msra.mxu0 0.0
        %4982 = vmatprep.subr.mxu0 0.0
        %4983 = vmatpush1.xpose.msra.mxu0 0.0
        %4984 = vmatprep.subr.mxu0 0.0
        %4985 = vmatpush1.xpose.msra.mxu0 0.0
        %4986 = vmatprep.subr.mxu0 0.0
        %4987 = vmatpush1.xpose.msra.mxu0 0.0
        %4988 = vmatprep.subr.mxu0 0.0
        %4989 = vmatpush1.xpose.msra.mxu0 0.0
        %4990 = vmatprep.subr.mxu0 0.0
        %4991 = vmatpush1.xpose.msra.mxu0 0.0
        %4992 = vmatprep.subr.mxu0 0.0
        %4993 = vmatpush1.xpose.msra.mxu0 0.0
        %4994 = vmatprep.subr.mxu0 0.0
        %4995 = vmatpush1.xpose.msra.mxu0 0.0
        %4996 = vmatprep.mubr.f32.mxu0 0.0
        %4997 = vmatmul.mubr.f32.gmra.mrb[0].mxu0 %v4928
        %v4998 = vpop.f32.mrb[0].mxu0
        %v4999 = vadd.f32 0.0, %v4998
        %v5000 = vpop.f32.mrb[0].mxu0
        %5001 = vdwg.mxu0
        %5002 = vrot.lane.b32.xlu0 %v4922, 120
        %v5003 = vpop.permute.xlu0 %5002
        %5004 = vrot.lane.b32.xlu0 %v4922, 88
        %v5005 = vpop.permute.xlu0 %5004
        %v5006 = vsel %vm1205, %v5003, 0
        %v5008 = vsel %vm1205, %v5005, 0
        %5010 = vmatprep.subr.mxu0 0.0
        %5011 = vmatpush1.xpose.msra.mxu0 %v5008
        %5012 = vmatprep.subr.mxu0 0.0
        %5013 = vmatpush1.xpose.msra.mxu0 0.0
        %5014 = vmatprep.subr.mxu0 0.0
        %5015 = vmatpush1.xpose.msra.mxu0 0.0
        %5016 = vmatprep.subr.mxu0 0.0
        %5017 = vmatpush1.xpose.msra.mxu0 0.0
        %5018 = vmatprep.subr.mxu0 0.0
        %5019 = vmatpush1.xpose.msra.mxu0 0.0
        %5020 = vmatprep.subr.mxu0 0.0
        %5021 = vmatpush1.xpose.msra.mxu0 0.0
        %5022 = vmatprep.subr.mxu0 0.0
        %5023 = vmatpush1.xpose.msra.mxu0 0.0
        %5024 = vmatprep.subr.mxu0 0.0
        %5025 = vmatpush1.xpose.msra.mxu0 0.0
        %5026 = vmatprep.subr.mxu0 0.0
        %5027 = vmatpush1.xpose.msra.mxu0 0.0
        %5028 = vmatprep.subr.mxu0 0.0
        %5029 = vmatpush1.xpose.msra.mxu0 0.0
        %5030 = vmatprep.subr.mxu0 0.0
        %5031 = vmatpush1.xpose.msra.mxu0 0.0
        %5032 = vmatprep.subr.mxu0 0.0
        %5033 = vmatpush1.xpose.msra.mxu0 0.0
        %5034 = vmatprep.subr.mxu0 0.0
        %5035 = vmatpush1.xpose.msra.mxu0 0.0
        %5036 = vmatprep.subr.mxu0 0.0
        %5037 = vmatpush1.xpose.msra.mxu0 0.0
        %5038 = vmatprep.subr.mxu0 0.0
        %5039 = vmatpush1.xpose.msra.mxu0 0.0
        %5040 = vmatprep.subr.mxu0 0.0
        %5041 = vmatpush1.xpose.msra.mxu0 0.0
        %5042 = vmatprep.subr.mxu0 0.0
        %5043 = vmatpush1.xpose.msra.mxu0 0.0
        %5044 = vmatprep.subr.mxu0 0.0
        %5045 = vmatpush1.xpose.msra.mxu0 0.0
        %5046 = vmatprep.subr.mxu0 0.0
        %5047 = vmatpush1.xpose.msra.mxu0 0.0
        %5048 = vmatprep.subr.mxu0 0.0
        %5049 = vmatpush1.xpose.msra.mxu0 0.0
        %5050 = vmatprep.subr.mxu0 0.0
        %5051 = vmatpush1.xpose.msra.mxu0 0.0
        %5052 = vmatprep.subr.mxu0 0.0
        %5053 = vmatpush1.xpose.msra.mxu0 0.0
        %5054 = vmatprep.subr.mxu0 0.0
        %5055 = vmatpush1.xpose.msra.mxu0 0.0
        %5056 = vmatprep.subr.mxu0 0.0
        %5057 = vmatpush1.xpose.msra.mxu0 0.0
        %5058 = vmatprep.subr.mxu0 0.0
        %5059 = vmatpush1.xpose.msra.mxu0 0.0
        %5060 = vmatprep.subr.mxu0 0.0
        %5061 = vmatpush1.xpose.msra.mxu0 0.0
        %5062 = vmatprep.subr.mxu0 0.0
        %5063 = vmatpush1.xpose.msra.mxu0 0.0
        %5064 = vmatprep.subr.mxu0 0.0
        %5065 = vmatpush1.xpose.msra.mxu0 0.0
        %5066 = vmatprep.subr.mxu0 0.0
        %5067 = vmatpush1.xpose.msra.mxu0 0.0
        %5068 = vmatprep.subr.mxu0 0.0
        %5069 = vmatpush1.xpose.msra.mxu0 0.0
        %5070 = vmatprep.subr.mxu0 0.0
        %5071 = vmatpush1.xpose.msra.mxu0 0.0
        %5072 = vmatprep.subr.mxu0 0.0
        %5073 = vmatpush1.xpose.msra.mxu0 0.0
        %5074 = vmatprep.mubr.f32.mxu0 0.0
        %5075 = vmatmul.mubr.f32.gmra.mrb[0].mxu0 %v5006
        %v5076 = vpop.f32.mrb[0].mxu0
        %v5077 = vadd.f32 0.0, %v5076
        %v5078 = vpop.f32.mrb[0].mxu0
        %5079 = vdwg.mxu0
        %5080 = vrot.lane.b32.xlu0 %v4922, 112
        %v5081 = vpop.permute.xlu0 %5080
        %5082 = vrot.lane.b32.xlu0 %v4922, 80
        %v5083 = vpop.permute.xlu0 %5082
        %v5084 = vsel %vm1205, %v5081, 0
        %v5086 = vsel %vm1205, %v5083, 0
        %5088 = vmatprep.subr.mxu0 0.0
        %5089 = vmatpush1.xpose.msra.mxu0 %v5086
        %5090 = vmatprep.subr.mxu0 0.0
        %5091 = vmatpush1.xpose.msra.mxu0 0.0
        %5092 = vmatprep.subr.mxu0 0.0
        %5093 = vmatpush1.xpose.msra.mxu0 0.0
        %5094 = vmatprep.subr.mxu0 0.0
        %5095 = vmatpush1.xpose.msra.mxu0 0.0
        %5096 = vmatprep.subr.mxu0 0.0
        %5097 = vmatpush1.xpose.msra.mxu0 0.0
        %5098 = vmatprep.subr.mxu0 0.0
        %5099 = vmatpush1.xpose.msra.mxu0 0.0
        %5100 = vmatprep.subr.mxu0 0.0
        %5101 = vmatpush1.xpose.msra.mxu0 0.0
        %5102 = vmatprep.subr.mxu0 0.0
        %5103 = vmatpush1.xpose.msra.mxu0 0.0
        %5104 = vmatprep.subr.mxu0 0.0
        %5105 = vmatpush1.xpose.msra.mxu0 0.0
        %5106 = vmatprep.subr.mxu0 0.0
        %5107 = vmatpush1.xpose.msra.mxu0 0.0
        %5108 = vmatprep.subr.mxu0 0.0
        %5109 = vmatpush1.xpose.msra.mxu0 0.0
        %5110 = vmatprep.subr.mxu0 0.0
        %5111 = vmatpush1.xpose.msra.mxu0 0.0
        %5112 = vmatprep.subr.mxu0 0.0
        %5113 = vmatpush1.xpose.msra.mxu0 0.0
        %5114 = vmatprep.subr.mxu0 0.0
        %5115 = vmatpush1.xpose.msra.mxu0 0.0
        %5116 = vmatprep.subr.mxu0 0.0
        %5117 = vmatpush1.xpose.msra.mxu0 0.0
        %5118 = vmatprep.subr.mxu0 0.0
        %5119 = vmatpush1.xpose.msra.mxu0 0.0
        %5120 = vmatprep.subr.mxu0 0.0
        %5121 = vmatpush1.xpose.msra.mxu0 0.0
        %5122 = vmatprep.subr.mxu0 0.0
        %5123 = vmatpush1.xpose.msra.mxu0 0.0
        %5124 = vmatprep.subr.mxu0 0.0
        %5125 = vmatpush1.xpose.msra.mxu0 0.0
        %5126 = vmatprep.subr.mxu0 0.0
        %5127 = vmatpush1.xpose.msra.mxu0 0.0
        %5128 = vmatprep.subr.mxu0 0.0
        %5129 = vmatpush1.xpose.msra.mxu0 0.0
        %5130 = vmatprep.subr.mxu0 0.0
        %5131 = vmatpush1.xpose.msra.mxu0 0.0
        %5132 = vmatprep.subr.mxu0 0.0
        %5133 = vmatpush1.xpose.msra.mxu0 0.0
        %5134 = vmatprep.subr.mxu0 0.0
        %5135 = vmatpush1.xpose.msra.mxu0 0.0
        %5136 = vmatprep.subr.mxu0 0.0
        %5137 = vmatpush1.xpose.msra.mxu0 0.0
        %5138 = vmatprep.subr.mxu0 0.0
        %5139 = vmatpush1.xpose.msra.mxu0 0.0
        %5140 = vmatprep.subr.mxu0 0.0
        %5141 = vmatpush1.xpose.msra.mxu0 0.0
        %5142 = vmatprep.subr.mxu0 0.0
        %5143 = vmatpush1.xpose.msra.mxu0 0.0
        %5144 = vmatprep.subr.mxu0 0.0
        %5145 = vmatpush1.xpose.msra.mxu0 0.0
        %5146 = vmatprep.subr.mxu0 0.0
        %5147 = vmatpush1.xpose.msra.mxu0 0.0
        %5148 = vmatprep.subr.mxu0 0.0
        %5149 = vmatpush1.xpose.msra.mxu0 0.0
        %5150 = vmatprep.subr.mxu0 0.0
        %5151 = vmatpush1.xpose.msra.mxu0 0.0
        %5152 = vmatprep.mubr.f32.mxu0 0.0
        %5153 = vmatmul.mubr.f32.gmra.mrb[0].mxu0 %v5084
        %v5154 = vpop.f32.mrb[0].mxu0
        %v5155 = vadd.f32 0.0, %v5154
        %v5156 = vpop.f32.mrb[0].mxu0
        %5157 = vdwg.mxu0
        %5158 = vrot.lane.b32.xlu0 %v4922, 104
        %v5159 = vpop.permute.xlu0 %5158
        %5160 = vrot.lane.b32.xlu0 %v4922, 72
        %v5161 = vpop.permute.xlu0 %5160
        %v5162 = vsel %vm1205, %v5159, 0
        %v5164 = vsel %vm1205, %v5161, 0
        %5166 = vmatprep.subr.mxu0 0.0
        %5167 = vmatpush1.xpose.msra.mxu0 %v5164
        %5168 = vmatprep.subr.mxu0 0.0
        %5169 = vmatpush1.xpose.msra.mxu0 0.0
        %5170 = vmatprep.subr.mxu0 0.0
        %5171 = vmatpush1.xpose.msra.mxu0 0.0
        %5172 = vmatprep.subr.mxu0 0.0
        %5173 = vmatpush1.xpose.msra.mxu0 0.0
        %5174 = vmatprep.subr.mxu0 0.0
        %5175 = vmatpush1.xpose.msra.mxu0 0.0
        %5176 = vmatprep.subr.mxu0 0.0
        %5177 = vmatpush1.xpose.msra.mxu0 0.0
        %5178 = vmatprep.subr.mxu0 0.0
        %5179 = vmatpush1.xpose.msra.mxu0 0.0
        %5180 = vmatprep.subr.mxu0 0.0
        %5181 = vmatpush1.xpose.msra.mxu0 0.0
        %5182 = vmatprep.subr.mxu0 0.0
        %5183 = vmatpush1.xpose.msra.mxu0 0.0
        %5184 = vmatprep.subr.mxu0 0.0
        %5185 = vmatpush1.xpose.msra.mxu0 0.0
        %5186 = vmatprep.subr.mxu0 0.0
        %5187 = vmatpush1.xpose.msra.mxu0 0.0
        %5188 = vmatprep.subr.mxu0 0.0
        %5189 = vmatpush1.xpose.msra.mxu0 0.0
        %5190 = vmatprep.subr.mxu0 0.0
        %5191 = vmatpush1.xpose.msra.mxu0 0.0
        %5192 = vmatprep.subr.mxu0 0.0
        %5193 = vmatpush1.xpose.msra.mxu0 0.0
        %5194 = vmatprep.subr.mxu0 0.0
        %5195 = vmatpush1.xpose.msra.mxu0 0.0
        %5196 = vmatprep.subr.mxu0 0.0
        %5197 = vmatpush1.xpose.msra.mxu0 0.0
        %5198 = vmatprep.subr.mxu0 0.0
        %5199 = vmatpush1.xpose.msra.mxu0 0.0
        %5200 = vmatprep.subr.mxu0 0.0
        %5201 = vmatpush1.xpose.msra.mxu0 0.0
        %5202 = vmatprep.subr.mxu0 0.0
        %5203 = vmatpush1.xpose.msra.mxu0 0.0
        %5204 = vmatprep.subr.mxu0 0.0
        %5205 = vmatpush1.xpose.msra.mxu0 0.0
        %5206 = vmatprep.subr.mxu0 0.0
        %5207 = vmatpush1.xpose.msra.mxu0 0.0
        %5208 = vmatprep.subr.mxu0 0.0
        %5209 = vmatpush1.xpose.msra.mxu0 0.0
        %5210 = vmatprep.subr.mxu0 0.0
        %5211 = vmatpush1.xpose.msra.mxu0 0.0
        %5212 = vmatprep.subr.mxu0 0.0
        %5213 = vmatpush1.xpose.msra.mxu0 0.0
        %5214 = vmatprep.subr.mxu0 0.0
        %5215 = vmatpush1.xpose.msra.mxu0 0.0
        %5216 = vmatprep.subr.mxu0 0.0
        %5217 = vmatpush1.xpose.msra.mxu0 0.0
        %5218 = vmatprep.subr.mxu0 0.0
        %5219 = vmatpush1.xpose.msra.mxu0 0.0
        %5220 = vmatprep.subr.mxu0 0.0
        %5221 = vmatpush1.xpose.msra.mxu0 0.0
        %5222 = vmatprep.subr.mxu0 0.0
        %5223 = vmatpush1.xpose.msra.mxu0 0.0
        %5224 = vmatprep.subr.mxu0 0.0
        %5225 = vmatpush1.xpose.msra.mxu0 0.0
        %5226 = vmatprep.subr.mxu0 0.0
        %5227 = vmatpush1.xpose.msra.mxu0 0.0
        %5228 = vmatprep.subr.mxu0 0.0
        %5229 = vmatpush1.xpose.msra.mxu0 0.0
        %5230 = vmatprep.mubr.f32.mxu0 0.0
        %5231 = vmatmul.mubr.f32.gmra.mrb[0].mxu0 %v5162
        %v5232 = vpop.f32.mrb[0].mxu0
        %v5233 = vadd.f32 0.0, %v5232
        %v5234 = vpop.f32.mrb[0].mxu0
        %5235 = vdwg.mxu0
        %vm5236 = vcmask 9216
        %v5237 = vsel %vm5236, %v4999, -inf
        %5238 = vmax.xlane.f32.xlu0 %v5237
        %v5239 = vpop.xlane.xlu0 %5238
        %v5240 = vsel %vm5236, %v5077, -inf
        %5241 = vmax.xlane.f32.xlu0 %v5240
        %v5242 = vpop.xlane.xlu0 %5241
        %v5243 = vsel %vm5236, %v5155, -inf
        %5244 = vmax.xlane.f32.xlu0 %v5243
        %v5245 = vpop.xlane.xlu0 %5244
        %v5246 = vsel %vm5236, %v5233, -inf
        %5247 = vmax.xlane.f32.xlu0 %v5246
        %v5248 = vpop.xlane.xlu0 %5247
        %v5249 = vsub.f32 %v4999, %v5239
        %v5250 = vsub.f32 %v5077, %v5242
        %v5251 = vsub.f32 %v5155, %v5245
        %v5252 = vsub.f32 %v5233, %v5248
        %v5253 = vmul.f32 %v5249, 1.442695
        %v5254 = vpow.pop %v5253
        %v5255 = vmul.f32 %v5250, 1.442695
        %v5256 = vpow.pop %v5255
        %v5257 = vmul.f32 %v5251, 1.442695
        %v5258 = vpow.pop %v5257
        %v5259 = vmul.f32 %v5252, 1.442695
        %v5260 = vpow.pop %v5259
        %v5261 = vsel %vm5236, %v5254, 0.0
        %5262 = vadd.xlane.f32.xlu0 %v5261
        %v5263 = vpop.xlane.xlu0 %5262
        %v5264 = vsel %vm5236, %v5256, 0.0
        %5265 = vadd.xlane.f32.xlu0 %v5264
        %v5266 = vpop.xlane.xlu0 %5265
        %v5267 = vsel %vm5236, %v5258, 0.0
        %5268 = vadd.xlane.f32.xlu0 %v5267
        %v5269 = vpop.xlane.xlu0 %5268
        %v5270 = vsel %vm5236, %v5260, 0.0
        %5271 = vadd.xlane.f32.xlu0 %v5270
        %v5272 = vpop.xlane.xlu0 %5271
        %v5273 = vrcp.pop %v5263
        %v5274 = vrcp.pop %v5266
        %v5275 = vrcp.pop %v5269
        %v5276 = vrcp.pop %v5272
        %v5277 = vmul.f32 %v5254, %v5273
        %v5278 = vmul.f32 %v5256, %v5274
        %v5279 = vmul.f32 %v5258, %v5275
        %v5280 = vmul.f32 %v5260, %v5276
        %5281 = vrot.lane.b32.xlu0 %v4922, 64
        %v5282 = vpop.permute.xlu0 %5281
        %vm5283 = vcmask 15360
        %v5285 = vsel %vm5283, %v5277, 0
        %vm5287 = vcmask 1041408
        %v5288 = vsel %vm5287, %v5282, 0
        %5290 = vmatprep.subr.mxu0 0.0
        %5291 = vmatpush1.msra.mxu0 %v5288
        %5292 = vmatprep.subr.mxu0 0.0
        %5293 = vmatpush1.msra.mxu0 0.0
        %5294 = vmatprep.subr.mxu0 0.0
        %5295 = vmatpush1.msra.mxu0 0.0
        %5296 = vmatprep.subr.mxu0 0.0
        %5297 = vmatpush1.msra.mxu0 0.0
        %5298 = vmatprep.subr.mxu0 0.0
        %5299 = vmatpush1.msra.mxu0 0.0
        %5300 = vmatprep.subr.mxu0 0.0
        %5301 = vmatpush1.msra.mxu0 0.0
        %5302 = vmatprep.subr.mxu0 0.0
        %5303 = vmatpush1.msra.mxu0 0.0
        %5304 = vmatprep.subr.mxu0 0.0
        %5305 = vmatpush1.msra.mxu0 0.0
        %5306 = vmatprep.subr.mxu0 0.0
        %5307 = vmatpush1.msra.mxu0 0.0
        %5308 = vmatprep.subr.mxu0 0.0
        %5309 = vmatpush1.msra.mxu0 0.0
        %5310 = vmatprep.subr.mxu0 0.0
        %5311 = vmatpush1.msra.mxu0 0.0
        %5312 = vmatprep.subr.mxu0 0.0
        %5313 = vmatpush1.msra.mxu0 0.0
        %5314 = vmatprep.subr.mxu0 0.0
        %5315 = vmatpush1.msra.mxu0 0.0
        %5316 = vmatprep.subr.mxu0 0.0
        %5317 = vmatpush1.msra.mxu0 0.0
        %5318 = vmatprep.subr.mxu0 0.0
        %5319 = vmatpush1.msra.mxu0 0.0
        %5320 = vmatprep.subr.mxu0 0.0
        %5321 = vmatpush1.msra.mxu0 0.0
        %5322 = vmatprep.subr.mxu0 0.0
        %5323 = vmatpush1.msra.mxu0 0.0
        %5324 = vmatprep.subr.mxu0 0.0
        %5325 = vmatpush1.msra.mxu0 0.0
        %5326 = vmatprep.subr.mxu0 0.0
        %5327 = vmatpush1.msra.mxu0 0.0
        %5328 = vmatprep.subr.mxu0 0.0
        %5329 = vmatpush1.msra.mxu0 0.0
        %5330 = vmatprep.subr.mxu0 0.0
        %5331 = vmatpush1.msra.mxu0 0.0
        %5332 = vmatprep.subr.mxu0 0.0
        %5333 = vmatpush1.msra.mxu0 0.0
        %5334 = vmatprep.subr.mxu0 0.0
        %5335 = vmatpush1.msra.mxu0 0.0
        %5336 = vmatprep.subr.mxu0 0.0
        %5337 = vmatpush1.msra.mxu0 0.0
        %5338 = vmatprep.subr.mxu0 0.0
        %5339 = vmatpush1.msra.mxu0 0.0
        %5340 = vmatprep.subr.mxu0 0.0
        %5341 = vmatpush1.msra.mxu0 0.0
        %5342 = vmatprep.subr.mxu0 0.0
        %5343 = vmatpush1.msra.mxu0 0.0
        %5344 = vmatprep.subr.mxu0 0.0
        %5345 = vmatpush1.msra.mxu0 0.0
        %5346 = vmatprep.subr.mxu0 0.0
        %5347 = vmatpush1.msra.mxu0 0.0
        %5348 = vmatprep.subr.mxu0 0.0
        %5349 = vmatpush1.msra.mxu0 0.0
        %5350 = vmatprep.subr.mxu0 0.0
        %5351 = vmatpush1.msra.mxu0 0.0
        %5352 = vmatprep.subr.mxu0 0.0
        %5353 = vmatpush1.msra.mxu0 0.0
        %5354 = vmatprep.mubr.f32.mxu0 0.0
        %5355 = vmatmul.mubr.f32.gmra.mrb[0].mxu0 %v5285
        %v5356 = vpop.f32.mrb[0].mxu0
        %v5357 = vadd.f32 0.0, %v5356
        %v5358 = vpop.f32.mrb[0].mxu0
        %5359 = vdwg.mxu0
        %5360 = vrot.lane.b32.xlu0 %v4922, 56
        %v5361 = vpop.permute.xlu0 %5360
        %v5363 = vsel %vm5283, %v5278, 0
        %v5365 = vsel %vm5287, %v5361, 0
        %5367 = vmatprep.subr.mxu0 0.0
        %5368 = vmatpush1.msra.mxu0 %v5365
        %5369 = vmatprep.subr.mxu0 0.0
        %5370 = vmatpush1.msra.mxu0 0.0
        %5371 = vmatprep.subr.mxu0 0.0
        %5372 = vmatpush1.msra.mxu0 0.0
        %5373 = vmatprep.subr.mxu0 0.0
        %5374 = vmatpush1.msra.mxu0 0.0
        %5375 = vmatprep.subr.mxu0 0.0
        %5376 = vmatpush1.msra.mxu0 0.0
        %5377 = vmatprep.subr.mxu0 0.0
        %5378 = vmatpush1.msra.mxu0 0.0
        %5379 = vmatprep.subr.mxu0 0.0
        %5380 = vmatpush1.msra.mxu0 0.0
        %5381 = vmatprep.subr.mxu0 0.0
        %5382 = vmatpush1.msra.mxu0 0.0
        %5383 = vmatprep.subr.mxu0 0.0
        %5384 = vmatpush1.msra.mxu0 0.0
        %5385 = vmatprep.subr.mxu0 0.0
        %5386 = vmatpush1.msra.mxu0 0.0
        %5387 = vmatprep.subr.mxu0 0.0
        %5388 = vmatpush1.msra.mxu0 0.0
        %5389 = vmatprep.subr.mxu0 0.0
        %5390 = vmatpush1.msra.mxu0 0.0
        %5391 = vmatprep.subr.mxu0 0.0
        %5392 = vmatpush1.msra.mxu0 0.0
        %5393 = vmatprep.subr.mxu0 0.0
        %5394 = vmatpush1.msra.mxu0 0.0
        %5395 = vmatprep.subr.mxu0 0.0
        %5396 = vmatpush1.msra.mxu0 0.0
        %5397 = vmatprep.subr.mxu0 0.0
        %5398 = vmatpush1.msra.mxu0 0.0
        %5399 = vmatprep.subr.mxu0 0.0
        %5400 = vmatpush1.msra.mxu0 0.0
        %5401 = vmatprep.subr.mxu0 0.0
        %5402 = vmatpush1.msra.mxu0 0.0
        %5403 = vmatprep.subr.mxu0 0.0
        %5404 = vmatpush1.msra.mxu0 0.0
        %5405 = vmatprep.subr.mxu0 0.0
        %5406 = vmatpush1.msra.mxu0 0.0
        %5407 = vmatprep.subr.mxu0 0.0
        %5408 = vmatpush1.msra.mxu0 0.0
        %5409 = vmatprep.subr.mxu0 0.0
        %5410 = vmatpush1.msra.mxu0 0.0
        %5411 = vmatprep.subr.mxu0 0.0
        %5412 = vmatpush1.msra.mxu0 0.0
        %5413 = vmatprep.subr.mxu0 0.0
        %5414 = vmatpush1.msra.mxu0 0.0
        %5415 = vmatprep.subr.mxu0 0.0
        %5416 = vmatpush1.msra.mxu0 0.0
        %5417 = vmatprep.subr.mxu0 0.0
        %5418 = vmatpush1.msra.mxu0 0.0
        %5419 = vmatprep.subr.mxu0 0.0
        %5420 = vmatpush1.msra.mxu0 0.0
        %5421 = vmatprep.subr.mxu0 0.0
        %5422 = vmatpush1.msra.mxu0 0.0
        %5423 = vmatprep.subr.mxu0 0.0
        %5424 = vmatpush1.msra.mxu0 0.0
        %5425 = vmatprep.subr.mxu0 0.0
        %5426 = vmatpush1.msra.mxu0 0.0
        %5427 = vmatprep.subr.mxu0 0.0
        %5428 = vmatpush1.msra.mxu0 0.0
        %5429 = vmatprep.subr.mxu0 0.0
        %5430 = vmatpush1.msra.mxu0 0.0
        %5431 = vmatprep.mubr.f32.mxu0 0.0
        %5432 = vmatmul.mubr.f32.gmra.mrb[0].mxu0 %v5363
        %v5433 = vpop.f32.mrb[0].mxu0
        %v5434 = vadd.f32 0.0, %v5433
        %v5435 = vpop.f32.mrb[0].mxu0
        %5436 = vdwg.mxu0
        %5437 = vrot.lane.b32.xlu0 %v4922, 48
        %v5438 = vpop.permute.xlu0 %5437
        %v5440 = vsel %vm5283, %v5279, 0
        %v5442 = vsel %vm5287, %v5438, 0
        %5444 = vmatprep.subr.mxu0 0.0
        %5445 = vmatpush1.msra.mxu0 %v5442
        %5446 = vmatprep.subr.mxu0 0.0
        %5447 = vmatpush1.msra.mxu0 0.0
        %5448 = vmatprep.subr.mxu0 0.0
        %5449 = vmatpush1.msra.mxu0 0.0
        %5450 = vmatprep.subr.mxu0 0.0
        %5451 = vmatpush1.msra.mxu0 0.0
        %5452 = vmatprep.subr.mxu0 0.0
        %5453 = vmatpush1.msra.mxu0 0.0
        %5454 = vmatprep.subr.mxu0 0.0
        %5455 = vmatpush1.msra.mxu0 0.0
        %5456 = vmatprep.subr.mxu0 0.0
        %5457 = vmatpush1.msra.mxu0 0.0
        %5458 = vmatprep.subr.mxu0 0.0
        %5459 = vmatpush1.msra.mxu0 0.0
        %5460 = vmatprep.subr.mxu0 0.0
        %5461 = vmatpush1.msra.mxu0 0.0
        %5462 = vmatprep.subr.mxu0 0.0
        %5463 = vmatpush1.msra.mxu0 0.0
        %5464 = vmatprep.subr.mxu0 0.0
        %5465 = vmatpush1.msra.mxu0 0.0
        %5466 = vmatprep.subr.mxu0 0.0
        %5467 = vmatpush1.msra.mxu0 0.0
        %5468 = vmatprep.subr.mxu0 0.0
        %5469 = vmatpush1.msra.mxu0 0.0
        %5470 = vmatprep.subr.mxu0 0.0
        %5471 = vmatpush1.msra.mxu0 0.0
        %5472 = vmatprep.subr.mxu0 0.0
        %5473 = vmatpush1.msra.mxu0 0.0
        %5474 = vmatprep.subr.mxu0 0.0
        %5475 = vmatpush1.msra.mxu0 0.0
        %5476 = vmatprep.subr.mxu0 0.0
        %5477 = vmatpush1.msra.mxu0 0.0
        %5478 = vmatprep.subr.mxu0 0.0
        %5479 = vmatpush1.msra.mxu0 0.0
        %5480 = vmatprep.subr.mxu0 0.0
        %5481 = vmatpush1.msra.mxu0 0.0
        %5482 = vmatprep.subr.mxu0 0.0
        %5483 = vmatpush1.msra.mxu0 0.0
        %5484 = vmatprep.subr.mxu0 0.0
        %5485 = vmatpush1.msra.mxu0 0.0
        %5486 = vmatprep.subr.mxu0 0.0
        %5487 = vmatpush1.msra.mxu0 0.0
        %5488 = vmatprep.subr.mxu0 0.0
        %5489 = vmatpush1.msra.mxu0 0.0
        %5490 = vmatprep.subr.mxu0 0.0
        %5491 = vmatpush1.msra.mxu0 0.0
        %5492 = vmatprep.subr.mxu0 0.0
        %5493 = vmatpush1.msra.mxu0 0.0
        %5494 = vmatprep.subr.mxu0 0.0
        %5495 = vmatpush1.msra.mxu0 0.0
        %5496 = vmatprep.subr.mxu0 0.0
        %5497 = vmatpush1.msra.mxu0 0.0
        %5498 = vmatprep.subr.mxu0 0.0
        %5499 = vmatpush1.msra.mxu0 0.0
        %5500 = vmatprep.subr.mxu0 0.0
        %5501 = vmatpush1.msra.mxu0 0.0
        %5502 = vmatprep.subr.mxu0 0.0
        %5503 = vmatpush1.msra.mxu0 0.0
        %5504 = vmatprep.subr.mxu0 0.0
        %5505 = vmatpush1.msra.mxu0 0.0
        %5506 = vmatprep.subr.mxu0 0.0
        %5507 = vmatpush1.msra.mxu0 0.0
        %5508 = vmatprep.mubr.f32.mxu0 0.0
        %5509 = vmatmul.mubr.f32.gmra.mrb[0].mxu0 %v5440
        %v5510 = vpop.f32.mrb[0].mxu0
        %v5511 = vadd.f32 0.0, %v5510
        %v5512 = vpop.f32.mrb[0].mxu0
        %5513 = vdwg.mxu0
        %5514 = vrot.lane.b32.xlu0 %v4922, 40
        %v5515 = vpop.permute.xlu0 %5514
        %v5517 = vsel %vm5283, %v5280, 0
        %v5519 = vsel %vm5287, %v5515, 0
        %5521 = vmatprep.subr.mxu0 0.0
        %5522 = vmatpush1.msra.mxu0 %v5519
        %5523 = vmatprep.subr.mxu0 0.0
        %5524 = vmatpush1.msra.mxu0 0.0
        %5525 = vmatprep.subr.mxu0 0.0
        %5526 = vmatpush1.msra.mxu0 0.0
        %5527 = vmatprep.subr.mxu0 0.0
        %5528 = vmatpush1.msra.mxu0 0.0
        %5529 = vmatprep.subr.mxu0 0.0
        %5530 = vmatpush1.msra.mxu0 0.0
        %5531 = vmatprep.subr.mxu0 0.0
        %5532 = vmatpush1.msra.mxu0 0.0
        %5533 = vmatprep.subr.mxu0 0.0
        %5534 = vmatpush1.msra.mxu0 0.0
        %5535 = vmatprep.subr.mxu0 0.0
        %5536 = vmatpush1.msra.mxu0 0.0
        %5537 = vmatprep.subr.mxu0 0.0
        %5538 = vmatpush1.msra.mxu0 0.0
        %5539 = vmatprep.subr.mxu0 0.0
        %5540 = vmatpush1.msra.mxu0 0.0
        %5541 = vmatprep.subr.mxu0 0.0
        %5542 = vmatpush1.msra.mxu0 0.0
        %5543 = vmatprep.subr.mxu0 0.0
        %5544 = vmatpush1.msra.mxu0 0.0
        %5545 = vmatprep.subr.mxu0 0.0
        %5546 = vmatpush1.msra.mxu0 0.0
        %5547 = vmatprep.subr.mxu0 0.0
        %5548 = vmatpush1.msra.mxu0 0.0
        %5549 = vmatprep.subr.mxu0 0.0
        %5550 = vmatpush1.msra.mxu0 0.0
        %5551 = vmatprep.subr.mxu0 0.0
        %5552 = vmatpush1.msra.mxu0 0.0
        %5553 = vmatprep.subr.mxu0 0.0
        %5554 = vmatpush1.msra.mxu0 0.0
        %5555 = vmatprep.subr.mxu0 0.0
        %5556 = vmatpush1.msra.mxu0 0.0
        %5557 = vmatprep.subr.mxu0 0.0
        %5558 = vmatpush1.msra.mxu0 0.0
        %5559 = vmatprep.subr.mxu0 0.0
        %5560 = vmatpush1.msra.mxu0 0.0
        %5561 = vmatprep.subr.mxu0 0.0
        %5562 = vmatpush1.msra.mxu0 0.0
        %5563 = vmatprep.subr.mxu0 0.0
        %5564 = vmatpush1.msra.mxu0 0.0
        %5565 = vmatprep.subr.mxu0 0.0
        %5566 = vmatpush1.msra.mxu0 0.0
        %5567 = vmatprep.subr.mxu0 0.0
        %5568 = vmatpush1.msra.mxu0 0.0
        %5569 = vmatprep.subr.mxu0 0.0
        %5570 = vmatpush1.msra.mxu0 0.0
        %5571 = vmatprep.subr.mxu0 0.0
        %5572 = vmatpush1.msra.mxu0 0.0
        %5573 = vmatprep.subr.mxu0 0.0
        %5574 = vmatpush1.msra.mxu0 0.0
        %5575 = vmatprep.subr.mxu0 0.0
        %5576 = vmatpush1.msra.mxu0 0.0
        %5577 = vmatprep.subr.mxu0 0.0
        %5578 = vmatpush1.msra.mxu0 0.0
        %5579 = vmatprep.subr.mxu0 0.0
        %5580 = vmatpush1.msra.mxu0 0.0
        %5581 = vmatprep.subr.mxu0 0.0
        %5582 = vmatpush1.msra.mxu0 0.0
        %5583 = vmatprep.subr.mxu0 0.0
        %5584 = vmatpush1.msra.mxu0 0.0
        %5585 = vmatprep.mubr.f32.mxu0 0.0
        %5586 = vmatmul.mubr.f32.gmra.mrb[0].mxu0 %v5517
        %v5587 = vpop.f32.mrb[0].mxu0
        %v5588 = vadd.f32 0.0, %v5587
        %v5589 = vpop.f32.mrb[0].mxu0
        %5590 = vdwg.mxu0
        %5592 = vrot.lane.b32.xlu0 %v5434, 8
        %v5593 = vpop.permute.xlu0 %5592
        %5596 = vrot.lane.b32.xlu0 %v5511, 16
        %v5597 = vpop.permute.xlu0 %5596
        %5600 = vrot.lane.b32.xlu0 %v5588, 24
        %v5601 = vpop.permute.xlu0 %5600
        %v5603 = vsel %vm1205, %v5357, %v5593
        %v5604 = vsel %vm2184, %v5603, %v5597
        %v5605 = vsel %vm2186, %v5604, %v5601
        %s5606 = scalar_lea.vmem [#allocation6], 64
        %v5607 = vld [vmem:[%s5606] sm:$0xff]
        %v5608 = vld [vmem:[%s5606 + $0x8] sm:$0xff]
        %v5609 = vld [vmem:[%s5606 + $0x10] sm:$0xff]
        %v5610 = vld [vmem:[%s5606 + $0x18] sm:$0xff]
        %s5611 = scalar_lea.vmem [#allocation8], 2
        %v5612 = vld [vmem:[%s5611] sm:$0x1]
        %v5614 = vlaneseq
        %v5615 = vshrl.u32 %v5614, 7
        %v5616 = vsub.s32 0, %v5615
        %v5617 = vrot.slane %v5612, %v5616
        %v5620 = vsel %vm1438, %v5605, 0
        %5622 = vmatprep.subr.mxu0 0.0
        %5623 = vmatpush1.msra.mxu0 %v5607
        %5624 = vmatprep.subr.mxu0 0.0
        %5625 = vmatpush1.msra.mxu0 %v5608
        %5626 = vmatprep.subr.mxu0 0.0
        %5627 = vmatpush1.msra.mxu0 %v5609
        %5628 = vmatprep.subr.mxu0 0.0
        %5629 = vmatpush1.msra.mxu0 %v5610
        %5630 = vmatprep.subr.mxu0 0.0
        %5631 = vmatpush1.msra.mxu0 0.0
        %5632 = vmatprep.subr.mxu0 0.0
        %5633 = vmatpush1.msra.mxu0 0.0
        %5634 = vmatprep.subr.mxu0 0.0
        %5635 = vmatpush1.msra.mxu0 0.0
        %5636 = vmatprep.subr.mxu0 0.0
        %5637 = vmatpush1.msra.mxu0 0.0
        %5638 = vmatprep.subr.mxu0 0.0
        %5639 = vmatpush1.msra.mxu0 0.0
        %5640 = vmatprep.subr.mxu0 0.0
        %5641 = vmatpush1.msra.mxu0 0.0
        %5642 = vmatprep.subr.mxu0 0.0
        %5643 = vmatpush1.msra.mxu0 0.0
        %5644 = vmatprep.subr.mxu0 0.0
        %5645 = vmatpush1.msra.mxu0 0.0
        %5646 = vmatprep.subr.mxu0 0.0
        %5647 = vmatpush1.msra.mxu0 0.0
        %5648 = vmatprep.subr.mxu0 0.0
        %5649 = vmatpush1.msra.mxu0 0.0
        %5650 = vmatprep.subr.mxu0 0.0
        %5651 = vmatpush1.msra.mxu0 0.0
        %5652 = vmatprep.subr.mxu0 0.0
        %5653 = vmatpush1.msra.mxu0 0.0
        %5654 = vmatprep.subr.mxu0 0.0
        %5655 = vmatpush1.msra.mxu0 0.0
        %5656 = vmatprep.subr.mxu0 0.0
        %5657 = vmatpush1.msra.mxu0 0.0
        %5658 = vmatprep.subr.mxu0 0.0
        %5659 = vmatpush1.msra.mxu0 0.0
        %5660 = vmatprep.subr.mxu0 0.0
        %5661 = vmatpush1.msra.mxu0 0.0
        %5662 = vmatprep.subr.mxu0 0.0
        %5663 = vmatpush1.msra.mxu0 0.0
        %5664 = vmatprep.subr.mxu0 0.0
        %5665 = vmatpush1.msra.mxu0 0.0
        %5666 = vmatprep.subr.mxu0 0.0
        %5667 = vmatpush1.msra.mxu0 0.0
        %5668 = vmatprep.subr.mxu0 0.0
        %5669 = vmatpush1.msra.mxu0 0.0
        %5670 = vmatprep.subr.mxu0 0.0
        %5671 = vmatpush1.msra.mxu0 0.0
        %5672 = vmatprep.subr.mxu0 0.0
        %5673 = vmatpush1.msra.mxu0 0.0
        %5674 = vmatprep.subr.mxu0 0.0
        %5675 = vmatpush1.msra.mxu0 0.0
        %5676 = vmatprep.subr.mxu0 0.0
        %5677 = vmatpush1.msra.mxu0 0.0
        %5678 = vmatprep.subr.mxu0 0.0
        %5679 = vmatpush1.msra.mxu0 0.0
        %5680 = vmatprep.subr.mxu0 0.0
        %5681 = vmatpush1.msra.mxu0 0.0
        %5682 = vmatprep.subr.mxu0 0.0
        %5683 = vmatpush1.msra.mxu0 0.0
        %5684 = vmatprep.subr.mxu0 0.0
        %5685 = vmatpush1.msra.mxu0 0.0
        %5686 = vmatprep.mubr.f32.mxu0 0.0
        %5687 = vmatmul.mubr.f32.gmra.mrb[0].mxu0 %v5620
        %v5688 = vpop.f32.mrb[0].mxu0
        %v5689 = vadd.f32 %v5617, %v5688
        %v5690 = vpop.f32.mrb[0].mxu0
        %5691 = vdwg.mxu0
        %v5692 = vadd.f32 %v4838, %v5689
        %s5693 = scalar_lea.vmem [#allocation9], 2
        %v5694 = vld [vmem:[%s5693] sm:$0x1]
        %s5695 = scalar_lea.vmem [#allocation11], 2
        %v5696 = vld [vmem:[%s5695] sm:$0x1]
        %vm5697 = vcmask 254976
        %v5698 = vsel %vm5697, %v5692, 0.0
        %5699 = vadd.xlane.f32.xlu0 %v5698
        %v5700 = vpop.xlane.xlu0 %5699
        %v5701 = vmul.f32 %v5700, %v2278
        %v5702 = vsub.f32 %v5692, %v5701
        %v5703 = vmul.f32 %v5702, %v5702
        %v5704 = vsel %vm5697, %v5703, 0.0
        %5705 = vadd.xlane.f32.xlu0 %v5704
        %v5706 = vpop.xlane.xlu0 %5705
        %v5707 = vmul.f32 %v5706, %v2278
        %v5708 = vadd.f32 %v5707, 1e-05
        %v5709 = vrsqrt.pop %v5708
        %v5710 = vmul.f32 %v5702, %v5709
        %v5712 = vlaneseq
        %v5713 = vshrl.u32 %v5712, 7
        %v5714 = vsub.s32 0, %v5713
        %v5715 = vrot.slane %v5694, %v5714
        %v5717 = vmul.f32 %v5710, %v5715
        %v5719 = vlaneseq
        %v5720 = vshrl.u32 %v5719, 7
        %v5721 = vsub.s32 0, %v5720
        %v5722 = vrot.slane %v5696, %v5721
        %v5724 = vadd.f32 %v5717, %v5722
        %s5725 = scalar_lea.vmem [#allocation12], 64
        %v5726 = vld [vmem:[%s5725] sm:$0xff]
        %v5727 = vld [vmem:[%s5725 + $0x8] sm:$0xff]
        %v5728 = vld [vmem:[%s5725 + $0x10] sm:$0xff]
        %v5729 = vld [vmem:[%s5725 + $0x18] sm:$0xff]
        %s5730 = scalar_lea.vmem [#allocation14], 2
        %v5731 = vld [vmem:[%s5730] sm:$0x1]
        %v5733 = vlaneseq
        %v5734 = vshrl.u32 %v5733, 7
        %v5735 = vsub.s32 0, %v5734
        %v5736 = vrot.slane %v5731, %v5735
        %v5739 = vsel %vm1438, %v5724, 0
        %5741 = vmatprep.subr.mxu0 0.0
        %5742 = vmatpush1.msra.mxu0 %v5726
        %5743 = vmatprep.subr.mxu0 0.0
        %5744 = vmatpush1.msra.mxu0 %v5727
        %5745 = vmatprep.subr.mxu0 0.0
        %5746 = vmatpush1.msra.mxu0 %v5728
        %5747 = vmatprep.subr.mxu0 0.0
        %5748 = vmatpush1.msra.mxu0 %v5729
        %5749 = vmatprep.subr.mxu0 0.0
        %5750 = vmatpush1.msra.mxu0 0.0
        %5751 = vmatprep.subr.mxu0 0.0
        %5752 = vmatpush1.msra.mxu0 0.0
        %5753 = vmatprep.subr.mxu0 0.0
        %5754 = vmatpush1.msra.mxu0 0.0
        %5755 = vmatprep.subr.mxu0 0.0
        %5756 = vmatpush1.msra.mxu0 0.0
        %5757 = vmatprep.subr.mxu0 0.0
        %5758 = vmatpush1.msra.mxu0 0.0
        %5759 = vmatprep.subr.mxu0 0.0
        %5760 = vmatpush1.msra.mxu0 0.0
        %5761 = vmatprep.subr.mxu0 0.0
        %5762 = vmatpush1.msra.mxu0 0.0
        %5763 = vmatprep.subr.mxu0 0.0
        %5764 = vmatpush1.msra.mxu0 0.0
        %5765 = vmatprep.subr.mxu0 0.0
        %5766 = vmatpush1.msra.mxu0 0.0
        %5767 = vmatprep.subr.mxu0 0.0
        %5768 = vmatpush1.msra.mxu0 0.0
        %5769 = vmatprep.subr.mxu0 0.0
        %5770 = vmatpush1.msra.mxu0 0.0
        %5771 = vmatprep.subr.mxu0 0.0
        %5772 = vmatpush1.msra.mxu0 0.0
        %5773 = vmatprep.subr.mxu0 0.0
        %5774 = vmatpush1.msra.mxu0 0.0
        %5775 = vmatprep.subr.mxu0 0.0
        %5776 = vmatpush1.msra.mxu0 0.0
        %5777 = vmatprep.subr.mxu0 0.0
        %5778 = vmatpush1.msra.mxu0 0.0
        %5779 = vmatprep.subr.mxu0 0.0
        %5780 = vmatpush1.msra.mxu0 0.0
        %5781 = vmatprep.subr.mxu0 0.0
        %5782 = vmatpush1.msra.mxu0 0.0
        %5783 = vmatprep.subr.mxu0 0.0
        %5784 = vmatpush1.msra.mxu0 0.0
        %5785 = vmatprep.subr.mxu0 0.0
        %5786 = vmatpush1.msra.mxu0 0.0
        %5787 = vmatprep.subr.mxu0 0.0
        %5788 = vmatpush1.msra.mxu0 0.0
        %5789 = vmatprep.subr.mxu0 0.0
        %5790 = vmatpush1.msra.mxu0 0.0
        %5791 = vmatprep.subr.mxu0 0.0
        %5792 = vmatpush1.msra.mxu0 0.0
        %5793 = vmatprep.subr.mxu0 0.0
        %5794 = vmatpush1.msra.mxu0 0.0
        %5795 = vmatprep.subr.mxu0 0.0
        %5796 = vmatpush1.msra.mxu0 0.0
        %5797 = vmatprep.subr.mxu0 0.0
        %5798 = vmatpush1.msra.mxu0 0.0
        %5799 = vmatprep.subr.mxu0 0.0
        %5800 = vmatpush1.msra.mxu0 0.0
        %5801 = vmatprep.subr.mxu0 0.0
        %5802 = vmatpush1.msra.mxu0 0.0
        %5803 = vmatprep.subr.mxu0 0.0
        %5804 = vmatpush1.msra.mxu0 0.0
        %5805 = vmatprep.mubr.f32.mxu0 0.0
        %5806 = vmatmul.mubr.f32.gmra.mrb[0].mxu0 %v5739
        %v5807 = vpop.f32.mrb[0].mxu0
        %v5808 = vadd.f32 %v5736, %v5807
        %v5809 = vpop.f32.mrb[0].mxu0
        %5810 = vdwg.mxu0
        %v5811 = vmul.f32 %v5808, 0.5
        %v5812 = vmul.f32 %v5808, 0.044715
        %v5813 = vmul.f32 %v5812, %v5808
        %v5814 = vmul.f32 %v5813, %v5808
        %v5815 = vadd.f32 %v5808, %v5814
        %v5816 = vmul.f32 %v5815, 0.7978846
        %v5817 = vtanh.pop %v5816
        %v5818 = vadd.f32 %v5817, 1.0
        %v5819 = vmul.f32 %v5811, %v5818
        %s5820 = scalar_lea.vmem [#allocation15], 64
        %v5821 = vld [vmem:[%s5820] sm:$0xff]
        %v5822 = vld [vmem:[%s5820 + $0x8] sm:$0xff]
        %v5823 = vld [vmem:[%s5820 + $0x10] sm:$0xff]
        %v5824 = vld [vmem:[%s5820 + $0x18] sm:$0xff]
        %s5825 = scalar_lea.vmem [#allocation17], 2
        %v5826 = vld [vmem:[%s5825] sm:$0x1]
        %v5828 = vlaneseq
        %v5829 = vshrl.u32 %v5828, 7
        %v5830 = vsub.s32 0, %v5829
        %v5831 = vrot.slane %v5826, %v5830
        %v5834 = vsel %vm1438, %v5819, 0
        %5836 = vmatprep.subr.mxu0 0.0
        %5837 = vmatpush1.msra.mxu0 %v5821
        %5838 = vmatprep.subr.mxu0 0.0
        %5839 = vmatpush1.msra.mxu0 %v5822
        %5840 = vmatprep.subr.mxu0 0.0
        %5841 = vmatpush1.msra.mxu0 %v5823
        %5842 = vmatprep.subr.mxu0 0.0
        %5843 = vmatpush1.msra.mxu0 %v5824
        %5844 = vmatprep.subr.mxu0 0.0
        %5845 = vmatpush1.msra.mxu0 0.0
        %5846 = vmatprep.subr.mxu0 0.0
        %5847 = vmatpush1.msra.mxu0 0.0
        %5848 = vmatprep.subr.mxu0 0.0
        %5849 = vmatpush1.msra.mxu0 0.0
        %5850 = vmatprep.subr.mxu0 0.0
        %5851 = vmatpush1.msra.mxu0 0.0
        %5852 = vmatprep.subr.mxu0 0.0
        %5853 = vmatpush1.msra.mxu0 0.0
        %5854 = vmatprep.subr.mxu0 0.0
        %5855 = vmatpush1.msra.mxu0 0.0
        %5856 = vmatprep.subr.mxu0 0.0
        %5857 = vmatpush1.msra.mxu0 0.0
        %5858 = vmatprep.subr.mxu0 0.0
        %5859 = vmatpush1.msra.mxu0 0.0
        %5860 = vmatprep.subr.mxu0 0.0
        %5861 = vmatpush1.msra.mxu0 0.0
        %5862 = vmatprep.subr.mxu0 0.0
        %5863 = vmatpush1.msra.mxu0 0.0
        %5864 = vmatprep.subr.mxu0 0.0
        %5865 = vmatpush1.msra.mxu0 0.0
        %5866 = vmatprep.subr.mxu0 0.0
        %5867 = vmatpush1.msra.mxu0 0.0
        %5868 = vmatprep.subr.mxu0 0.0
        %5869 = vmatpush1.msra.mxu0 0.0
        %5870 = vmatprep.subr.mxu0 0.0
        %5871 = vmatpush1.msra.mxu0 0.0
        %5872 = vmatprep.subr.mxu0 0.0
        %5873 = vmatpush1.msra.mxu0 0.0
        %5874 = vmatprep.subr.mxu0 0.0
        %5875 = vmatpush1.msra.mxu0 0.0
        %5876 = vmatprep.subr.mxu0 0.0
        %5877 = vmatpush1.msra.mxu0 0.0
        %5878 = vmatprep.subr.mxu0 0.0
        %5879 = vmatpush1.msra.mxu0 0.0
        %5880 = vmatprep.subr.mxu0 0.0
        %5881 = vmatpush1.msra.mxu0 0.0
        %5882 = vmatprep.subr.mxu0 0.0
        %5883 = vmatpush1.msra.mxu0 0.0
        %5884 = vmatprep.subr.mxu0 0.0
        %5885 = vmatpush1.msra.mxu0 0.0
        %5886 = vmatprep.subr.mxu0 0.0
        %5887 = vmatpush1.msra.mxu0 0.0
        %5888 = vmatprep.subr.mxu0 0.0
        %5889 = vmatpush1.msra.mxu0 0.0
        %5890 = vmatprep.subr.mxu0 0.0
        %5891 = vmatpush1.msra.mxu0 0.0
        %5892 = vmatprep.subr.mxu0 0.0
        %5893 = vmatpush1.msra.mxu0 0.0
        %5894 = vmatprep.subr.mxu0 0.0
        %5895 = vmatpush1.msra.mxu0 0.0
        %5896 = vmatprep.subr.mxu0 0.0
        %5897 = vmatpush1.msra.mxu0 0.0
        %5898 = vmatprep.subr.mxu0 0.0
        %5899 = vmatpush1.msra.mxu0 0.0
        %5900 = vmatprep.mubr.f32.mxu0 0.0
        %5901 = vmatmul.mubr.f32.gmra.mrb[0].mxu0 %v5834
        %v5902 = vpop.f32.mrb[0].mxu0
        %v5903 = vadd.f32 %v5831, %v5902
        %v5904 = vpop.f32.mrb[0].mxu0
        %5905 = vdwg.mxu0
        %v5906 = vadd.f32 %v5724, %v5903
        %s5907 = scalar_lea.vmem [#allocation18], 2
        %v5908 = vld [vmem:[%s5907] sm:$0x1]
        %s5909 = scalar_lea.vmem [#allocation20], 2
        %v5910 = vld [vmem:[%s5909] sm:$0x1]
        %v5911 = vsel %vm5697, %v5906, 0.0
        %5912 = vadd.xlane.f32.xlu0 %v5911
        %v5913 = vpop.xlane.xlu0 %5912
        %v5914 = vmul.f32 %v5913, %v2278
        %v5915 = vsub.f32 %v5906, %v5914
        %v5916 = vmul.f32 %v5915, %v5915
        %v5917 = vsel %vm5697, %v5916, 0.0
        %5918 = vadd.xlane.f32.xlu0 %v5917
        %v5919 = vpop.xlane.xlu0 %5918
        %v5920 = vmul.f32 %v5919, %v2278
        %v5921 = vadd.f32 %v5920, 1e-05
        %v5922 = vrsqrt.pop %v5921
        %v5923 = vmul.f32 %v5915, %v5922
        %v5925 = vlaneseq
        %v5926 = vshrl.u32 %v5925, 7
        %v5927 = vsub.s32 0, %v5926
        %v5928 = vrot.slane %v5908, %v5927
        %v5930 = vmul.f32 %v5923, %v5928
        %v5932 = vlaneseq
        %v5933 = vshrl.u32 %v5932, 7
        %v5934 = vsub.s32 0, %v5933
        %v5935 = vrot.slane %v5910, %v5934
        %v5937 = vadd.f32 %v5930, %v5935
        %v5938 = vld [vmem:[#allocation24] sm:$0x1]
        %v5939 = vld [vmem:[#allocation26] sm:$0x1]
        %v5940 = vsel %vm5697, %v5937, 0.0
        %5941 = vadd.xlane.f32.xlu0 %v5940
        %v5942 = vpop.xlane.xlu0 %5941
        %v5943 = vmul.f32 %v5942, %v2278
        %v5944 = vsub.f32 %v5937, %v5943
        %v5945 = vmul.f32 %v5944, %v5944
        %v5946 = vsel %vm5697, %v5945, 0.0
        %5947 = vadd.xlane.f32.xlu0 %v5946
        %v5948 = vpop.xlane.xlu0 %5947
        %v5949 = vmul.f32 %v5948, %v2278
        %v5950 = vadd.f32 %v5949, 1e-05
        %v5951 = vrsqrt.pop %v5950
        %v5952 = vmul.f32 %v5944, %v5951
        %v5954 = vlaneseq
        %v5955 = vshrl.u32 %v5954, 7
        %v5956 = vsub.s32 0, %v5955
        %v5957 = vrot.slane %v5938, %v5956
        %v5959 = vmul.f32 %v5952, %v5957
        %v5961 = vlaneseq
        %v5962 = vshrl.u32 %v5961, 7
        %v5963 = vsub.s32 0, %v5962
        %v5964 = vrot.slane %v5939, %v5963
        %v5966 = vadd.f32 %v5959, %v5964
        %v5967 = vld [vmem:[#allocation27] sm:$0x1]
        %v5969 = vlaneseq
        %v5970 = vshrl.u32 %v5969, 7
        %v5971 = vsub.s32 0, %v5970
        %v5972 = vrot.slane %v5967, %v5971
        %v5974 = vmul.f32 %v5966, %v5972
        %v5975 = vsel %vm5697, %v5974, 0.0
        %5976 = vadd.xlane.f32.xlu0 %v5975
        %v5977 = vpop.xlane.xlu0 %5976
        %v5978 = vld [vmem:[#allocation2] sm:$0x1]
        %s5979 = vtos %v5978
        %v5980 = vstv %s5979
        %v5981 = vadd.f32 %v5977, %v5980
        %v5983 = vlaneseq
        %v5984 = vand.u32 %v5983, 127
        %v5985 = vlaneseq
        %v5986 = vshrl.u32 %v5985, 7
        %v5987 = vsub.s32 %v5984, %v5986
        %v5988 = vrot.slane %v5981, %v5987
        %vm5990 = vcmask 8192
        %5991 = vst.msk [vmem:[%s1039] sm:$0x1] %vm5990, %v5988
        %s5992 = sand.u32 %s590, 1
        %s5993 = scalar_lea.sflag [#allocation5], %s5992
        %s5994 = sand.u32 %s590, 1
        %s5995 = scalar_lea.vmem [#allocation35], %s5994
        // Predicated region
        $region201: #{informer_forward.1} parent=119 // pred_check
          %p5996 = pneg %p600
        $region202: #{informer_forward.1} parent=119 // pred_check_branch
          %5998 = sbr.rel (%p5996) target = $region204
        $region203: #{informer_forward.1} parent=119 // pred_region
          %s6000 = ssub.s32 16, 16
          %6001 = vsyncadd %s5993, %s6000
          %s6002 = smul.addr %s52, 16
          %s6003 = scalar_lea.hbm %s25, %s6002
          %s6005 = sshll.u32 %s5995, 4
          %s6006 = int_to_ptr.vmem [resolvable:$true] %s6005
          %6008 = dma.vmem_to_hbm [thread:$0]  %s6006, 16, %s6003, %s5993
        $region204: #{informer_forward.1} parent=119 // pred_fallthru
          _
      $region120: #{informer_forward.1} parent=5 // pred_fallthru
        _
      %p6009 = scmp.le.s32.totalorder 2, %s47
      // Predicated region
      $region205: #{informer_forward.1} parent=5 // pred_check
        %p6010 = pneg %p6009
      $region206: #{informer_forward.1} parent=5 // pred_check_branch
        %6012 = sbr.rel (%p6010) target = $region208
      $region207: #{informer_forward.1} parent=5 // pred_region
        %s6013 = ssub.s32 %s47, 2
        // Predicated region
        $region209: #{informer_forward.1} parent=207 // pred_check
          %p6014 = pneg %p606
        $region210: #{informer_forward.1} parent=207 // pred_check_branch
          %6016 = sbr.rel (%p6014) target = $region212
        $region211: #{informer_forward.1} parent=207 // pred_region
          %s6017 = sand.u32 %s591, 1
          %s6018 = scalar_lea.sflag [#allocation5], %s6017
          %s6019 = sand.u32 %s591, 1
          %s6020 = scalar_lea.vmem [#allocation35], %s6019
          %6021 = dma.done %s6018, 16
        $region212: #{informer_forward.1} parent=207 // pred_fallthru
          _
      $region208: #{informer_forward.1} parent=5 // pred_fallthru
        _
    $region6: #{informer_forward.1} parent=1 // loop_footer
      %s51 = sadd.s32 1, %s47
    $region7: #{informer_forward.1} parent=1 // loop_footer_branch
      %46 = sbr.rel target = $region3
    $region8: #{informer_forward.1} parent=1 // loop_exit
      _
    %6022 = vsyncpa [#allocation4], 1
    %s6023 = scalar_lea.sflag [#allocation4], 1
    %6024 = vsyncpa %s6023, 1
    %6025 = vsyncpa [#allocation7], 1
    %6026 = vsyncpa [#allocation10], 1
    %6027 = vsyncpa [#allocation13], 1
    %6028 = vsyncpa [#allocation16], 1
    %6029 = vsyncpa [#allocation19], 1
    %6030 = vsyncpa [#allocation22], 1
    %6031 = vsyncpa [#allocation25], 1
    %6032 = vsyncpa [#allocation28], 1
    %6033 = vsyncpa [#allocation31], 1
    %6034 = vsyncpa [#allocation34], 1
    %6035 = vsyncpa [#allocation5], 1
    %s6036 = scalar_lea.sflag [#allocation5], 1
    %6037 = vsyncpa %s6036, 1

</llo_original>
